<compile_context>
chip_gen: v7x
topology: tpu7x:2x2x1
jax: 0.10.0
libtpu: 0.0.40
codegen_flags: <defaults>
</compile_context>

<pallas_src>
import functools

import jax
import jax.numpy as jnp
from jax import lax
from jax.experimental import pallas as pl
from jax.experimental.pallas import tpu as pltpu


# ------------------------------------------------------------------
# small helpers
# ------------------------------------------------------------------

def _row_tile(m):
    """Largest row tile (multiple of 8) dividing m, else m (full-dim block)."""
    for t in (512, 256, 128, 64, 32, 16, 8):
        if m % t == 0:
            return t
    return m


def _col_tile(n):
    """Largest lane tile (multiple of 128) dividing n, else n (full-dim block)."""
    for t in (512, 256, 128):
        if n % t == 0:
            return t
    return n


def _ln(x, g, b, eps=1e-5):
    """f32 layernorm over last dim; g/b are (1, D)-shaped values."""
    mu = jnp.mean(x, axis=-1, keepdims=True)
    xc = x - mu
    var = jnp.mean(xc * xc, axis=-1, keepdims=True)
    return (xc * lax.rsqrt(var + eps)) * g + b


def _bf16(x):
    return x.astype(jnp.bfloat16)


# ------------------------------------------------------------------
# Pallas kernels
# ------------------------------------------------------------------

def _embed_kernel(x_ref, g1_ref, b1_ref, w_ref, bw_ref, g2_ref, b2_ref, o_ref):
    """LN(patch_dim) -> Linear -> LN(embed_dim), fused."""
    x = x_ref[...].astype(jnp.float32)
    xn = _ln(x, g1_ref[...], b1_ref[...])
    y = jnp.dot(_bf16(xn), _bf16(w_ref[...]),
                preferred_element_type=jnp.float32) + bw_ref[...]
    o_ref[...] = _ln(y, g2_ref[...], b2_ref[...]).astype(o_ref.dtype)


def _layer_body(x, kv_raw,
                g_a, b_a, wq, bq, wk, bk, wv, bv, wo, bo,
                g_f, b_f, w1, b1, w2, b2, g_o, b_o,
                *, heads, dim_head, scale, cross, final_ln):
    """Fused pre-norm transformer layer body (values, not refs).

    x      : (S, D) f32
    kv_raw : (T, D) f32 raw context, or None for self-attention.
    Returns (S, D) f32.
    """
    # --- attention sub-block ------------------------------------------------
    xn = _ln(x, g_a, b_a)
    kv = kv_raw if cross else xn

    q = jnp.dot(_bf16(xn), _bf16(wq), preferred_element_type=jnp.float32) + bq
    k = jnp.dot(_bf16(kv), _bf16(wk), preferred_element_type=jnp.float32) + bk
    v = jnp.dot(_bf16(kv), _bf16(wv), preferred_element_type=jnp.float32) + bv

    outs = []
    for h in range(heads):                               # static unroll (heads small)
        sl = slice(h * dim_head, (h + 1) * dim_head)
        qh, kh, vh = _bf16(q[:, sl]), _bf16(k[:, sl]), _bf16(v[:, sl])
        s = lax.dot_general(qh, kh, (((1,), (1,)), ((), ())),
                            preferred_element_type=jnp.float32) * scale
        s = s - jnp.max(s, axis=-1, keepdims=True)
        p = jnp.exp(s)
        p = p * pl.reciprocal(jnp.sum(p, axis=-1, keepdims=True), approx=True)
        outs.append(jnp.dot(_bf16(p), vh, preferred_element_type=jnp.float32))
    o = jnp.concatenate(outs, axis=-1)                   # (S, heads*dim_head)

    y = jnp.dot(_bf16(o), _bf16(wo), preferred_element_type=jnp.float32) + bo
    x = x + y

    # --- MLP sub-block ------------------------------------------------------
    xn = _ln(x, g_f, b_f)
    hdn = jnp.dot(_bf16(xn), _bf16(w1), preferred_element_type=jnp.float32) + b1
    hdn = jax.nn.gelu(hdn, approximate=True)
    y = jnp.dot(_bf16(hdn), _bf16(w2), preferred_element_type=jnp.float32) + b2
    x = x + y

    if final_ln:
        x = _ln(x, g_o, b_o)
    return x


def _layer_kernel_self(x_ref,
                       g_a_ref, b_a_ref, wq_ref, bq_ref, wk_ref, bk_ref,
                       wv_ref, bv_ref, wo_ref, bo_ref,
                       g_f_ref, b_f_ref, w1_ref, b1_ref, w2_ref, b2_ref,
                       g_o_ref, b_o_ref, o_ref,
                       *, heads, dim_head, scale, final_ln):
    x = x_ref[0].astype(jnp.float32)
    out = _layer_body(x, None,
                      g_a_ref[...], b_a_ref[...], wq_ref[...], bq_ref[...],
                      wk_ref[...], bk_ref[...], wv_ref[...], bv_ref[...],
                      wo_ref[...], bo_ref[...],
                      g_f_ref[...], b_f_ref[...], w1_ref[...], b1_ref[...],
                      w2_ref[...], b2_ref[...], g_o_ref[...], b_o_ref[...],
                      heads=heads, dim_head=dim_head, scale=scale,
                      cross=False, final_ln=final_ln)
    o_ref[0] = out.astype(o_ref.dtype)


def _layer_kernel_cross(x_ref, ctx_ref,
                        g_a_ref, b_a_ref, wq_ref, bq_ref, wk_ref, bk_ref,
                        wv_ref, bv_ref, wo_ref, bo_ref,
                        g_f_ref, b_f_ref, w1_ref, b1_ref, w2_ref, b2_ref,
                        g_o_ref, b_o_ref, o_ref,
                        *, heads, dim_head, scale, final_ln):
    x = x_ref[0].astype(jnp.float32)
    ctx = ctx_ref[0].astype(jnp.float32)
    out = _layer_body(x, ctx,
                      g_a_ref[...], b_a_ref[...], wq_ref[...], bq_ref[...],
                      wk_ref[...], bk_ref[...], wv_ref[...], bv_ref[...],
                      wo_ref[...], bo_ref[...],
                      g_f_ref[...], b_f_ref[...], w1_ref[...], b1_ref[...],
                      w2_ref[...], b2_ref[...], g_o_ref[...], b_o_ref[...],
                      heads=heads, dim_head=dim_head, scale=scale,
                      cross=True, final_ln=final_ln)
    o_ref[0] = out.astype(o_ref.dtype)


def _layernorm_kernel(x_ref, g_ref, b_ref, o_ref, *, eps):
    x = x_ref[...].astype(jnp.float32)
    o_ref[...] = _ln(x, g_ref[...], b_ref[...], eps).astype(o_ref.dtype)


def _ln_linear_kernel(x_ref, g_ref, b_ref, w_ref, bw_ref, o_ref):
    """Fused LN -> Linear (pixel projection)."""
    x = x_ref[...].astype(jnp.float32)
    xn = _ln(x, g_ref[...], b_ref[...])
    y = jnp.dot(_bf16(xn), _bf16(w_ref[...]),
                preferred_element_type=jnp.float32) + bw_ref[...]
    o_ref[...] = y.astype(o_ref.dtype)


def _matmul_kernel(x_ref, w_ref, b_ref, o_ref, acc_ref):
    """K-tiled matmul with f32 VMEM accumulator (init/finalize via pl.when)."""
    k = pl.program_id(2)

    @pl.when(k == 0)
    def _():
        acc_ref[...] = jnp.zeros_like(acc_ref)

    acc_ref[...] += jnp.dot(_bf16(x_ref[...]), _bf16(w_ref[...]),
                            preferred_element_type=jnp.float32)

    @pl.when(k == pl.num_programs(2) - 1)
    def _():
        o_ref[...] = (acc_ref[...] + b_ref[...]).astype(o_ref.dtype)


def _codebook_kernel(z_ref, c_ref, q_ref, idx_ref):
    """L2 nearest-neighbour lookup; row select is a VPU mask-and-reduce."""
    z = z_ref[...].astype(jnp.float32)   # (B, L)
    c = c_ref[...].astype(jnp.float32)   # (E, L)
    B, L = z_ref.shape
    E = c_ref.shape[0]

    zc = lax.dot_general(z, c, (((1,), (1,)), ((), ())),
                         preferred_element_type=jnp.float32)          # (B, E)
    d = (jnp.sum(z * z, axis=-1, keepdims=True)
         - 2.0 * zc
         + jnp.sum(c * c, axis=-1)[None, :])                          # (B, E)

    iota_e = lax.broadcasted_iota(jnp.int32, (B, E), 1)
    dmin = jnp.min(d, axis=-1, keepdims=True)
    idx = jnp.min(jnp.where(d <= dmin, iota_e, E), axis=-1)           # first argmin, (B,)

    # Direct row select (mask + cross-sublane reduce) instead of onehot @ codes.
    row_iota = lax.broadcasted_iota(jnp.int32, (E, L), 0)
    rows = []
    for bi in range(B):                                               # static unroll, B small
        mask = (row_iota == idx[bi]).astype(jnp.float32)
        rows.append(jnp.sum(mask * c, axis=0, keepdims=True))         # (1, L)
    q_ref[...] = jnp.concatenate(rows, axis=0)

    # lane-dense int32 index output
    idx_ref[...] = jnp.broadcast_to(idx[:, None], idx_ref.shape).astype(jnp.int32)


# ------------------------------------------------------------------
# kernel wrappers
# ------------------------------------------------------------------

def embed_patches(x2, p):
    """x2: (M, patch_dim) -> (M, embed_dim); fused LN+Linear+LN."""
    M, PD = x2.shape
    D = p["embed_lin"]["w"].shape[1]
    tm = _row_tile(M)
    return pl.pallas_call(
        _embed_kernel,
        out_shape=jax.ShapeDtypeStruct((M, D), jnp.float32),
        grid=(M // tm,),
        in_specs=[
            pl.BlockSpec((tm, PD), lambda i: (i, 0)),
            pl.BlockSpec((1, PD), lambda i: (0, 0)),
            pl.BlockSpec((1, PD), lambda i: (0, 0)),
            pl.BlockSpec((PD, D), lambda i: (0, 0)),
            pl.BlockSpec((1, D), lambda i: (0, 0)),
            pl.BlockSpec((1, D), lambda i: (0, 0)),
            pl.BlockSpec((1, D), lambda i: (0, 0)),
        ],
        out_specs=pl.BlockSpec((tm, D), lambda i: (i, 0)),
        compiler_params=pltpu.CompilerParams(dimension_semantics=("parallel",)),
    )(x2,
      p["embed_ln1"]["g"].reshape(1, PD), p["embed_ln1"]["b"].reshape(1, PD),
      p["embed_lin"]["w"], p["embed_lin"]["b"].reshape(1, D),
      p["embed_ln2"]["g"].reshape(1, D), p["embed_ln2"]["b"].reshape(1, D))


def transformer_layer(x, lyr, ln_out, heads, dim_head, *, context=None, final_ln=False):
    """One fused pre-norm transformer layer; grid over batch ('parallel').

    x: (B, S, D); context: optional (B, T, D) for cross-attention kv.
    Returns x + attn + mlp (+ final LN if final_ln), shape (B, S, D).
    """
    B, S, D = x.shape
    inner = heads * dim_head
    F = lyr["ff1"]["w"].shape[1]
    scale = dim_head ** -0.5
    cross = context is not None
    T = context.shape[1] if cross else S

    weight_specs = [
        pl.BlockSpec((1, D), lambda i: (0, 0)),        # ln_attn g
        pl.BlockSpec((1, D), lambda i: (0, 0)),        # ln_attn b
        pl.BlockSpec((D, inner), lambda i: (0, 0)),    # wq
        pl.BlockSpec((1, inner), lambda i: (0, 0)),
        pl.BlockSpec((D, inner), lambda i: (0, 0)),    # wk
        pl.BlockSpec((1, inner), lambda i: (0, 0)),
        pl.BlockSpec((D, inner), lambda i: (0, 0)),    # wv
        pl.BlockSpec((1, inner), lambda i: (0, 0)),
        pl.BlockSpec((inner, D), lambda i: (0, 0)),    # wo
        pl.BlockSpec((1, D), lambda i: (0, 0)),
        pl.BlockSpec((1, D), lambda i: (0, 0)),        # ln_ff g
        pl.BlockSpec((1, D), lambda i: (0, 0)),        # ln_ff b
        pl.BlockSpec((D, F), lambda i: (0, 0)),        # ff1
        pl.BlockSpec((1, F), lambda i: (0, 0)),
        pl.BlockSpec((F, D), lambda i: (0, 0)),        # ff2
        pl.BlockSpec((1, D), lambda i: (0, 0)),
        pl.BlockSpec((1, D), lambda i: (0, 0)),        # ln_out g
        pl.BlockSpec((1, D), lambda i: (0, 0)),        # ln_out b
    ]
    weight_args = [
        lyr["ln_attn"]["g"].reshape(1, D), lyr["ln_attn"]["b"].reshape(1, D),
        lyr["wq"]["w"], lyr["wq"]["b"].reshape(1, inner),
        lyr["wk"]["w"], lyr["wk"]["b"].reshape(1, inner),
        lyr["wv"]["w"], lyr["wv"]["b"].reshape(1, inner),
        lyr["wo"]["w"], lyr["wo"]["b"].reshape(1, D),
        lyr["ln_ff"]["g"].reshape(1, D), lyr["ln_ff"]["b"].reshape(1, D),
        lyr["ff1"]["w"], lyr["ff1"]["b"].reshape(1, F),
        lyr["ff2"]["w"], lyr["ff2"]["b"].reshape(1, D),
        ln_out["g"].reshape(1, D), ln_out["b"].reshape(1, D),
    ]

    x_spec = pl.BlockSpec((1, S, D), lambda i: (i, 0, 0))
    if cross:
        kern = functools.partial(_layer_kernel_cross, heads=heads, dim_head=dim_head,
                                 scale=scale, final_ln=final_ln)
        in_specs = [x_spec, pl.BlockSpec((1, T, D), lambda i: (i, 0, 0))] + weight_specs
        args = [x, context] + weight_args
    else:
        kern = functools.partial(_layer_kernel_self, heads=heads, dim_head=dim_head,
                                 scale=scale, final_ln=final_ln)
        in_specs = [x_spec] + weight_specs
        args = [x] + weight_args

    flops = 2 * B * (3 * S * D * inner + 2 * heads * S * T * dim_head
                     + S * inner * D + 2 * S * D * F)
    transcendentals = B * (heads * S * T + S * F)
    bytes_accessed = 4 * (2 * B * S * D + (B * T * D if cross else 0)
                          + 4 * D * inner + 2 * D * F)

    return pl.pallas_call(
        kern,
        out_shape=jax.ShapeDtypeStruct((B, S, D), jnp.float32),
        grid=(B,),
        in_specs=in_specs,
        out_specs=pl.BlockSpec((1, S, D), lambda i: (i, 0, 0)),
        compiler_params=pltpu.CompilerParams(dimension_semantics=("parallel",)),
        cost_estimate=pl.CostEstimate(flops=flops, transcendentals=transcendentals,
                                      bytes_accessed=bytes_accessed),
    )(*args)


def layernorm(x, g, b, eps=1e-5):
    lead = x.shape[:-1]
    D = x.shape[-1]
    x2 = x.reshape(-1, D)
    M = x2.shape[0]
    tm = _row_tile(M)
    out = pl.pallas_call(
        functools.partial(_layernorm_kernel, eps=eps),
        out_shape=jax.ShapeDtypeStruct((M, D), jnp.float32),
        grid=(M // tm,),
        in_specs=[
            pl.BlockSpec((tm, D), lambda i: (i, 0)),
            pl.BlockSpec((1, D), lambda i: (0, 0)),
            pl.BlockSpec((1, D), lambda i: (0, 0)),
        ],
        out_specs=pl.BlockSpec((tm, D), lambda i: (i, 0)),
        compiler_params=pltpu.CompilerParams(dimension_semantics=("parallel",)),
    )(x2, g.reshape(1, D), b.reshape(1, D))
    return out.reshape(*lead, D)


def ln_linear(x, g, b, w, bw):
    """Fused LN -> Linear."""
    lead = x.shape[:-1]
    D = x.shape[-1]
    N = w.shape[1]
    x2 = x.reshape(-1, D)
    M = x2.shape[0]
    tm = _row_tile(M)
    out = pl.pallas_call(
        _ln_linear_kernel,
        out_shape=jax.ShapeDtypeStruct((M, N), jnp.float32),
        grid=(M // tm,),
        in_specs=[
            pl.BlockSpec((tm, D), lambda i: (i, 0)),
            pl.BlockSpec((1, D), lambda i: (0, 0)),
            pl.BlockSpec((1, D), lambda i: (0, 0)),
            pl.BlockSpec((D, N), lambda i: (0, 0)),
            pl.BlockSpec((1, N), lambda i: (0, 0)),
        ],
        out_specs=pl.BlockSpec((tm, N), lambda i: (i, 0)),
        compiler_params=pltpu.CompilerParams(dimension_semantics=("parallel",)),
    )(x2, g.reshape(1, D), b.reshape(1, D), w, bw.reshape(1, N))
    return out.reshape(*lead, N)


def linear(x, w, b):
    """K-tiled matmul with accumulator; used for the (large-K) codebook projections."""
    lead = x.shape[:-1]
    K = x.shape[-1]
    N = w.shape[1]
    x2 = x.reshape(-1, K)
    M = x2.shape[0]
    tm, tn, tk = _row_tile(M), _col_tile(N), _col_tile(K)
    out = pl.pallas_call(
        _matmul_kernel,
        out_shape=jax.ShapeDtypeStruct((M, N), jnp.float32),
        grid=(M // tm, N // tn, K // tk),
        in_specs=[
            pl.BlockSpec((tm, tk), lambda i, j, k: (i, k)),
            pl.BlockSpec((tk, tn), lambda i, j, k: (k, j)),
            pl.BlockSpec((1, tn), lambda i, j, k: (0, j)),
        ],
        out_specs=pl.BlockSpec((tm, tn), lambda i, j, k: (i, j)),
        scratch_shapes=[pltpu.VMEM((tm, tn), jnp.float32)],
        compiler_params=pltpu.CompilerParams(
            dimension_semantics=("parallel", "parallel", "arbitrary")),
        cost_estimate=pl.CostEstimate(flops=2 * M * N * K, transcendentals=0,
                                      bytes_accessed=4 * (M * K + K * N + M * N)),
    )(x2, w, b.reshape(1, N))
    return out.reshape(*lead, N)


def codebook_lookup(z, codes):
    B, L = z.shape
    E = codes.shape[0]
    q, idx = pl.pallas_call(
        _codebook_kernel,
        out_shape=(
            jax.ShapeDtypeStruct((B, L), jnp.float32),
            jax.ShapeDtypeStruct((B, 128), jnp.int32),   # lane-dense index block
        ),
        grid=(1,),
        in_specs=[
            pl.BlockSpec((B, L), lambda i: (0, 0)),
            pl.BlockSpec((E, L), lambda i: (0, 0)),
        ],
        out_specs=(
            pl.BlockSpec((B, L), lambda i: (0, 0)),
            pl.BlockSpec((B, 128), lambda i: (0, 0)),
        ),
    )(z, codes)
    return q, idx[:, 0]


# ------------------------------------------------------------------
# Parameter initialization (deterministic, synthetic)
# ------------------------------------------------------------------

def init_linear_params(key, din, dout):
    w = jax.random.normal(key, (din, dout), jnp.float32) * 0.02
    b = jnp.zeros((dout,), jnp.float32)
    return {"w": w, "b": b}


def init_ln_params(d):
    return {"g": jnp.ones((d,), jnp.float32), "b": jnp.zeros((d,), jnp.float32)}


def init_transformer_params(key, dim, depth, heads, dim_head, ff_mult):
    inner = heads * dim_head
    layers = []
    for k in jax.random.split(key, depth):
        k1, k2, k3, k4, k5, k6 = jax.random.split(k, 6)
        layers.append({
            "ln_attn": init_ln_params(dim),
            "wq": init_linear_params(k1, dim, inner),
            "wk": init_linear_params(k2, dim, inner),
            "wv": init_linear_params(k3, dim, inner),
            "wo": init_linear_params(k4, inner, dim),
            "ln_ff": init_ln_params(dim),
            "ff1": init_linear_params(k5, dim, dim * ff_mult),
            "ff2": init_linear_params(k6, dim * ff_mult, dim),
        })
    return {"layers": layers, "ln_out": init_ln_params(dim)}


def init_vqvae_params(key, *, channels, image_size, patch_size, num_patches,
                      patch_embed_dim, hidden_dim, latent_dim, num_embeddings,
                      num_heads, num_transformer_layers):
    p1, p2 = patch_size
    patch_dim = channels * p1 * p2
    flat_dim = patch_embed_dim * num_patches
    keys = jax.random.split(key, 8)
    return {
        "embed_ln1": init_ln_params(patch_dim),
        "embed_lin": init_linear_params(keys[0], patch_dim, patch_embed_dim),
        "embed_ln2": init_ln_params(patch_embed_dim),
        "spatial": init_transformer_params(keys[1], patch_embed_dim,
                                           num_transformer_layers, num_heads, 64, 2),
        "temporal": init_transformer_params(keys[2], patch_embed_dim,
                                            num_transformer_layers, num_heads, 64, 2),
        "decoder": init_transformer_params(keys[3], patch_embed_dim,
                                           num_transformer_layers, num_heads, 64, 2),
        "cb_enc": init_linear_params(keys[4], 2 * flat_dim, latent_dim),
        "cb_embed": jax.random.normal(keys[5], (num_embeddings, latent_dim), jnp.float32),
        "cb_dec": init_linear_params(keys[6], latent_dim, flat_dim),
        "pix_ln": init_ln_params(patch_embed_dim),
        "pix_lin": init_linear_params(keys[7], patch_embed_dim, patch_dim),
    }


# ------------------------------------------------------------------
# Model forward (glue around the Pallas kernels)
# ------------------------------------------------------------------

def embed_image_patches(params, img, patch_size):
    # Rearrange('b c (h p1) (w p2) -> b (h w) (p1 p2 c)') + LN + Linear + LN (fused kernel)
    B, C, H, W = img.shape
    p1, p2 = patch_size
    hp, wp = H // p1, W // p2
    x = img.reshape(B, C, hp, p1, wp, p2).transpose(0, 2, 4, 3, 5, 1)
    x = x.reshape(B * hp * wp, p1 * p2 * C)
    D = params["embed_lin"]["w"].shape[1]
    return embed_patches(x, params).reshape(B, hp * wp, D)


def transformer_forward(tparams, x, heads, dim_head, context=None):
    layers = tparams["layers"]
    n = len(layers)
    for li, lyr in enumerate(layers):
        x = transformer_layer(x, lyr, tparams["ln_out"], heads, dim_head,
                              context=context, final_ln=(li == n - 1))
    if n == 0:   # degenerate depth-0 fallback
        x = layernorm(x, tparams["ln_out"]["g"], tparams["ln_out"]["b"])
    return x


def codebook_forward(params, enc_first, enc_last):
    B, N, E = enc_first.shape
    z_in = jnp.concatenate([enc_first.reshape(B, -1), enc_last.reshape(B, -1)], axis=-1)
    z = linear(z_in, params["cb_enc"]["w"], params["cb_enc"]["b"])
    q, idx = codebook_lookup(z, params["cb_embed"])   # straight-through fwd value = q
    out = linear(q, params["cb_dec"]["w"], params["cb_dec"]["b"]).reshape(B, N, E)
    return out, idx


def reshape_patches_to_images(patches, image_size, patch_size, c=3):
    # Rearrange('b (h w) (p1 p2 c) -> b c (h p1) (w p2)', c=3)
    B = patches.shape[0]
    H, W = image_size
    p1, p2 = patch_size
    hp, wp = H // p1, W // p2
    x = patches.reshape(B, hp, wp, p1, p2, c).transpose(0, 5, 1, 3, 2, 4)
    return x.reshape(B, c, hp * p1, wp * p2)


def vqvae_forward(params, img1, img2, cfg):
    heads = cfg["num_heads"]
    # encode
    pe1 = embed_image_patches(params, img1, cfg["patch_size"])
    pe2 = embed_image_patches(params, img2, cfg["patch_size"])
    e1 = transformer_forward(params["spatial"], pe1, heads, 64)
    e2 = transformer_forward(params["spatial"], pe2, heads, 64)
    enc = jnp.concatenate([e1, e2], axis=1)
    enc = transformer_forward(params["temporal"], enc, heads, 64)
    n = enc.shape[1] // 2
    enc_first, enc_last = enc[:, :n], enc[:, n:]
    # quantize (train mode)
    quantized, _ = codebook_forward(params, enc_first, enc_last)
    # decode (detach is identity on forward values)
    out = transformer_forward(params["decoder"], enc_first, heads, 64, context=quantized)
    out = ln_linear(out, params["pix_ln"]["g"], params["pix_ln"]["b"],
                    params["pix_lin"]["w"], params["pix_lin"]["b"])
    return reshape_patches_to_images(out, cfg["image_size"], cfg["patch_size"], c=3)


# ------------------------------------------------------------------

if __name__ == "__main__":
    cfg = dict(
        channels=3,                 # reshape_patches_to_images hardcodes c=3
        image_size=(16, 16),
        patch_size=(4, 4),
        num_patches=16,             # (16/4) * (16/4)
        patch_embed_dim=32,
        hidden_dim=32,
        latent_dim=16,
        num_embeddings=8,
        num_heads=2,
        num_transformer_layers=1,
    )
    key = jax.random.PRNGKey(0)
    kp, k1, k2 = jax.random.split(key, 3)
    params = init_vqvae_params(kp, **cfg)

    img1 = jax.random.normal(k1, (2, cfg["channels"], *cfg["image_size"]), jnp.float32)
    img2 = jax.random.normal(k2, (2, cfg["channels"], *cfg["image_size"]), jnp.float32)

    fwd = jax.jit(lambda p, a, b: vqvae_forward(p, a, b, cfg))
    out = fwd(params, img1, img2)
    out = jax.block_until_ready(out)
    assert out.shape == (2, 3, 16, 16), out.shape
    assert jnp.all(jnp.isfinite(out))
    print("KERNEL_OK")
</pallas_src>

<mosaic_0001>
module attributes {stable_mosaic.version = 11 : i64} {
  func.func @_embed_kernel(%arg0: i32, %arg1: memref<32x48xf32, #tpu.memory_space<vmem>>, %arg2: memref<1x48xf32, #tpu.memory_space<vmem>>, %arg3: memref<1x48xf32, #tpu.memory_space<vmem>>, %arg4: memref<48x32xf32, #tpu.memory_space<vmem>>, %arg5: memref<1x32xf32, #tpu.memory_space<vmem>>, %arg6: memref<1x32xf32, #tpu.memory_space<vmem>>, %arg7: memref<1x32xf32, #tpu.memory_space<vmem>>, %arg8: memref<32x32xf32, #tpu.memory_space<vmem>>) attributes {dimension_semantics = [#tpu.dimension_semantics<parallel>], iteration_bounds = array<i64: 1>, scalar_prefetch = 0 : i64, scratch_operands = 0 : i64, tpu.core_type = #tpu.core_type<tc>, window_params = [{transform_indices = @transform_0, window_bounds = array<i64: 32, 48>}, {pipeline_mode = #tpu.pipeline_mode<synchronous>, transform_indices = @transform_1, window_bounds = array<i64: 1, 48>}, {pipeline_mode = #tpu.pipeline_mode<synchronous>, transform_indices = @transform_2, window_bounds = array<i64: 1, 48>}, {pipeline_mode = #tpu.pipeline_mode<synchronous>, transform_indices = @transform_3, window_bounds = array<i64: 48, 32>}, {pipeline_mode = #tpu.pipeline_mode<synchronous>, transform_indices = @transform_4, window_bounds = array<i64: 1, 32>}, {pipeline_mode = #tpu.pipeline_mode<synchronous>, transform_indices = @transform_5, window_bounds = array<i64: 1, 32>}, {pipeline_mode = #tpu.pipeline_mode<synchronous>, transform_indices = @transform_6, window_bounds = array<i64: 1, 32>}, {transform_indices = @transform_7, window_bounds = array<i64: 32, 32>}]} {
    %c0 = arith.constant 0 : index
    %c0_0 = arith.constant 0 : index
    %0 = vector.load %arg1[%c0, %c0_0] : memref<32x48xf32, #tpu.memory_space<vmem>>, vector<32x48xf32>
    %c0_1 = arith.constant 0 : index
    %c0_2 = arith.constant 0 : index
    %1 = vector.load %arg2[%c0_1, %c0_2] : memref<1x48xf32, #tpu.memory_space<vmem>>, vector<1x48xf32>
    %c0_3 = arith.constant 0 : index
    %c0_4 = arith.constant 0 : index
    %2 = vector.load %arg3[%c0_3, %c0_4] : memref<1x48xf32, #tpu.memory_space<vmem>>, vector<1x48xf32>
    %cst = arith.constant dense<0.000000e+00> : vector<32xf32>
    %3 = vector.multi_reduction <add>, %0, %cst [1] : vector<32x48xf32> to vector<32xf32>
    %4 = vector.shape_cast %3 : vector<32xf32> to vector<32x1xf32>
    %cst_5 = arith.constant 4.800000e+01 : f32
    %5 = vector.broadcast %cst_5 : f32 to vector<32x1xf32>
    %6 = arith.divf %4, %5 : vector<32x1xf32>
    %7 = vector.broadcast %6 : vector<32x1xf32> to vector<32x48xf32>
    %8 = arith.subf %0, %7 : vector<32x48xf32>
    %9 = arith.mulf %8, %8 : vector<32x48xf32>
    %cst_6 = arith.constant dense<0.000000e+00> : vector<32xf32>
    %10 = vector.multi_reduction <add>, %9, %cst_6 [1] : vector<32x48xf32> to vector<32xf32>
    %11 = vector.shape_cast %10 : vector<32xf32> to vector<32x1xf32>
    %cst_7 = arith.constant 4.800000e+01 : f32
    %12 = vector.broadcast %cst_7 : f32 to vector<32x1xf32>
    %13 = arith.divf %11, %12 : vector<32x1xf32>
    %cst_8 = arith.constant 9.99999974E-6 : f32
    %14 = vector.broadcast %cst_8 : f32 to vector<32x1xf32>
    %15 = arith.addf %13, %14 : vector<32x1xf32>
    %16 = math.rsqrt %15 : vector<32x1xf32>
    %17 = vector.broadcast %16 : vector<32x1xf32> to vector<32x48xf32>
    %18 = arith.mulf %8, %17 : vector<32x48xf32>
    %19 = vector.broadcast %1 : vector<1x48xf32> to vector<32x48xf32>
    %20 = arith.mulf %18, %19 : vector<32x48xf32>
    %21 = vector.broadcast %2 : vector<1x48xf32> to vector<32x48xf32>
    %22 = arith.addf %20, %21 : vector<32x48xf32>
    %23 = arith.truncf %22 : vector<32x48xf32> to vector<32x48xbf16>
    %c0_9 = arith.constant 0 : index
    %c0_10 = arith.constant 0 : index
    %24 = vector.load %arg4[%c0_9, %c0_10] : memref<48x32xf32, #tpu.memory_space<vmem>>, vector<48x32xf32>
    %25 = arith.truncf %24 : vector<48x32xf32> to vector<48x32xbf16>
    %cst_11 = arith.constant dense<0.000000e+00> : vector<32x32xf32>
    %26 = tpu.matmul %23, %25, %cst_11 {dimension_numbers = #tpu.dot_dimension_numbers<[1], [0], [0], [1], [0, 0, 1, 1], [], []>} : vector<32x48xbf16>, vector<48x32xbf16>, vector<32x32xf32> -> vector<32x32xf32>
    %c0_12 = arith.constant 0 : index
    %c0_13 = arith.constant 0 : index
    %27 = vector.load %arg5[%c0_12, %c0_13] : memref<1x32xf32, #tpu.memory_space<vmem>>, vector<1x32xf32>
    %28 = vector.broadcast %27 : vector<1x32xf32> to vector<32x32xf32>
    %29 = arith.addf %26, %28 : vector<32x32xf32>
    %c0_14 = arith.constant 0 : index
    %c0_15 = arith.constant 0 : index
    %30 = vector.load %arg6[%c0_14, %c0_15] : memref<1x32xf32, #tpu.memory_space<vmem>>, vector<1x32xf32>
    %c0_16 = arith.constant 0 : index
    %c0_17 = arith.constant 0 : index
    %31 = vector.load %arg7[%c0_16, %c0_17] : memref<1x32xf32, #tpu.memory_space<vmem>>, vector<1x32xf32>
    %cst_18 = arith.constant dense<0.000000e+00> : vector<32xf32>
    %32 = vector.multi_reduction <add>, %29, %cst_18 [1] : vector<32x32xf32> to vector<32xf32>
    %33 = vector.shape_cast %32 : vector<32xf32> to vector<32x1xf32>
    %cst_19 = arith.constant 3.200000e+01 : f32
    %34 = vector.broadcast %cst_19 : f32 to vector<32x1xf32>
    %35 = arith.divf %33, %34 : vector<32x1xf32>
    %36 = vector.broadcast %35 : vector<32x1xf32> to vector<32x32xf32>
    %37 = arith.subf %29, %36 : vector<32x32xf32>
    %38 = arith.mulf %37, %37 : vector<32x32xf32>
    %cst_20 = arith.constant dense<0.000000e+00> : vector<32xf32>
    %39 = vector.multi_reduction <add>, %38, %cst_20 [1] : vector<32x32xf32> to vector<32xf32>
    %40 = vector.shape_cast %39 : vector<32xf32> to vector<32x1xf32>
    %cst_21 = arith.constant 3.200000e+01 : f32
    %41 = vector.broadcast %cst_21 : f32 to vector<32x1xf32>
    %42 = arith.divf %40, %41 : vector<32x1xf32>
    %cst_22 = arith.constant 9.99999974E-6 : f32
    %43 = vector.broadcast %cst_22 : f32 to vector<32x1xf32>
    %44 = arith.addf %42, %43 : vector<32x1xf32>
    %45 = math.rsqrt %44 : vector<32x1xf32>
    %46 = vector.broadcast %45 : vector<32x1xf32> to vector<32x32xf32>
    %47 = arith.mulf %37, %46 : vector<32x32xf32>
    %48 = vector.broadcast %30 : vector<1x32xf32> to vector<32x32xf32>
    %49 = arith.mulf %47, %48 : vector<32x32xf32>
    %50 = vector.broadcast %31 : vector<1x32xf32> to vector<32x32xf32>
    %51 = arith.addf %49, %50 : vector<32x32xf32>
    %c0_23 = arith.constant 0 : index
    %c0_24 = arith.constant 0 : index
    %52 = vector.load %arg8[%c0_23, %c0_24] : memref<32x32xf32, #tpu.memory_space<vmem>>, vector<32x32xf32>
    tpu.vector_store %arg8[%c0_23, %c0_24], %51 {strides = array<i32>} : memref<32x32xf32, #tpu.memory_space<vmem>>, vector<32x32xf32>,
    return
  }
  func.func @transform_0(%arg0: i32) -> (i32, i32) {
    %c0_i32 = arith.constant 0 : i32
    %c0_i32_0 = arith.constant 0 : i32
    return %arg0, %c0_i32 : i32, i32
  }
  func.func @transform_1(%arg0: i32) -> (i32, i32) {
    %c0_i32 = arith.constant 0 : i32
    %c0_i32_0 = arith.constant 0 : i32
    %c0_i32_1 = arith.constant 0 : i32
    return %c0_i32, %c0_i32_0 : i32, i32
  }
  func.func @transform_2(%arg0: i32) -> (i32, i32) {
    %c0_i32 = arith.constant 0 : i32
    %c0_i32_0 = arith.constant 0 : i32
    %c0_i32_1 = arith.constant 0 : i32
    return %c0_i32, %c0_i32_0 : i32, i32
  }
  func.func @transform_3(%arg0: i32) -> (i32, i32) {
    %c0_i32 = arith.constant 0 : i32
    %c0_i32_0 = arith.constant 0 : i32
    %c0_i32_1 = arith.constant 0 : i32
    return %c0_i32, %c0_i32_0 : i32, i32
  }
  func.func @transform_4(%arg0: i32) -> (i32, i32) {
    %c0_i32 = arith.constant 0 : i32
    %c0_i32_0 = arith.constant 0 : i32
    %c0_i32_1 = arith.constant 0 : i32
    return %c0_i32, %c0_i32_0 : i32, i32
  }
  func.func @transform_5(%arg0: i32) -> (i32, i32) {
    %c0_i32 = arith.constant 0 : i32
    %c0_i32_0 = arith.constant 0 : i32
    %c0_i32_1 = arith.constant 0 : i32
    return %c0_i32, %c0_i32_0 : i32, i32
  }
  func.func @transform_6(%arg0: i32) -> (i32, i32) {
    %c0_i32 = arith.constant 0 : i32
    %c0_i32_0 = arith.constant 0 : i32
    %c0_i32_1 = arith.constant 0 : i32
    return %c0_i32, %c0_i32_0 : i32, i32
  }
  func.func @transform_7(%arg0: i32) -> (i32, i32) {
    %c0_i32 = arith.constant 0 : i32
    %c0_i32_0 = arith.constant 0 : i32
    return %arg0, %c0_i32 : i32, i32
  }
}

module attributes {stable_mosaic.version = 11 : i64} {
  func.func @_layer_kernel_self(%arg0: i32, %arg1: memref<1x16x32xf32, #tpu.memory_space<vmem>>, %arg2: memref<1x32xf32, #tpu.memory_space<vmem>>, %arg3: memref<1x32xf32, #tpu.memory_space<vmem>>, %arg4: memref<32x128xf32, #tpu.memory_space<vmem>>, %arg5: memref<1x128xf32, #tpu.memory_space<vmem>>, %arg6: memref<32x128xf32, #tpu.memory_space<vmem>>, %arg7: memref<1x128xf32, #tpu.memory_space<vmem>>, %arg8: memref<32x128xf32, #tpu.memory_space<vmem>>, %arg9: memref<1x128xf32, #tpu.memory_space<vmem>>, %arg10: memref<128x32xf32, #tpu.memory_space<vmem>>, %arg11: memref<1x32xf32, #tpu.memory_space<vmem>>, %arg12: memref<1x32xf32, #tpu.memory_space<vmem>>, %arg13: memref<1x32xf32, #tpu.memory_space<vmem>>, %arg14: memref<32x64xf32, #tpu.memory_space<vmem>>, %arg15: memref<1x64xf32, #tpu.memory_space<vmem>>, %arg16: memref<64x32xf32, #tpu.memory_space<vmem>>, %arg17: memref<1x32xf32, #tpu.memory_space<vmem>>, %arg18: memref<1x32xf32, #tpu.memory_space<vmem>>, %arg19: memref<1x32xf32, #tpu.memory_space<vmem>>, %arg20: memref<1x16x32xf32, #tpu.memory_space<vmem>>) attributes {dimension_semantics = [#tpu.dimension_semantics<parallel>], iteration_bounds = array<i64: 2>, scalar_prefetch = 0 : i64, scratch_operands = 0 : i64, tpu.core_type = #tpu.core_type<tc>, window_params = [{transform_indices = @transform_0, window_bounds = array<i64: 1, 16, 32>}, {pipeline_mode = #tpu.pipeline_mode<synchronous>, transform_indices = @transform_1, window_bounds = array<i64: 1, 32>}, {pipeline_mode = #tpu.pipeline_mode<synchronous>, transform_indices = @transform_2, window_bounds = array<i64: 1, 32>}, {pipeline_mode = #tpu.pipeline_mode<synchronous>, transform_indices = @transform_3, window_bounds = array<i64: 32, 128>}, {pipeline_mode = #tpu.pipeline_mode<synchronous>, transform_indices = @transform_4, window_bounds = array<i64: 1, 128>}, {pipeline_mode = #tpu.pipeline_mode<synchronous>, transform_indices = @transform_5, window_bounds = array<i64: 32, 128>}, {pipeline_mode = #tpu.pipeline_mode<synchronous>, transform_indices = @transform_6, window_bounds = array<i64: 1, 128>}, {pipeline_mode = #tpu.pipeline_mode<synchronous>, transform_indices = @transform_7, window_bounds = array<i64: 32, 128>}, {pipeline_mode = #tpu.pipeline_mode<synchronous>, transform_indices = @transform_8, window_bounds = array<i64: 1, 128>}, {pipeline_mode = #tpu.pipeline_mode<synchronous>, transform_indices = @transform_9, window_bounds = array<i64: 128, 32>}, {pipeline_mode = #tpu.pipeline_mode<synchronous>, transform_indices = @transform_10, window_bounds = array<i64: 1, 32>}, {pipeline_mode = #tpu.pipeline_mode<synchronous>, transform_indices = @transform_11, window_bounds = array<i64: 1, 32>}, {pipeline_mode = #tpu.pipeline_mode<synchronous>, transform_indices = @transform_12, window_bounds = array<i64: 1, 32>}, {pipeline_mode = #tpu.pipeline_mode<synchronous>, transform_indices = @transform_13, window_bounds = array<i64: 32, 64>}, {pipeline_mode = #tpu.pipeline_mode<synchronous>, transform_indices = @transform_14, window_bounds = array<i64: 1, 64>}, {pipeline_mode = #tpu.pipeline_mode<synchronous>, transform_indices = @transform_15, window_bounds = array<i64: 64, 32>}, {pipeline_mode = #tpu.pipeline_mode<synchronous>, transform_indices = @transform_16, window_bounds = array<i64: 1, 32>}, {pipeline_mode = #tpu.pipeline_mode<synchronous>, transform_indices = @transform_17, window_bounds = array<i64: 1, 32>}, {pipeline_mode = #tpu.pipeline_mode<synchronous>, transform_indices = @transform_18, window_bounds = array<i64: 1, 32>}, {transform_indices = @transform_19, window_bounds = array<i64: 1, 16, 32>}]} {
    %c0 = arith.constant 0 : index
    %c0_0 = arith.constant 0 : index
    %c0_1 = arith.constant 0 : index
    %0 = vector.load %arg1[%c0, %c0_0, %c0_1] : memref<1x16x32xf32, #tpu.memory_space<vmem>>, vector<1x16x32xf32>
    %1 = vector.shape_cast %0 : vector<1x16x32xf32> to vector<16x32xf32>
    %c0_2 = arith.constant 0 : index
    %c0_3 = arith.constant 0 : index
    %2 = vector.load %arg2[%c0_2, %c0_3] : memref<1x32xf32, #tpu.memory_space<vmem>>, vector<1x32xf32>
    %c0_4 = arith.constant 0 : index
    %c0_5 = arith.constant 0 : index
    %3 = vector.load %arg3[%c0_4, %c0_5] : memref<1x32xf32, #tpu.memory_space<vmem>>, vector<1x32xf32>
    %c0_6 = arith.constant 0 : index
    %c0_7 = arith.constant 0 : index
    %4 = vector.load %arg4[%c0_6, %c0_7] : memref<32x128xf32, #tpu.memory_space<vmem>>, vector<32x128xf32>
    %c0_8 = arith.constant 0 : index
    %c0_9 = arith.constant 0 : index
    %5 = vector.load %arg5[%c0_8, %c0_9] : memref<1x128xf32, #tpu.memory_space<vmem>>, vector<1x128xf32>
    %c0_10 = arith.constant 0 : index
    %c0_11 = arith.constant 0 : index
    %6 = vector.load %arg6[%c0_10, %c0_11] : memref<32x128xf32, #tpu.memory_space<vmem>>, vector<32x128xf32>
    %c0_12 = arith.constant 0 : index
    %c0_13 = arith.constant 0 : index
    %7 = vector.load %arg7[%c0_12, %c0_13] : memref<1x128xf32, #tpu.memory_space<vmem>>, vector<1x128xf32>
    %c0_14 = arith.constant 0 : index
    %c0_15 = arith.constant 0 : index
    %8 = vector.load %arg8[%c0_14, %c0_15] : memref<32x128xf32, #tpu.memory_space<vmem>>, vector<32x128xf32>
    %c0_16 = arith.constant 0 : index
    %c0_17 = arith.constant 0 : index
    %9 = vector.load %arg9[%c0_16, %c0_17] : memref<1x128xf32, #tpu.memory_space<vmem>>, vector<1x128xf32>
    %c0_18 = arith.constant 0 : index
    %c0_19 = arith.constant 0 : index
    %10 = vector.load %arg10[%c0_18, %c0_19] : memref<128x32xf32, #tpu.memory_space<vmem>>, vector<128x32xf32>
    %c0_20 = arith.constant 0 : index
    %c0_21 = arith.constant 0 : index
    %11 = vector.load %arg11[%c0_20, %c0_21] : memref<1x32xf32, #tpu.memory_space<vmem>>, vector<1x32xf32>
    %c0_22 = arith.constant 0 : index
    %c0_23 = arith.constant 0 : index
    %12 = vector.load %arg12[%c0_22, %c0_23] : memref<1x32xf32, #tpu.memory_space<vmem>>, vector<1x32xf32>
    %c0_24 = arith.constant 0 : index
    %c0_25 = arith.constant 0 : index
    %13 = vector.load %arg13[%c0_24, %c0_25] : memref<1x32xf32, #tpu.memory_space<vmem>>, vector<1x32xf32>
    %c0_26 = arith.constant 0 : index
    %c0_27 = arith.constant 0 : index
    %14 = vector.load %arg14[%c0_26, %c0_27] : memref<32x64xf32, #tpu.memory_space<vmem>>, vector<32x64xf32>
    %c0_28 = arith.constant 0 : index
    %c0_29 = arith.constant 0 : index
    %15 = vector.load %arg15[%c0_28, %c0_29] : memref<1x64xf32, #tpu.memory_space<vmem>>, vector<1x64xf32>
    %c0_30 = arith.constant 0 : index
    %c0_31 = arith.constant 0 : index
    %16 = vector.load %arg16[%c0_30, %c0_31] : memref<64x32xf32, #tpu.memory_space<vmem>>, vector<64x32xf32>
    %c0_32 = arith.constant 0 : index
    %c0_33 = arith.constant 0 : index
    %17 = vector.load %arg17[%c0_32, %c0_33] : memref<1x32xf32, #tpu.memory_space<vmem>>, vector<1x32xf32>
    %c0_34 = arith.constant 0 : index
    %c0_35 = arith.constant 0 : index
    %18 = vector.load %arg18[%c0_34, %c0_35] : memref<1x32xf32, #tpu.memory_space<vmem>>, vector<1x32xf32>
    %c0_36 = arith.constant 0 : index
    %c0_37 = arith.constant 0 : index
    %19 = vector.load %arg19[%c0_36, %c0_37] : memref<1x32xf32, #tpu.memory_space<vmem>>, vector<1x32xf32>
    %cst = arith.constant dense<0.000000e+00> : vector<16xf32>
    %20 = vector.multi_reduction <add>, %1, %cst [1] : vector<16x32xf32> to vector<16xf32>
    %21 = vector.shape_cast %20 : vector<16xf32> to vector<16x1xf32>
    %cst_38 = arith.constant 3.200000e+01 : f32
    %22 = vector.broadcast %cst_38 : f32 to vector<16x1xf32>
    %23 = arith.divf %21, %22 : vector<16x1xf32>
    %24 = vector.broadcast %23 : vector<16x1xf32> to vector<16x32xf32>
    %25 = arith.subf %1, %24 : vector<16x32xf32>
    %26 = arith.mulf %25, %25 : vector<16x32xf32>
    %cst_39 = arith.constant dense<0.000000e+00> : vector<16xf32>
    %27 = vector.multi_reduction <add>, %26, %cst_39 [1] : vector<16x32xf32> to vector<16xf32>
    %28 = vector.shape_cast %27 : vector<16xf32> to vector<16x1xf32>
    %cst_40 = arith.constant 3.200000e+01 : f32
    %29 = vector.broadcast %cst_40 : f32 to vector<16x1xf32>
    %30 = arith.divf %28, %29 : vector<16x1xf32>
    %cst_41 = arith.constant 9.99999974E-6 : f32
    %31 = vector.broadcast %cst_41 : f32 to vector<16x1xf32>
    %32 = arith.addf %30, %31 : vector<16x1xf32>
    %33 = math.rsqrt %32 : vector<16x1xf32>
    %34 = vector.broadcast %33 : vector<16x1xf32> to vector<16x32xf32>
    %35 = arith.mulf %25, %34 : vector<16x32xf32>
    %36 = vector.broadcast %2 : vector<1x32xf32> to vector<16x32xf32>
    %37 = arith.mulf %35, %36 : vector<16x32xf32>
    %38 = vector.broadcast %3 : vector<1x32xf32> to vector<16x32xf32>
    %39 = arith.addf %37, %38 : vector<16x32xf32>
    %40 = arith.truncf %39 : vector<16x32xf32> to vector<16x32xbf16>
    %41 = arith.truncf %4 : vector<32x128xf32> to vector<32x128xbf16>
    %cst_42 = arith.constant dense<0.000000e+00> : vector<16x128xf32>
    %42 = tpu.matmul %40, %41, %cst_42 {dimension_numbers = #tpu.dot_dimension_numbers<[1], [0], [0], [1], [0, 0, 1, 1], [], []>} : vector<16x32xbf16>, vector<32x128xbf16>, vector<16x128xf32> -> vector<16x128xf32>
    %43 = vector.broadcast %5 : vector<1x128xf32> to vector<16x128xf32>
    %44 = arith.addf %42, %43 : vector<16x128xf32>
    %45 = arith.truncf %39 : vector<16x32xf32> to vector<16x32xbf16>
    %46 = arith.truncf %6 : vector<32x128xf32> to vector<32x128xbf16>
    %cst_43 = arith.constant dense<0.000000e+00> : vector<16x128xf32>
    %47 = tpu.matmul %45, %46, %cst_43 {dimension_numbers = #tpu.dot_dimension_numbers<[1], [0], [0], [1], [0, 0, 1, 1], [], []>} : vector<16x32xbf16>, vector<32x128xbf16>, vector<16x128xf32> -> vector<16x128xf32>
    %48 = vector.broadcast %7 : vector<1x128xf32> to vector<16x128xf32>
    %49 = arith.addf %47, %48 : vector<16x128xf32>
    %50 = arith.truncf %39 : vector<16x32xf32> to vector<16x32xbf16>
    %51 = arith.truncf %8 : vector<32x128xf32> to vector<32x128xbf16>
    %cst_44 = arith.constant dense<0.000000e+00> : vector<16x128xf32>
    %52 = tpu.matmul %50, %51, %cst_44 {dimension_numbers = #tpu.dot_dimension_numbers<[1], [0], [0], [1], [0, 0, 1, 1], [], []>} : vector<16x32xbf16>, vector<32x128xbf16>, vector<16x128xf32> -> vector<16x128xf32>
    %53 = vector.broadcast %9 : vector<1x128xf32> to vector<16x128xf32>
    %54 = arith.addf %52, %53 : vector<16x128xf32>
    %55 = vector.extract_strided_slice %44 {offsets = [0, 0], sizes = [16, 64], strides = [1, 1]} : vector<16x128xf32> to vector<16x64xf32>
    %56 = arith.truncf %55 : vector<16x64xf32> to vector<16x64xbf16>
    %57 = vector.extract_strided_slice %49 {offsets = [0, 0], sizes = [16, 64], strides = [1, 1]} : vector<16x128xf32> to vector<16x64xf32>
    %58 = arith.truncf %57 : vector<16x64xf32> to vector<16x64xbf16>
    %59 = vector.extract_strided_slice %54 {offsets = [0, 0], sizes = [16, 64], strides = [1, 1]} : vector<16x128xf32> to vector<16x64xf32>
    %60 = arith.truncf %59 : vector<16x64xf32> to vector<16x64xbf16>
    %cst_45 = arith.constant dense<0.000000e+00> : vector<16x16xf32>
    %61 = tpu.matmul %56, %58, %cst_45 {dimension_numbers = #tpu.dot_dimension_numbers<[1], [1], [0], [0], [0, 0, 1, 0], [], []>} : vector<16x64xbf16>, vector<16x64xbf16>, vector<16x16xf32> -> vector<16x16xf32>
    %cst_46 = arith.constant 1.250000e-01 : f32
    %62 = vector.broadcast %cst_46 : f32 to vector<16x16xf32>
    %63 = arith.mulf %61, %62 : vector<16x16xf32>
    %cst_47 = arith.constant dense<0xFF800000> : vector<16xf32>
    %64 = vector.multi_reduction <maximumf>, %63, %cst_47 [1] : vector<16x16xf32> to vector<16xf32>
    %65 = vector.shape_cast %64 : vector<16xf32> to vector<16x1xf32>
    %66 = vector.broadcast %65 : vector<16x1xf32> to vector<16x16xf32>
    %67 = arith.subf %63, %66 : vector<16x16xf32>
    %68 = math.exp %67 : vector<16x16xf32>
    %cst_48 = arith.constant dense<0.000000e+00> : vector<16xf32>
    %69 = vector.multi_reduction <add>, %68, %cst_48 [1] : vector<16x16xf32> to vector<16xf32>
    %70 = vector.shape_cast %69 : vector<16xf32> to vector<16x1xf32>
    %71 = tpu.reciprocal %70 {approx = true} : vector<16x1xf32> -> vector<16x1xf32>
    %72 = vector.broadcast %71 : vector<16x1xf32> to vector<16x16xf32>
    %73 = arith.mulf %68, %72 : vector<16x16xf32>
    %74 = arith.truncf %73 : vector<16x16xf32> to vector<16x16xbf16>
    %cst_49 = arith.constant dense<0.000000e+00> : vector<16x64xf32>
    %75 = tpu.matmul %74, %60, %cst_49 {dimension_numbers = #tpu.dot_dimension_numbers<[1], [0], [0], [1], [0, 0, 1, 1], [], []>} : vector<16x16xbf16>, vector<16x64xbf16>, vector<16x64xf32> -> vector<16x64xf32>
    %76 = vector.extract_strided_slice %44 {offsets = [0, 64], sizes = [16, 64], strides = [1, 1]} : vector<16x128xf32> to vector<16x64xf32>
    %77 = arith.truncf %76 : vector<16x64xf32> to vector<16x64xbf16>
    %78 = vector.extract_strided_slice %49 {offsets = [0, 64], sizes = [16, 64], strides = [1, 1]} : vector<16x128xf32> to vector<16x64xf32>
    %79 = arith.truncf %78 : vector<16x64xf32> to vector<16x64xbf16>
    %80 = vector.extract_strided_slice %54 {offsets = [0, 64], sizes = [16, 64], strides = [1, 1]} : vector<16x128xf32> to vector<16x64xf32>
    %81 = arith.truncf %80 : vector<16x64xf32> to vector<16x64xbf16>
    %cst_50 = arith.constant dense<0.000000e+00> : vector<16x16xf32>
    %82 = tpu.matmul %77, %79, %cst_50 {dimension_numbers = #tpu.dot_dimension_numbers<[1], [1], [0], [0], [0, 0, 1, 0], [], []>} : vector<16x64xbf16>, vector<16x64xbf16>, vector<16x16xf32> -> vector<16x16xf32>
    %cst_51 = arith.constant 1.250000e-01 : f32
    %83 = vector.broadcast %cst_51 : f32 to vector<16x16xf32>
    %84 = arith.mulf %82, %83 : vector<16x16xf32>
    %cst_52 = arith.constant dense<0xFF800000> : vector<16xf32>
    %85 = vector.multi_reduction <maximumf>, %84, %cst_52 [1] : vector<16x16xf32> to vector<16xf32>
    %86 = vector.shape_cast %85 : vector<16xf32> to vector<16x1xf32>
    %87 = vector.broadcast %86 : vector<16x1xf32> to vector<16x16xf32>
    %88 = arith.subf %84, %87 : vector<16x16xf32>
    %89 = math.exp %88 : vector<16x16xf32>
    %cst_53 = arith.constant dense<0.000000e+00> : vector<16xf32>
    %90 = vector.multi_reduction <add>, %89, %cst_53 [1] : vector<16x16xf32> to vector<16xf32>
    %91 = vector.shape_cast %90 : vector<16xf32> to vector<16x1xf32>
    %92 = tpu.reciprocal %91 {approx = true} : vector<16x1xf32> -> vector<16x1xf32>
    %93 = vector.broadcast %92 : vector<16x1xf32> to vector<16x16xf32>
    %94 = arith.mulf %89, %93 : vector<16x16xf32>
    %95 = arith.truncf %94 : vector<16x16xf32> to vector<16x16xbf16>
    %cst_54 = arith.constant dense<0.000000e+00> : vector<16x64xf32>
    %96 = tpu.matmul %95, %81, %cst_54 {dimension_numbers = #tpu.dot_dimension_numbers<[1], [0], [0], [1], [0, 0, 1, 1], [], []>} : vector<16x16xbf16>, vector<16x64xbf16>, vector<16x64xf32> -> vector<16x64xf32>
    %97 = tpu.concatenate %75, %96 in 1 : vector<16x64xf32>, vector<16x64xf32> -> vector<16x128xf32>
    %98 = arith.truncf %97 : vector<16x128xf32> to vector<16x128xbf16>
    %99 = arith.truncf %10 : vector<128x32xf32> to vector<128x32xbf16>
    %cst_55 = arith.constant dense<0.000000e+00> : vector<16x32xf32>
    %100 = tpu.matmul %98, %99, %cst_55 {dimension_numbers = #tpu.dot_dimension_numbers<[1], [0], [0], [1], [0, 0, 1, 1], [], []>} : vector<16x128xbf16>, vector<128x32xbf16>, vector<16x32xf32> -> vector<16x32xf32>
    %101 = vector.broadcast %11 : vector<1x32xf32> to vector<16x32xf32>
    %102 = arith.addf %100, %101 : vector<16x32xf32>
    %103 = arith.addf %1, %102 : vector<16x32xf32>
    %cst_56 = arith.constant dense<0.000000e+00> : vector<16xf32>
    %104 = vector.multi_reduction <add>, %103, %cst_56 [1] : vector<16x32xf32> to vector<16xf32>
    %105 = vector.shape_cast %104 : vector<16xf32> to vector<16x1xf32>
    %cst_57 = arith.constant 3.200000e+01 : f32
    %106 = vector.broadcast %cst_57 : f32 to vector<16x1xf32>
    %107 = arith.divf %105, %106 : vector<16x1xf32>
    %108 = vector.broadcast %107 : vector<16x1xf32> to vector<16x32xf32>
    %109 = arith.subf %103, %108 : vector<16x32xf32>
    %110 = arith.mulf %109, %109 : vector<16x32xf32>
    %cst_58 = arith.constant dense<0.000000e+00> : vector<16xf32>
    %111 = vector.multi_reduction <add>, %110, %cst_58 [1] : vector<16x32xf32> to vector<16xf32>
    %112 = vector.shape_cast %111 : vector<16xf32> to vector<16x1xf32>
    %cst_59 = arith.constant 3.200000e+01 : f32
    %113 = vector.broadcast %cst_59 : f32 to vector<16x1xf32>
    %114 = arith.divf %112, %113 : vector<16x1xf32>
    %cst_60 = arith.constant 9.99999974E-6 : f32
    %115 = vector.broadcast %cst_60 : f32 to vector<16x1xf32>
    %116 = arith.addf %114, %115 : vector<16x1xf32>
    %117 = math.rsqrt %116 : vector<16x1xf32>
    %118 = vector.broadcast %117 : vector<16x1xf32> to vector<16x32xf32>
    %119 = arith.mulf %109, %118 : vector<16x32xf32>
    %120 = vector.broadcast %12 : vector<1x32xf32> to vector<16x32xf32>
    %121 = arith.mulf %119, %120 : vector<16x32xf32>
    %122 = vector.broadcast %13 : vector<1x32xf32> to vector<16x32xf32>
    %123 = arith.addf %121, %122 : vector<16x32xf32>
    %124 = arith.truncf %123 : vector<16x32xf32> to vector<16x32xbf16>
    %125 = arith.truncf %14 : vector<32x64xf32> to vector<32x64xbf16>
    %cst_61 = arith.constant dense<0.000000e+00> : vector<16x64xf32>
    %126 = tpu.matmul %124, %125, %cst_61 {dimension_numbers = #tpu.dot_dimension_numbers<[1], [0], [0], [1], [0, 0, 1, 1], [], []>} : vector<16x32xbf16>, vector<32x64xbf16>, vector<16x64xf32> -> vector<16x64xf32>
    %127 = vector.broadcast %15 : vector<1x64xf32> to vector<16x64xf32>
    %128 = arith.addf %126, %127 : vector<16x64xf32>
    %129 = arith.mulf %128, %128 : vector<16x64xf32>
    %130 = arith.mulf %128, %129 : vector<16x64xf32>
    %cst_62 = arith.constant 4.471500e-02 : f32
    %131 = vector.broadcast %cst_62 : f32 to vector<16x64xf32>
    %132 = arith.mulf %131, %130 : vector<16x64xf32>
    %133 = arith.addf %128, %132 : vector<16x64xf32>
    %cst_63 = arith.constant 0.797884583 : f32
    %134 = vector.broadcast %cst_63 : f32 to vector<16x64xf32>
    %135 = arith.mulf %134, %133 : vector<16x64xf32>
    %136 = math.tanh %135 : vector<16x64xf32>
    %cst_64 = arith.constant 1.000000e+00 : f32
    %137 = vector.broadcast %cst_64 : f32 to vector<16x64xf32>
    %138 = arith.addf %137, %136 : vector<16x64xf32>
    %cst_65 = arith.constant 5.000000e-01 : f32
    %139 = vector.broadcast %cst_65 : f32 to vector<16x64xf32>
    %140 = arith.mulf %139, %138 : vector<16x64xf32>
    %141 = arith.mulf %128, %140 : vector<16x64xf32>
    %142 = arith.truncf %141 : vector<16x64xf32> to vector<16x64xbf16>
    %143 = arith.truncf %16 : vector<64x32xf32> to vector<64x32xbf16>
    %cst_66 = arith.constant dense<0.000000e+00> : vector<16x32xf32>
    %144 = tpu.matmul %142, %143, %cst_66 {dimension_numbers = #tpu.dot_dimension_numbers<[1], [0], [0], [1], [0, 0, 1, 1], [], []>} : vector<16x64xbf16>, vector<64x32xbf16>, vector<16x32xf32> -> vector<16x32xf32>
    %145 = vector.broadcast %17 : vector<1x32xf32> to vector<16x32xf32>
    %146 = arith.addf %144, %145 : vector<16x32xf32>
    %147 = arith.addf %103, %146 : vector<16x32xf32>
    %cst_67 = arith.constant dense<0.000000e+00> : vector<16xf32>
    %148 = vector.multi_reduction <add>, %147, %cst_67 [1] : vector<16x32xf32> to vector<16xf32>
    %149 = vector.shape_cast %148 : vector<16xf32> to vector<16x1xf32>
    %cst_68 = arith.constant 3.200000e+01 : f32
    %150 = vector.broadcast %cst_68 : f32 to vector<16x1xf32>
    %151 = arith.divf %149, %150 : vector<16x1xf32>
    %152 = vector.broadcast %151 : vector<16x1xf32> to vector<16x32xf32>
    %153 = arith.subf %147, %152 : vector<16x32xf32>
    %154 = arith.mulf %153, %153 : vector<16x32xf32>
    %cst_69 = arith.constant dense<0.000000e+00> : vector<16xf32>
    %155 = vector.multi_reduction <add>, %154, %cst_69 [1] : vector<16x32xf32> to vector<16xf32>
    %156 = vector.shape_cast %155 : vector<16xf32> to vector<16x1xf32>
    %cst_70 = arith.constant 3.200000e+01 : f32
    %157 = vector.broadcast %cst_70 : f32 to vector<16x1xf32>
    %158 = arith.divf %156, %157 : vector<16x1xf32>
    %cst_71 = arith.constant 9.99999974E-6 : f32
    %159 = vector.broadcast %cst_71 : f32 to vector<16x1xf32>
    %160 = arith.addf %158, %159 : vector<16x1xf32>
    %161 = math.rsqrt %160 : vector<16x1xf32>
    %162 = vector.broadcast %161 : vector<16x1xf32> to vector<16x32xf32>
    %163 = arith.mulf %153, %162 : vector<16x32xf32>
    %164 = vector.broadcast %18 : vector<1x32xf32> to vector<16x32xf32>
    %165 = arith.mulf %163, %164 : vector<16x32xf32>
    %166 = vector.broadcast %19 : vector<1x32xf32> to vector<16x32xf32>
    %167 = arith.addf %165, %166 : vector<16x32xf32>
    %c0_72 = arith.constant 0 : index
    %c0_73 = arith.constant 0 : index
    %c0_74 = arith.constant 0 : index
    %168 = vector.load %arg20[%c0_72, %c0_73, %c0_74] : memref<1x16x32xf32, #tpu.memory_space<vmem>>, vector<1x16x32xf32>
    %169 = vector.shape_cast %168 : vector<1x16x32xf32> to vector<16x32xf32>
    %170 = vector.shape_cast %167 : vector<16x32xf32> to vector<1x16x32xf32>
    tpu.vector_store %arg20[%c0_72, %c0_73, %c0_74], %170 {strides = array<i32>} : memref<1x16x32xf32, #tpu.memory_space<vmem>>, vector<1x16x32xf32>,
    return
  }
  func.func @transform_0(%arg0: i32) -> (i32, i32, i32) {
    %c0_i32 = arith.constant 0 : i32
    %c0_i32_0 = arith.constant 0 : i32
    %c0_i32_1 = arith.constant 0 : i32
    return %arg0, %c0_i32, %c0_i32_0 : i32, i32, i32
  }
  func.func @transform_1(%arg0: i32) -> (i32, i32) {
    %c0_i32 = arith.constant 0 : i32
    %c0_i32_0 = arith.constant 0 : i32
    %c0_i32_1 = arith.constant 0 : i32
    return %c0_i32, %c0_i32_0 : i32, i32
  }
  func.func @transform_2(%arg0: i32) -> (i32, i32) {
    %c0_i32 = arith.constant 0 : i32
    %c0_i32_0 = arith.constant 0 : i32
    %c0_i32_1 = arith.constant 0 : i32
    return %c0_i32, %c0_i32_0 : i32, i32
  }
  func.func @transform_3(%arg0: i32) -> (i32, i32) {
    %c0_i32 = arith.constant 0 : i32
    %c0_i32_0 = arith.constant 0 : i32
    %c0_i32_1 = arith.constant 0 : i32
    return %c0_i32, %c0_i32_0 : i32, i32
  }
  func.func @transform_4(%arg0: i32) -> (i32, i32) {
    %c0_i32 = arith.constant 0 : i32
    %c0_i32_0 = arith.constant 0 : i32
    %c0_i32_1 = arith.constant 0 : i32
    return %c0_i32, %c0_i32_0 : i32, i32
  }
  func.func @transform_5(%arg0: i32) -> (i32, i32) {
    %c0_i32 = arith.constant 0 : i32
    %c0_i32_0 = arith.constant 0 : i32
    %c0_i32_1 = arith.constant 0 : i32
    return %c0_i32, %c0_i32_0 : i32, i32
  }
  func.func @transform_6(%arg0: i32) -> (i32, i32) {
    %c0_i32 = arith.constant 0 : i32
    %c0_i32_0 = arith.constant 0 : i32
    %c0_i32_1 = arith.constant 0 : i32
    return %c0_i32, %c0_i32_0 : i32, i32
  }
  func.func @transform_7(%arg0: i32) -> (i32, i32) {
    %c0_i32 = arith.constant 0 : i32
    %c0_i32_0 = arith.constant 0 : i32
    %c0_i32_1 = arith.constant 0 : i32
    return %c0_i32, %c0_i32_0 : i32, i32
  }
  func.func @transform_8(%arg0: i32) -> (i32, i32) {
    %c0_i32 = arith.constant 0 : i32
    %c0_i32_0 = arith.constant 0 : i32
    %c0_i32_1 = arith.constant 0 : i32
    return %c0_i32, %c0_i32_0 : i32, i32
  }
  func.func @transform_9(%arg0: i32) -> (i32, i32) {
    %c0_i32 = arith.constant 0 : i32
    %c0_i32_0 = arith.constant 0 : i32
    %c0_i32_1 = arith.constant 0 : i32
    return %c0_i32, %c0_i32_0 : i32, i32
  }
  func.func @transform_10(%arg0: i32) -> (i32, i32) {
    %c0_i32 = arith.constant 0 : i32
    %c0_i32_0 = arith.constant 0 : i32
    %c0_i32_1 = arith.constant 0 : i32
    return %c0_i32, %c0_i32_0 : i32, i32
  }
  func.func @transform_11(%arg0: i32) -> (i32, i32) {
    %c0_i32 = arith.constant 0 : i32
    %c0_i32_0 = arith.constant 0 : i32
    %c0_i32_1 = arith.constant 0 : i32
    return %c0_i32, %c0_i32_0 : i32, i32
  }
  func.func @transform_12(%arg0: i32) -> (i32, i32) {
    %c0_i32 = arith.constant 0 : i32
    %c0_i32_0 = arith.constant 0 : i32
    %c0_i32_1 = arith.constant 0 : i32
    return %c0_i32, %c0_i32_0 : i32, i32
  }
  func.func @transform_13(%arg0: i32) -> (i32, i32) {
    %c0_i32 = arith.constant 0 : i32
    %c0_i32_0 = arith.constant 0 : i32
    %c0_i32_1 = arith.constant 0 : i32
    return %c0_i32, %c0_i32_0 : i32, i32
  }
  func.func @transform_14(%arg0: i32) -> (i32, i32) {
    %c0_i32 = arith.constant 0 : i32
    %c0_i32_0 = arith.constant 0 : i32
    %c0_i32_1 = arith.constant 0 : i32
    return %c0_i32, %c0_i32_0 : i32, i32
  }
  func.func @transform_15(%arg0: i32) -> (i32, i32) {
    %c0_i32 = arith.constant 0 : i32
    %c0_i32_0 = arith.constant 0 : i32
    %c0_i32_1 = arith.constant 0 : i32
    return %c0_i32, %c0_i32_0 : i32, i32
  }
  func.func @transform_16(%arg0: i32) -> (i32, i32) {
    %c0_i32 = arith.constant 0 : i32
    %c0_i32_0 = arith.constant 0 : i32
    %c0_i32_1 = arith.constant 0 : i32
    return %c0_i32, %c0_i32_0 : i32, i32
  }
  func.func @transform_17(%arg0: i32) -> (i32, i32) {
    %c0_i32 = arith.constant 0 : i32
    %c0_i32_0 = arith.constant 0 : i32
    %c0_i32_1 = arith.constant 0 : i32
    return %c0_i32, %c0_i32_0 : i32, i32
  }
  func.func @transform_18(%arg0: i32) -> (i32, i32) {
    %c0_i32 = arith.constant 0 : i32
    %c0_i32_0 = arith.constant 0 : i32
    %c0_i32_1 = arith.constant 0 : i32
    return %c0_i32, %c0_i32_0 : i32, i32
  }
  func.func @transform_19(%arg0: i32) -> (i32, i32, i32) {
    %c0_i32 = arith.constant 0 : i32
    %c0_i32_0 = arith.constant 0 : i32
    %c0_i32_1 = arith.constant 0 : i32
    return %arg0, %c0_i32, %c0_i32_0 : i32, i32, i32
  }
}

module attributes {stable_mosaic.version = 11 : i64} {
  func.func @_layer_kernel_self(%arg0: i32, %arg1: memref<1x32x32xf32, #tpu.memory_space<vmem>>, %arg2: memref<1x32xf32, #tpu.memory_space<vmem>>, %arg3: memref<1x32xf32, #tpu.memory_space<vmem>>, %arg4: memref<32x128xf32, #tpu.memory_space<vmem>>, %arg5: memref<1x128xf32, #tpu.memory_space<vmem>>, %arg6: memref<32x128xf32, #tpu.memory_space<vmem>>, %arg7: memref<1x128xf32, #tpu.memory_space<vmem>>, %arg8: memref<32x128xf32, #tpu.memory_space<vmem>>, %arg9: memref<1x128xf32, #tpu.memory_space<vmem>>, %arg10: memref<128x32xf32, #tpu.memory_space<vmem>>, %arg11: memref<1x32xf32, #tpu.memory_space<vmem>>, %arg12: memref<1x32xf32, #tpu.memory_space<vmem>>, %arg13: memref<1x32xf32, #tpu.memory_space<vmem>>, %arg14: memref<32x64xf32, #tpu.memory_space<vmem>>, %arg15: memref<1x64xf32, #tpu.memory_space<vmem>>, %arg16: memref<64x32xf32, #tpu.memory_space<vmem>>, %arg17: memref<1x32xf32, #tpu.memory_space<vmem>>, %arg18: memref<1x32xf32, #tpu.memory_space<vmem>>, %arg19: memref<1x32xf32, #tpu.memory_space<vmem>>, %arg20: memref<1x32x32xf32, #tpu.memory_space<vmem>>) attributes {dimension_semantics = [#tpu.dimension_semantics<parallel>], iteration_bounds = array<i64: 2>, scalar_prefetch = 0 : i64, scratch_operands = 0 : i64, tpu.core_type = #tpu.core_type<tc>, window_params = [{transform_indices = @transform_0, window_bounds = array<i64: 1, 32, 32>}, {pipeline_mode = #tpu.pipeline_mode<synchronous>, transform_indices = @transform_1, window_bounds = array<i64: 1, 32>}, {pipeline_mode = #tpu.pipeline_mode<synchronous>, transform_indices = @transform_2, window_bounds = array<i64: 1, 32>}, {pipeline_mode = #tpu.pipeline_mode<synchronous>, transform_indices = @transform_3, window_bounds = array<i64: 32, 128>}, {pipeline_mode = #tpu.pipeline_mode<synchronous>, transform_indices = @transform_4, window_bounds = array<i64: 1, 128>}, {pipeline_mode = #tpu.pipeline_mode<synchronous>, transform_indices = @transform_5, window_bounds = array<i64: 32, 128>}, {pipeline_mode = #tpu.pipeline_mode<synchronous>, transform_indices = @transform_6, window_bounds = array<i64: 1, 128>}, {pipeline_mode = #tpu.pipeline_mode<synchronous>, transform_indices = @transform_7, window_bounds = array<i64: 32, 128>}, {pipeline_mode = #tpu.pipeline_mode<synchronous>, transform_indices = @transform_8, window_bounds = array<i64: 1, 128>}, {pipeline_mode = #tpu.pipeline_mode<synchronous>, transform_indices = @transform_9, window_bounds = array<i64: 128, 32>}, {pipeline_mode = #tpu.pipeline_mode<synchronous>, transform_indices = @transform_10, window_bounds = array<i64: 1, 32>}, {pipeline_mode = #tpu.pipeline_mode<synchronous>, transform_indices = @transform_11, window_bounds = array<i64: 1, 32>}, {pipeline_mode = #tpu.pipeline_mode<synchronous>, transform_indices = @transform_12, window_bounds = array<i64: 1, 32>}, {pipeline_mode = #tpu.pipeline_mode<synchronous>, transform_indices = @transform_13, window_bounds = array<i64: 32, 64>}, {pipeline_mode = #tpu.pipeline_mode<synchronous>, transform_indices = @transform_14, window_bounds = array<i64: 1, 64>}, {pipeline_mode = #tpu.pipeline_mode<synchronous>, transform_indices = @transform_15, window_bounds = array<i64: 64, 32>}, {pipeline_mode = #tpu.pipeline_mode<synchronous>, transform_indices = @transform_16, window_bounds = array<i64: 1, 32>}, {pipeline_mode = #tpu.pipeline_mode<synchronous>, transform_indices = @transform_17, window_bounds = array<i64: 1, 32>}, {pipeline_mode = #tpu.pipeline_mode<synchronous>, transform_indices = @transform_18, window_bounds = array<i64: 1, 32>}, {transform_indices = @transform_19, window_bounds = array<i64: 1, 32, 32>}]} {
    %c0 = arith.constant 0 : index
    %c0_0 = arith.constant 0 : index
    %c0_1 = arith.constant 0 : index
    %0 = vector.load %arg1[%c0, %c0_0, %c0_1] : memref<1x32x32xf32, #tpu.memory_space<vmem>>, vector<1x32x32xf32>
    %1 = vector.shape_cast %0 : vector<1x32x32xf32> to vector<32x32xf32>
    %c0_2 = arith.constant 0 : index
    %c0_3 = arith.constant 0 : index
    %2 = vector.load %arg2[%c0_2, %c0_3] : memref<1x32xf32, #tpu.memory_space<vmem>>, vector<1x32xf32>
    %c0_4 = arith.constant 0 : index
    %c0_5 = arith.constant 0 : index
    %3 = vector.load %arg3[%c0_4, %c0_5] : memref<1x32xf32, #tpu.memory_space<vmem>>, vector<1x32xf32>
    %c0_6 = arith.constant 0 : index
    %c0_7 = arith.constant 0 : index
    %4 = vector.load %arg4[%c0_6, %c0_7] : memref<32x128xf32, #tpu.memory_space<vmem>>, vector<32x128xf32>
    %c0_8 = arith.constant 0 : index
    %c0_9 = arith.constant 0 : index
    %5 = vector.load %arg5[%c0_8, %c0_9] : memref<1x128xf32, #tpu.memory_space<vmem>>, vector<1x128xf32>
    %c0_10 = arith.constant 0 : index
    %c0_11 = arith.constant 0 : index
    %6 = vector.load %arg6[%c0_10, %c0_11] : memref<32x128xf32, #tpu.memory_space<vmem>>, vector<32x128xf32>
    %c0_12 = arith.constant 0 : index
    %c0_13 = arith.constant 0 : index
    %7 = vector.load %arg7[%c0_12, %c0_13] : memref<1x128xf32, #tpu.memory_space<vmem>>, vector<1x128xf32>
    %c0_14 = arith.constant 0 : index
    %c0_15 = arith.constant 0 : index
    %8 = vector.load %arg8[%c0_14, %c0_15] : memref<32x128xf32, #tpu.memory_space<vmem>>, vector<32x128xf32>
    %c0_16 = arith.constant 0 : index
    %c0_17 = arith.constant 0 : index
    %9 = vector.load %arg9[%c0_16, %c0_17] : memref<1x128xf32, #tpu.memory_space<vmem>>, vector<1x128xf32>
    %c0_18 = arith.constant 0 : index
    %c0_19 = arith.constant 0 : index
    %10 = vector.load %arg10[%c0_18, %c0_19] : memref<128x32xf32, #tpu.memory_space<vmem>>, vector<128x32xf32>
    %c0_20 = arith.constant 0 : index
    %c0_21 = arith.constant 0 : index
    %11 = vector.load %arg11[%c0_20, %c0_21] : memref<1x32xf32, #tpu.memory_space<vmem>>, vector<1x32xf32>
    %c0_22 = arith.constant 0 : index
    %c0_23 = arith.constant 0 : index
    %12 = vector.load %arg12[%c0_22, %c0_23] : memref<1x32xf32, #tpu.memory_space<vmem>>, vector<1x32xf32>
    %c0_24 = arith.constant 0 : index
    %c0_25 = arith.constant 0 : index
    %13 = vector.load %arg13[%c0_24, %c0_25] : memref<1x32xf32, #tpu.memory_space<vmem>>, vector<1x32xf32>
    %c0_26 = arith.constant 0 : index
    %c0_27 = arith.constant 0 : index
    %14 = vector.load %arg14[%c0_26, %c0_27] : memref<32x64xf32, #tpu.memory_space<vmem>>, vector<32x64xf32>
    %c0_28 = arith.constant 0 : index
    %c0_29 = arith.constant 0 : index
    %15 = vector.load %arg15[%c0_28, %c0_29] : memref<1x64xf32, #tpu.memory_space<vmem>>, vector<1x64xf32>
    %c0_30 = arith.constant 0 : index
    %c0_31 = arith.constant 0 : index
    %16 = vector.load %arg16[%c0_30, %c0_31] : memref<64x32xf32, #tpu.memory_space<vmem>>, vector<64x32xf32>
    %c0_32 = arith.constant 0 : index
    %c0_33 = arith.constant 0 : index
    %17 = vector.load %arg17[%c0_32, %c0_33] : memref<1x32xf32, #tpu.memory_space<vmem>>, vector<1x32xf32>
    %c0_34 = arith.constant 0 : index
    %c0_35 = arith.constant 0 : index
    %18 = vector.load %arg18[%c0_34, %c0_35] : memref<1x32xf32, #tpu.memory_space<vmem>>, vector<1x32xf32>
    %c0_36 = arith.constant 0 : index
    %c0_37 = arith.constant 0 : index
    %19 = vector.load %arg19[%c0_36, %c0_37] : memref<1x32xf32, #tpu.memory_space<vmem>>, vector<1x32xf32>
    %cst = arith.constant dense<0.000000e+00> : vector<32xf32>
    %20 = vector.multi_reduction <add>, %1, %cst [1] : vector<32x32xf32> to vector<32xf32>
    %21 = vector.shape_cast %20 : vector<32xf32> to vector<32x1xf32>
    %cst_38 = arith.constant 3.200000e+01 : f32
    %22 = vector.broadcast %cst_38 : f32 to vector<32x1xf32>
    %23 = arith.divf %21, %22 : vector<32x1xf32>
    %24 = vector.broadcast %23 : vector<32x1xf32> to vector<32x32xf32>
    %25 = arith.subf %1, %24 : vector<32x32xf32>
    %26 = arith.mulf %25, %25 : vector<32x32xf32>
    %cst_39 = arith.constant dense<0.000000e+00> : vector<32xf32>
    %27 = vector.multi_reduction <add>, %26, %cst_39 [1] : vector<32x32xf32> to vector<32xf32>
    %28 = vector.shape_cast %27 : vector<32xf32> to vector<32x1xf32>
    %cst_40 = arith.constant 3.200000e+01 : f32
    %29 = vector.broadcast %cst_40 : f32 to vector<32x1xf32>
    %30 = arith.divf %28, %29 : vector<32x1xf32>
    %cst_41 = arith.constant 9.99999974E-6 : f32
    %31 = vector.broadcast %cst_41 : f32 to vector<32x1xf32>
    %32 = arith.addf %30, %31 : vector<32x1xf32>
    %33 = math.rsqrt %32 : vector<32x1xf32>
    %34 = vector.broadcast %33 : vector<32x1xf32> to vector<32x32xf32>
    %35 = arith.mulf %25, %34 : vector<32x32xf32>
    %36 = vector.broadcast %2 : vector<1x32xf32> to vector<32x32xf32>
    %37 = arith.mulf %35, %36 : vector<32x32xf32>
    %38 = vector.broadcast %3 : vector<1x32xf32> to vector<32x32xf32>
    %39 = arith.addf %37, %38 : vector<32x32xf32>
    %40 = arith.truncf %39 : vector<32x32xf32> to vector<32x32xbf16>
    %41 = arith.truncf %4 : vector<32x128xf32> to vector<32x128xbf16>
    %cst_42 = arith.constant dense<0.000000e+00> : vector<32x128xf32>
    %42 = tpu.matmul %40, %41, %cst_42 {dimension_numbers = #tpu.dot_dimension_numbers<[1], [0], [0], [1], [0, 0, 1, 1], [], []>} : vector<32x32xbf16>, vector<32x128xbf16>, vector<32x128xf32> -> vector<32x128xf32>
    %43 = vector.broadcast %5 : vector<1x128xf32> to vector<32x128xf32>
    %44 = arith.addf %42, %43 : vector<32x128xf32>
    %45 = arith.truncf %39 : vector<32x32xf32> to vector<32x32xbf16>
    %46 = arith.truncf %6 : vector<32x128xf32> to vector<32x128xbf16>
    %cst_43 = arith.constant dense<0.000000e+00> : vector<32x128xf32>
    %47 = tpu.matmul %45, %46, %cst_43 {dimension_numbers = #tpu.dot_dimension_numbers<[1], [0], [0], [1], [0, 0, 1, 1], [], []>} : vector<32x32xbf16>, vector<32x128xbf16>, vector<32x128xf32> -> vector<32x128xf32>
    %48 = vector.broadcast %7 : vector<1x128xf32> to vector<32x128xf32>
    %49 = arith.addf %47, %48 : vector<32x128xf32>
    %50 = arith.truncf %39 : vector<32x32xf32> to vector<32x32xbf16>
    %51 = arith.truncf %8 : vector<32x128xf32> to vector<32x128xbf16>
    %cst_44 = arith.constant dense<0.000000e+00> : vector<32x128xf32>
    %52 = tpu.matmul %50, %51, %cst_44 {dimension_numbers = #tpu.dot_dimension_numbers<[1], [0], [0], [1], [0, 0, 1, 1], [], []>} : vector<32x32xbf16>, vector<32x128xbf16>, vector<32x128xf32> -> vector<32x128xf32>
    %53 = vector.broadcast %9 : vector<1x128xf32> to vector<32x128xf32>
    %54 = arith.addf %52, %53 : vector<32x128xf32>
    %55 = vector.extract_strided_slice %44 {offsets = [0, 0], sizes = [32, 64], strides = [1, 1]} : vector<32x128xf32> to vector<32x64xf32>
    %56 = arith.truncf %55 : vector<32x64xf32> to vector<32x64xbf16>
    %57 = vector.extract_strided_slice %49 {offsets = [0, 0], sizes = [32, 64], strides = [1, 1]} : vector<32x128xf32> to vector<32x64xf32>
    %58 = arith.truncf %57 : vector<32x64xf32> to vector<32x64xbf16>
    %59 = vector.extract_strided_slice %54 {offsets = [0, 0], sizes = [32, 64], strides = [1, 1]} : vector<32x128xf32> to vector<32x64xf32>
    %60 = arith.truncf %59 : vector<32x64xf32> to vector<32x64xbf16>
    %cst_45 = arith.constant dense<0.000000e+00> : vector<32x32xf32>
    %61 = tpu.matmul %56, %58, %cst_45 {dimension_numbers = #tpu.dot_dimension_numbers<[1], [1], [0], [0], [0, 0, 1, 0], [], []>} : vector<32x64xbf16>, vector<32x64xbf16>, vector<32x32xf32> -> vector<32x32xf32>
    %cst_46 = arith.constant 1.250000e-01 : f32
    %62 = vector.broadcast %cst_46 : f32 to vector<32x32xf32>
    %63 = arith.mulf %61, %62 : vector<32x32xf32>
    %cst_47 = arith.constant dense<0xFF800000> : vector<32xf32>
    %64 = vector.multi_reduction <maximumf>, %63, %cst_47 [1] : vector<32x32xf32> to vector<32xf32>
    %65 = vector.shape_cast %64 : vector<32xf32> to vector<32x1xf32>
    %66 = vector.broadcast %65 : vector<32x1xf32> to vector<32x32xf32>
    %67 = arith.subf %63, %66 : vector<32x32xf32>
    %68 = math.exp %67 : vector<32x32xf32>
    %cst_48 = arith.constant dense<0.000000e+00> : vector<32xf32>
    %69 = vector.multi_reduction <add>, %68, %cst_48 [1] : vector<32x32xf32> to vector<32xf32>
    %70 = vector.shape_cast %69 : vector<32xf32> to vector<32x1xf32>
    %71 = tpu.reciprocal %70 {approx = true} : vector<32x1xf32> -> vector<32x1xf32>
    %72 = vector.broadcast %71 : vector<32x1xf32> to vector<32x32xf32>
    %73 = arith.mulf %68, %72 : vector<32x32xf32>
    %74 = arith.truncf %73 : vector<32x32xf32> to vector<32x32xbf16>
    %cst_49 = arith.constant dense<0.000000e+00> : vector<32x64xf32>
    %75 = tpu.matmul %74, %60, %cst_49 {dimension_numbers = #tpu.dot_dimension_numbers<[1], [0], [0], [1], [0, 0, 1, 1], [], []>} : vector<32x32xbf16>, vector<32x64xbf16>, vector<32x64xf32> -> vector<32x64xf32>
    %76 = vector.extract_strided_slice %44 {offsets = [0, 64], sizes = [32, 64], strides = [1, 1]} : vector<32x128xf32> to vector<32x64xf32>
    %77 = arith.truncf %76 : vector<32x64xf32> to vector<32x64xbf16>
    %78 = vector.extract_strided_slice %49 {offsets = [0, 64], sizes = [32, 64], strides = [1, 1]} : vector<32x128xf32> to vector<32x64xf32>
    %79 = arith.truncf %78 : vector<32x64xf32> to vector<32x64xbf16>
    %80 = vector.extract_strided_slice %54 {offsets = [0, 64], sizes = [32, 64], strides = [1, 1]} : vector<32x128xf32> to vector<32x64xf32>
    %81 = arith.truncf %80 : vector<32x64xf32> to vector<32x64xbf16>
    %cst_50 = arith.constant dense<0.000000e+00> : vector<32x32xf32>
    %82 = tpu.matmul %77, %79, %cst_50 {dimension_numbers = #tpu.dot_dimension_numbers<[1], [1], [0], [0], [0, 0, 1, 0], [], []>} : vector<32x64xbf16>, vector<32x64xbf16>, vector<32x32xf32> -> vector<32x32xf32>
    %cst_51 = arith.constant 1.250000e-01 : f32
    %83 = vector.broadcast %cst_51 : f32 to vector<32x32xf32>
    %84 = arith.mulf %82, %83 : vector<32x32xf32>
    %cst_52 = arith.constant dense<0xFF800000> : vector<32xf32>
    %85 = vector.multi_reduction <maximumf>, %84, %cst_52 [1] : vector<32x32xf32> to vector<32xf32>
    %86 = vector.shape_cast %85 : vector<32xf32> to vector<32x1xf32>
    %87 = vector.broadcast %86 : vector<32x1xf32> to vector<32x32xf32>
    %88 = arith.subf %84, %87 : vector<32x32xf32>
    %89 = math.exp %88 : vector<32x32xf32>
    %cst_53 = arith.constant dense<0.000000e+00> : vector<32xf32>
    %90 = vector.multi_reduction <add>, %89, %cst_53 [1] : vector<32x32xf32> to vector<32xf32>
    %91 = vector.shape_cast %90 : vector<32xf32> to vector<32x1xf32>
    %92 = tpu.reciprocal %91 {approx = true} : vector<32x1xf32> -> vector<32x1xf32>
    %93 = vector.broadcast %92 : vector<32x1xf32> to vector<32x32xf32>
    %94 = arith.mulf %89, %93 : vector<32x32xf32>
    %95 = arith.truncf %94 : vector<32x32xf32> to vector<32x32xbf16>
    %cst_54 = arith.constant dense<0.000000e+00> : vector<32x64xf32>
    %96 = tpu.matmul %95, %81, %cst_54 {dimension_numbers = #tpu.dot_dimension_numbers<[1], [0], [0], [1], [0, 0, 1, 1], [], []>} : vector<32x32xbf16>, vector<32x64xbf16>, vector<32x64xf32> -> vector<32x64xf32>
    %97 = tpu.concatenate %75, %96 in 1 : vector<32x64xf32>, vector<32x64xf32> -> vector<32x128xf32>
    %98 = arith.truncf %97 : vector<32x128xf32> to vector<32x128xbf16>
    %99 = arith.truncf %10 : vector<128x32xf32> to vector<128x32xbf16>
    %cst_55 = arith.constant dense<0.000000e+00> : vector<32x32xf32>
    %100 = tpu.matmul %98, %99, %cst_55 {dimension_numbers = #tpu.dot_dimension_numbers<[1], [0], [0], [1], [0, 0, 1, 1], [], []>} : vector<32x128xbf16>, vector<128x32xbf16>, vector<32x32xf32> -> vector<32x32xf32>
    %101 = vector.broadcast %11 : vector<1x32xf32> to vector<32x32xf32>
    %102 = arith.addf %100, %101 : vector<32x32xf32>
    %103 = arith.addf %1, %102 : vector<32x32xf32>
    %cst_56 = arith.constant dense<0.000000e+00> : vector<32xf32>
    %104 = vector.multi_reduction <add>, %103, %cst_56 [1] : vector<32x32xf32> to vector<32xf32>
    %105 = vector.shape_cast %104 : vector<32xf32> to vector<32x1xf32>
    %cst_57 = arith.constant 3.200000e+01 : f32
    %106 = vector.broadcast %cst_57 : f32 to vector<32x1xf32>
    %107 = arith.divf %105, %106 : vector<32x1xf32>
    %108 = vector.broadcast %107 : vector<32x1xf32> to vector<32x32xf32>
    %109 = arith.subf %103, %108 : vector<32x32xf32>
    %110 = arith.mulf %109, %109 : vector<32x32xf32>
    %cst_58 = arith.constant dense<0.000000e+00> : vector<32xf32>
    %111 = vector.multi_reduction <add>, %110, %cst_58 [1] : vector<32x32xf32> to vector<32xf32>
    %112 = vector.shape_cast %111 : vector<32xf32> to vector<32x1xf32>
    %cst_59 = arith.constant 3.200000e+01 : f32
    %113 = vector.broadcast %cst_59 : f32 to vector<32x1xf32>
    %114 = arith.divf %112, %113 : vector<32x1xf32>
    %cst_60 = arith.constant 9.99999974E-6 : f32
    %115 = vector.broadcast %cst_60 : f32 to vector<32x1xf32>
    %116 = arith.addf %114, %115 : vector<32x1xf32>
    %117 = math.rsqrt %116 : vector<32x1xf32>
    %118 = vector.broadcast %117 : vector<32x1xf32> to vector<32x32xf32>
    %119 = arith.mulf %109, %118 : vector<32x32xf32>
    %120 = vector.broadcast %12 : vector<1x32xf32> to vector<32x32xf32>
    %121 = arith.mulf %119, %120 : vector<32x32xf32>
    %122 = vector.broadcast %13 : vector<1x32xf32> to vector<32x32xf32>
    %123 = arith.addf %121, %122 : vector<32x32xf32>
    %124 = arith.truncf %123 : vector<32x32xf32> to vector<32x32xbf16>
    %125 = arith.truncf %14 : vector<32x64xf32> to vector<32x64xbf16>
    %cst_61 = arith.constant dense<0.000000e+00> : vector<32x64xf32>
    %126 = tpu.matmul %124, %125, %cst_61 {dimension_numbers = #tpu.dot_dimension_numbers<[1], [0], [0], [1], [0, 0, 1, 1], [], []>} : vector<32x32xbf16>, vector<32x64xbf16>, vector<32x64xf32> -> vector<32x64xf32>
    %127 = vector.broadcast %15 : vector<1x64xf32> to vector<32x64xf32>
    %128 = arith.addf %126, %127 : vector<32x64xf32>
    %129 = arith.mulf %128, %128 : vector<32x64xf32>
    %130 = arith.mulf %128, %129 : vector<32x64xf32>
    %cst_62 = arith.constant 4.471500e-02 : f32
    %131 = vector.broadcast %cst_62 : f32 to vector<32x64xf32>
    %132 = arith.mulf %131, %130 : vector<32x64xf32>
    %133 = arith.addf %128, %132 : vector<32x64xf32>
    %cst_63 = arith.constant 0.797884583 : f32
    %134 = vector.broadcast %cst_63 : f32 to vector<32x64xf32>
    %135 = arith.mulf %134, %133 : vector<32x64xf32>
    %136 = math.tanh %135 : vector<32x64xf32>
    %cst_64 = arith.constant 1.000000e+00 : f32
    %137 = vector.broadcast %cst_64 : f32 to vector<32x64xf32>
    %138 = arith.addf %137, %136 : vector<32x64xf32>
    %cst_65 = arith.constant 5.000000e-01 : f32
    %139 = vector.broadcast %cst_65 : f32 to vector<32x64xf32>
    %140 = arith.mulf %139, %138 : vector<32x64xf32>
    %141 = arith.mulf %128, %140 : vector<32x64xf32>
    %142 = arith.truncf %141 : vector<32x64xf32> to vector<32x64xbf16>
    %143 = arith.truncf %16 : vector<64x32xf32> to vector<64x32xbf16>
    %cst_66 = arith.constant dense<0.000000e+00> : vector<32x32xf32>
    %144 = tpu.matmul %142, %143, %cst_66 {dimension_numbers = #tpu.dot_dimension_numbers<[1], [0], [0], [1], [0, 0, 1, 1], [], []>} : vector<32x64xbf16>, vector<64x32xbf16>, vector<32x32xf32> -> vector<32x32xf32>
    %145 = vector.broadcast %17 : vector<1x32xf32> to vector<32x32xf32>
    %146 = arith.addf %144, %145 : vector<32x32xf32>
    %147 = arith.addf %103, %146 : vector<32x32xf32>
    %cst_67 = arith.constant dense<0.000000e+00> : vector<32xf32>
    %148 = vector.multi_reduction <add>, %147, %cst_67 [1] : vector<32x32xf32> to vector<32xf32>
    %149 = vector.shape_cast %148 : vector<32xf32> to vector<32x1xf32>
    %cst_68 = arith.constant 3.200000e+01 : f32
    %150 = vector.broadcast %cst_68 : f32 to vector<32x1xf32>
    %151 = arith.divf %149, %150 : vector<32x1xf32>
    %152 = vector.broadcast %151 : vector<32x1xf32> to vector<32x32xf32>
    %153 = arith.subf %147, %152 : vector<32x32xf32>
    %154 = arith.mulf %153, %153 : vector<32x32xf32>
    %cst_69 = arith.constant dense<0.000000e+00> : vector<32xf32>
    %155 = vector.multi_reduction <add>, %154, %cst_69 [1] : vector<32x32xf32> to vector<32xf32>
    %156 = vector.shape_cast %155 : vector<32xf32> to vector<32x1xf32>
    %cst_70 = arith.constant 3.200000e+01 : f32
    %157 = vector.broadcast %cst_70 : f32 to vector<32x1xf32>
    %158 = arith.divf %156, %157 : vector<32x1xf32>
    %cst_71 = arith.constant 9.99999974E-6 : f32
    %159 = vector.broadcast %cst_71 : f32 to vector<32x1xf32>
    %160 = arith.addf %158, %159 : vector<32x1xf32>
    %161 = math.rsqrt %160 : vector<32x1xf32>
    %162 = vector.broadcast %161 : vector<32x1xf32> to vector<32x32xf32>
    %163 = arith.mulf %153, %162 : vector<32x32xf32>
    %164 = vector.broadcast %18 : vector<1x32xf32> to vector<32x32xf32>
    %165 = arith.mulf %163, %164 : vector<32x32xf32>
    %166 = vector.broadcast %19 : vector<1x32xf32> to vector<32x32xf32>
    %167 = arith.addf %165, %166 : vector<32x32xf32>
    %c0_72 = arith.constant 0 : index
    %c0_73 = arith.constant 0 : index
    %c0_74 = arith.constant 0 : index
    %168 = vector.load %arg20[%c0_72, %c0_73, %c0_74] : memref<1x32x32xf32, #tpu.memory_space<vmem>>, vector<1x32x32xf32>
    %169 = vector.shape_cast %168 : vector<1x32x32xf32> to vector<32x32xf32>
    %170 = vector.shape_cast %167 : vector<32x32xf32> to vector<1x32x32xf32>
    tpu.vector_store %arg20[%c0_72, %c0_73, %c0_74], %170 {strides = array<i32>} : memref<1x32x32xf32, #tpu.memory_space<vmem>>, vector<1x32x32xf32>,
    return
  }
  func.func @transform_0(%arg0: i32) -> (i32, i32, i32) {
    %c0_i32 = arith.constant 0 : i32
    %c0_i32_0 = arith.constant 0 : i32
    %c0_i32_1 = arith.constant 0 : i32
    return %arg0, %c0_i32, %c0_i32_0 : i32, i32, i32
  }
  func.func @transform_1(%arg0: i32) -> (i32, i32) {
    %c0_i32 = arith.constant 0 : i32
    %c0_i32_0 = arith.constant 0 : i32
    %c0_i32_1 = arith.constant 0 : i32
    return %c0_i32, %c0_i32_0 : i32, i32
  }
  func.func @transform_2(%arg0: i32) -> (i32, i32) {
    %c0_i32 = arith.constant 0 : i32
    %c0_i32_0 = arith.constant 0 : i32
    %c0_i32_1 = arith.constant 0 : i32
    return %c0_i32, %c0_i32_0 : i32, i32
  }
  func.func @transform_3(%arg0: i32) -> (i32, i32) {
    %c0_i32 = arith.constant 0 : i32
    %c0_i32_0 = arith.constant 0 : i32
    %c0_i32_1 = arith.constant 0 : i32
    return %c0_i32, %c0_i32_0 : i32, i32
  }
  func.func @transform_4(%arg0: i32) -> (i32, i32) {
    %c0_i32 = arith.constant 0 : i32
    %c0_i32_0 = arith.constant 0 : i32
    %c0_i32_1 = arith.constant 0 : i32
    return %c0_i32, %c0_i32_0 : i32, i32
  }
  func.func @transform_5(%arg0: i32) -> (i32, i32) {
    %c0_i32 = arith.constant 0 : i32
    %c0_i32_0 = arith.constant 0 : i32
    %c0_i32_1 = arith.constant 0 : i32
    return %c0_i32, %c0_i32_0 : i32, i32
  }
  func.func @transform_6(%arg0: i32) -> (i32, i32) {
    %c0_i32 = arith.constant 0 : i32
    %c0_i32_0 = arith.constant 0 : i32
    %c0_i32_1 = arith.constant 0 : i32
    return %c0_i32, %c0_i32_0 : i32, i32
  }
  func.func @transform_7(%arg0: i32) -> (i32, i32) {
    %c0_i32 = arith.constant 0 : i32
    %c0_i32_0 = arith.constant 0 : i32
    %c0_i32_1 = arith.constant 0 : i32
    return %c0_i32, %c0_i32_0 : i32, i32
  }
  func.func @transform_8(%arg0: i32) -> (i32, i32) {
    %c0_i32 = arith.constant 0 : i32
    %c0_i32_0 = arith.constant 0 : i32
    %c0_i32_1 = arith.constant 0 : i32
    return %c0_i32, %c0_i32_0 : i32, i32
  }
  func.func @transform_9(%arg0: i32) -> (i32, i32) {
    %c0_i32 = arith.constant 0 : i32
    %c0_i32_0 = arith.constant 0 : i32
    %c0_i32_1 = arith.constant 0 : i32
    return %c0_i32, %c0_i32_0 : i32, i32
  }
  func.func @transform_10(%arg0: i32) -> (i32, i32) {
    %c0_i32 = arith.constant 0 : i32
    %c0_i32_0 = arith.constant 0 : i32
    %c0_i32_1 = arith.constant 0 : i32
    return %c0_i32, %c0_i32_0 : i32, i32
  }
  func.func @transform_11(%arg0: i32) -> (i32, i32) {
    %c0_i32 = arith.constant 0 : i32
    %c0_i32_0 = arith.constant 0 : i32
    %c0_i32_1 = arith.constant 0 : i32
    return %c0_i32, %c0_i32_0 : i32, i32
  }
  func.func @transform_12(%arg0: i32) -> (i32, i32) {
    %c0_i32 = arith.constant 0 : i32
    %c0_i32_0 = arith.constant 0 : i32
    %c0_i32_1 = arith.constant 0 : i32
    return %c0_i32, %c0_i32_0 : i32, i32
  }
  func.func @transform_13(%arg0: i32) -> (i32, i32) {
    %c0_i32 = arith.constant 0 : i32
    %c0_i32_0 = arith.constant 0 : i32
    %c0_i32_1 = arith.constant 0 : i32
    return %c0_i32, %c0_i32_0 : i32, i32
  }
  func.func @transform_14(%arg0: i32) -> (i32, i32) {
    %c0_i32 = arith.constant 0 : i32
    %c0_i32_0 = arith.constant 0 : i32
    %c0_i32_1 = arith.constant 0 : i32
    return %c0_i32, %c0_i32_0 : i32, i32
  }
  func.func @transform_15(%arg0: i32) -> (i32, i32) {
    %c0_i32 = arith.constant 0 : i32
    %c0_i32_0 = arith.constant 0 : i32
    %c0_i32_1 = arith.constant 0 : i32
    return %c0_i32, %c0_i32_0 : i32, i32
  }
  func.func @transform_16(%arg0: i32) -> (i32, i32) {
    %c0_i32 = arith.constant 0 : i32
    %c0_i32_0 = arith.constant 0 : i32
    %c0_i32_1 = arith.constant 0 : i32
    return %c0_i32, %c0_i32_0 : i32, i32
  }
  func.func @transform_17(%arg0: i32) -> (i32, i32) {
    %c0_i32 = arith.constant 0 : i32
    %c0_i32_0 = arith.constant 0 : i32
    %c0_i32_1 = arith.constant 0 : i32
    return %c0_i32, %c0_i32_0 : i32, i32
  }
  func.func @transform_18(%arg0: i32) -> (i32, i32) {
    %c0_i32 = arith.constant 0 : i32
    %c0_i32_0 = arith.constant 0 : i32
    %c0_i32_1 = arith.constant 0 : i32
    return %c0_i32, %c0_i32_0 : i32, i32
  }
  func.func @transform_19(%arg0: i32) -> (i32, i32, i32) {
    %c0_i32 = arith.constant 0 : i32
    %c0_i32_0 = arith.constant 0 : i32
    %c0_i32_1 = arith.constant 0 : i32
    return %arg0, %c0_i32, %c0_i32_0 : i32, i32, i32
  }
}

module attributes {stable_mosaic.version = 11 : i64} {
  func.func @_matmul_kernel(%arg0: i32, %arg1: i32, %arg2: i32, %arg3: memref<2x512xf32, #tpu.memory_space<vmem>>, %arg4: memref<512x16xf32, #tpu.memory_space<vmem>>, %arg5: memref<1x16xf32, #tpu.memory_space<vmem>>, %arg6: memref<2x16xf32, #tpu.memory_space<vmem>>, %arg7: memref<2x16xf32, #tpu.memory_space<vmem>>) attributes {dimension_semantics = [#tpu.dimension_semantics<parallel>, #tpu.dimension_semantics<parallel>, #tpu.dimension_semantics<arbitrary>], iteration_bounds = array<i64: 1, 1, 2>, scalar_prefetch = 0 : i64, scratch_operands = 1 : i64, tpu.core_type = #tpu.core_type<tc>, window_params = [{transform_indices = @transform_0, window_bounds = array<i64: 2, 512>}, {transform_indices = @transform_1, window_bounds = array<i64: 512, 16>}, {transform_indices = @transform_2, window_bounds = array<i64: 1, 16>}, {transform_indices = @transform_3, window_bounds = array<i64: 2, 16>}]} {
    %c0_i32 = arith.constant 0 : i32
    %0 = arith.cmpi eq, %arg2, %c0_i32 : i32
    %1 = arith.extui %0 : i1 to i32
    %c0_i32_0 = arith.constant 0 : i32
    %2 = arith.cmpi ne, %1, %c0_i32_0 : i32
    scf.if %2 {
      %cst_9 = arith.constant 0.000000e+00 : f32
      %14 = vector.broadcast %cst_9 : f32 to vector<2x16xf32>
      %c0_10 = arith.constant 0 : index
      %c0_11 = arith.constant 0 : index
      %15 = vector.load %arg7[%c0_10, %c0_11] : memref<2x16xf32, #tpu.memory_space<vmem>>, vector<2x16xf32>
      tpu.vector_store %arg7[%c0_10, %c0_11], %14 {strides = array<i32>} : memref<2x16xf32, #tpu.memory_space<vmem>>, vector<2x16xf32>,
    } else {
    }
    %c0 = arith.constant 0 : index
    %c0_1 = arith.constant 0 : index
    %3 = vector.load %arg7[%c0, %c0_1] : memref<2x16xf32, #tpu.memory_space<vmem>>, vector<2x16xf32>
    %c0_2 = arith.constant 0 : index
    %c0_3 = arith.constant 0 : index
    %4 = vector.load %arg3[%c0_2, %c0_3] : memref<2x512xf32, #tpu.memory_space<vmem>>, vector<2x512xf32>
    %5 = arith.truncf %4 : vector<2x512xf32> to vector<2x512xbf16>
    %c0_4 = arith.constant 0 : index
    %c0_5 = arith.constant 0 : index
    %6 = vector.load %arg4[%c0_4, %c0_5] : memref<512x16xf32, #tpu.memory_space<vmem>>, vector<512x16xf32>
    %7 = arith.truncf %6 : vector<512x16xf32> to vector<512x16xbf16>
    %cst = arith.constant dense<0.000000e+00> : vector<2x16xf32>
    %8 = tpu.matmul %5, %7, %cst {dimension_numbers = #tpu.dot_dimension_numbers<[1], [0], [0], [1], [0, 0, 1, 1], [], []>} : vector<2x512xbf16>, vector<512x16xbf16>, vector<2x16xf32> -> vector<2x16xf32>
    %9 = arith.addf %3, %8 : vector<2x16xf32>
    %c0_6 = arith.constant 0 : index
    %c0_7 = arith.constant 0 : index
    %10 = vector.load %arg7[%c0_6, %c0_7] : memref<2x16xf32, #tpu.memory_space<vmem>>, vector<2x16xf32>
    tpu.vector_store %arg7[%c0_6, %c0_7], %9 {strides = array<i32>} : memref<2x16xf32, #tpu.memory_space<vmem>>, vector<2x16xf32>,
    %c1_i32 = arith.constant 1 : i32
    %11 = arith.cmpi eq, %arg2, %c1_i32 : i32
    %12 = arith.extui %11 : i1 to i32
    %c0_i32_8 = arith.constant 0 : i32
    %13 = arith.cmpi ne, %12, %c0_i32_8 : i32
    scf.if %13 {
      %c0_9 = arith.constant 0 : index
      %c0_10 = arith.constant 0 : index
      %14 = vector.load %arg7[%c0_9, %c0_10] : memref<2x16xf32, #tpu.memory_space<vmem>>, vector<2x16xf32>
      %c0_11 = arith.constant 0 : index
      %c0_12 = arith.constant 0 : index
      %15 = vector.load %arg5[%c0_11, %c0_12] : memref<1x16xf32, #tpu.memory_space<vmem>>, vector<1x16xf32>
      %16 = vector.broadcast %15 : vector<1x16xf32> to vector<2x16xf32>
      %17 = arith.addf %14, %16 : vector<2x16xf32>
      %c0_13 = arith.constant 0 : index
      %c0_14 = arith.constant 0 : index
      %18 = vector.load %arg6[%c0_13, %c0_14] : memref<2x16xf32, #tpu.memory_space<vmem>>, vector<2x16xf32>
      tpu.vector_store %arg6[%c0_13, %c0_14], %17 {strides = array<i32>} : memref<2x16xf32, #tpu.memory_space<vmem>>, vector<2x16xf32>,
    } else {
    }
    return
  }
  func.func @transform_0(%arg0: i32, %arg1: i32, %arg2: i32) -> (i32, i32) {
    %c0_i32 = arith.constant 0 : i32
    return %arg0, %arg2 : i32, i32
  }
  func.func @transform_1(%arg0: i32, %arg1: i32, %arg2: i32) -> (i32, i32) {
    %c0_i32 = arith.constant 0 : i32
    return %arg2, %arg1 : i32, i32
  }
  func.func @transform_2(%arg0: i32, %arg1: i32, %arg2: i32) -> (i32, i32) {
    %c0_i32 = arith.constant 0 : i32
    %c0_i32_0 = arith.constant 0 : i32
    return %c0_i32, %arg1 : i32, i32
  }
  func.func @transform_3(%arg0: i32, %arg1: i32, %arg2: i32) -> (i32, i32) {
    %c0_i32 = arith.constant 0 : i32
    return %arg0, %arg1 : i32, i32
  }
}

module attributes {stable_mosaic.version = 11 : i64} {
  func.func @_codebook_kernel(%arg0: i32, %arg1: memref<2x16xf32, #tpu.memory_space<vmem>>, %arg2: memref<8x16xf32, #tpu.memory_space<vmem>>, %arg3: memref<2x16xf32, #tpu.memory_space<vmem>>, %arg4: memref<2x128xi32, #tpu.memory_space<vmem>>) attributes {dimension_semantics = [#tpu.dimension_semantics<arbitrary>], iteration_bounds = array<i64: 1>, scalar_prefetch = 0 : i64, scratch_operands = 0 : i64, tpu.core_type = #tpu.core_type<tc>, window_params = [{pipeline_mode = #tpu.pipeline_mode<synchronous>, transform_indices = @transform_0, window_bounds = array<i64: 2, 16>}, {pipeline_mode = #tpu.pipeline_mode<synchronous>, transform_indices = @transform_1, window_bounds = array<i64: 8, 16>}, {pipeline_mode = #tpu.pipeline_mode<synchronous>, transform_indices = @transform_2, window_bounds = array<i64: 2, 16>}, {pipeline_mode = #tpu.pipeline_mode<synchronous>, transform_indices = @transform_3, window_bounds = array<i64: 2, 128>}]} {
    %c0 = arith.constant 0 : index
    %c0_0 = arith.constant 0 : index
    %0 = vector.load %arg1[%c0, %c0_0] : memref<2x16xf32, #tpu.memory_space<vmem>>, vector<2x16xf32>
    %c0_1 = arith.constant 0 : index
    %c0_2 = arith.constant 0 : index
    %1 = vector.load %arg2[%c0_1, %c0_2] : memref<8x16xf32, #tpu.memory_space<vmem>>, vector<8x16xf32>
    %cst = arith.constant dense<0.000000e+00> : vector<2x8xf32>
    %2 = tpu.matmul %0, %1, %cst {dimension_numbers = #tpu.dot_dimension_numbers<[1], [1], [0], [0], [0, 0, 1, 0], [], []>} : vector<2x16xf32>, vector<8x16xf32>, vector<2x8xf32> -> vector<2x8xf32>
    %3 = arith.mulf %0, %0 : vector<2x16xf32>
    %cst_3 = arith.constant dense<0.000000e+00> : vector<2xf32>
    %4 = vector.multi_reduction <add>, %3, %cst_3 [1] : vector<2x16xf32> to vector<2xf32>
    %5 = vector.shape_cast %4 : vector<2xf32> to vector<2x1xf32>
    %cst_4 = arith.constant 2.000000e+00 : f32
    %6 = vector.broadcast %cst_4 : f32 to vector<2x8xf32>
    %7 = arith.mulf %6, %2 : vector<2x8xf32>
    %8 = vector.broadcast %5 : vector<2x1xf32> to vector<2x8xf32>
    %9 = arith.subf %8, %7 : vector<2x8xf32>
    %10 = arith.mulf %1, %1 : vector<8x16xf32>
    %cst_5 = arith.constant dense<0.000000e+00> : vector<8xf32>
    %11 = vector.multi_reduction <add>, %10, %cst_5 [1] : vector<8x16xf32> to vector<8xf32>
    %12 = vector.shape_cast %11 : vector<8xf32> to vector<1x8xf32>
    %13 = vector.broadcast %12 : vector<1x8xf32> to vector<2x8xf32>
    %14 = arith.addf %9, %13 : vector<2x8xf32>
    %15 = tpu.iota {dimensions = array<i32: 1>} : vector<2x8xi32>
    %cst_6 = arith.constant dense<0x7F800000> : vector<2xf32>
    %16 = vector.multi_reduction <minimumf>, %14, %cst_6 [1] : vector<2x8xf32> to vector<2xf32>
    %17 = vector.shape_cast %16 : vector<2xf32> to vector<2x1xf32>
    %18 = vector.broadcast %17 : vector<2x1xf32> to vector<2x8xf32>
    %19 = arith.cmpf ole, %14, %18 : vector<2x8xf32>
    %c8_i32 = arith.constant 8 : i32
    %20 = vector.broadcast %c8_i32 : i32 to vector<2x8xi32>
    %21 = arith.select %19, %15, %20 : vector<2x8xi1>, vector<2x8xi32>
    %cst_7 = arith.constant dense<2147483647> : vector<2xi32>
    %22 = vector.multi_reduction <minsi>, %21, %cst_7 [1] : vector<2x8xi32> to vector<2xi32>
    %23 = tpu.iota {dimensions = array<i32: 0>} : vector<8x16xi32>
    %24 = vector.extract_strided_slice %22 {offsets = [0], sizes = [1], strides = [1]} : vector<2xi32> to vector<1xi32>
    %25 = vector.extract %24[0] : i32 from vector<1xi32>
    %26 = vector.broadcast %25 : i32 to vector<8x16xi32>
    %27 = arith.cmpi eq, %23, %26 : vector<8x16xi32>
    %28 = arith.extui %27 : vector<8x16xi1> to vector<8x16xi32>
    %29 = arith.sitofp %28 : vector<8x16xi32> to vector<8x16xf32>
    %30 = arith.mulf %29, %1 : vector<8x16xf32>
    %cst_8 = arith.constant dense<0.000000e+00> : vector<16xf32>
    %31 = vector.multi_reduction <add>, %30, %cst_8 [0] : vector<8x16xf32> to vector<16xf32>
    %32 = vector.shape_cast %31 : vector<16xf32> to vector<1x16xf32>
    %33 = vector.extract_strided_slice %22 {offsets = [1], sizes = [1], strides = [1]} : vector<2xi32> to vector<1xi32>
    %34 = vector.extract %33[0] : i32 from vector<1xi32>
    %35 = vector.broadcast %34 : i32 to vector<8x16xi32>
    %36 = arith.cmpi eq, %23, %35 : vector<8x16xi32>
    %37 = arith.extui %36 : vector<8x16xi1> to vector<8x16xi32>
    %38 = arith.sitofp %37 : vector<8x16xi32> to vector<8x16xf32>
    %39 = arith.mulf %38, %1 : vector<8x16xf32>
    %cst_9 = arith.constant dense<0.000000e+00> : vector<16xf32>
    %40 = vector.multi_reduction <add>, %39, %cst_9 [0] : vector<8x16xf32> to vector<16xf32>
    %41 = vector.shape_cast %40 : vector<16xf32> to vector<1x16xf32>
    %42 = tpu.concatenate %32, %41 in 0 : vector<1x16xf32>, vector<1x16xf32> -> vector<2x16xf32>
    %c0_10 = arith.constant 0 : index
    %c0_11 = arith.constant 0 : index
    %43 = vector.load %arg3[%c0_10, %c0_11] : memref<2x16xf32, #tpu.memory_space<vmem>>, vector<2x16xf32>
    tpu.vector_store %arg3[%c0_10, %c0_11], %42 {strides = array<i32>} : memref<2x16xf32, #tpu.memory_space<vmem>>, vector<2x16xf32>,
    %44 = vector.shape_cast %22 : vector<2xi32> to vector<2x1xi32>
    %45 = vector.shape_cast %44 : vector<2x1xi32> to vector<2x1xi32>
    %46 = vector.broadcast %45 : vector<2x1xi32> to vector<2x128xi32>
    %c0_12 = arith.constant 0 : index
    %c0_13 = arith.constant 0 : index
    %47 = vector.load %arg4[%c0_12, %c0_13] : memref<2x128xi32, #tpu.memory_space<vmem>>, vector<2x128xi32>
    tpu.vector_store %arg4[%c0_12, %c0_13], %46 {strides = array<i32>} : memref<2x128xi32, #tpu.memory_space<vmem>>, vector<2x128xi32>,
    return
  }
  func.func @transform_0(%arg0: i32) -> (i32, i32) {
    %c0_i32 = arith.constant 0 : i32
    %c0_i32_0 = arith.constant 0 : i32
    %c0_i32_1 = arith.constant 0 : i32
    return %c0_i32, %c0_i32_0 : i32, i32
  }
  func.func @transform_1(%arg0: i32) -> (i32, i32) {
    %c0_i32 = arith.constant 0 : i32
    %c0_i32_0 = arith.constant 0 : i32
    %c0_i32_1 = arith.constant 0 : i32
    return %c0_i32, %c0_i32_0 : i32, i32
  }
  func.func @transform_2(%arg0: i32) -> (i32, i32) {
    %c0_i32 = arith.constant 0 : i32
    %c0_i32_0 = arith.constant 0 : i32
    %c0_i32_1 = arith.constant 0 : i32
    return %c0_i32, %c0_i32_0 : i32, i32
  }
  func.func @transform_3(%arg0: i32) -> (i32, i32) {
    %c0_i32 = arith.constant 0 : i32
    %c0_i32_0 = arith.constant 0 : i32
    %c0_i32_1 = arith.constant 0 : i32
    return %c0_i32, %c0_i32_0 : i32, i32
  }
}

module attributes {stable_mosaic.version = 11 : i64} {
  func.func @_matmul_kernel(%arg0: i32, %arg1: i32, %arg2: i32, %arg3: memref<2x16xf32, #tpu.memory_space<vmem>>, %arg4: memref<16x512xf32, #tpu.memory_space<vmem>>, %arg5: memref<1x512xf32, #tpu.memory_space<vmem>>, %arg6: memref<2x512xf32, #tpu.memory_space<vmem>>, %arg7: memref<2x512xf32, #tpu.memory_space<vmem>>) attributes {dimension_semantics = [#tpu.dimension_semantics<parallel>, #tpu.dimension_semantics<parallel>, #tpu.dimension_semantics<arbitrary>], iteration_bounds = array<i64: 1, 1, 1>, scalar_prefetch = 0 : i64, scratch_operands = 1 : i64, tpu.core_type = #tpu.core_type<tc>, window_params = [{transform_indices = @transform_0, window_bounds = array<i64: 2, 16>}, {transform_indices = @transform_1, window_bounds = array<i64: 16, 512>}, {transform_indices = @transform_2, window_bounds = array<i64: 1, 512>}, {transform_indices = @transform_3, window_bounds = array<i64: 2, 512>}]} {
    %c0_i32 = arith.constant 0 : i32
    %0 = arith.cmpi eq, %arg2, %c0_i32 : i32
    %1 = arith.extui %0 : i1 to i32
    %c0_i32_0 = arith.constant 0 : i32
    %2 = arith.cmpi ne, %1, %c0_i32_0 : i32
    scf.if %2 {
      %cst_10 = arith.constant 0.000000e+00 : f32
      %14 = vector.broadcast %cst_10 : f32 to vector<2x512xf32>
      %c0_11 = arith.constant 0 : index
      %c0_12 = arith.constant 0 : index
      %15 = vector.load %arg7[%c0_11, %c0_12] : memref<2x512xf32, #tpu.memory_space<vmem>>, vector<2x512xf32>
      tpu.vector_store %arg7[%c0_11, %c0_12], %14 {strides = array<i32>} : memref<2x512xf32, #tpu.memory_space<vmem>>, vector<2x512xf32>,
    } else {
    }
    %c0 = arith.constant 0 : index
    %c0_1 = arith.constant 0 : index
    %3 = vector.load %arg7[%c0, %c0_1] : memref<2x512xf32, #tpu.memory_space<vmem>>, vector<2x512xf32>
    %c0_2 = arith.constant 0 : index
    %c0_3 = arith.constant 0 : index
    %4 = vector.load %arg3[%c0_2, %c0_3] : memref<2x16xf32, #tpu.memory_space<vmem>>, vector<2x16xf32>
    %5 = arith.truncf %4 : vector<2x16xf32> to vector<2x16xbf16>
    %c0_4 = arith.constant 0 : index
    %c0_5 = arith.constant 0 : index
    %6 = vector.load %arg4[%c0_4, %c0_5] : memref<16x512xf32, #tpu.memory_space<vmem>>, vector<16x512xf32>
    %7 = arith.truncf %6 : vector<16x512xf32> to vector<16x512xbf16>
    %cst = arith.constant dense<0.000000e+00> : vector<2x512xf32>
    %8 = tpu.matmul %5, %7, %cst {dimension_numbers = #tpu.dot_dimension_numbers<[1], [0], [0], [1], [0, 0, 1, 1], [], []>} : vector<2x16xbf16>, vector<16x512xbf16>, vector<2x512xf32> -> vector<2x512xf32>
    %9 = arith.addf %3, %8 : vector<2x512xf32>
    %c0_6 = arith.constant 0 : index
    %c0_7 = arith.constant 0 : index
    %10 = vector.load %arg7[%c0_6, %c0_7] : memref<2x512xf32, #tpu.memory_space<vmem>>, vector<2x512xf32>
    tpu.vector_store %arg7[%c0_6, %c0_7], %9 {strides = array<i32>} : memref<2x512xf32, #tpu.memory_space<vmem>>, vector<2x512xf32>,
    %c0_i32_8 = arith.constant 0 : i32
    %11 = arith.cmpi eq, %arg2, %c0_i32_8 : i32
    %12 = arith.extui %11 : i1 to i32
    %c0_i32_9 = arith.constant 0 : i32
    %13 = arith.cmpi ne, %12, %c0_i32_9 : i32
    scf.if %13 {
      %c0_10 = arith.constant 0 : index
      %c0_11 = arith.constant 0 : index
      %14 = vector.load %arg7[%c0_10, %c0_11] : memref<2x512xf32, #tpu.memory_space<vmem>>, vector<2x512xf32>
      %c0_12 = arith.constant 0 : index
      %c0_13 = arith.constant 0 : index
      %15 = vector.load %arg5[%c0_12, %c0_13] : memref<1x512xf32, #tpu.memory_space<vmem>>, vector<1x512xf32>
      %16 = vector.broadcast %15 : vector<1x512xf32> to vector<2x512xf32>
      %17 = arith.addf %14, %16 : vector<2x512xf32>
      %c0_14 = arith.constant 0 : index
      %c0_15 = arith.constant 0 : index
      %18 = vector.load %arg6[%c0_14, %c0_15] : memref<2x512xf32, #tpu.memory_space<vmem>>, vector<2x512xf32>
      tpu.vector_store %arg6[%c0_14, %c0_15], %17 {strides = array<i32>} : memref<2x512xf32, #tpu.memory_space<vmem>>, vector<2x512xf32>,
    } else {
    }
    return
  }
  func.func @transform_0(%arg0: i32, %arg1: i32, %arg2: i32) -> (i32, i32) {
    %c0_i32 = arith.constant 0 : i32
    return %arg0, %arg2 : i32, i32
  }
  func.func @transform_1(%arg0: i32, %arg1: i32, %arg2: i32) -> (i32, i32) {
    %c0_i32 = arith.constant 0 : i32
    return %arg2, %arg1 : i32, i32
  }
  func.func @transform_2(%arg0: i32, %arg1: i32, %arg2: i32) -> (i32, i32) {
    %c0_i32 = arith.constant 0 : i32
    %c0_i32_0 = arith.constant 0 : i32
    return %c0_i32, %arg1 : i32, i32
  }
  func.func @transform_3(%arg0: i32, %arg1: i32, %arg2: i32) -> (i32, i32) {
    %c0_i32 = arith.constant 0 : i32
    return %arg0, %arg1 : i32, i32
  }
}

module attributes {stable_mosaic.version = 11 : i64} {
  func.func @_ln_linear_kernel(%arg0: i32, %arg1: memref<32x32xf32, #tpu.memory_space<vmem>>, %arg2: memref<1x32xf32, #tpu.memory_space<vmem>>, %arg3: memref<1x32xf32, #tpu.memory_space<vmem>>, %arg4: memref<32x48xf32, #tpu.memory_space<vmem>>, %arg5: memref<1x48xf32, #tpu.memory_space<vmem>>, %arg6: memref<32x48xf32, #tpu.memory_space<vmem>>) attributes {dimension_semantics = [#tpu.dimension_semantics<parallel>], iteration_bounds = array<i64: 1>, scalar_prefetch = 0 : i64, scratch_operands = 0 : i64, tpu.core_type = #tpu.core_type<tc>, window_params = [{transform_indices = @transform_0, window_bounds = array<i64: 32, 32>}, {pipeline_mode = #tpu.pipeline_mode<synchronous>, transform_indices = @transform_1, window_bounds = array<i64: 1, 32>}, {pipeline_mode = #tpu.pipeline_mode<synchronous>, transform_indices = @transform_2, window_bounds = array<i64: 1, 32>}, {pipeline_mode = #tpu.pipeline_mode<synchronous>, transform_indices = @transform_3, window_bounds = array<i64: 32, 48>}, {pipeline_mode = #tpu.pipeline_mode<synchronous>, transform_indices = @transform_4, window_bounds = array<i64: 1, 48>}, {transform_indices = @transform_5, window_bounds = array<i64: 32, 48>}]} {
    %c0 = arith.constant 0 : index
    %c0_0 = arith.constant 0 : index
    %0 = vector.load %arg1[%c0, %c0_0] : memref<32x32xf32, #tpu.memory_space<vmem>>, vector<32x32xf32>
    %c0_1 = arith.constant 0 : index
    %c0_2 = arith.constant 0 : index
    %1 = vector.load %arg2[%c0_1, %c0_2] : memref<1x32xf32, #tpu.memory_space<vmem>>, vector<1x32xf32>
    %c0_3 = arith.constant 0 : index
    %c0_4 = arith.constant 0 : index
    %2 = vector.load %arg3[%c0_3, %c0_4] : memref<1x32xf32, #tpu.memory_space<vmem>>, vector<1x32xf32>
    %cst = arith.constant dense<0.000000e+00> : vector<32xf32>
    %3 = vector.multi_reduction <add>, %0, %cst [1] : vector<32x32xf32> to vector<32xf32>
    %4 = vector.shape_cast %3 : vector<32xf32> to vector<32x1xf32>
    %cst_5 = arith.constant 3.200000e+01 : f32
    %5 = vector.broadcast %cst_5 : f32 to vector<32x1xf32>
    %6 = arith.divf %4, %5 : vector<32x1xf32>
    %7 = vector.broadcast %6 : vector<32x1xf32> to vector<32x32xf32>
    %8 = arith.subf %0, %7 : vector<32x32xf32>
    %9 = arith.mulf %8, %8 : vector<32x32xf32>
    %cst_6 = arith.constant dense<0.000000e+00> : vector<32xf32>
    %10 = vector.multi_reduction <add>, %9, %cst_6 [1] : vector<32x32xf32> to vector<32xf32>
    %11 = vector.shape_cast %10 : vector<32xf32> to vector<32x1xf32>
    %cst_7 = arith.constant 3.200000e+01 : f32
    %12 = vector.broadcast %cst_7 : f32 to vector<32x1xf32>
    %13 = arith.divf %11, %12 : vector<32x1xf32>
    %cst_8 = arith.constant 9.99999974E-6 : f32
    %14 = vector.broadcast %cst_8 : f32 to vector<32x1xf32>
    %15 = arith.addf %13, %14 : vector<32x1xf32>
    %16 = math.rsqrt %15 : vector<32x1xf32>
    %17 = vector.broadcast %16 : vector<32x1xf32> to vector<32x32xf32>
    %18 = arith.mulf %8, %17 : vector<32x32xf32>
    %19 = vector.broadcast %1 : vector<1x32xf32> to vector<32x32xf32>
    %20 = arith.mulf %18, %19 : vector<32x32xf32>
    %21 = vector.broadcast %2 : vector<1x32xf32> to vector<32x32xf32>
    %22 = arith.addf %20, %21 : vector<32x32xf32>
    %23 = arith.truncf %22 : vector<32x32xf32> to vector<32x32xbf16>
    %c0_9 = arith.constant 0 : index
    %c0_10 = arith.constant 0 : index
    %24 = vector.load %arg4[%c0_9, %c0_10] : memref<32x48xf32, #tpu.memory_space<vmem>>, vector<32x48xf32>
    %25 = arith.truncf %24 : vector<32x48xf32> to vector<32x48xbf16>
    %cst_11 = arith.constant dense<0.000000e+00> : vector<32x48xf32>
    %26 = tpu.matmul %23, %25, %cst_11 {dimension_numbers = #tpu.dot_dimension_numbers<[1], [0], [0], [1], [0, 0, 1, 1], [], []>} : vector<32x32xbf16>, vector<32x48xbf16>, vector<32x48xf32> -> vector<32x48xf32>
    %c0_12 = arith.constant 0 : index
    %c0_13 = arith.constant 0 : index
    %27 = vector.load %arg5[%c0_12, %c0_13] : memref<1x48xf32, #tpu.memory_space<vmem>>, vector<1x48xf32>
    %28 = vector.broadcast %27 : vector<1x48xf32> to vector<32x48xf32>
    %29 = arith.addf %26, %28 : vector<32x48xf32>
    %c0_14 = arith.constant 0 : index
    %c0_15 = arith.constant 0 : index
    %30 = vector.load %arg6[%c0_14, %c0_15] : memref<32x48xf32, #tpu.memory_space<vmem>>, vector<32x48xf32>
    tpu.vector_store %arg6[%c0_14, %c0_15], %29 {strides = array<i32>} : memref<32x48xf32, #tpu.memory_space<vmem>>, vector<32x48xf32>,
    return
  }
  func.func @transform_0(%arg0: i32) -> (i32, i32) {
    %c0_i32 = arith.constant 0 : i32
    %c0_i32_0 = arith.constant 0 : i32
    return %arg0, %c0_i32 : i32, i32
  }
  func.func @transform_1(%arg0: i32) -> (i32, i32) {
    %c0_i32 = arith.constant 0 : i32
    %c0_i32_0 = arith.constant 0 : i32
    %c0_i32_1 = arith.constant 0 : i32
    return %c0_i32, %c0_i32_0 : i32, i32
  }
  func.func @transform_2(%arg0: i32) -> (i32, i32) {
    %c0_i32 = arith.constant 0 : i32
    %c0_i32_0 = arith.constant 0 : i32
    %c0_i32_1 = arith.constant 0 : i32
    return %c0_i32, %c0_i32_0 : i32, i32
  }
  func.func @transform_3(%arg0: i32) -> (i32, i32) {
    %c0_i32 = arith.constant 0 : i32
    %c0_i32_0 = arith.constant 0 : i32
    %c0_i32_1 = arith.constant 0 : i32
    return %c0_i32, %c0_i32_0 : i32, i32
  }
  func.func @transform_4(%arg0: i32) -> (i32, i32) {
    %c0_i32 = arith.constant 0 : i32
    %c0_i32_0 = arith.constant 0 : i32
    %c0_i32_1 = arith.constant 0 : i32
    return %c0_i32, %c0_i32_0 : i32, i32
  }
  func.func @transform_5(%arg0: i32) -> (i32, i32) {
    %c0_i32 = arith.constant 0 : i32
    %c0_i32_0 = arith.constant 0 : i32
    return %arg0, %c0_i32 : i32, i32
  }
}

module attributes {stable_mosaic.version = 11 : i64} {
  func.func @_layer_kernel_cross(%arg0: i32, %arg1: memref<1x16x32xf32, #tpu.memory_space<vmem>>, %arg2: memref<1x16x32xf32, #tpu.memory_space<vmem>>, %arg3: memref<1x32xf32, #tpu.memory_space<vmem>>, %arg4: memref<1x32xf32, #tpu.memory_space<vmem>>, %arg5: memref<32x128xf32, #tpu.memory_space<vmem>>, %arg6: memref<1x128xf32, #tpu.memory_space<vmem>>, %arg7: memref<32x128xf32, #tpu.memory_space<vmem>>, %arg8: memref<1x128xf32, #tpu.memory_space<vmem>>, %arg9: memref<32x128xf32, #tpu.memory_space<vmem>>, %arg10: memref<1x128xf32, #tpu.memory_space<vmem>>, %arg11: memref<128x32xf32, #tpu.memory_space<vmem>>, %arg12: memref<1x32xf32, #tpu.memory_space<vmem>>, %arg13: memref<1x32xf32, #tpu.memory_space<vmem>>, %arg14: memref<1x32xf32, #tpu.memory_space<vmem>>, %arg15: memref<32x64xf32, #tpu.memory_space<vmem>>, %arg16: memref<1x64xf32, #tpu.memory_space<vmem>>, %arg17: memref<64x32xf32, #tpu.memory_space<vmem>>, %arg18: memref<1x32xf32, #tpu.memory_space<vmem>>, %arg19: memref<1x32xf32, #tpu.memory_space<vmem>>, %arg20: memref<1x32xf32, #tpu.memory_space<vmem>>, %arg21: memref<1x16x32xf32, #tpu.memory_space<vmem>>) attributes {dimension_semantics = [#tpu.dimension_semantics<parallel>], iteration_bounds = array<i64: 2>, scalar_prefetch = 0 : i64, scratch_operands = 0 : i64, tpu.core_type = #tpu.core_type<tc>, window_params = [{transform_indices = @transform_0, window_bounds = array<i64: 1, 16, 32>}, {transform_indices = @transform_1, window_bounds = array<i64: 1, 16, 32>}, {pipeline_mode = #tpu.pipeline_mode<synchronous>, transform_indices = @transform_2, window_bounds = array<i64: 1, 32>}, {pipeline_mode = #tpu.pipeline_mode<synchronous>, transform_indices = @transform_3, window_bounds = array<i64: 1, 32>}, {pipeline_mode = #tpu.pipeline_mode<synchronous>, transform_indices = @transform_4, window_bounds = array<i64: 32, 128>}, {pipeline_mode = #tpu.pipeline_mode<synchronous>, transform_indices = @transform_5, window_bounds = array<i64: 1, 128>}, {pipeline_mode = #tpu.pipeline_mode<synchronous>, transform_indices = @transform_6, window_bounds = array<i64: 32, 128>}, {pipeline_mode = #tpu.pipeline_mode<synchronous>, transform_indices = @transform_7, window_bounds = array<i64: 1, 128>}, {pipeline_mode = #tpu.pipeline_mode<synchronous>, transform_indices = @transform_8, window_bounds = array<i64: 32, 128>}, {pipeline_mode = #tpu.pipeline_mode<synchronous>, transform_indices = @transform_9, window_bounds = array<i64: 1, 128>}, {pipeline_mode = #tpu.pipeline_mode<synchronous>, transform_indices = @transform_10, window_bounds = array<i64: 128, 32>}, {pipeline_mode = #tpu.pipeline_mode<synchronous>, transform_indices = @transform_11, window_bounds = array<i64: 1, 32>}, {pipeline_mode = #tpu.pipeline_mode<synchronous>, transform_indices = @transform_12, window_bounds = array<i64: 1, 32>}, {pipeline_mode = #tpu.pipeline_mode<synchronous>, transform_indices = @transform_13, window_bounds = array<i64: 1, 32>}, {pipeline_mode = #tpu.pipeline_mode<synchronous>, transform_indices = @transform_14, window_bounds = array<i64: 32, 64>}, {pipeline_mode = #tpu.pipeline_mode<synchronous>, transform_indices = @transform_15, window_bounds = array<i64: 1, 64>}, {pipeline_mode = #tpu.pipeline_mode<synchronous>, transform_indices = @transform_16, window_bounds = array<i64: 64, 32>}, {pipeline_mode = #tpu.pipeline_mode<synchronous>, transform_indices = @transform_17, window_bounds = array<i64: 1, 32>}, {pipeline_mode = #tpu.pipeline_mode<synchronous>, transform_indices = @transform_18, window_bounds = array<i64: 1, 32>}, {pipeline_mode = #tpu.pipeline_mode<synchronous>, transform_indices = @transform_19, window_bounds = array<i64: 1, 32>}, {transform_indices = @transform_20, window_bounds = array<i64: 1, 16, 32>}]} {
    %c0 = arith.constant 0 : index
    %c0_0 = arith.constant 0 : index
    %c0_1 = arith.constant 0 : index
    %0 = vector.load %arg1[%c0, %c0_0, %c0_1] : memref<1x16x32xf32, #tpu.memory_space<vmem>>, vector<1x16x32xf32>
    %1 = vector.shape_cast %0 : vector<1x16x32xf32> to vector<16x32xf32>
    %c0_2 = arith.constant 0 : index
    %c0_3 = arith.constant 0 : index
    %c0_4 = arith.constant 0 : index
    %2 = vector.load %arg2[%c0_2, %c0_3, %c0_4] : memref<1x16x32xf32, #tpu.memory_space<vmem>>, vector<1x16x32xf32>
    %3 = vector.shape_cast %2 : vector<1x16x32xf32> to vector<16x32xf32>
    %c0_5 = arith.constant 0 : index
    %c0_6 = arith.constant 0 : index
    %4 = vector.load %arg3[%c0_5, %c0_6] : memref<1x32xf32, #tpu.memory_space<vmem>>, vector<1x32xf32>
    %c0_7 = arith.constant 0 : index
    %c0_8 = arith.constant 0 : index
    %5 = vector.load %arg4[%c0_7, %c0_8] : memref<1x32xf32, #tpu.memory_space<vmem>>, vector<1x32xf32>
    %c0_9 = arith.constant 0 : index
    %c0_10 = arith.constant 0 : index
    %6 = vector.load %arg5[%c0_9, %c0_10] : memref<32x128xf32, #tpu.memory_space<vmem>>, vector<32x128xf32>
    %c0_11 = arith.constant 0 : index
    %c0_12 = arith.constant 0 : index
    %7 = vector.load %arg6[%c0_11, %c0_12] : memref<1x128xf32, #tpu.memory_space<vmem>>, vector<1x128xf32>
    %c0_13 = arith.constant 0 : index
    %c0_14 = arith.constant 0 : index
    %8 = vector.load %arg7[%c0_13, %c0_14] : memref<32x128xf32, #tpu.memory_space<vmem>>, vector<32x128xf32>
    %c0_15 = arith.constant 0 : index
    %c0_16 = arith.constant 0 : index
    %9 = vector.load %arg8[%c0_15, %c0_16] : memref<1x128xf32, #tpu.memory_space<vmem>>, vector<1x128xf32>
    %c0_17 = arith.constant 0 : index
    %c0_18 = arith.constant 0 : index
    %10 = vector.load %arg9[%c0_17, %c0_18] : memref<32x128xf32, #tpu.memory_space<vmem>>, vector<32x128xf32>
    %c0_19 = arith.constant 0 : index
    %c0_20 = arith.constant 0 : index
    %11 = vector.load %arg10[%c0_19, %c0_20] : memref<1x128xf32, #tpu.memory_space<vmem>>, vector<1x128xf32>
    %c0_21 = arith.constant 0 : index
    %c0_22 = arith.constant 0 : index
    %12 = vector.load %arg11[%c0_21, %c0_22] : memref<128x32xf32, #tpu.memory_space<vmem>>, vector<128x32xf32>
    %c0_23 = arith.constant 0 : index
    %c0_24 = arith.constant 0 : index
    %13 = vector.load %arg12[%c0_23, %c0_24] : memref<1x32xf32, #tpu.memory_space<vmem>>, vector<1x32xf32>
    %c0_25 = arith.constant 0 : index
    %c0_26 = arith.constant 0 : index
    %14 = vector.load %arg13[%c0_25, %c0_26] : memref<1x32xf32, #tpu.memory_space<vmem>>, vector<1x32xf32>
    %c0_27 = arith.constant 0 : index
    %c0_28 = arith.constant 0 : index
    %15 = vector.load %arg14[%c0_27, %c0_28] : memref<1x32xf32, #tpu.memory_space<vmem>>, vector<1x32xf32>
    %c0_29 = arith.constant 0 : index
    %c0_30 = arith.constant 0 : index
    %16 = vector.load %arg15[%c0_29, %c0_30] : memref<32x64xf32, #tpu.memory_space<vmem>>, vector<32x64xf32>
    %c0_31 = arith.constant 0 : index
    %c0_32 = arith.constant 0 : index
    %17 = vector.load %arg16[%c0_31, %c0_32] : memref<1x64xf32, #tpu.memory_space<vmem>>, vector<1x64xf32>
    %c0_33 = arith.constant 0 : index
    %c0_34 = arith.constant 0 : index
    %18 = vector.load %arg17[%c0_33, %c0_34] : memref<64x32xf32, #tpu.memory_space<vmem>>, vector<64x32xf32>
    %c0_35 = arith.constant 0 : index
    %c0_36 = arith.constant 0 : index
    %19 = vector.load %arg18[%c0_35, %c0_36] : memref<1x32xf32, #tpu.memory_space<vmem>>, vector<1x32xf32>
    %c0_37 = arith.constant 0 : index
    %c0_38 = arith.constant 0 : index
    %20 = vector.load %arg19[%c0_37, %c0_38] : memref<1x32xf32, #tpu.memory_space<vmem>>, vector<1x32xf32>
    %c0_39 = arith.constant 0 : index
    %c0_40 = arith.constant 0 : index
    %21 = vector.load %arg20[%c0_39, %c0_40] : memref<1x32xf32, #tpu.memory_space<vmem>>, vector<1x32xf32>
    %cst = arith.constant dense<0.000000e+00> : vector<16xf32>
    %22 = vector.multi_reduction <add>, %1, %cst [1] : vector<16x32xf32> to vector<16xf32>
    %23 = vector.shape_cast %22 : vector<16xf32> to vector<16x1xf32>
    %cst_41 = arith.constant 3.200000e+01 : f32
    %24 = vector.broadcast %cst_41 : f32 to vector<16x1xf32>
    %25 = arith.divf %23, %24 : vector<16x1xf32>
    %26 = vector.broadcast %25 : vector<16x1xf32> to vector<16x32xf32>
    %27 = arith.subf %1, %26 : vector<16x32xf32>
    %28 = arith.mulf %27, %27 : vector<16x32xf32>
    %cst_42 = arith.constant dense<0.000000e+00> : vector<16xf32>
    %29 = vector.multi_reduction <add>, %28, %cst_42 [1] : vector<16x32xf32> to vector<16xf32>
    %30 = vector.shape_cast %29 : vector<16xf32> to vector<16x1xf32>
    %cst_43 = arith.constant 3.200000e+01 : f32
    %31 = vector.broadcast %cst_43 : f32 to vector<16x1xf32>
    %32 = arith.divf %30, %31 : vector<16x1xf32>
    %cst_44 = arith.constant 9.99999974E-6 : f32
    %33 = vector.broadcast %cst_44 : f32 to vector<16x1xf32>
    %34 = arith.addf %32, %33 : vector<16x1xf32>
    %35 = math.rsqrt %34 : vector<16x1xf32>
    %36 = vector.broadcast %35 : vector<16x1xf32> to vector<16x32xf32>
    %37 = arith.mulf %27, %36 : vector<16x32xf32>
    %38 = vector.broadcast %4 : vector<1x32xf32> to vector<16x32xf32>
    %39 = arith.mulf %37, %38 : vector<16x32xf32>
    %40 = vector.broadcast %5 : vector<1x32xf32> to vector<16x32xf32>
    %41 = arith.addf %39, %40 : vector<16x32xf32>
    %42 = arith.truncf %41 : vector<16x32xf32> to vector<16x32xbf16>
    %43 = arith.truncf %6 : vector<32x128xf32> to vector<32x128xbf16>
    %cst_45 = arith.constant dense<0.000000e+00> : vector<16x128xf32>
    %44 = tpu.matmul %42, %43, %cst_45 {dimension_numbers = #tpu.dot_dimension_numbers<[1], [0], [0], [1], [0, 0, 1, 1], [], []>} : vector<16x32xbf16>, vector<32x128xbf16>, vector<16x128xf32> -> vector<16x128xf32>
    %45 = vector.broadcast %7 : vector<1x128xf32> to vector<16x128xf32>
    %46 = arith.addf %44, %45 : vector<16x128xf32>
    %47 = arith.truncf %3 : vector<16x32xf32> to vector<16x32xbf16>
    %48 = arith.truncf %8 : vector<32x128xf32> to vector<32x128xbf16>
    %cst_46 = arith.constant dense<0.000000e+00> : vector<16x128xf32>
    %49 = tpu.matmul %47, %48, %cst_46 {dimension_numbers = #tpu.dot_dimension_numbers<[1], [0], [0], [1], [0, 0, 1, 1], [], []>} : vector<16x32xbf16>, vector<32x128xbf16>, vector<16x128xf32> -> vector<16x128xf32>
    %50 = vector.broadcast %9 : vector<1x128xf32> to vector<16x128xf32>
    %51 = arith.addf %49, %50 : vector<16x128xf32>
    %52 = arith.truncf %3 : vector<16x32xf32> to vector<16x32xbf16>
    %53 = arith.truncf %10 : vector<32x128xf32> to vector<32x128xbf16>
    %cst_47 = arith.constant dense<0.000000e+00> : vector<16x128xf32>
    %54 = tpu.matmul %52, %53, %cst_47 {dimension_numbers = #tpu.dot_dimension_numbers<[1], [0], [0], [1], [0, 0, 1, 1], [], []>} : vector<16x32xbf16>, vector<32x128xbf16>, vector<16x128xf32> -> vector<16x128xf32>
    %55 = vector.broadcast %11 : vector<1x128xf32> to vector<16x128xf32>
    %56 = arith.addf %54, %55 : vector<16x128xf32>
    %57 = vector.extract_strided_slice %46 {offsets = [0, 0], sizes = [16, 64], strides = [1, 1]} : vector<16x128xf32> to vector<16x64xf32>
    %58 = arith.truncf %57 : vector<16x64xf32> to vector<16x64xbf16>
    %59 = vector.extract_strided_slice %51 {offsets = [0, 0], sizes = [16, 64], strides = [1, 1]} : vector<16x128xf32> to vector<16x64xf32>
    %60 = arith.truncf %59 : vector<16x64xf32> to vector<16x64xbf16>
    %61 = vector.extract_strided_slice %56 {offsets = [0, 0], sizes = [16, 64], strides = [1, 1]} : vector<16x128xf32> to vector<16x64xf32>
    %62 = arith.truncf %61 : vector<16x64xf32> to vector<16x64xbf16>
    %cst_48 = arith.constant dense<0.000000e+00> : vector<16x16xf32>
    %63 = tpu.matmul %58, %60, %cst_48 {dimension_numbers = #tpu.dot_dimension_numbers<[1], [1], [0], [0], [0, 0, 1, 0], [], []>} : vector<16x64xbf16>, vector<16x64xbf16>, vector<16x16xf32> -> vector<16x16xf32>
    %cst_49 = arith.constant 1.250000e-01 : f32
    %64 = vector.broadcast %cst_49 : f32 to vector<16x16xf32>
    %65 = arith.mulf %63, %64 : vector<16x16xf32>
    %cst_50 = arith.constant dense<0xFF800000> : vector<16xf32>
    %66 = vector.multi_reduction <maximumf>, %65, %cst_50 [1] : vector<16x16xf32> to vector<16xf32>
    %67 = vector.shape_cast %66 : vector<16xf32> to vector<16x1xf32>
    %68 = vector.broadcast %67 : vector<16x1xf32> to vector<16x16xf32>
    %69 = arith.subf %65, %68 : vector<16x16xf32>
    %70 = math.exp %69 : vector<16x16xf32>
    %cst_51 = arith.constant dense<0.000000e+00> : vector<16xf32>
    %71 = vector.multi_reduction <add>, %70, %cst_51 [1] : vector<16x16xf32> to vector<16xf32>
    %72 = vector.shape_cast %71 : vector<16xf32> to vector<16x1xf32>
    %73 = tpu.reciprocal %72 {approx = true} : vector<16x1xf32> -> vector<16x1xf32>
    %74 = vector.broadcast %73 : vector<16x1xf32> to vector<16x16xf32>
    %75 = arith.mulf %70, %74 : vector<16x16xf32>
    %76 = arith.truncf %75 : vector<16x16xf32> to vector<16x16xbf16>
    %cst_52 = arith.constant dense<0.000000e+00> : vector<16x64xf32>
    %77 = tpu.matmul %76, %62, %cst_52 {dimension_numbers = #tpu.dot_dimension_numbers<[1], [0], [0], [1], [0, 0, 1, 1], [], []>} : vector<16x16xbf16>, vector<16x64xbf16>, vector<16x64xf32> -> vector<16x64xf32>
    %78 = vector.extract_strided_slice %46 {offsets = [0, 64], sizes = [16, 64], strides = [1, 1]} : vector<16x128xf32> to vector<16x64xf32>
    %79 = arith.truncf %78 : vector<16x64xf32> to vector<16x64xbf16>
    %80 = vector.extract_strided_slice %51 {offsets = [0, 64], sizes = [16, 64], strides = [1, 1]} : vector<16x128xf32> to vector<16x64xf32>
    %81 = arith.truncf %80 : vector<16x64xf32> to vector<16x64xbf16>
    %82 = vector.extract_strided_slice %56 {offsets = [0, 64], sizes = [16, 64], strides = [1, 1]} : vector<16x128xf32> to vector<16x64xf32>
    %83 = arith.truncf %82 : vector<16x64xf32> to vector<16x64xbf16>
    %cst_53 = arith.constant dense<0.000000e+00> : vector<16x16xf32>
    %84 = tpu.matmul %79, %81, %cst_53 {dimension_numbers = #tpu.dot_dimension_numbers<[1], [1], [0], [0], [0, 0, 1, 0], [], []>} : vector<16x64xbf16>, vector<16x64xbf16>, vector<16x16xf32> -> vector<16x16xf32>
    %cst_54 = arith.constant 1.250000e-01 : f32
    %85 = vector.broadcast %cst_54 : f32 to vector<16x16xf32>
    %86 = arith.mulf %84, %85 : vector<16x16xf32>
    %cst_55 = arith.constant dense<0xFF800000> : vector<16xf32>
    %87 = vector.multi_reduction <maximumf>, %86, %cst_55 [1] : vector<16x16xf32> to vector<16xf32>
    %88 = vector.shape_cast %87 : vector<16xf32> to vector<16x1xf32>
    %89 = vector.broadcast %88 : vector<16x1xf32> to vector<16x16xf32>
    %90 = arith.subf %86, %89 : vector<16x16xf32>
    %91 = math.exp %90 : vector<16x16xf32>
    %cst_56 = arith.constant dense<0.000000e+00> : vector<16xf32>
    %92 = vector.multi_reduction <add>, %91, %cst_56 [1] : vector<16x16xf32> to vector<16xf32>
    %93 = vector.shape_cast %92 : vector<16xf32> to vector<16x1xf32>
    %94 = tpu.reciprocal %93 {approx = true} : vector<16x1xf32> -> vector<16x1xf32>
    %95 = vector.broadcast %94 : vector<16x1xf32> to vector<16x16xf32>
    %96 = arith.mulf %91, %95 : vector<16x16xf32>
    %97 = arith.truncf %96 : vector<16x16xf32> to vector<16x16xbf16>
    %cst_57 = arith.constant dense<0.000000e+00> : vector<16x64xf32>
    %98 = tpu.matmul %97, %83, %cst_57 {dimension_numbers = #tpu.dot_dimension_numbers<[1], [0], [0], [1], [0, 0, 1, 1], [], []>} : vector<16x16xbf16>, vector<16x64xbf16>, vector<16x64xf32> -> vector<16x64xf32>
    %99 = tpu.concatenate %77, %98 in 1 : vector<16x64xf32>, vector<16x64xf32> -> vector<16x128xf32>
    %100 = arith.truncf %99 : vector<16x128xf32> to vector<16x128xbf16>
    %101 = arith.truncf %12 : vector<128x32xf32> to vector<128x32xbf16>
    %cst_58 = arith.constant dense<0.000000e+00> : vector<16x32xf32>
    %102 = tpu.matmul %100, %101, %cst_58 {dimension_numbers = #tpu.dot_dimension_numbers<[1], [0], [0], [1], [0, 0, 1, 1], [], []>} : vector<16x128xbf16>, vector<128x32xbf16>, vector<16x32xf32> -> vector<16x32xf32>
    %103 = vector.broadcast %13 : vector<1x32xf32> to vector<16x32xf32>
    %104 = arith.addf %102, %103 : vector<16x32xf32>
    %105 = arith.addf %1, %104 : vector<16x32xf32>
    %cst_59 = arith.constant dense<0.000000e+00> : vector<16xf32>
    %106 = vector.multi_reduction <add>, %105, %cst_59 [1] : vector<16x32xf32> to vector<16xf32>
    %107 = vector.shape_cast %106 : vector<16xf32> to vector<16x1xf32>
    %cst_60 = arith.constant 3.200000e+01 : f32
    %108 = vector.broadcast %cst_60 : f32 to vector<16x1xf32>
    %109 = arith.divf %107, %108 : vector<16x1xf32>
    %110 = vector.broadcast %109 : vector<16x1xf32> to vector<16x32xf32>
    %111 = arith.subf %105, %110 : vector<16x32xf32>
    %112 = arith.mulf %111, %111 : vector<16x32xf32>
    %cst_61 = arith.constant dense<0.000000e+00> : vector<16xf32>
    %113 = vector.multi_reduction <add>, %112, %cst_61 [1] : vector<16x32xf32> to vector<16xf32>
    %114 = vector.shape_cast %113 : vector<16xf32> to vector<16x1xf32>
    %cst_62 = arith.constant 3.200000e+01 : f32
    %115 = vector.broadcast %cst_62 : f32 to vector<16x1xf32>
    %116 = arith.divf %114, %115 : vector<16x1xf32>
    %cst_63 = arith.constant 9.99999974E-6 : f32
    %117 = vector.broadcast %cst_63 : f32 to vector<16x1xf32>
    %118 = arith.addf %116, %117 : vector<16x1xf32>
    %119 = math.rsqrt %118 : vector<16x1xf32>
    %120 = vector.broadcast %119 : vector<16x1xf32> to vector<16x32xf32>
    %121 = arith.mulf %111, %120 : vector<16x32xf32>
    %122 = vector.broadcast %14 : vector<1x32xf32> to vector<16x32xf32>
    %123 = arith.mulf %121, %122 : vector<16x32xf32>
    %124 = vector.broadcast %15 : vector<1x32xf32> to vector<16x32xf32>
    %125 = arith.addf %123, %124 : vector<16x32xf32>
    %126 = arith.truncf %125 : vector<16x32xf32> to vector<16x32xbf16>
    %127 = arith.truncf %16 : vector<32x64xf32> to vector<32x64xbf16>
    %cst_64 = arith.constant dense<0.000000e+00> : vector<16x64xf32>
    %128 = tpu.matmul %126, %127, %cst_64 {dimension_numbers = #tpu.dot_dimension_numbers<[1], [0], [0], [1], [0, 0, 1, 1], [], []>} : vector<16x32xbf16>, vector<32x64xbf16>, vector<16x64xf32> -> vector<16x64xf32>
    %129 = vector.broadcast %17 : vector<1x64xf32> to vector<16x64xf32>
    %130 = arith.addf %128, %129 : vector<16x64xf32>
    %131 = arith.mulf %130, %130 : vector<16x64xf32>
    %132 = arith.mulf %130, %131 : vector<16x64xf32>
    %cst_65 = arith.constant 4.471500e-02 : f32
    %133 = vector.broadcast %cst_65 : f32 to vector<16x64xf32>
    %134 = arith.mulf %133, %132 : vector<16x64xf32>
    %135 = arith.addf %130, %134 : vector<16x64xf32>
    %cst_66 = arith.constant 0.797884583 : f32
    %136 = vector.broadcast %cst_66 : f32 to vector<16x64xf32>
    %137 = arith.mulf %136, %135 : vector<16x64xf32>
    %138 = math.tanh %137 : vector<16x64xf32>
    %cst_67 = arith.constant 1.000000e+00 : f32
    %139 = vector.broadcast %cst_67 : f32 to vector<16x64xf32>
    %140 = arith.addf %139, %138 : vector<16x64xf32>
    %cst_68 = arith.constant 5.000000e-01 : f32
    %141 = vector.broadcast %cst_68 : f32 to vector<16x64xf32>
    %142 = arith.mulf %141, %140 : vector<16x64xf32>
    %143 = arith.mulf %130, %142 : vector<16x64xf32>
    %144 = arith.truncf %143 : vector<16x64xf32> to vector<16x64xbf16>
    %145 = arith.truncf %18 : vector<64x32xf32> to vector<64x32xbf16>
    %cst_69 = arith.constant dense<0.000000e+00> : vector<16x32xf32>
    %146 = tpu.matmul %144, %145, %cst_69 {dimension_numbers = #tpu.dot_dimension_numbers<[1], [0], [0], [1], [0, 0, 1, 1], [], []>} : vector<16x64xbf16>, vector<64x32xbf16>, vector<16x32xf32> -> vector<16x32xf32>
    %147 = vector.broadcast %19 : vector<1x32xf32> to vector<16x32xf32>
    %148 = arith.addf %146, %147 : vector<16x32xf32>
    %149 = arith.addf %105, %148 : vector<16x32xf32>
    %cst_70 = arith.constant dense<0.000000e+00> : vector<16xf32>
    %150 = vector.multi_reduction <add>, %149, %cst_70 [1] : vector<16x32xf32> to vector<16xf32>
    %151 = vector.shape_cast %150 : vector<16xf32> to vector<16x1xf32>
    %cst_71 = arith.constant 3.200000e+01 : f32
    %152 = vector.broadcast %cst_71 : f32 to vector<16x1xf32>
    %153 = arith.divf %151, %152 : vector<16x1xf32>
    %154 = vector.broadcast %153 : vector<16x1xf32> to vector<16x32xf32>
    %155 = arith.subf %149, %154 : vector<16x32xf32>
    %156 = arith.mulf %155, %155 : vector<16x32xf32>
    %cst_72 = arith.constant dense<0.000000e+00> : vector<16xf32>
    %157 = vector.multi_reduction <add>, %156, %cst_72 [1] : vector<16x32xf32> to vector<16xf32>
    %158 = vector.shape_cast %157 : vector<16xf32> to vector<16x1xf32>
    %cst_73 = arith.constant 3.200000e+01 : f32
    %159 = vector.broadcast %cst_73 : f32 to vector<16x1xf32>
    %160 = arith.divf %158, %159 : vector<16x1xf32>
    %cst_74 = arith.constant 9.99999974E-6 : f32
    %161 = vector.broadcast %cst_74 : f32 to vector<16x1xf32>
    %162 = arith.addf %160, %161 : vector<16x1xf32>
    %163 = math.rsqrt %162 : vector<16x1xf32>
    %164 = vector.broadcast %163 : vector<16x1xf32> to vector<16x32xf32>
    %165 = arith.mulf %155, %164 : vector<16x32xf32>
    %166 = vector.broadcast %20 : vector<1x32xf32> to vector<16x32xf32>
    %167 = arith.mulf %165, %166 : vector<16x32xf32>
    %168 = vector.broadcast %21 : vector<1x32xf32> to vector<16x32xf32>
    %169 = arith.addf %167, %168 : vector<16x32xf32>
    %c0_75 = arith.constant 0 : index
    %c0_76 = arith.constant 0 : index
    %c0_77 = arith.constant 0 : index
    %170 = vector.load %arg21[%c0_75, %c0_76, %c0_77] : memref<1x16x32xf32, #tpu.memory_space<vmem>>, vector<1x16x32xf32>
    %171 = vector.shape_cast %170 : vector<1x16x32xf32> to vector<16x32xf32>
    %172 = vector.shape_cast %169 : vector<16x32xf32> to vector<1x16x32xf32>
    tpu.vector_store %arg21[%c0_75, %c0_76, %c0_77], %172 {strides = array<i32>} : memref<1x16x32xf32, #tpu.memory_space<vmem>>, vector<1x16x32xf32>,
    return
  }
  func.func @transform_0(%arg0: i32) -> (i32, i32, i32) {
    %c0_i32 = arith.constant 0 : i32
    %c0_i32_0 = arith.constant 0 : i32
    %c0_i32_1 = arith.constant 0 : i32
    return %arg0, %c0_i32, %c0_i32_0 : i32, i32, i32
  }
  func.func @transform_1(%arg0: i32) -> (i32, i32, i32) {
    %c0_i32 = arith.constant 0 : i32
    %c0_i32_0 = arith.constant 0 : i32
    %c0_i32_1 = arith.constant 0 : i32
    return %arg0, %c0_i32, %c0_i32_0 : i32, i32, i32
  }
  func.func @transform_2(%arg0: i32) -> (i32, i32) {
    %c0_i32 = arith.constant 0 : i32
    %c0_i32_0 = arith.constant 0 : i32
    %c0_i32_1 = arith.constant 0 : i32
    return %c0_i32, %c0_i32_0 : i32, i32
  }
  func.func @transform_3(%arg0: i32) -> (i32, i32) {
    %c0_i32 = arith.constant 0 : i32
    %c0_i32_0 = arith.constant 0 : i32
    %c0_i32_1 = arith.constant 0 : i32
    return %c0_i32, %c0_i32_0 : i32, i32
  }
  func.func @transform_4(%arg0: i32) -> (i32, i32) {
    %c0_i32 = arith.constant 0 : i32
    %c0_i32_0 = arith.constant 0 : i32
    %c0_i32_1 = arith.constant 0 : i32
    return %c0_i32, %c0_i32_0 : i32, i32
  }
  func.func @transform_5(%arg0: i32) -> (i32, i32) {
    %c0_i32 = arith.constant 0 : i32
    %c0_i32_0 = arith.constant 0 : i32
    %c0_i32_1 = arith.constant 0 : i32
    return %c0_i32, %c0_i32_0 : i32, i32
  }
  func.func @transform_6(%arg0: i32) -> (i32, i32) {
    %c0_i32 = arith.constant 0 : i32
    %c0_i32_0 = arith.constant 0 : i32
    %c0_i32_1 = arith.constant 0 : i32
    return %c0_i32, %c0_i32_0 : i32, i32
  }
  func.func @transform_7(%arg0: i32) -> (i32, i32) {
    %c0_i32 = arith.constant 0 : i32
    %c0_i32_0 = arith.constant 0 : i32
    %c0_i32_1 = arith.constant 0 : i32
    return %c0_i32, %c0_i32_0 : i32, i32
  }
  func.func @transform_8(%arg0: i32) -> (i32, i32) {
    %c0_i32 = arith.constant 0 : i32
    %c0_i32_0 = arith.constant 0 : i32
    %c0_i32_1 = arith.constant 0 : i32
    return %c0_i32, %c0_i32_0 : i32, i32
  }
  func.func @transform_9(%arg0: i32) -> (i32, i32) {
    %c0_i32 = arith.constant 0 : i32
    %c0_i32_0 = arith.constant 0 : i32
    %c0_i32_1 = arith.constant 0 : i32
    return %c0_i32, %c0_i32_0 : i32, i32
  }
  func.func @transform_10(%arg0: i32) -> (i32, i32) {
    %c0_i32 = arith.constant 0 : i32
    %c0_i32_0 = arith.constant 0 : i32
    %c0_i32_1 = arith.constant 0 : i32
    return %c0_i32, %c0_i32_0 : i32, i32
  }
  func.func @transform_11(%arg0: i32) -> (i32, i32) {
    %c0_i32 = arith.constant 0 : i32
    %c0_i32_0 = arith.constant 0 : i32
    %c0_i32_1 = arith.constant 0 : i32
    return %c0_i32, %c0_i32_0 : i32, i32
  }
  func.func @transform_12(%arg0: i32) -> (i32, i32) {
    %c0_i32 = arith.constant 0 : i32
    %c0_i32_0 = arith.constant 0 : i32
    %c0_i32_1 = arith.constant 0 : i32
    return %c0_i32, %c0_i32_0 : i32, i32
  }
  func.func @transform_13(%arg0: i32) -> (i32, i32) {
    %c0_i32 = arith.constant 0 : i32
    %c0_i32_0 = arith.constant 0 : i32
    %c0_i32_1 = arith.constant 0 : i32
    return %c0_i32, %c0_i32_0 : i32, i32
  }
  func.func @transform_14(%arg0: i32) -> (i32, i32) {
    %c0_i32 = arith.constant 0 : i32
    %c0_i32_0 = arith.constant 0 : i32
    %c0_i32_1 = arith.constant 0 : i32
    return %c0_i32, %c0_i32_0 : i32, i32
  }
  func.func @transform_15(%arg0: i32) -> (i32, i32) {
    %c0_i32 = arith.constant 0 : i32
    %c0_i32_0 = arith.constant 0 : i32
    %c0_i32_1 = arith.constant 0 : i32
    return %c0_i32, %c0_i32_0 : i32, i32
  }
  func.func @transform_16(%arg0: i32) -> (i32, i32) {
    %c0_i32 = arith.constant 0 : i32
    %c0_i32_0 = arith.constant 0 : i32
    %c0_i32_1 = arith.constant 0 : i32
    return %c0_i32, %c0_i32_0 : i32, i32
  }
  func.func @transform_17(%arg0: i32) -> (i32, i32) {
    %c0_i32 = arith.constant 0 : i32
    %c0_i32_0 = arith.constant 0 : i32
    %c0_i32_1 = arith.constant 0 : i32
    return %c0_i32, %c0_i32_0 : i32, i32
  }
  func.func @transform_18(%arg0: i32) -> (i32, i32) {
    %c0_i32 = arith.constant 0 : i32
    %c0_i32_0 = arith.constant 0 : i32
    %c0_i32_1 = arith.constant 0 : i32
    return %c0_i32, %c0_i32_0 : i32, i32
  }
  func.func @transform_19(%arg0: i32) -> (i32, i32) {
    %c0_i32 = arith.constant 0 : i32
    %c0_i32_0 = arith.constant 0 : i32
    %c0_i32_1 = arith.constant 0 : i32
    return %c0_i32, %c0_i32_0 : i32, i32
  }
  func.func @transform_20(%arg0: i32) -> (i32, i32, i32) {
    %c0_i32 = arith.constant 0 : i32
    %c0_i32_0 = arith.constant 0 : i32
    %c0_i32_1 = arith.constant 0 : i32
    return %arg0, %c0_i32, %c0_i32_0 : i32, i32, i32
  }
}

</mosaic_0001>

<llo_original>
// kernel: _lambda_.10
$region0: #{_lambda_.10}
  #allocation0 [shape = 'u32[]', space=smem, size = 0x4, offset = 0x4, fixed_abs, tag = 'smem constant byte address 0x4 - core index']
  #allocation1 [shape = 'u32[144,128]{1,0:T(1,128)}', space=vmem, size = 0x12000, scoped, tag = 'internal scratch']
  %s0 = inlined_call_operand.vmem [shape: f32[32,48], index: 0, kind: input, shape index: {}]
  %s1 = inlined_call_operand.vmem [shape: f32[1,48], index: 1, kind: input, shape index: {}]
  %s2 = inlined_call_operand.vmem [shape: f32[1,48], index: 2, kind: input, shape index: {}]
  %s3 = inlined_call_operand.vmem [shape: f32[48,32], index: 3, kind: input, shape index: {}]
  %s4 = inlined_call_operand.vmem [shape: f32[1,32], index: 4, kind: input, shape index: {}]
  %s5 = inlined_call_operand.vmem [shape: f32[1,32], index: 5, kind: input, shape index: {}]
  %s6 = inlined_call_operand.vmem [shape: f32[1,32], index: 6, kind: input, shape index: {}]
  %s7 = inlined_call_operand.vmem [shape: f32[32,32], index: 7, kind: output, shape index: {}]
  %s8 = sld [smem:[#allocation0]]
  $region38: #{_lambda_.10} parent=0
    _
  %s10 = ssub.s32 1, %s8
  %s11 = scalar_select 0, %s10, %s8
  // Predicated region
  $region2: #{_lambda_.10} parent=0 // pred_check
    _
  $region3: #{_lambda_.10} parent=0 // pred_check_branch
    %13 = sbr.rel (0) target = $region5
  $region4: #{_lambda_.10} parent=0 // pred_region
    _
  $region5: #{_lambda_.10} parent=0 // pred_fallthru
    _
  // Predicated region
  $region6: #{_lambda_.10} parent=0 // pred_check
    _
  $region7: #{_lambda_.10} parent=0 // pred_check_branch
    %15 = sbr.rel (0) target = $region9
  $region8: #{_lambda_.10} parent=0 // pred_region
    _
  $region9: #{_lambda_.10} parent=0 // pred_fallthru
    _
  // Predicated region
  $region10: #{_lambda_.10} parent=0 // pred_check
    _
  $region11: #{_lambda_.10} parent=0 // pred_check_branch
    %17 = sbr.rel (0) target = $region13
  $region12: #{_lambda_.10} parent=0 // pred_region
    _
  $region13: #{_lambda_.10} parent=0 // pred_fallthru
    _
  // Predicated region
  $region14: #{_lambda_.10} parent=0 // pred_check
    _
  $region15: #{_lambda_.10} parent=0 // pred_check_branch
    %19 = sbr.rel (0) target = $region17
  $region16: #{_lambda_.10} parent=0 // pred_region
    _
  $region17: #{_lambda_.10} parent=0 // pred_fallthru
    _
  // Predicated region
  $region18: #{_lambda_.10} parent=0 // pred_check
    _
  $region19: #{_lambda_.10} parent=0 // pred_check_branch
    %21 = sbr.rel (0) target = $region21
  $region20: #{_lambda_.10} parent=0 // pred_region
    _
  $region21: #{_lambda_.10} parent=0 // pred_fallthru
    _
  // Predicated region
  $region22: #{_lambda_.10} parent=0 // pred_check
    _
  $region23: #{_lambda_.10} parent=0 // pred_check_branch
    %23 = sbr.rel (0) target = $region25
  $region24: #{_lambda_.10} parent=0 // pred_region
    _
  $region25: #{_lambda_.10} parent=0 // pred_fallthru
    _
  // Predicated region
  $region26: #{_lambda_.10} parent=0 // pred_check
    _
  $region27: #{_lambda_.10} parent=0 // pred_check_branch
    %25 = sbr.rel (0) target = $region29
  $region28: #{_lambda_.10} parent=0 // pred_region
    _
  $region29: #{_lambda_.10} parent=0 // pred_fallthru
    _
  %v27 = vld [vmem:[%s0] sm:$0xff]
  %v28 = vld [vmem:[%s0 + $0x8] sm:$0xff]
  %v29 = vld [vmem:[%s0 + $0x10] sm:$0xff]
  %v30 = vld [vmem:[%s0 + $0x18] sm:$0xff]
  %v31 = vld [vmem:[%s1] sm:$0x1]
  %v32 = vld [vmem:[%s2] sm:$0x1]
  %vm33 = vcmask 392192
  %v34 = vsel %vm33, %v27, 0.0
  %35 = vadd.xlane.f32.xlu0 %v34
  %v36 = vpop.xlane.xlu0 %35
  %v37 = vsel %vm33, %v28, 0.0
  %38 = vadd.xlane.f32.xlu0 %v37
  %v39 = vpop.xlane.xlu0 %38
  %v40 = vsel %vm33, %v29, 0.0
  %41 = vadd.xlane.f32.xlu0 %v40
  %v42 = vpop.xlane.xlu0 %41
  %v43 = vsel %vm33, %v30, 0.0
  %44 = vadd.xlane.f32.xlu0 %v43
  %v45 = vpop.xlane.xlu0 %44
  %v46 = vrcp.pop 48.0
  %v47 = vmul.f32 %v36, %v46
  %v48 = vmul.f32 %v39, %v46
  %v49 = vmul.f32 %v42, %v46
  %v50 = vmul.f32 %v45, %v46
  %v51 = vsub.f32 %v27, %v47
  %v52 = vsub.f32 %v28, %v48
  %v53 = vsub.f32 %v29, %v49
  %v54 = vsub.f32 %v30, %v50
  %v55 = vmul.f32 %v51, %v51
  %v56 = vmul.f32 %v52, %v52
  %v57 = vmul.f32 %v53, %v53
  %v58 = vmul.f32 %v54, %v54
  %v59 = vsel %vm33, %v55, 0.0
  %60 = vadd.xlane.f32.xlu0 %v59
  %v61 = vpop.xlane.xlu0 %60
  %v62 = vsel %vm33, %v56, 0.0
  %63 = vadd.xlane.f32.xlu0 %v62
  %v64 = vpop.xlane.xlu0 %63
  %v65 = vsel %vm33, %v57, 0.0
  %66 = vadd.xlane.f32.xlu0 %v65
  %v67 = vpop.xlane.xlu0 %66
  %v68 = vsel %vm33, %v58, 0.0
  %69 = vadd.xlane.f32.xlu0 %v68
  %v70 = vpop.xlane.xlu0 %69
  %v71 = vmul.f32 %v61, %v46
  %v72 = vmul.f32 %v64, %v46
  %v73 = vmul.f32 %v67, %v46
  %v74 = vmul.f32 %v70, %v46
  %v75 = vadd.f32 %v71, 1e-05
  %v76 = vadd.f32 %v72, 1e-05
  %v77 = vadd.f32 %v73, 1e-05
  %v78 = vadd.f32 %v74, 1e-05
  %v79 = vrsqrt.pop %v75
  %v80 = vrsqrt.pop %v76
  %v81 = vrsqrt.pop %v77
  %v82 = vrsqrt.pop %v78
  %v83 = vmul.f32 %v51, %v79
  %v84 = vmul.f32 %v52, %v80
  %v85 = vmul.f32 %v53, %v81
  %v86 = vmul.f32 %v54, %v82
  %v88 = vlaneseq
  %v89 = vshrl.u32 %v88, 7
  %v90 = vsub.s32 0, %v89
  %v91 = vrot.slane %v31, %v90
  %v93 = vmul.f32 %v83, %v91
  %v94 = vmul.f32 %v84, %v91
  %v95 = vmul.f32 %v85, %v91
  %v96 = vmul.f32 %v86, %v91
  %v98 = vlaneseq
  %v99 = vshrl.u32 %v98, 7
  %v100 = vsub.s32 0, %v99
  %v101 = vrot.slane %v32, %v100
  %v103 = vadd.f32 %v93, %v101
  %v104 = vadd.f32 %v94, %v101
  %v105 = vadd.f32 %v95, %v101
  %v106 = vadd.f32 %v96, %v101
  %v107 = vpack.c.bf16 %v104, %v103
  %v108 = vpack.c.bf16 %v106, %v105
  %v109 = vld [vmem:[%s3] sm:$0xff]
  %v110 = vld [vmem:[%s3 + $0x8] sm:$0xff]
  %v111 = vld [vmem:[%s3 + $0x10] sm:$0xff]
  %v112 = vld [vmem:[%s3 + $0x18] sm:$0xff]
  %v113 = vld [vmem:[%s3 + $0x20] sm:$0xff]
  %v114 = vld [vmem:[%s3 + $0x28] sm:$0xff]
  %v115 = vpack.c.bf16 %v110, %v109
  %v116 = vpack.c.bf16 %v112, %v111
  %v117 = vpack.c.bf16 %v114, %v113
  %v118 = vld [vmem:[%s4] sm:$0x1]
  %v120 = vlaneseq
  %v121 = vshrl.u32 %v120, 7
  %v122 = vsub.s32 0, %v121
  %v123 = vrot.slane %v118, %v122
  %v126 = vsel %vm33, %v107, 0
  %v129 = vsel %vm33, %v108, 0
  %131 = vmatprep.subr.bf16.mxu0 0
  %132 = vmatpush1.bf16.msra.mxu0 %v115
  %133 = vmatprep.subr.bf16.mxu0 0
  %134 = vmatpush1.bf16.msra.mxu0 %v116
  %135 = vmatprep.subr.bf16.mxu0 0
  %136 = vmatpush1.bf16.msra.mxu0 %v117
  %137 = vmatprep.subr.bf16.mxu0 0
  %138 = vmatpush1.bf16.msra.mxu0 0
  %139 = vmatprep.subr.bf16.mxu0 0
  %140 = vmatpush1.bf16.msra.mxu0 0
  %141 = vmatprep.subr.bf16.mxu0 0
  %142 = vmatpush1.bf16.msra.mxu0 0
  %143 = vmatprep.subr.bf16.mxu0 0
  %144 = vmatpush1.bf16.msra.mxu0 0
  %145 = vmatprep.subr.bf16.mxu0 0
  %146 = vmatpush1.bf16.msra.mxu0 0
  %147 = vmatprep.subr.bf16.mxu0 0
  %148 = vmatpush1.bf16.msra.mxu0 0
  %149 = vmatprep.subr.bf16.mxu0 0
  %150 = vmatpush1.bf16.msra.mxu0 0
  %151 = vmatprep.subr.bf16.mxu0 0
  %152 = vmatpush1.bf16.msra.mxu0 0
  %153 = vmatprep.subr.bf16.mxu0 0
  %154 = vmatpush1.bf16.msra.mxu0 0
  %155 = vmatprep.subr.bf16.mxu0 0
  %156 = vmatpush1.bf16.msra.mxu0 0
  %157 = vmatprep.subr.bf16.mxu0 0
  %158 = vmatpush1.bf16.msra.mxu0 0
  %159 = vmatprep.subr.bf16.mxu0 0
  %160 = vmatpush1.bf16.msra.mxu0 0
  %161 = vmatprep.subr.bf16.mxu0 0
  %162 = vmatpush1.bf16.msra.mxu0 0
  %163 = vmatprep.mubr.bf16.mxu0 0
  %164 = vmatmul.mubr.bf16.gmra.mrb[0].mxu0 %v126
  %v165 = vpop.f32.mrb[0].mxu0
  %v166 = vadd.f32 %v123, %v165
  %v167 = vpop.f32.mrb[0].mxu0
  %v168 = vpop.f32.mrb[0].mxu0
  %v169 = vadd.f32 %v123, %v168
  %v170 = vpop.f32.mrb[0].mxu0
  %171 = vmatprep.mubr.bf16.mxu0 0
  %172 = vmatmul.mubr.bf16.gmra.mrb[0].mxu0 %v129
  %v173 = vpop.f32.mrb[0].mxu0
  %v174 = vadd.f32 %v123, %v173
  %v175 = vpop.f32.mrb[0].mxu0
  %v176 = vpop.f32.mrb[0].mxu0
  %v177 = vadd.f32 %v123, %v176
  %v178 = vpop.f32.mrb[0].mxu0
  %179 = vdwg.mxu0
  %v180 = vld [vmem:[%s5] sm:$0x1]
  %v181 = vld [vmem:[%s6] sm:$0x1]
  %vm182 = vcmask 261120
  %v183 = vsel %vm182, %v166, 0.0
  %184 = vadd.xlane.f32.xlu0 %v183
  %v185 = vpop.xlane.xlu0 %184
  %v186 = vsel %vm182, %v169, 0.0
  %187 = vadd.xlane.f32.xlu0 %v186
  %v188 = vpop.xlane.xlu0 %187
  %v189 = vsel %vm182, %v174, 0.0
  %190 = vadd.xlane.f32.xlu0 %v189
  %v191 = vpop.xlane.xlu0 %190
  %v192 = vsel %vm182, %v177, 0.0
  %193 = vadd.xlane.f32.xlu0 %v192
  %v194 = vpop.xlane.xlu0 %193
  %v195 = vrcp.pop 32.0
  %v196 = vmul.f32 %v185, %v195
  %v197 = vmul.f32 %v188, %v195
  %v198 = vmul.f32 %v191, %v195
  %v199 = vmul.f32 %v194, %v195
  %v200 = vsub.f32 %v166, %v196
  %v201 = vsub.f32 %v169, %v197
  %v202 = vsub.f32 %v174, %v198
  %v203 = vsub.f32 %v177, %v199
  %v204 = vmul.f32 %v200, %v200
  %v205 = vmul.f32 %v201, %v201
  %v206 = vmul.f32 %v202, %v202
  %v207 = vmul.f32 %v203, %v203
  %v208 = vsel %vm182, %v204, 0.0
  %209 = vadd.xlane.f32.xlu0 %v208
  %v210 = vpop.xlane.xlu0 %209
  %v211 = vsel %vm182, %v205, 0.0
  %212 = vadd.xlane.f32.xlu0 %v211
  %v213 = vpop.xlane.xlu0 %212
  %v214 = vsel %vm182, %v206, 0.0
  %215 = vadd.xlane.f32.xlu0 %v214
  %v216 = vpop.xlane.xlu0 %215
  %v217 = vsel %vm182, %v207, 0.0
  %218 = vadd.xlane.f32.xlu0 %v217
  %v219 = vpop.xlane.xlu0 %218
  %v220 = vmul.f32 %v210, %v195
  %v221 = vmul.f32 %v213, %v195
  %v222 = vmul.f32 %v216, %v195
  %v223 = vmul.f32 %v219, %v195
  %v224 = vadd.f32 %v220, 1e-05
  %v225 = vadd.f32 %v221, 1e-05
  %v226 = vadd.f32 %v222, 1e-05
  %v227 = vadd.f32 %v223, 1e-05
  %v228 = vrsqrt.pop %v224
  %v229 = vrsqrt.pop %v225
  %v230 = vrsqrt.pop %v226
  %v231 = vrsqrt.pop %v227
  %v232 = vmul.f32 %v200, %v228
  %v233 = vmul.f32 %v201, %v229
  %v234 = vmul.f32 %v202, %v230
  %v235 = vmul.f32 %v203, %v231
  %v237 = vlaneseq
  %v238 = vshrl.u32 %v237, 7
  %v239 = vsub.s32 0, %v238
  %v240 = vrot.slane %v180, %v239
  %v242 = vmul.f32 %v232, %v240
  %v243 = vmul.f32 %v233, %v240
  %v244 = vmul.f32 %v234, %v240
  %v245 = vmul.f32 %v235, %v240
  %v247 = vlaneseq
  %v248 = vshrl.u32 %v247, 7
  %v249 = vsub.s32 0, %v248
  %v250 = vrot.slane %v181, %v249
  %v252 = vadd.f32 %v242, %v250
  %v253 = vadd.f32 %v243, %v250
  %v254 = vadd.f32 %v244, %v250
  %v255 = vadd.f32 %v245, %v250
  %256 = vst.msk [vmem:[%s7] sm:$0xff] %vm182, %v252
  %257 = vst.msk [vmem:[%s7 + $0x8] sm:$0xff] %vm182, %v253
  %258 = vst.msk [vmem:[%s7 + $0x10] sm:$0xff] %vm182, %v254
  %259 = vst.msk [vmem:[%s7 + $0x18] sm:$0xff] %vm182, %v255
  // Predicated region
  $region30: #{_lambda_.10} parent=0 // pred_check
    _
  $region31: #{_lambda_.10} parent=0 // pred_check_branch
    %261 = sbr.rel (0) target = $region33
  $region32: #{_lambda_.10} parent=0 // pred_region
    _
  $region33: #{_lambda_.10} parent=0 // pred_fallthru
    _
  // Predicated region
  $region34: #{_lambda_.10} parent=0 // pred_check
    _
  $region35: #{_lambda_.10} parent=0 // pred_check_branch
    %263 = sbr.rel (0) target = $region37
  $region36: #{_lambda_.10} parent=0 // pred_region
    _
  $region37: #{_lambda_.10} parent=0 // pred_fallthru
    _

// kernel: _lambda_.12
$region0: #{_lambda_.12}
  #allocation0 [shape = 'u32[]', space=smem, size = 0x4, offset = 0x4, fixed_abs, tag = 'smem constant byte address 0x4 - core index']
  #allocation1 [shape = 'u32[144,128]{1,0:T(1,128)}', space=vmem, size = 0x12000, scoped, tag = 'internal scratch']
  %s0 = inlined_call_operand.vmem [shape: f32[2,16,32], index: 0, kind: input, shape index: {}]
  %s1 = inlined_call_operand.vmem [shape: f32[1,32], index: 1, kind: input, shape index: {}]
  %s2 = inlined_call_operand.vmem [shape: f32[1,32], index: 2, kind: input, shape index: {}]
  %s3 = inlined_call_operand.vmem [shape: f32[32,128], index: 3, kind: input, shape index: {}]
  %s4 = inlined_call_operand.vmem [shape: f32[1,128], index: 4, kind: input, shape index: {}]
  %s5 = inlined_call_operand.vmem [shape: f32[32,128], index: 5, kind: input, shape index: {}]
  %s6 = inlined_call_operand.vmem [shape: f32[1,128], index: 6, kind: input, shape index: {}]
  %s7 = inlined_call_operand.vmem [shape: f32[32,128], index: 7, kind: input, shape index: {}]
  %s8 = inlined_call_operand.vmem [shape: f32[1,128], index: 8, kind: input, shape index: {}]
  %s9 = inlined_call_operand.vmem [shape: f32[128,32], index: 9, kind: input, shape index: {}]
  %s10 = inlined_call_operand.vmem [shape: f32[1,32], index: 10, kind: input, shape index: {}]
  %s11 = inlined_call_operand.vmem [shape: f32[1,32], index: 11, kind: input, shape index: {}]
  %s12 = inlined_call_operand.vmem [shape: f32[1,32], index: 12, kind: input, shape index: {}]
  %s13 = inlined_call_operand.vmem [shape: f32[32,64], index: 13, kind: input, shape index: {}]
  %s14 = inlined_call_operand.vmem [shape: f32[1,64], index: 14, kind: input, shape index: {}]
  %s15 = inlined_call_operand.vmem [shape: f32[64,32], index: 15, kind: input, shape index: {}]
  %s16 = inlined_call_operand.vmem [shape: f32[1,32], index: 16, kind: input, shape index: {}]
  %s17 = inlined_call_operand.vmem [shape: f32[1,32], index: 17, kind: input, shape index: {}]
  %s18 = inlined_call_operand.vmem [shape: f32[1,32], index: 18, kind: input, shape index: {}]
  %s19 = inlined_call_operand.vmem [shape: f32[2,16,32], index: 19, kind: output, shape index: {}]
  %s20 = sld [smem:[#allocation0]]
  $region109: #{_lambda_.12} parent=0
    _
  %s22 = ssub.s32 1, %s20
  %s23 = scalar_select 0, %s22, %s20
  loop: start=0, step=1, limit=4
  $region2: #{_lambda_.12} parent=0 // loop_pre_header
    _
  $region3: #{_lambda_.12} parent=0 // loop_header
    %s25 = sphi 0, %s29
    %p26 = scmp.ge.s32.totalorder %s25, 4
    %s35 = sphi 0, %s37
    %s38 = sphi 0, %s35
    %s39 = sphi 0, %s38
    %s55 = sphi 0, %s39
    %s59 = sphi 0, %s59
    %s61 = sphi 0, %s59
    %s62 = sphi 0, %s61
    %s76 = sphi 0, %s62
    %s80 = sphi 0, %s80
    %s82 = sphi 0, %s80
    %s83 = sphi 0, %s82
    %s97 = sphi 0, %s83
    %s101 = sphi 0, %s101
    %s103 = sphi 0, %s101
    %s104 = sphi 0, %s103
    %s118 = sphi 0, %s104
    %s122 = sphi 0, %s122
    %s124 = sphi 0, %s122
    %s125 = sphi 0, %s124
    %s139 = sphi 0, %s125
    %s143 = sphi 0, %s143
    %s145 = sphi 0, %s143
    %s146 = sphi 0, %s145
    %s160 = sphi 0, %s146
    %s164 = sphi 0, %s164
    %s166 = sphi 0, %s164
    %s167 = sphi 0, %s166
    %s181 = sphi 0, %s167
    %s185 = sphi 0, %s185
    %s187 = sphi 0, %s185
    %s188 = sphi 0, %s187
    %s202 = sphi 0, %s188
    %s206 = sphi 0, %s206
    %s208 = sphi 0, %s206
    %s209 = sphi 0, %s208
    %s223 = sphi 0, %s209
    %s227 = sphi 0, %s227
    %s229 = sphi 0, %s227
    %s230 = sphi 0, %s229
    %s244 = sphi 0, %s230
    %s248 = sphi 0, %s248
    %s250 = sphi 0, %s248
    %s251 = sphi 0, %s250
    %s265 = sphi 0, %s251
    %s269 = sphi 0, %s269
    %s271 = sphi 0, %s269
    %s272 = sphi 0, %s271
    %s286 = sphi 0, %s272
    %s290 = sphi 0, %s290
    %s292 = sphi 0, %s290
    %s293 = sphi 0, %s292
    %s307 = sphi 0, %s293
    %s311 = sphi 0, %s311
    %s313 = sphi 0, %s311
    %s314 = sphi 0, %s313
    %s328 = sphi 0, %s314
    %s332 = sphi 0, %s332
    %s334 = sphi 0, %s332
    %s335 = sphi 0, %s334
    %s349 = sphi 0, %s335
    %s353 = sphi 0, %s353
    %s355 = sphi 0, %s353
    %s356 = sphi 0, %s355
    %s370 = sphi 0, %s356
    %s374 = sphi 0, %s374
    %s376 = sphi 0, %s374
    %s377 = sphi 0, %s376
    %s391 = sphi 0, %s377
    %s395 = sphi 0, %s395
    %s397 = sphi 0, %s395
    %s398 = sphi 0, %s397
    %s412 = sphi 0, %s398
    %s416 = sphi 0, %s416
    %s418 = sphi 0, %s416
    %s419 = sphi 0, %s418
    %s433 = sphi 0, %s419
    %s439 = sphi 0, %s441
    %s442 = sphi 0, %s439
    %s443 = sphi 0, %s442
    %s459 = sphi 0, %s443
  $region4: #{_lambda_.12} parent=0 // loop_header_branch
    %28 = sbr.rel (%p26) target = $region8
  $region5: #{_lambda_.12} parent=0 // loop_body
    %s30 = ssub.s32 %s25, 1
    %s31 = ssub.s32 %s25, 2
    %s32 = sadd.s32 %s25, 1
    %s33 = ssub.s32 %s25, %s32
    %p34 = scmp.eq.s32.totalorder %s33, 0
    %s36 = sadd.s32 %s35, 1
    %s37 = scalar_select %p34, %s35, %s36
    %p40 = pneg %p34
    %p41 = scmp.eq.s32.totalorder %s25, 1
    %p42 = por %p40, %p41
    %p43 = scmp.ne.s32.totalorder %s35, %s38
    %p44 = scmp.eq.s32.totalorder %s25, 0
    %p45 = por %p43, %p44
    %p46 = scmp.ne.s32.totalorder %s35, %s38
    %p47 = scmp.eq.s32.totalorder %s30, 1
    %p48 = por %p46, %p47
    %p49 = scmp.ne.s32.totalorder %s38, %s39
    %p50 = scmp.eq.s32.totalorder %s30, 0
    %p51 = por %p49, %p50
    %p52 = scmp.ne.s32.totalorder %s38, %s39
    %p53 = scmp.eq.s32.totalorder %s31, 1
    %p54 = por %p52, %p53
    %p56 = scmp.ne.s32.totalorder %s39, %s55
    %p57 = scmp.eq.s32.totalorder %s31, 0
    %p58 = por %p56, %p57
    %s60 = sadd.s32 %s59, 1
    %p63 = scmp.eq.s32.totalorder %s25, 1
    %p64 = scmp.ne.s32.totalorder %s59, %s61
    %p65 = scmp.eq.s32.totalorder %s25, 0
    %p66 = por %p64, %p65
    %p67 = scmp.ne.s32.totalorder %s59, %s61
    %p68 = scmp.eq.s32.totalorder %s30, 1
    %p69 = por %p67, %p68
    %p70 = scmp.ne.s32.totalorder %s61, %s62
    %p71 = scmp.eq.s32.totalorder %s30, 0
    %p72 = por %p70, %p71
    %p73 = scmp.ne.s32.totalorder %s61, %s62
    %p74 = scmp.eq.s32.totalorder %s31, 1
    %p75 = por %p73, %p74
    %p77 = scmp.ne.s32.totalorder %s62, %s76
    %p78 = scmp.eq.s32.totalorder %s31, 0
    %p79 = por %p77, %p78
    %s81 = sadd.s32 %s80, 1
    %p84 = scmp.eq.s32.totalorder %s25, 1
    %p85 = scmp.ne.s32.totalorder %s80, %s82
    %p86 = scmp.eq.s32.totalorder %s25, 0
    %p87 = por %p85, %p86
    %p88 = scmp.ne.s32.totalorder %s80, %s82
    %p89 = scmp.eq.s32.totalorder %s30, 1
    %p90 = por %p88, %p89
    %p91 = scmp.ne.s32.totalorder %s82, %s83
    %p92 = scmp.eq.s32.totalorder %s30, 0
    %p93 = por %p91, %p92
    %p94 = scmp.ne.s32.totalorder %s82, %s83
    %p95 = scmp.eq.s32.totalorder %s31, 1
    %p96 = por %p94, %p95
    %p98 = scmp.ne.s32.totalorder %s83, %s97
    %p99 = scmp.eq.s32.totalorder %s31, 0
    %p100 = por %p98, %p99
    %s102 = sadd.s32 %s101, 1
    %p105 = scmp.eq.s32.totalorder %s25, 1
    %p106 = scmp.ne.s32.totalorder %s101, %s103
    %p107 = scmp.eq.s32.totalorder %s25, 0
    %p108 = por %p106, %p107
    %p109 = scmp.ne.s32.totalorder %s101, %s103
    %p110 = scmp.eq.s32.totalorder %s30, 1
    %p111 = por %p109, %p110
    %p112 = scmp.ne.s32.totalorder %s103, %s104
    %p113 = scmp.eq.s32.totalorder %s30, 0
    %p114 = por %p112, %p113
    %p115 = scmp.ne.s32.totalorder %s103, %s104
    %p116 = scmp.eq.s32.totalorder %s31, 1
    %p117 = por %p115, %p116
    %p119 = scmp.ne.s32.totalorder %s104, %s118
    %p120 = scmp.eq.s32.totalorder %s31, 0
    %p121 = por %p119, %p120
    %s123 = sadd.s32 %s122, 1
    %p126 = scmp.eq.s32.totalorder %s25, 1
    %p127 = scmp.ne.s32.totalorder %s122, %s124
    %p128 = scmp.eq.s32.totalorder %s25, 0
    %p129 = por %p127, %p128
    %p130 = scmp.ne.s32.totalorder %s122, %s124
    %p131 = scmp.eq.s32.totalorder %s30, 1
    %p132 = por %p130, %p131
    %p133 = scmp.ne.s32.totalorder %s124, %s125
    %p134 = scmp.eq.s32.totalorder %s30, 0
    %p135 = por %p133, %p134
    %p136 = scmp.ne.s32.totalorder %s124, %s125
    %p137 = scmp.eq.s32.totalorder %s31, 1
    %p138 = por %p136, %p137
    %p140 = scmp.ne.s32.totalorder %s125, %s139
    %p141 = scmp.eq.s32.totalorder %s31, 0
    %p142 = por %p140, %p141
    %s144 = sadd.s32 %s143, 1
    %p147 = scmp.eq.s32.totalorder %s25, 1
    %p148 = scmp.ne.s32.totalorder %s143, %s145
    %p149 = scmp.eq.s32.totalorder %s25, 0
    %p150 = por %p148, %p149
    %p151 = scmp.ne.s32.totalorder %s143, %s145
    %p152 = scmp.eq.s32.totalorder %s30, 1
    %p153 = por %p151, %p152
    %p154 = scmp.ne.s32.totalorder %s145, %s146
    %p155 = scmp.eq.s32.totalorder %s30, 0
    %p156 = por %p154, %p155
    %p157 = scmp.ne.s32.totalorder %s145, %s146
    %p158 = scmp.eq.s32.totalorder %s31, 1
    %p159 = por %p157, %p158
    %p161 = scmp.ne.s32.totalorder %s146, %s160
    %p162 = scmp.eq.s32.totalorder %s31, 0
    %p163 = por %p161, %p162
    %s165 = sadd.s32 %s164, 1
    %p168 = scmp.eq.s32.totalorder %s25, 1
    %p169 = scmp.ne.s32.totalorder %s164, %s166
    %p170 = scmp.eq.s32.totalorder %s25, 0
    %p171 = por %p169, %p170
    %p172 = scmp.ne.s32.totalorder %s164, %s166
    %p173 = scmp.eq.s32.totalorder %s30, 1
    %p174 = por %p172, %p173
    %p175 = scmp.ne.s32.totalorder %s166, %s167
    %p176 = scmp.eq.s32.totalorder %s30, 0
    %p177 = por %p175, %p176
    %p178 = scmp.ne.s32.totalorder %s166, %s167
    %p179 = scmp.eq.s32.totalorder %s31, 1
    %p180 = por %p178, %p179
    %p182 = scmp.ne.s32.totalorder %s167, %s181
    %p183 = scmp.eq.s32.totalorder %s31, 0
    %p184 = por %p182, %p183
    %s186 = sadd.s32 %s185, 1
    %p189 = scmp.eq.s32.totalorder %s25, 1
    %p190 = scmp.ne.s32.totalorder %s185, %s187
    %p191 = scmp.eq.s32.totalorder %s25, 0
    %p192 = por %p190, %p191
    %p193 = scmp.ne.s32.totalorder %s185, %s187
    %p194 = scmp.eq.s32.totalorder %s30, 1
    %p195 = por %p193, %p194
    %p196 = scmp.ne.s32.totalorder %s187, %s188
    %p197 = scmp.eq.s32.totalorder %s30, 0
    %p198 = por %p196, %p197
    %p199 = scmp.ne.s32.totalorder %s187, %s188
    %p200 = scmp.eq.s32.totalorder %s31, 1
    %p201 = por %p199, %p200
    %p203 = scmp.ne.s32.totalorder %s188, %s202
    %p204 = scmp.eq.s32.totalorder %s31, 0
    %p205 = por %p203, %p204
    %s207 = sadd.s32 %s206, 1
    %p210 = scmp.eq.s32.totalorder %s25, 1
    %p211 = scmp.ne.s32.totalorder %s206, %s208
    %p212 = scmp.eq.s32.totalorder %s25, 0
    %p213 = por %p211, %p212
    %p214 = scmp.ne.s32.totalorder %s206, %s208
    %p215 = scmp.eq.s32.totalorder %s30, 1
    %p216 = por %p214, %p215
    %p217 = scmp.ne.s32.totalorder %s208, %s209
    %p218 = scmp.eq.s32.totalorder %s30, 0
    %p219 = por %p217, %p218
    %p220 = scmp.ne.s32.totalorder %s208, %s209
    %p221 = scmp.eq.s32.totalorder %s31, 1
    %p222 = por %p220, %p221
    %p224 = scmp.ne.s32.totalorder %s209, %s223
    %p225 = scmp.eq.s32.totalorder %s31, 0
    %p226 = por %p224, %p225
    %s228 = sadd.s32 %s227, 1
    %p231 = scmp.eq.s32.totalorder %s25, 1
    %p232 = scmp.ne.s32.totalorder %s227, %s229
    %p233 = scmp.eq.s32.totalorder %s25, 0
    %p234 = por %p232, %p233
    %p235 = scmp.ne.s32.totalorder %s227, %s229
    %p236 = scmp.eq.s32.totalorder %s30, 1
    %p237 = por %p235, %p236
    %p238 = scmp.ne.s32.totalorder %s229, %s230
    %p239 = scmp.eq.s32.totalorder %s30, 0
    %p240 = por %p238, %p239
    %p241 = scmp.ne.s32.totalorder %s229, %s230
    %p242 = scmp.eq.s32.totalorder %s31, 1
    %p243 = por %p241, %p242
    %p245 = scmp.ne.s32.totalorder %s230, %s244
    %p246 = scmp.eq.s32.totalorder %s31, 0
    %p247 = por %p245, %p246
    %s249 = sadd.s32 %s248, 1
    %p252 = scmp.eq.s32.totalorder %s25, 1
    %p253 = scmp.ne.s32.totalorder %s248, %s250
    %p254 = scmp.eq.s32.totalorder %s25, 0
    %p255 = por %p253, %p254
    %p256 = scmp.ne.s32.totalorder %s248, %s250
    %p257 = scmp.eq.s32.totalorder %s30, 1
    %p258 = por %p256, %p257
    %p259 = scmp.ne.s32.totalorder %s250, %s251
    %p260 = scmp.eq.s32.totalorder %s30, 0
    %p261 = por %p259, %p260
    %p262 = scmp.ne.s32.totalorder %s250, %s251
    %p263 = scmp.eq.s32.totalorder %s31, 1
    %p264 = por %p262, %p263
    %p266 = scmp.ne.s32.totalorder %s251, %s265
    %p267 = scmp.eq.s32.totalorder %s31, 0
    %p268 = por %p266, %p267
    %s270 = sadd.s32 %s269, 1
    %p273 = scmp.eq.s32.totalorder %s25, 1
    %p274 = scmp.ne.s32.totalorder %s269, %s271
    %p275 = scmp.eq.s32.totalorder %s25, 0
    %p276 = por %p274, %p275
    %p277 = scmp.ne.s32.totalorder %s269, %s271
    %p278 = scmp.eq.s32.totalorder %s30, 1
    %p279 = por %p277, %p278
    %p280 = scmp.ne.s32.totalorder %s271, %s272
    %p281 = scmp.eq.s32.totalorder %s30, 0
    %p282 = por %p280, %p281
    %p283 = scmp.ne.s32.totalorder %s271, %s272
    %p284 = scmp.eq.s32.totalorder %s31, 1
    %p285 = por %p283, %p284
    %p287 = scmp.ne.s32.totalorder %s272, %s286
    %p288 = scmp.eq.s32.totalorder %s31, 0
    %p289 = por %p287, %p288
    %s291 = sadd.s32 %s290, 1
    %p294 = scmp.eq.s32.totalorder %s25, 1
    %p295 = scmp.ne.s32.totalorder %s290, %s292
    %p296 = scmp.eq.s32.totalorder %s25, 0
    %p297 = por %p295, %p296
    %p298 = scmp.ne.s32.totalorder %s290, %s292
    %p299 = scmp.eq.s32.totalorder %s30, 1
    %p300 = por %p298, %p299
    %p301 = scmp.ne.s32.totalorder %s292, %s293
    %p302 = scmp.eq.s32.totalorder %s30, 0
    %p303 = por %p301, %p302
    %p304 = scmp.ne.s32.totalorder %s292, %s293
    %p305 = scmp.eq.s32.totalorder %s31, 1
    %p306 = por %p304, %p305
    %p308 = scmp.ne.s32.totalorder %s293, %s307
    %p309 = scmp.eq.s32.totalorder %s31, 0
    %p310 = por %p308, %p309
    %s312 = sadd.s32 %s311, 1
    %p315 = scmp.eq.s32.totalorder %s25, 1
    %p316 = scmp.ne.s32.totalorder %s311, %s313
    %p317 = scmp.eq.s32.totalorder %s25, 0
    %p318 = por %p316, %p317
    %p319 = scmp.ne.s32.totalorder %s311, %s313
    %p320 = scmp.eq.s32.totalorder %s30, 1
    %p321 = por %p319, %p320
    %p322 = scmp.ne.s32.totalorder %s313, %s314
    %p323 = scmp.eq.s32.totalorder %s30, 0
    %p324 = por %p322, %p323
    %p325 = scmp.ne.s32.totalorder %s313, %s314
    %p326 = scmp.eq.s32.totalorder %s31, 1
    %p327 = por %p325, %p326
    %p329 = scmp.ne.s32.totalorder %s314, %s328
    %p330 = scmp.eq.s32.totalorder %s31, 0
    %p331 = por %p329, %p330
    %s333 = sadd.s32 %s332, 1
    %p336 = scmp.eq.s32.totalorder %s25, 1
    %p337 = scmp.ne.s32.totalorder %s332, %s334
    %p338 = scmp.eq.s32.totalorder %s25, 0
    %p339 = por %p337, %p338
    %p340 = scmp.ne.s32.totalorder %s332, %s334
    %p341 = scmp.eq.s32.totalorder %s30, 1
    %p342 = por %p340, %p341
    %p343 = scmp.ne.s32.totalorder %s334, %s335
    %p344 = scmp.eq.s32.totalorder %s30, 0
    %p345 = por %p343, %p344
    %p346 = scmp.ne.s32.totalorder %s334, %s335
    %p347 = scmp.eq.s32.totalorder %s31, 1
    %p348 = por %p346, %p347
    %p350 = scmp.ne.s32.totalorder %s335, %s349
    %p351 = scmp.eq.s32.totalorder %s31, 0
    %p352 = por %p350, %p351
    %s354 = sadd.s32 %s353, 1
    %p357 = scmp.eq.s32.totalorder %s25, 1
    %p358 = scmp.ne.s32.totalorder %s353, %s355
    %p359 = scmp.eq.s32.totalorder %s25, 0
    %p360 = por %p358, %p359
    %p361 = scmp.ne.s32.totalorder %s353, %s355
    %p362 = scmp.eq.s32.totalorder %s30, 1
    %p363 = por %p361, %p362
    %p364 = scmp.ne.s32.totalorder %s355, %s356
    %p365 = scmp.eq.s32.totalorder %s30, 0
    %p366 = por %p364, %p365
    %p367 = scmp.ne.s32.totalorder %s355, %s356
    %p368 = scmp.eq.s32.totalorder %s31, 1
    %p369 = por %p367, %p368
    %p371 = scmp.ne.s32.totalorder %s356, %s370
    %p372 = scmp.eq.s32.totalorder %s31, 0
    %p373 = por %p371, %p372
    %s375 = sadd.s32 %s374, 1
    %p378 = scmp.eq.s32.totalorder %s25, 1
    %p379 = scmp.ne.s32.totalorder %s374, %s376
    %p380 = scmp.eq.s32.totalorder %s25, 0
    %p381 = por %p379, %p380
    %p382 = scmp.ne.s32.totalorder %s374, %s376
    %p383 = scmp.eq.s32.totalorder %s30, 1
    %p384 = por %p382, %p383
    %p385 = scmp.ne.s32.totalorder %s376, %s377
    %p386 = scmp.eq.s32.totalorder %s30, 0
    %p387 = por %p385, %p386
    %p388 = scmp.ne.s32.totalorder %s376, %s377
    %p389 = scmp.eq.s32.totalorder %s31, 1
    %p390 = por %p388, %p389
    %p392 = scmp.ne.s32.totalorder %s377, %s391
    %p393 = scmp.eq.s32.totalorder %s31, 0
    %p394 = por %p392, %p393
    %s396 = sadd.s32 %s395, 1
    %p399 = scmp.eq.s32.totalorder %s25, 1
    %p400 = scmp.ne.s32.totalorder %s395, %s397
    %p401 = scmp.eq.s32.totalorder %s25, 0
    %p402 = por %p400, %p401
    %p403 = scmp.ne.s32.totalorder %s395, %s397
    %p404 = scmp.eq.s32.totalorder %s30, 1
    %p405 = por %p403, %p404
    %p406 = scmp.ne.s32.totalorder %s397, %s398
    %p407 = scmp.eq.s32.totalorder %s30, 0
    %p408 = por %p406, %p407
    %p409 = scmp.ne.s32.totalorder %s397, %s398
    %p410 = scmp.eq.s32.totalorder %s31, 1
    %p411 = por %p409, %p410
    %p413 = scmp.ne.s32.totalorder %s398, %s412
    %p414 = scmp.eq.s32.totalorder %s31, 0
    %p415 = por %p413, %p414
    %s417 = sadd.s32 %s416, 1
    %p420 = scmp.eq.s32.totalorder %s25, 1
    %p421 = scmp.ne.s32.totalorder %s416, %s418
    %p422 = scmp.eq.s32.totalorder %s25, 0
    %p423 = por %p421, %p422
    %p424 = scmp.ne.s32.totalorder %s416, %s418
    %p425 = scmp.eq.s32.totalorder %s30, 1
    %p426 = por %p424, %p425
    %p427 = scmp.ne.s32.totalorder %s418, %s419
    %p428 = scmp.eq.s32.totalorder %s30, 0
    %p429 = por %p427, %p428
    %p430 = scmp.ne.s32.totalorder %s418, %s419
    %p431 = scmp.eq.s32.totalorder %s31, 1
    %p432 = por %p430, %p431
    %p434 = scmp.ne.s32.totalorder %s419, %s433
    %p435 = scmp.eq.s32.totalorder %s31, 0
    %p436 = por %p434, %p435
    %s437 = ssub.s32 %s25, %s32
    %p438 = scmp.eq.s32.totalorder %s437, 0
    %s440 = sadd.s32 %s439, 1
    %s441 = scalar_select %p438, %s439, %s440
    %p444 = pneg %p438
    %p445 = scmp.eq.s32.totalorder %s25, 1
    %p446 = por %p444, %p445
    %p447 = scmp.ne.s32.totalorder %s439, %s442
    %p448 = scmp.eq.s32.totalorder %s25, 0
    %p449 = por %p447, %p448
    %p450 = scmp.ne.s32.totalorder %s439, %s442
    %p451 = scmp.eq.s32.totalorder %s30, 1
    %p452 = por %p450, %p451
    %p453 = scmp.ne.s32.totalorder %s442, %s443
    %p454 = scmp.eq.s32.totalorder %s30, 0
    %p455 = por %p453, %p454
    %p456 = scmp.ne.s32.totalorder %s442, %s443
    %p457 = scmp.eq.s32.totalorder %s31, 1
    %p458 = por %p456, %p457
    %p460 = scmp.ne.s32.totalorder %s443, %s459
    %p461 = scmp.eq.s32.totalorder %s31, 0
    %p462 = por %p460, %p461
    %p463 = scmp.le.s32.totalorder 1, %s25
    %p464 = scmp.lt.s32.totalorder %s25, 3
    %p465 = pnand %p463, %p464
    %p466 = pneg %p465
    // Predicated region
    $region9: #{_lambda_.12} parent=5 // pred_check
      _
    $region10: #{_lambda_.12} parent=5 // pred_check_branch
      %468 = sbr.rel (%p465) target = $region12
    $region11: #{_lambda_.12} parent=5 // pred_region
      %s469 = ssub.s32 %s25, 1
      // Predicated region
      $region13: #{_lambda_.12} parent=11 // pred_check
        %p470 = pneg %p72
      $region14: #{_lambda_.12} parent=11 // pred_check_branch
        %472 = sbr.rel (%p470) target = $region16
      $region15: #{_lambda_.12} parent=11 // pred_region
        _
      $region16: #{_lambda_.12} parent=11 // pred_fallthru
        _
      // Predicated region
      $region17: #{_lambda_.12} parent=11 // pred_check
        %p473 = pneg %p93
      $region18: #{_lambda_.12} parent=11 // pred_check_branch
        %475 = sbr.rel (%p473) target = $region20
      $region19: #{_lambda_.12} parent=11 // pred_region
        _
      $region20: #{_lambda_.12} parent=11 // pred_fallthru
        _
      // Predicated region
      $region21: #{_lambda_.12} parent=11 // pred_check
        %p476 = pneg %p114
      $region22: #{_lambda_.12} parent=11 // pred_check_branch
        %478 = sbr.rel (%p476) target = $region24
      $region23: #{_lambda_.12} parent=11 // pred_region
        _
      $region24: #{_lambda_.12} parent=11 // pred_fallthru
        _
      // Predicated region
      $region25: #{_lambda_.12} parent=11 // pred_check
        %p479 = pneg %p135
      $region26: #{_lambda_.12} parent=11 // pred_check_branch
        %481 = sbr.rel (%p479) target = $region28
      $region27: #{_lambda_.12} parent=11 // pred_region
        _
      $region28: #{_lambda_.12} parent=11 // pred_fallthru
        _
      // Predicated region
      $region29: #{_lambda_.12} parent=11 // pred_check
        %p482 = pneg %p156
      $region30: #{_lambda_.12} parent=11 // pred_check_branch
        %484 = sbr.rel (%p482) target = $region32
      $region31: #{_lambda_.12} parent=11 // pred_region
        _
      $region32: #{_lambda_.12} parent=11 // pred_fallthru
        _
      // Predicated region
      $region33: #{_lambda_.12} parent=11 // pred_check
        %p485 = pneg %p177
      $region34: #{_lambda_.12} parent=11 // pred_check_branch
        %487 = sbr.rel (%p485) target = $region36
      $region35: #{_lambda_.12} parent=11 // pred_region
        _
      $region36: #{_lambda_.12} parent=11 // pred_fallthru
        _
      // Predicated region
      $region37: #{_lambda_.12} parent=11 // pred_check
        %p488 = pneg %p198
      $region38: #{_lambda_.12} parent=11 // pred_check_branch
        %490 = sbr.rel (%p488) target = $region40
      $region39: #{_lambda_.12} parent=11 // pred_region
        _
      $region40: #{_lambda_.12} parent=11 // pred_fallthru
        _
      // Predicated region
      $region41: #{_lambda_.12} parent=11 // pred_check
        %p491 = pneg %p219
      $region42: #{_lambda_.12} parent=11 // pred_check_branch
        %493 = sbr.rel (%p491) target = $region44
      $region43: #{_lambda_.12} parent=11 // pred_region
        _
      $region44: #{_lambda_.12} parent=11 // pred_fallthru
        _
      // Predicated region
      $region45: #{_lambda_.12} parent=11 // pred_check
        %p494 = pneg %p240
      $region46: #{_lambda_.12} parent=11 // pred_check_branch
        %496 = sbr.rel (%p494) target = $region48
      $region47: #{_lambda_.12} parent=11 // pred_region
        _
      $region48: #{_lambda_.12} parent=11 // pred_fallthru
        _
      // Predicated region
      $region49: #{_lambda_.12} parent=11 // pred_check
        %p497 = pneg %p261
      $region50: #{_lambda_.12} parent=11 // pred_check_branch
        %499 = sbr.rel (%p497) target = $region52
      $region51: #{_lambda_.12} parent=11 // pred_region
        _
      $region52: #{_lambda_.12} parent=11 // pred_fallthru
        _
      // Predicated region
      $region53: #{_lambda_.12} parent=11 // pred_check
        %p500 = pneg %p282
      $region54: #{_lambda_.12} parent=11 // pred_check_branch
        %502 = sbr.rel (%p500) target = $region56
      $region55: #{_lambda_.12} parent=11 // pred_region
        _
      $region56: #{_lambda_.12} parent=11 // pred_fallthru
        _
      // Predicated region
      $region57: #{_lambda_.12} parent=11 // pred_check
        %p503 = pneg %p303
      $region58: #{_lambda_.12} parent=11 // pred_check_branch
        %505 = sbr.rel (%p503) target = $region60
      $region59: #{_lambda_.12} parent=11 // pred_region
        _
      $region60: #{_lambda_.12} parent=11 // pred_fallthru
        _
      // Predicated region
      $region61: #{_lambda_.12} parent=11 // pred_check
        %p506 = pneg %p324
      $region62: #{_lambda_.12} parent=11 // pred_check_branch
        %508 = sbr.rel (%p506) target = $region64
      $region63: #{_lambda_.12} parent=11 // pred_region
        _
      $region64: #{_lambda_.12} parent=11 // pred_fallthru
        _
      // Predicated region
      $region65: #{_lambda_.12} parent=11 // pred_check
        %p509 = pneg %p345
      $region66: #{_lambda_.12} parent=11 // pred_check_branch
        %511 = sbr.rel (%p509) target = $region68
      $region67: #{_lambda_.12} parent=11 // pred_region
        _
      $region68: #{_lambda_.12} parent=11 // pred_fallthru
        _
      // Predicated region
      $region69: #{_lambda_.12} parent=11 // pred_check
        %p512 = pneg %p366
      $region70: #{_lambda_.12} parent=11 // pred_check_branch
        %514 = sbr.rel (%p512) target = $region72
      $region71: #{_lambda_.12} parent=11 // pred_region
        _
      $region72: #{_lambda_.12} parent=11 // pred_fallthru
        _
      // Predicated region
      $region73: #{_lambda_.12} parent=11 // pred_check
        %p515 = pneg %p387
      $region74: #{_lambda_.12} parent=11 // pred_check_branch
        %517 = sbr.rel (%p515) target = $region76
      $region75: #{_lambda_.12} parent=11 // pred_region
        _
      $region76: #{_lambda_.12} parent=11 // pred_fallthru
        _
      // Predicated region
      $region77: #{_lambda_.12} parent=11 // pred_check
        %p518 = pneg %p408
      $region78: #{_lambda_.12} parent=11 // pred_check_branch
        %520 = sbr.rel (%p518) target = $region80
      $region79: #{_lambda_.12} parent=11 // pred_region
        _
      $region80: #{_lambda_.12} parent=11 // pred_fallthru
        _
      // Predicated region
      $region81: #{_lambda_.12} parent=11 // pred_check
        %p521 = pneg %p429
      $region82: #{_lambda_.12} parent=11 // pred_check_branch
        %523 = sbr.rel (%p521) target = $region84
      $region83: #{_lambda_.12} parent=11 // pred_region
        _
      $region84: #{_lambda_.12} parent=11 // pred_fallthru
        _
    $region12: #{_lambda_.12} parent=5 // pred_fallthru
      _
    %p524 = scmp.lt.s32.totalorder %s25, 2
    // Predicated region
    $region85: #{_lambda_.12} parent=5 // pred_check
      %p525 = pneg %p524
    $region86: #{_lambda_.12} parent=5 // pred_check_branch
      %527 = sbr.rel (%p525) target = $region88
    $region87: #{_lambda_.12} parent=5 // pred_region
      // Predicated region
      $region89: #{_lambda_.12} parent=87 // pred_check
        %p528 = pneg %p45
      $region90: #{_lambda_.12} parent=87 // pred_check_branch
        %530 = sbr.rel (%p528) target = $region92
      $region91: #{_lambda_.12} parent=87 // pred_region
        %p531 = scmp.lt.s32.totalorder %s25, 1
        %s532 = scalar_select %p531, %s25, 1
        %s533 = smul.addr %s532, 2
        %s534 = smul.addr %s533, 8
        %s535 = scalar_lea.vmem %s0, %s534
      $region92: #{_lambda_.12} parent=87 // pred_fallthru
        _
    $region88: #{_lambda_.12} parent=5 // pred_fallthru
      _
    %p536 = scmp.le.s32.totalorder 1, %s25
    %p537 = scmp.lt.s32.totalorder %s25, 3
    %p538 = pnand %p536, %p537
    %p539 = pneg %p538
    // Predicated region
    $region93: #{_lambda_.12} parent=5 // pred_check
      _
    $region94: #{_lambda_.12} parent=5 // pred_check_branch
      %541 = sbr.rel (%p538) target = $region96
    $region95: #{_lambda_.12} parent=5 // pred_region
      %s542 = ssub.s32 %s25, 1
      %p543 = scmp.lt.s32.totalorder %s30, 1
      %s544 = scalar_select %p543, %s30, 1
      %s545 = smul.addr %s544, 2
      %s546 = smul.addr %s545, 8
      %s547 = scalar_lea.vmem %s0, %s546
      %p548 = pneg %p51
      %p549 = pneg %p48
      %p550 = pneg %p72
      %p551 = pneg %p69
      %p552 = pneg %p93
      %p553 = pneg %p90
      %p554 = pneg %p114
      %p555 = pneg %p111
      %p556 = pneg %p135
      %p557 = pneg %p132
      %p558 = pneg %p156
      %p559 = pneg %p153
      %p560 = pneg %p177
      %p561 = pneg %p174
      %p562 = pneg %p198
      %p563 = pneg %p195
      %p564 = pneg %p219
      %p565 = pneg %p216
      %p566 = pneg %p240
      %p567 = pneg %p237
      %p568 = pneg %p261
      %p569 = pneg %p258
      %p570 = pneg %p282
      %p571 = pneg %p279
      %p572 = pneg %p303
      %p573 = pneg %p300
      %p574 = pneg %p324
      %p575 = pneg %p321
      %p576 = pneg %p345
      %p577 = pneg %p342
      %p578 = pneg %p366
      %p579 = pneg %p363
      %p580 = pneg %p387
      %p581 = pneg %p384
      %p582 = pneg %p408
      %p583 = pneg %p405
      %p584 = pneg %p429
      %p585 = pneg %p426
      %p586 = pneg %p455
      %p587 = pneg %p452
      %p588 = scmp.lt.s32.totalorder %s30, 1
      %s589 = scalar_select %p588, %s30, 1
      %s590 = smul.addr %s589, 2
      %s591 = smul.addr %s590, 8
      %s592 = scalar_lea.vmem %s19, %s591
      %p593 = scmp.lt.s32.totalorder %s30, 1
      %s594 = scalar_select %p593, %s30, 1
      %s595 = smul.addr %s594, 2
      %s596 = smul.addr %s595, 8
      %s597 = scalar_lea.vmem %s0, %s596
      %p598 = scmp.lt.s32.totalorder %s30, 1
      %s599 = scalar_select %p598, %s30, 1
      %s600 = smul.addr %s599, 2
      %s601 = smul.addr %s600, 8
      %s602 = scalar_lea.vmem %s19, %s601
      %v604 = vld [vmem:[%s597] sm:$0xff]
      %v605 = vld [vmem:[%s597 + $0x8] sm:$0xff]
      %v606 = vld [vmem:[%s1] sm:$0x1]
      %v607 = vld [vmem:[%s2] sm:$0x1]
      %v608 = vld [vmem:[%s3] sm:$0xff]
      %v609 = vld [vmem:[%s3 + $0x8] sm:$0xff]
      %v610 = vld [vmem:[%s3 + $0x10] sm:$0xff]
      %v611 = vld [vmem:[%s3 + $0x18] sm:$0xff]
      %v612 = vld [vmem:[%s4] sm:$0x1]
      %v613 = vld [vmem:[%s5] sm:$0xff]
      %v614 = vld [vmem:[%s5 + $0x8] sm:$0xff]
      %v615 = vld [vmem:[%s5 + $0x10] sm:$0xff]
      %v616 = vld [vmem:[%s5 + $0x18] sm:$0xff]
      %v617 = vld [vmem:[%s6] sm:$0x1]
      %v618 = vld [vmem:[%s7] sm:$0xff]
      %v619 = vld [vmem:[%s7 + $0x8] sm:$0xff]
      %v620 = vld [vmem:[%s7 + $0x10] sm:$0xff]
      %v621 = vld [vmem:[%s7 + $0x18] sm:$0xff]
      %v622 = vld [vmem:[%s8] sm:$0x1]
      %v623 = vld [vmem:[%s9] sm:$0xff]
      %v624 = vld [vmem:[%s9 + $0x8] sm:$0xff]
      %v625 = vld [vmem:[%s9 + $0x10] sm:$0xff]
      %v626 = vld [vmem:[%s9 + $0x18] sm:$0xff]
      %v627 = vld [vmem:[%s9 + $0x20] sm:$0xff]
      %v628 = vld [vmem:[%s9 + $0x28] sm:$0xff]
      %v629 = vld [vmem:[%s9 + $0x30] sm:$0xff]
      %v630 = vld [vmem:[%s9 + $0x38] sm:$0xff]
      %v631 = vld [vmem:[%s9 + $0x40] sm:$0xff]
      %v632 = vld [vmem:[%s9 + $0x48] sm:$0xff]
      %v633 = vld [vmem:[%s9 + $0x50] sm:$0xff]
      %v634 = vld [vmem:[%s9 + $0x58] sm:$0xff]
      %v635 = vld [vmem:[%s9 + $0x60] sm:$0xff]
      %v636 = vld [vmem:[%s9 + $0x68] sm:$0xff]
      %v637 = vld [vmem:[%s9 + $0x70] sm:$0xff]
      %v638 = vld [vmem:[%s9 + $0x78] sm:$0xff]
      %v639 = vld [vmem:[%s10] sm:$0x1]
      %v640 = vld [vmem:[%s11] sm:$0x1]
      %v641 = vld [vmem:[%s12] sm:$0x1]
      %v642 = vld [vmem:[%s13] sm:$0xff]
      %v643 = vld [vmem:[%s13 + $0x8] sm:$0xff]
      %v644 = vld [vmem:[%s13 + $0x10] sm:$0xff]
      %v645 = vld [vmem:[%s13 + $0x18] sm:$0xff]
      %v646 = vld [vmem:[%s14] sm:$0x1]
      %v647 = vld [vmem:[%s15] sm:$0xff]
      %v648 = vld [vmem:[%s15 + $0x8] sm:$0xff]
      %v649 = vld [vmem:[%s15 + $0x10] sm:$0xff]
      %v650 = vld [vmem:[%s15 + $0x18] sm:$0xff]
      %v651 = vld [vmem:[%s15 + $0x20] sm:$0xff]
      %v652 = vld [vmem:[%s15 + $0x28] sm:$0xff]
      %v653 = vld [vmem:[%s15 + $0x30] sm:$0xff]
      %v654 = vld [vmem:[%s15 + $0x38] sm:$0xff]
      %v655 = vld [vmem:[%s16] sm:$0x1]
      %v656 = vld [vmem:[%s17] sm:$0x1]
      %v657 = vld [vmem:[%s18] sm:$0x1]
      %vm658 = vcmask 261120
      %v659 = vsel %vm658, %v604, 0.0
      %660 = vadd.xlane.f32.xlu0 %v659
      %v661 = vpop.xlane.xlu0 %660
      %v662 = vsel %vm658, %v605, 0.0
      %663 = vadd.xlane.f32.xlu0 %v662
      %v664 = vpop.xlane.xlu0 %663
      %v665 = vrcp.pop 32.0
      %v666 = vmul.f32 %v661, %v665
      %v667 = vmul.f32 %v664, %v665
      %v668 = vsub.f32 %v604, %v666
      %v669 = vsub.f32 %v605, %v667
      %v670 = vmul.f32 %v668, %v668
      %v671 = vmul.f32 %v669, %v669
      %v672 = vsel %vm658, %v670, 0.0
      %673 = vadd.xlane.f32.xlu0 %v672
      %v674 = vpop.xlane.xlu0 %673
      %v675 = vsel %vm658, %v671, 0.0
      %676 = vadd.xlane.f32.xlu0 %v675
      %v677 = vpop.xlane.xlu0 %676
      %v678 = vmul.f32 %v674, %v665
      %v679 = vmul.f32 %v677, %v665
      %v680 = vadd.f32 %v678, 1e-05
      %v681 = vadd.f32 %v679, 1e-05
      %v682 = vrsqrt.pop %v680
      %v683 = vrsqrt.pop %v681
      %v684 = vmul.f32 %v668, %v682
      %v685 = vmul.f32 %v669, %v683
      %v687 = vlaneseq
      %v688 = vshrl.u32 %v687, 7
      %v689 = vsub.s32 0, %v688
      %v690 = vrot.slane %v606, %v689
      %v692 = vmul.f32 %v684, %v690
      %v693 = vmul.f32 %v685, %v690
      %v695 = vlaneseq
      %v696 = vshrl.u32 %v695, 7
      %v697 = vsub.s32 0, %v696
      %v698 = vrot.slane %v607, %v697
      %v700 = vadd.f32 %v692, %v698
      %v701 = vadd.f32 %v693, %v698
      %v702 = vpack.c.bf16 %v701, %v700
      %v703 = vpack.c.bf16 %v609, %v608
      %v704 = vpack.c.bf16 %v611, %v610
      %v706 = vlaneseq
      %v707 = vshrl.u32 %v706, 7
      %v708 = vsub.s32 0, %v707
      %v709 = vrot.slane %v612, %v708
      %v712 = vsel %vm658, %v702, 0
      %714 = vmatprep.subr.bf16.mxu0 0
      %715 = vmatpush1.bf16.msra.mxu0 %v703
      %716 = vmatprep.subr.bf16.mxu0 0
      %717 = vmatpush1.bf16.msra.mxu0 %v704
      %718 = vmatprep.subr.bf16.mxu0 0
      %719 = vmatpush1.bf16.msra.mxu0 0
      %720 = vmatprep.subr.bf16.mxu0 0
      %721 = vmatpush1.bf16.msra.mxu0 0
      %722 = vmatprep.subr.bf16.mxu0 0
      %723 = vmatpush1.bf16.msra.mxu0 0
      %724 = vmatprep.subr.bf16.mxu0 0
      %725 = vmatpush1.bf16.msra.mxu0 0
      %726 = vmatprep.subr.bf16.mxu0 0
      %727 = vmatpush1.bf16.msra.mxu0 0
      %728 = vmatprep.subr.bf16.mxu0 0
      %729 = vmatpush1.bf16.msra.mxu0 0
      %730 = vmatprep.subr.bf16.mxu0 0
      %731 = vmatpush1.bf16.msra.mxu0 0
      %732 = vmatprep.subr.bf16.mxu0 0
      %733 = vmatpush1.bf16.msra.mxu0 0
      %734 = vmatprep.subr.bf16.mxu0 0
      %735 = vmatpush1.bf16.msra.mxu0 0
      %736 = vmatprep.subr.bf16.mxu0 0
      %737 = vmatpush1.bf16.msra.mxu0 0
      %738 = vmatprep.subr.bf16.mxu0 0
      %739 = vmatpush1.bf16.msra.mxu0 0
      %740 = vmatprep.subr.bf16.mxu0 0
      %741 = vmatpush1.bf16.msra.mxu0 0
      %742 = vmatprep.subr.bf16.mxu0 0
      %743 = vmatpush1.bf16.msra.mxu0 0
      %744 = vmatprep.subr.bf16.mxu0 0
      %745 = vmatpush1.bf16.msra.mxu0 0
      %746 = vmatprep.mubr.bf16.mxu0 0
      %747 = vmatmul.mubr.bf16.gmra.mrb[0].mxu0 %v712
      %v748 = vpop.f32.mrb[0].mxu0
      %v749 = vadd.f32 %v709, %v748
      %v750 = vpop.f32.mrb[0].mxu0
      %v751 = vpop.f32.mrb[0].mxu0
      %v752 = vadd.f32 %v709, %v751
      %v753 = vpop.f32.mrb[0].mxu0
      %754 = vdwg.mxu0
      %v755 = vpack.c.bf16 %v614, %v613
      %v756 = vpack.c.bf16 %v616, %v615
      %v758 = vlaneseq
      %v759 = vshrl.u32 %v758, 7
      %v760 = vsub.s32 0, %v759
      %v761 = vrot.slane %v617, %v760
      %763 = vmatprep.subr.bf16.mxu0 0
      %764 = vmatpush1.bf16.msra.mxu0 %v755
      %765 = vmatprep.subr.bf16.mxu0 0
      %766 = vmatpush1.bf16.msra.mxu0 %v756
      %767 = vmatprep.subr.bf16.mxu0 0
      %768 = vmatpush1.bf16.msra.mxu0 0
      %769 = vmatprep.subr.bf16.mxu0 0
      %770 = vmatpush1.bf16.msra.mxu0 0
      %771 = vmatprep.subr.bf16.mxu0 0
      %772 = vmatpush1.bf16.msra.mxu0 0
      %773 = vmatprep.subr.bf16.mxu0 0
      %774 = vmatpush1.bf16.msra.mxu0 0
      %775 = vmatprep.subr.bf16.mxu0 0
      %776 = vmatpush1.bf16.msra.mxu0 0
      %777 = vmatprep.subr.bf16.mxu0 0
      %778 = vmatpush1.bf16.msra.mxu0 0
      %779 = vmatprep.subr.bf16.mxu0 0
      %780 = vmatpush1.bf16.msra.mxu0 0
      %781 = vmatprep.subr.bf16.mxu0 0
      %782 = vmatpush1.bf16.msra.mxu0 0
      %783 = vmatprep.subr.bf16.mxu0 0
      %784 = vmatpush1.bf16.msra.mxu0 0
      %785 = vmatprep.subr.bf16.mxu0 0
      %786 = vmatpush1.bf16.msra.mxu0 0
      %787 = vmatprep.subr.bf16.mxu0 0
      %788 = vmatpush1.bf16.msra.mxu0 0
      %789 = vmatprep.subr.bf16.mxu0 0
      %790 = vmatpush1.bf16.msra.mxu0 0
      %791 = vmatprep.subr.bf16.mxu0 0
      %792 = vmatpush1.bf16.msra.mxu0 0
      %793 = vmatprep.subr.bf16.mxu0 0
      %794 = vmatpush1.bf16.msra.mxu0 0
      %795 = vmatprep.mubr.bf16.mxu0 0
      %796 = vmatmul.mubr.bf16.gmra.mrb[0].mxu0 %v712
      %v797 = vpop.f32.mrb[0].mxu0
      %v798 = vadd.f32 %v761, %v797
      %v799 = vpop.f32.mrb[0].mxu0
      %v800 = vpop.f32.mrb[0].mxu0
      %v801 = vadd.f32 %v761, %v800
      %v802 = vpop.f32.mrb[0].mxu0
      %803 = vdwg.mxu0
      %v804 = vpack.c.bf16 %v619, %v618
      %v805 = vpack.c.bf16 %v621, %v620
      %v807 = vlaneseq
      %v808 = vshrl.u32 %v807, 7
      %v809 = vsub.s32 0, %v808
      %v810 = vrot.slane %v622, %v809
      %812 = vmatprep.subr.bf16.mxu0 0
      %813 = vmatpush1.bf16.msra.mxu0 %v804
      %814 = vmatprep.subr.bf16.mxu0 0
      %815 = vmatpush1.bf16.msra.mxu0 %v805
      %816 = vmatprep.subr.bf16.mxu0 0
      %817 = vmatpush1.bf16.msra.mxu0 0
      %818 = vmatprep.subr.bf16.mxu0 0
      %819 = vmatpush1.bf16.msra.mxu0 0
      %820 = vmatprep.subr.bf16.mxu0 0
      %821 = vmatpush1.bf16.msra.mxu0 0
      %822 = vmatprep.subr.bf16.mxu0 0
      %823 = vmatpush1.bf16.msra.mxu0 0
      %824 = vmatprep.subr.bf16.mxu0 0
      %825 = vmatpush1.bf16.msra.mxu0 0
      %826 = vmatprep.subr.bf16.mxu0 0
      %827 = vmatpush1.bf16.msra.mxu0 0
      %828 = vmatprep.subr.bf16.mxu0 0
      %829 = vmatpush1.bf16.msra.mxu0 0
      %830 = vmatprep.subr.bf16.mxu0 0
      %831 = vmatpush1.bf16.msra.mxu0 0
      %832 = vmatprep.subr.bf16.mxu0 0
      %833 = vmatpush1.bf16.msra.mxu0 0
      %834 = vmatprep.subr.bf16.mxu0 0
      %835 = vmatpush1.bf16.msra.mxu0 0
      %836 = vmatprep.subr.bf16.mxu0 0
      %837 = vmatpush1.bf16.msra.mxu0 0
      %838 = vmatprep.subr.bf16.mxu0 0
      %839 = vmatpush1.bf16.msra.mxu0 0
      %840 = vmatprep.subr.bf16.mxu0 0
      %841 = vmatpush1.bf16.msra.mxu0 0
      %842 = vmatprep.subr.bf16.mxu0 0
      %843 = vmatpush1.bf16.msra.mxu0 0
      %844 = vmatprep.mubr.bf16.mxu0 0
      %845 = vmatmul.mubr.bf16.gmra.mrb[0].mxu0 %v712
      %v846 = vpop.f32.mrb[0].mxu0
      %v847 = vadd.f32 %v810, %v846
      %v848 = vpop.f32.mrb[0].mxu0
      %v849 = vpop.f32.mrb[0].mxu0
      %v850 = vadd.f32 %v810, %v849
      %v851 = vpop.f32.mrb[0].mxu0
      %852 = vdwg.mxu0
      %v853 = vpack.c.bf16 %v752, %v749
      %v854 = vpack.c.bf16 %v801, %v798
      %v855 = vpack.c.bf16 %v850, %v847
      %vm856 = vcmask 523264
      %v858 = vsel %vm856, %v853, 0
      %v861 = vsel %vm856, %v854, 0
      %863 = vmatprep.subr.bf16.mxu0 0
      %864 = vmatpush1.bf16.xpose.msra.mxu0 %v861
      %865 = vmatprep.subr.bf16.mxu0 0
      %866 = vmatpush1.bf16.xpose.msra.mxu0 0
      %867 = vmatprep.subr.bf16.mxu0 0
      %868 = vmatpush1.bf16.xpose.msra.mxu0 0
      %869 = vmatprep.subr.bf16.mxu0 0
      %870 = vmatpush1.bf16.xpose.msra.mxu0 0
      %871 = vmatprep.subr.bf16.mxu0 0
      %872 = vmatpush1.bf16.xpose.msra.mxu0 0
      %873 = vmatprep.subr.bf16.mxu0 0
      %874 = vmatpush1.bf16.xpose.msra.mxu0 0
      %875 = vmatprep.subr.bf16.mxu0 0
      %876 = vmatpush1.bf16.xpose.msra.mxu0 0
      %877 = vmatprep.subr.bf16.mxu0 0
      %878 = vmatpush1.bf16.xpose.msra.mxu0 0
      %879 = vmatprep.subr.bf16.mxu0 0
      %880 = vmatpush1.bf16.xpose.msra.mxu0 0
      %881 = vmatprep.subr.bf16.mxu0 0
      %882 = vmatpush1.bf16.xpose.msra.mxu0 0
      %883 = vmatprep.subr.bf16.mxu0 0
      %884 = vmatpush1.bf16.xpose.msra.mxu0 0
      %885 = vmatprep.subr.bf16.mxu0 0
      %886 = vmatpush1.bf16.xpose.msra.mxu0 0
      %887 = vmatprep.subr.bf16.mxu0 0
      %888 = vmatpush1.bf16.xpose.msra.mxu0 0
      %889 = vmatprep.subr.bf16.mxu0 0
      %890 = vmatpush1.bf16.xpose.msra.mxu0 0
      %891 = vmatprep.subr.bf16.mxu0 0
      %892 = vmatpush1.bf16.xpose.msra.mxu0 0
      %893 = vmatprep.subr.bf16.mxu0 0
      %894 = vmatpush1.bf16.xpose.msra.mxu0 0
      %895 = vmatprep.mubr.bf16.mxu0 0
      %896 = vmatmul.mubr.bf16.gmra.mrb[0].mxu0 %v858
      %v897 = vpop.f32.mrb[0].mxu0
      %v898 = vadd.f32 0.0, %v897
      %v899 = vpop.f32.mrb[0].mxu0
      %v900 = vpop.f32.mrb[0].mxu0
      %v901 = vadd.f32 0.0, %v900
      %v902 = vpop.f32.mrb[0].mxu0
      %903 = vdwg.mxu0
      %v904 = vmul.f32 %v898, 0.125
      %v905 = vmul.f32 %v901, 0.125
      %vm906 = vcmask 130048
      %v907 = vsel %vm906, %v904, -inf
      %908 = vmax.xlane.f32.xlu0 %v907
      %v909 = vpop.xlane.xlu0 %908
      %v910 = vsel %vm906, %v905, -inf
      %911 = vmax.xlane.f32.xlu0 %v910
      %v912 = vpop.xlane.xlu0 %911
      %v913 = vsub.f32 %v904, %v909
      %v914 = vsub.f32 %v905, %v912
      %v915 = vmul.f32 %v913, 1.442695
      %v916 = vpow.pop %v915
      %v917 = vmul.f32 %v914, 1.442695
      %v918 = vpow.pop %v917
      %v919 = vsel %vm906, %v916, 0.0
      %920 = vadd.xlane.f32.xlu0 %v919
      %v921 = vpop.xlane.xlu0 %920
      %v922 = vsel %vm906, %v918, 0.0
      %923 = vadd.xlane.f32.xlu0 %v922
      %v924 = vpop.xlane.xlu0 %923
      %v925 = vrcp.pop %v921
      %v926 = vrcp.pop %v924
      %v927 = vmul.f32 %v916, %v925
      %v928 = vmul.f32 %v918, %v926
      %v929 = vpack.c.bf16 %v928, %v927
      %v931 = vsel %vm906, %v929, 0
      %933 = vmatprep.subr.bf16.mxu0 0
      %934 = vmatpush1.bf16.msra.mxu0 %v855
      %935 = vmatprep.subr.bf16.mxu0 0
      %936 = vmatpush1.bf16.msra.mxu0 0
      %937 = vmatprep.subr.bf16.mxu0 0
      %938 = vmatpush1.bf16.msra.mxu0 0
      %939 = vmatprep.subr.bf16.mxu0 0
      %940 = vmatpush1.bf16.msra.mxu0 0
      %941 = vmatprep.subr.bf16.mxu0 0
      %942 = vmatpush1.bf16.msra.mxu0 0
      %943 = vmatprep.subr.bf16.mxu0 0
      %944 = vmatpush1.bf16.msra.mxu0 0
      %945 = vmatprep.subr.bf16.mxu0 0
      %946 = vmatpush1.bf16.msra.mxu0 0
      %947 = vmatprep.subr.bf16.mxu0 0
      %948 = vmatpush1.bf16.msra.mxu0 0
      %949 = vmatprep.subr.bf16.mxu0 0
      %950 = vmatpush1.bf16.msra.mxu0 0
      %951 = vmatprep.subr.bf16.mxu0 0
      %952 = vmatpush1.bf16.msra.mxu0 0
      %953 = vmatprep.subr.bf16.mxu0 0
      %954 = vmatpush1.bf16.msra.mxu0 0
      %955 = vmatprep.subr.bf16.mxu0 0
      %956 = vmatpush1.bf16.msra.mxu0 0
      %957 = vmatprep.subr.bf16.mxu0 0
      %958 = vmatpush1.bf16.msra.mxu0 0
      %959 = vmatprep.subr.bf16.mxu0 0
      %960 = vmatpush1.bf16.msra.mxu0 0
      %961 = vmatprep.subr.bf16.mxu0 0
      %962 = vmatpush1.bf16.msra.mxu0 0
      %963 = vmatprep.subr.bf16.mxu0 0
      %964 = vmatpush1.bf16.msra.mxu0 0
      %965 = vmatprep.mubr.bf16.mxu0 0
      %966 = vmatmul.mubr.bf16.gmra.mrb[0].mxu0 %v931
      %v967 = vpop.f32.mrb[0].mxu0
      %v968 = vadd.f32 0.0, %v967
      %v969 = vpop.f32.mrb[0].mxu0
      %v970 = vpop.f32.mrb[0].mxu0
      %v971 = vadd.f32 0.0, %v970
      %v972 = vpop.f32.mrb[0].mxu0
      %973 = vdwg.mxu0
      %975 = vrot.lane.b32.xlu0 %v853, 64
      %v976 = vpop.permute.xlu0 %975
      %978 = vrot.lane.b32.xlu0 %v854, 64
      %v979 = vpop.permute.xlu0 %978
      %v981 = vsel %vm856, %v976, 0
      %v984 = vsel %vm856, %v979, 0
      %986 = vmatprep.subr.bf16.mxu0 0
      %987 = vmatpush1.bf16.xpose.msra.mxu0 %v984
      %988 = vmatprep.subr.bf16.mxu0 0
      %989 = vmatpush1.bf16.xpose.msra.mxu0 0
      %990 = vmatprep.subr.bf16.mxu0 0
      %991 = vmatpush1.bf16.xpose.msra.mxu0 0
      %992 = vmatprep.subr.bf16.mxu0 0
      %993 = vmatpush1.bf16.xpose.msra.mxu0 0
      %994 = vmatprep.subr.bf16.mxu0 0
      %995 = vmatpush1.bf16.xpose.msra.mxu0 0
      %996 = vmatprep.subr.bf16.mxu0 0
      %997 = vmatpush1.bf16.xpose.msra.mxu0 0
      %998 = vmatprep.subr.bf16.mxu0 0
      %999 = vmatpush1.bf16.xpose.msra.mxu0 0
      %1000 = vmatprep.subr.bf16.mxu0 0
      %1001 = vmatpush1.bf16.xpose.msra.mxu0 0
      %1002 = vmatprep.subr.bf16.mxu0 0
      %1003 = vmatpush1.bf16.xpose.msra.mxu0 0
      %1004 = vmatprep.subr.bf16.mxu0 0
      %1005 = vmatpush1.bf16.xpose.msra.mxu0 0
      %1006 = vmatprep.subr.bf16.mxu0 0
      %1007 = vmatpush1.bf16.xpose.msra.mxu0 0
      %1008 = vmatprep.subr.bf16.mxu0 0
      %1009 = vmatpush1.bf16.xpose.msra.mxu0 0
      %1010 = vmatprep.subr.bf16.mxu0 0
      %1011 = vmatpush1.bf16.xpose.msra.mxu0 0
      %1012 = vmatprep.subr.bf16.mxu0 0
      %1013 = vmatpush1.bf16.xpose.msra.mxu0 0
      %1014 = vmatprep.subr.bf16.mxu0 0
      %1015 = vmatpush1.bf16.xpose.msra.mxu0 0
      %1016 = vmatprep.subr.bf16.mxu0 0
      %1017 = vmatpush1.bf16.xpose.msra.mxu0 0
      %1018 = vmatprep.mubr.bf16.mxu0 0
      %1019 = vmatmul.mubr.bf16.gmra.mrb[0].mxu0 %v981
      %v1020 = vpop.f32.mrb[0].mxu0
      %v1021 = vadd.f32 0.0, %v1020
      %v1022 = vpop.f32.mrb[0].mxu0
      %v1023 = vpop.f32.mrb[0].mxu0
      %v1024 = vadd.f32 0.0, %v1023
      %v1025 = vpop.f32.mrb[0].mxu0
      %1026 = vdwg.mxu0
      %v1027 = vmul.f32 %v1021, 0.125
      %v1028 = vmul.f32 %v1024, 0.125
      %v1029 = vsel %vm906, %v1027, -inf
      %1030 = vmax.xlane.f32.xlu0 %v1029
      %v1031 = vpop.xlane.xlu0 %1030
      %v1032 = vsel %vm906, %v1028, -inf
      %1033 = vmax.xlane.f32.xlu0 %v1032
      %v1034 = vpop.xlane.xlu0 %1033
      %v1035 = vsub.f32 %v1027, %v1031
      %v1036 = vsub.f32 %v1028, %v1034
      %v1037 = vmul.f32 %v1035, 1.442695
      %v1038 = vpow.pop %v1037
      %v1039 = vmul.f32 %v1036, 1.442695
      %v1040 = vpow.pop %v1039
      %v1041 = vsel %vm906, %v1038, 0.0
      %1042 = vadd.xlane.f32.xlu0 %v1041
      %v1043 = vpop.xlane.xlu0 %1042
      %v1044 = vsel %vm906, %v1040, 0.0
      %1045 = vadd.xlane.f32.xlu0 %v1044
      %v1046 = vpop.xlane.xlu0 %1045
      %v1047 = vrcp.pop %v1043
      %v1048 = vrcp.pop %v1046
      %v1049 = vmul.f32 %v1038, %v1047
      %v1050 = vmul.f32 %v1040, %v1048
      %v1051 = vpack.c.bf16 %v1050, %v1049
      %1053 = vrot.lane.b32.xlu0 %v855, 64
      %v1054 = vpop.permute.xlu0 %1053
      %v1057 = vsel %vm906, %v1051, 0
      %1059 = vmatprep.subr.bf16.mxu0 0
      %1060 = vmatpush1.bf16.msra.mxu0 %v1054
      %1061 = vmatprep.subr.bf16.mxu0 0
      %1062 = vmatpush1.bf16.msra.mxu0 0
      %1063 = vmatprep.subr.bf16.mxu0 0
      %1064 = vmatpush1.bf16.msra.mxu0 0
      %1065 = vmatprep.subr.bf16.mxu0 0
      %1066 = vmatpush1.bf16.msra.mxu0 0
      %1067 = vmatprep.subr.bf16.mxu0 0
      %1068 = vmatpush1.bf16.msra.mxu0 0
      %1069 = vmatprep.subr.bf16.mxu0 0
      %1070 = vmatpush1.bf16.msra.mxu0 0
      %1071 = vmatprep.subr.bf16.mxu0 0
      %1072 = vmatpush1.bf16.msra.mxu0 0
      %1073 = vmatprep.subr.bf16.mxu0 0
      %1074 = vmatpush1.bf16.msra.mxu0 0
      %1075 = vmatprep.subr.bf16.mxu0 0
      %1076 = vmatpush1.bf16.msra.mxu0 0
      %1077 = vmatprep.subr.bf16.mxu0 0
      %1078 = vmatpush1.bf16.msra.mxu0 0
      %1079 = vmatprep.subr.bf16.mxu0 0
      %1080 = vmatpush1.bf16.msra.mxu0 0
      %1081 = vmatprep.subr.bf16.mxu0 0
      %1082 = vmatpush1.bf16.msra.mxu0 0
      %1083 = vmatprep.subr.bf16.mxu0 0
      %1084 = vmatpush1.bf16.msra.mxu0 0
      %1085 = vmatprep.subr.bf16.mxu0 0
      %1086 = vmatpush1.bf16.msra.mxu0 0
      %1087 = vmatprep.subr.bf16.mxu0 0
      %1088 = vmatpush1.bf16.msra.mxu0 0
      %1089 = vmatprep.subr.bf16.mxu0 0
      %1090 = vmatpush1.bf16.msra.mxu0 0
      %1091 = vmatprep.mubr.bf16.mxu0 0
      %1092 = vmatmul.mubr.bf16.gmra.mrb[0].mxu0 %v1057
      %v1093 = vpop.f32.mrb[0].mxu0
      %v1094 = vadd.f32 0.0, %v1093
      %v1095 = vpop.f32.mrb[0].mxu0
      %v1096 = vpop.f32.mrb[0].mxu0
      %v1097 = vadd.f32 0.0, %v1096
      %v1098 = vpop.f32.mrb[0].mxu0
      %1099 = vdwg.mxu0
      %1102 = vrot.lane.b32.xlu0 %v1094, 64
      %v1103 = vpop.permute.xlu0 %1102
      %1104 = vrot.lane.b32.xlu0 %v1097, 64
      %v1105 = vpop.permute.xlu0 %1104
      %v1108 = vsel %vm856, %v968, %v1103
      %v1109 = vsel %vm856, %v971, %v1105
      %v1110 = vpack.c.bf16 %v1109, %v1108
      %v1111 = vpack.c.bf16 %v624, %v623
      %v1112 = vpack.c.bf16 %v626, %v625
      %v1113 = vpack.c.bf16 %v628, %v627
      %v1114 = vpack.c.bf16 %v630, %v629
      %v1115 = vpack.c.bf16 %v632, %v631
      %v1116 = vpack.c.bf16 %v634, %v633
      %v1117 = vpack.c.bf16 %v636, %v635
      %v1118 = vpack.c.bf16 %v638, %v637
      %v1120 = vlaneseq
      %v1121 = vshrl.u32 %v1120, 7
      %v1122 = vsub.s32 0, %v1121
      %v1123 = vrot.slane %v639, %v1122
      %1125 = vmatprep.subr.bf16.mxu0 0
      %1126 = vmatpush1.bf16.msra.mxu0 %v1111
      %1127 = vmatprep.subr.bf16.mxu0 0
      %1128 = vmatpush1.bf16.msra.mxu0 %v1112
      %1129 = vmatprep.subr.bf16.mxu0 0
      %1130 = vmatpush1.bf16.msra.mxu0 %v1113
      %1131 = vmatprep.subr.bf16.mxu0 0
      %1132 = vmatpush1.bf16.msra.mxu0 %v1114
      %1133 = vmatprep.subr.bf16.mxu0 0
      %1134 = vmatpush1.bf16.msra.mxu0 %v1115
      %1135 = vmatprep.subr.bf16.mxu0 0
      %1136 = vmatpush1.bf16.msra.mxu0 %v1116
      %1137 = vmatprep.subr.bf16.mxu0 0
      %1138 = vmatpush1.bf16.msra.mxu0 %v1117
      %1139 = vmatprep.subr.bf16.mxu0 0
      %1140 = vmatpush1.bf16.msra.mxu0 %v1118
      %1141 = vmatprep.subr.bf16.mxu0 0
      %1142 = vmatpush1.bf16.msra.mxu0 0
      %1143 = vmatprep.subr.bf16.mxu0 0
      %1144 = vmatpush1.bf16.msra.mxu0 0
      %1145 = vmatprep.subr.bf16.mxu0 0
      %1146 = vmatpush1.bf16.msra.mxu0 0
      %1147 = vmatprep.subr.bf16.mxu0 0
      %1148 = vmatpush1.bf16.msra.mxu0 0
      %1149 = vmatprep.subr.bf16.mxu0 0
      %1150 = vmatpush1.bf16.msra.mxu0 0
      %1151 = vmatprep.subr.bf16.mxu0 0
      %1152 = vmatpush1.bf16.msra.mxu0 0
      %1153 = vmatprep.subr.bf16.mxu0 0
      %1154 = vmatpush1.bf16.msra.mxu0 0
      %1155 = vmatprep.subr.bf16.mxu0 0
      %1156 = vmatpush1.bf16.msra.mxu0 0
      %1157 = vmatprep.mubr.bf16.mxu0 0
      %1158 = vmatmul.mubr.bf16.gmra.mrb[0].mxu0 %v1110
      %v1159 = vpop.f32.mrb[0].mxu0
      %v1160 = vadd.f32 %v1123, %v1159
      %v1161 = vpop.f32.mrb[0].mxu0
      %v1162 = vpop.f32.mrb[0].mxu0
      %v1163 = vadd.f32 %v1123, %v1162
      %v1164 = vpop.f32.mrb[0].mxu0
      %1165 = vdwg.mxu0
      %v1166 = vadd.f32 %v604, %v1160
      %v1167 = vadd.f32 %v605, %v1163
      %v1168 = vsel %vm658, %v1166, 0.0
      %1169 = vadd.xlane.f32.xlu0 %v1168
      %v1170 = vpop.xlane.xlu0 %1169
      %v1171 = vsel %vm658, %v1167, 0.0
      %1172 = vadd.xlane.f32.xlu0 %v1171
      %v1173 = vpop.xlane.xlu0 %1172
      %v1174 = vmul.f32 %v1170, %v665
      %v1175 = vmul.f32 %v1173, %v665
      %v1176 = vsub.f32 %v1166, %v1174
      %v1177 = vsub.f32 %v1167, %v1175
      %v1178 = vmul.f32 %v1176, %v1176
      %v1179 = vmul.f32 %v1177, %v1177
      %v1180 = vsel %vm658, %v1178, 0.0
      %1181 = vadd.xlane.f32.xlu0 %v1180
      %v1182 = vpop.xlane.xlu0 %1181
      %v1183 = vsel %vm658, %v1179, 0.0
      %1184 = vadd.xlane.f32.xlu0 %v1183
      %v1185 = vpop.xlane.xlu0 %1184
      %v1186 = vmul.f32 %v1182, %v665
      %v1187 = vmul.f32 %v1185, %v665
      %v1188 = vadd.f32 %v1186, 1e-05
      %v1189 = vadd.f32 %v1187, 1e-05
      %v1190 = vrsqrt.pop %v1188
      %v1191 = vrsqrt.pop %v1189
      %v1192 = vmul.f32 %v1176, %v1190
      %v1193 = vmul.f32 %v1177, %v1191
      %v1195 = vlaneseq
      %v1196 = vshrl.u32 %v1195, 7
      %v1197 = vsub.s32 0, %v1196
      %v1198 = vrot.slane %v640, %v1197
      %v1200 = vmul.f32 %v1192, %v1198
      %v1201 = vmul.f32 %v1193, %v1198
      %v1203 = vlaneseq
      %v1204 = vshrl.u32 %v1203, 7
      %v1205 = vsub.s32 0, %v1204
      %v1206 = vrot.slane %v641, %v1205
      %v1208 = vadd.f32 %v1200, %v1206
      %v1209 = vadd.f32 %v1201, %v1206
      %v1210 = vpack.c.bf16 %v1209, %v1208
      %v1211 = vpack.c.bf16 %v643, %v642
      %v1212 = vpack.c.bf16 %v645, %v644
      %v1214 = vlaneseq
      %v1215 = vshrl.u32 %v1214, 7
      %v1216 = vsub.s32 0, %v1215
      %v1217 = vrot.slane %v646, %v1216
      %v1220 = vsel %vm658, %v1210, 0
      %1222 = vmatprep.subr.bf16.mxu0 0
      %1223 = vmatpush1.bf16.msra.mxu0 %v1211
      %1224 = vmatprep.subr.bf16.mxu0 0
      %1225 = vmatpush1.bf16.msra.mxu0 %v1212
      %1226 = vmatprep.subr.bf16.mxu0 0
      %1227 = vmatpush1.bf16.msra.mxu0 0
      %1228 = vmatprep.subr.bf16.mxu0 0
      %1229 = vmatpush1.bf16.msra.mxu0 0
      %1230 = vmatprep.subr.bf16.mxu0 0
      %1231 = vmatpush1.bf16.msra.mxu0 0
      %1232 = vmatprep.subr.bf16.mxu0 0
      %1233 = vmatpush1.bf16.msra.mxu0 0
      %1234 = vmatprep.subr.bf16.mxu0 0
      %1235 = vmatpush1.bf16.msra.mxu0 0
      %1236 = vmatprep.subr.bf16.mxu0 0
      %1237 = vmatpush1.bf16.msra.mxu0 0
      %1238 = vmatprep.subr.bf16.mxu0 0
      %1239 = vmatpush1.bf16.msra.mxu0 0
      %1240 = vmatprep.subr.bf16.mxu0 0
      %1241 = vmatpush1.bf16.msra.mxu0 0
      %1242 = vmatprep.subr.bf16.mxu0 0
      %1243 = vmatpush1.bf16.msra.mxu0 0
      %1244 = vmatprep.subr.bf16.mxu0 0
      %1245 = vmatpush1.bf16.msra.mxu0 0
      %1246 = vmatprep.subr.bf16.mxu0 0
      %1247 = vmatpush1.bf16.msra.mxu0 0
      %1248 = vmatprep.subr.bf16.mxu0 0
      %1249 = vmatpush1.bf16.msra.mxu0 0
      %1250 = vmatprep.subr.bf16.mxu0 0
      %1251 = vmatpush1.bf16.msra.mxu0 0
      %1252 = vmatprep.subr.bf16.mxu0 0
      %1253 = vmatpush1.bf16.msra.mxu0 0
      %1254 = vmatprep.mubr.bf16.mxu0 0
      %1255 = vmatmul.mubr.bf16.gmra.mrb[0].mxu0 %v1220
      %v1256 = vpop.f32.mrb[0].mxu0
      %v1257 = vadd.f32 %v1217, %v1256
      %v1258 = vpop.f32.mrb[0].mxu0
      %v1259 = vpop.f32.mrb[0].mxu0
      %v1260 = vadd.f32 %v1217, %v1259
      %v1261 = vpop.f32.mrb[0].mxu0
      %1262 = vdwg.mxu0
      %v1263 = vmul.f32 %v1257, %v1257
      %v1264 = vmul.f32 %v1260, %v1260
      %v1265 = vmul.f32 %v1257, %v1263
      %v1266 = vmul.f32 %v1260, %v1264
      %v1267 = vmul.f32 %v1265, 0.044715
      %v1268 = vmul.f32 %v1266, 0.044715
      %v1269 = vadd.f32 %v1257, %v1267
      %v1270 = vadd.f32 %v1260, %v1268
      %v1271 = vmul.f32 %v1269, 0.7978846
      %v1272 = vmul.f32 %v1270, 0.7978846
      %v1273 = vtanh.pop %v1271
      %v1274 = vtanh.pop %v1272
      %v1275 = vadd.f32 %v1273, 1.0
      %v1276 = vadd.f32 %v1274, 1.0
      %v1277 = vmul.f32 %v1275, 0.5
      %v1278 = vmul.f32 %v1276, 0.5
      %v1279 = vmul.f32 %v1257, %v1277
      %v1280 = vmul.f32 %v1260, %v1278
      %v1281 = vpack.c.bf16 %v1280, %v1279
      %v1282 = vpack.c.bf16 %v648, %v647
      %v1283 = vpack.c.bf16 %v650, %v649
      %v1284 = vpack.c.bf16 %v652, %v651
      %v1285 = vpack.c.bf16 %v654, %v653
      %v1287 = vlaneseq
      %v1288 = vshrl.u32 %v1287, 7
      %v1289 = vsub.s32 0, %v1288
      %v1290 = vrot.slane %v655, %v1289
      %v1293 = vsel %vm856, %v1281, 0
      %1295 = vmatprep.subr.bf16.mxu0 0
      %1296 = vmatpush1.bf16.msra.mxu0 %v1282
      %1297 = vmatprep.subr.bf16.mxu0 0
      %1298 = vmatpush1.bf16.msra.mxu0 %v1283
      %1299 = vmatprep.subr.bf16.mxu0 0
      %1300 = vmatpush1.bf16.msra.mxu0 %v1284
      %1301 = vmatprep.subr.bf16.mxu0 0
      %1302 = vmatpush1.bf16.msra.mxu0 %v1285
      %1303 = vmatprep.subr.bf16.mxu0 0
      %1304 = vmatpush1.bf16.msra.mxu0 0
      %1305 = vmatprep.subr.bf16.mxu0 0
      %1306 = vmatpush1.bf16.msra.mxu0 0
      %1307 = vmatprep.subr.bf16.mxu0 0
      %1308 = vmatpush1.bf16.msra.mxu0 0
      %1309 = vmatprep.subr.bf16.mxu0 0
      %1310 = vmatpush1.bf16.msra.mxu0 0
      %1311 = vmatprep.subr.bf16.mxu0 0
      %1312 = vmatpush1.bf16.msra.mxu0 0
      %1313 = vmatprep.subr.bf16.mxu0 0
      %1314 = vmatpush1.bf16.msra.mxu0 0
      %1315 = vmatprep.subr.bf16.mxu0 0
      %1316 = vmatpush1.bf16.msra.mxu0 0
      %1317 = vmatprep.subr.bf16.mxu0 0
      %1318 = vmatpush1.bf16.msra.mxu0 0
      %1319 = vmatprep.subr.bf16.mxu0 0
      %1320 = vmatpush1.bf16.msra.mxu0 0
      %1321 = vmatprep.subr.bf16.mxu0 0
      %1322 = vmatpush1.bf16.msra.mxu0 0
      %1323 = vmatprep.subr.bf16.mxu0 0
      %1324 = vmatpush1.bf16.msra.mxu0 0
      %1325 = vmatprep.subr.bf16.mxu0 0
      %1326 = vmatpush1.bf16.msra.mxu0 0
      %1327 = vmatprep.mubr.bf16.mxu0 0
      %1328 = vmatmul.mubr.bf16.gmra.mrb[0].mxu0 %v1293
      %v1329 = vpop.f32.mrb[0].mxu0
      %v1330 = vadd.f32 %v1290, %v1329
      %v1331 = vpop.f32.mrb[0].mxu0
      %v1332 = vpop.f32.mrb[0].mxu0
      %v1333 = vadd.f32 %v1290, %v1332
      %v1334 = vpop.f32.mrb[0].mxu0
      %1335 = vdwg.mxu0
      %v1336 = vadd.f32 %v1166, %v1330
      %v1337 = vadd.f32 %v1167, %v1333
      %v1338 = vsel %vm658, %v1336, 0.0
      %1339 = vadd.xlane.f32.xlu0 %v1338
      %v1340 = vpop.xlane.xlu0 %1339
      %v1341 = vsel %vm658, %v1337, 0.0
      %1342 = vadd.xlane.f32.xlu0 %v1341
      %v1343 = vpop.xlane.xlu0 %1342
      %v1344 = vmul.f32 %v1340, %v665
      %v1345 = vmul.f32 %v1343, %v665
      %v1346 = vsub.f32 %v1336, %v1344
      %v1347 = vsub.f32 %v1337, %v1345
      %v1348 = vmul.f32 %v1346, %v1346
      %v1349 = vmul.f32 %v1347, %v1347
      %v1350 = vsel %vm658, %v1348, 0.0
      %1351 = vadd.xlane.f32.xlu0 %v1350
      %v1352 = vpop.xlane.xlu0 %1351
      %v1353 = vsel %vm658, %v1349, 0.0
      %1354 = vadd.xlane.f32.xlu0 %v1353
      %v1355 = vpop.xlane.xlu0 %1354
      %v1356 = vmul.f32 %v1352, %v665
      %v1357 = vmul.f32 %v1355, %v665
      %v1358 = vadd.f32 %v1356, 1e-05
      %v1359 = vadd.f32 %v1357, 1e-05
      %v1360 = vrsqrt.pop %v1358
      %v1361 = vrsqrt.pop %v1359
      %v1362 = vmul.f32 %v1346, %v1360
      %v1363 = vmul.f32 %v1347, %v1361
      %v1365 = vlaneseq
      %v1366 = vshrl.u32 %v1365, 7
      %v1367 = vsub.s32 0, %v1366
      %v1368 = vrot.slane %v656, %v1367
      %v1370 = vmul.f32 %v1362, %v1368
      %v1371 = vmul.f32 %v1363, %v1368
      %v1373 = vlaneseq
      %v1374 = vshrl.u32 %v1373, 7
      %v1375 = vsub.s32 0, %v1374
      %v1376 = vrot.slane %v657, %v1375
      %v1378 = vadd.f32 %v1370, %v1376
      %v1379 = vadd.f32 %v1371, %v1376
      %1380 = vst.msk [vmem:[%s602] sm:$0xff] %vm658, %v1378
      %1381 = vst.msk [vmem:[%s602 + $0x8] sm:$0xff] %vm658, %v1379
      %p1382 = scmp.lt.s32.totalorder %s30, 1
      %s1383 = scalar_select %p1382, %s30, 1
      %s1384 = smul.addr %s1383, 2
      %s1385 = smul.addr %s1384, 8
      %s1386 = scalar_lea.vmem %s19, %s1385
      // Predicated region
      $region97: #{_lambda_.12} parent=95 // pred_check
        %p1387 = pneg %p452
      $region98: #{_lambda_.12} parent=95 // pred_check_branch
        %1389 = sbr.rel (%p1387) target = $region100
      $region99: #{_lambda_.12} parent=95 // pred_region
        _
      $region100: #{_lambda_.12} parent=95 // pred_fallthru
        _
    $region96: #{_lambda_.12} parent=5 // pred_fallthru
      _
    %p1390 = scmp.le.s32.totalorder 2, %s25
    // Predicated region
    $region101: #{_lambda_.12} parent=5 // pred_check
      %p1391 = pneg %p1390
    $region102: #{_lambda_.12} parent=5 // pred_check_branch
      %1393 = sbr.rel (%p1391) target = $region104
    $region103: #{_lambda_.12} parent=5 // pred_region
      %s1394 = ssub.s32 %s25, 2
      // Predicated region
      $region105: #{_lambda_.12} parent=103 // pred_check
        %p1395 = pneg %p458
      $region106: #{_lambda_.12} parent=103 // pred_check_branch
        %1397 = sbr.rel (%p1395) target = $region108
      $region107: #{_lambda_.12} parent=103 // pred_region
        %p1398 = scmp.lt.s32.totalorder %s31, 1
        %s1399 = scalar_select %p1398, %s31, 1
        %s1400 = smul.addr %s1399, 2
        %s1401 = smul.addr %s1400, 8
        %s1402 = scalar_lea.vmem %s19, %s1401
      $region108: #{_lambda_.12} parent=103 // pred_fallthru
        _
    $region104: #{_lambda_.12} parent=5 // pred_fallthru
      _
  $region6: #{_lambda_.12} parent=0 // loop_footer
    %s29 = sadd.s32 1, %s25
  $region7: #{_lambda_.12} parent=0 // loop_footer_branch
    %24 = sbr.rel target = $region3
  $region8: #{_lambda_.12} parent=0 // loop_exit
    _

// kernel: _lambda_.14
$region0: #{_lambda_.14}
  #allocation0 [shape = 'u32[]', space=smem, size = 0x4, offset = 0x4, fixed_abs, tag = 'smem constant byte address 0x4 - core index']
  #allocation1 [shape = 'u32[144,128]{1,0:T(1,128)}', space=vmem, size = 0x12000, scoped, tag = 'internal scratch']
  %s0 = inlined_call_operand.vmem [shape: f32[2,32,32], index: 0, kind: input, shape index: {}]
  %s1 = inlined_call_operand.vmem [shape: f32[1,32], index: 1, kind: input, shape index: {}]
  %s2 = inlined_call_operand.vmem [shape: f32[1,32], index: 2, kind: input, shape index: {}]
  %s3 = inlined_call_operand.vmem [shape: f32[32,128], index: 3, kind: input, shape index: {}]
  %s4 = inlined_call_operand.vmem [shape: f32[1,128], index: 4, kind: input, shape index: {}]
  %s5 = inlined_call_operand.vmem [shape: f32[32,128], index: 5, kind: input, shape index: {}]
  %s6 = inlined_call_operand.vmem [shape: f32[1,128], index: 6, kind: input, shape index: {}]
  %s7 = inlined_call_operand.vmem [shape: f32[32,128], index: 7, kind: input, shape index: {}]
  %s8 = inlined_call_operand.vmem [shape: f32[1,128], index: 8, kind: input, shape index: {}]
  %s9 = inlined_call_operand.vmem [shape: f32[128,32], index: 9, kind: input, shape index: {}]
  %s10 = inlined_call_operand.vmem [shape: f32[1,32], index: 10, kind: input, shape index: {}]
  %s11 = inlined_call_operand.vmem [shape: f32[1,32], index: 11, kind: input, shape index: {}]
  %s12 = inlined_call_operand.vmem [shape: f32[1,32], index: 12, kind: input, shape index: {}]
  %s13 = inlined_call_operand.vmem [shape: f32[32,64], index: 13, kind: input, shape index: {}]
  %s14 = inlined_call_operand.vmem [shape: f32[1,64], index: 14, kind: input, shape index: {}]
  %s15 = inlined_call_operand.vmem [shape: f32[64,32], index: 15, kind: input, shape index: {}]
  %s16 = inlined_call_operand.vmem [shape: f32[1,32], index: 16, kind: input, shape index: {}]
  %s17 = inlined_call_operand.vmem [shape: f32[1,32], index: 17, kind: input, shape index: {}]
  %s18 = inlined_call_operand.vmem [shape: f32[1,32], index: 18, kind: input, shape index: {}]
  %s19 = inlined_call_operand.vmem [shape: f32[2,32,32], index: 19, kind: output, shape index: {}]
  %s20 = sld [smem:[#allocation0]]
  $region109: #{_lambda_.14} parent=0
    _
  %s22 = ssub.s32 1, %s20
  %s23 = scalar_select 0, %s22, %s20
  loop: start=0, step=1, limit=4
  $region2: #{_lambda_.14} parent=0 // loop_pre_header
    _
  $region3: #{_lambda_.14} parent=0 // loop_header
    %s25 = sphi 0, %s29
    %p26 = scmp.ge.s32.totalorder %s25, 4
    %s35 = sphi 0, %s37
    %s38 = sphi 0, %s35
    %s39 = sphi 0, %s38
    %s55 = sphi 0, %s39
    %s59 = sphi 0, %s59
    %s61 = sphi 0, %s59
    %s62 = sphi 0, %s61
    %s76 = sphi 0, %s62
    %s80 = sphi 0, %s80
    %s82 = sphi 0, %s80
    %s83 = sphi 0, %s82
    %s97 = sphi 0, %s83
    %s101 = sphi 0, %s101
    %s103 = sphi 0, %s101
    %s104 = sphi 0, %s103
    %s118 = sphi 0, %s104
    %s122 = sphi 0, %s122
    %s124 = sphi 0, %s122
    %s125 = sphi 0, %s124
    %s139 = sphi 0, %s125
    %s143 = sphi 0, %s143
    %s145 = sphi 0, %s143
    %s146 = sphi 0, %s145
    %s160 = sphi 0, %s146
    %s164 = sphi 0, %s164
    %s166 = sphi 0, %s164
    %s167 = sphi 0, %s166
    %s181 = sphi 0, %s167
    %s185 = sphi 0, %s185
    %s187 = sphi 0, %s185
    %s188 = sphi 0, %s187
    %s202 = sphi 0, %s188
    %s206 = sphi 0, %s206
    %s208 = sphi 0, %s206
    %s209 = sphi 0, %s208
    %s223 = sphi 0, %s209
    %s227 = sphi 0, %s227
    %s229 = sphi 0, %s227
    %s230 = sphi 0, %s229
    %s244 = sphi 0, %s230
    %s248 = sphi 0, %s248
    %s250 = sphi 0, %s248
    %s251 = sphi 0, %s250
    %s265 = sphi 0, %s251
    %s269 = sphi 0, %s269
    %s271 = sphi 0, %s269
    %s272 = sphi 0, %s271
    %s286 = sphi 0, %s272
    %s290 = sphi 0, %s290
    %s292 = sphi 0, %s290
    %s293 = sphi 0, %s292
    %s307 = sphi 0, %s293
    %s311 = sphi 0, %s311
    %s313 = sphi 0, %s311
    %s314 = sphi 0, %s313
    %s328 = sphi 0, %s314
    %s332 = sphi 0, %s332
    %s334 = sphi 0, %s332
    %s335 = sphi 0, %s334
    %s349 = sphi 0, %s335
    %s353 = sphi 0, %s353
    %s355 = sphi 0, %s353
    %s356 = sphi 0, %s355
    %s370 = sphi 0, %s356
    %s374 = sphi 0, %s374
    %s376 = sphi 0, %s374
    %s377 = sphi 0, %s376
    %s391 = sphi 0, %s377
    %s395 = sphi 0, %s395
    %s397 = sphi 0, %s395
    %s398 = sphi 0, %s397
    %s412 = sphi 0, %s398
    %s416 = sphi 0, %s416
    %s418 = sphi 0, %s416
    %s419 = sphi 0, %s418
    %s433 = sphi 0, %s419
    %s439 = sphi 0, %s441
    %s442 = sphi 0, %s439
    %s443 = sphi 0, %s442
    %s459 = sphi 0, %s443
  $region4: #{_lambda_.14} parent=0 // loop_header_branch
    %28 = sbr.rel (%p26) target = $region8
  $region5: #{_lambda_.14} parent=0 // loop_body
    %s30 = ssub.s32 %s25, 1
    %s31 = ssub.s32 %s25, 2
    %s32 = sadd.s32 %s25, 1
    %s33 = ssub.s32 %s25, %s32
    %p34 = scmp.eq.s32.totalorder %s33, 0
    %s36 = sadd.s32 %s35, 1
    %s37 = scalar_select %p34, %s35, %s36
    %p40 = pneg %p34
    %p41 = scmp.eq.s32.totalorder %s25, 1
    %p42 = por %p40, %p41
    %p43 = scmp.ne.s32.totalorder %s35, %s38
    %p44 = scmp.eq.s32.totalorder %s25, 0
    %p45 = por %p43, %p44
    %p46 = scmp.ne.s32.totalorder %s35, %s38
    %p47 = scmp.eq.s32.totalorder %s30, 1
    %p48 = por %p46, %p47
    %p49 = scmp.ne.s32.totalorder %s38, %s39
    %p50 = scmp.eq.s32.totalorder %s30, 0
    %p51 = por %p49, %p50
    %p52 = scmp.ne.s32.totalorder %s38, %s39
    %p53 = scmp.eq.s32.totalorder %s31, 1
    %p54 = por %p52, %p53
    %p56 = scmp.ne.s32.totalorder %s39, %s55
    %p57 = scmp.eq.s32.totalorder %s31, 0
    %p58 = por %p56, %p57
    %s60 = sadd.s32 %s59, 1
    %p63 = scmp.eq.s32.totalorder %s25, 1
    %p64 = scmp.ne.s32.totalorder %s59, %s61
    %p65 = scmp.eq.s32.totalorder %s25, 0
    %p66 = por %p64, %p65
    %p67 = scmp.ne.s32.totalorder %s59, %s61
    %p68 = scmp.eq.s32.totalorder %s30, 1
    %p69 = por %p67, %p68
    %p70 = scmp.ne.s32.totalorder %s61, %s62
    %p71 = scmp.eq.s32.totalorder %s30, 0
    %p72 = por %p70, %p71
    %p73 = scmp.ne.s32.totalorder %s61, %s62
    %p74 = scmp.eq.s32.totalorder %s31, 1
    %p75 = por %p73, %p74
    %p77 = scmp.ne.s32.totalorder %s62, %s76
    %p78 = scmp.eq.s32.totalorder %s31, 0
    %p79 = por %p77, %p78
    %s81 = sadd.s32 %s80, 1
    %p84 = scmp.eq.s32.totalorder %s25, 1
    %p85 = scmp.ne.s32.totalorder %s80, %s82
    %p86 = scmp.eq.s32.totalorder %s25, 0
    %p87 = por %p85, %p86
    %p88 = scmp.ne.s32.totalorder %s80, %s82
    %p89 = scmp.eq.s32.totalorder %s30, 1
    %p90 = por %p88, %p89
    %p91 = scmp.ne.s32.totalorder %s82, %s83
    %p92 = scmp.eq.s32.totalorder %s30, 0
    %p93 = por %p91, %p92
    %p94 = scmp.ne.s32.totalorder %s82, %s83
    %p95 = scmp.eq.s32.totalorder %s31, 1
    %p96 = por %p94, %p95
    %p98 = scmp.ne.s32.totalorder %s83, %s97
    %p99 = scmp.eq.s32.totalorder %s31, 0
    %p100 = por %p98, %p99
    %s102 = sadd.s32 %s101, 1
    %p105 = scmp.eq.s32.totalorder %s25, 1
    %p106 = scmp.ne.s32.totalorder %s101, %s103
    %p107 = scmp.eq.s32.totalorder %s25, 0
    %p108 = por %p106, %p107
    %p109 = scmp.ne.s32.totalorder %s101, %s103
    %p110 = scmp.eq.s32.totalorder %s30, 1
    %p111 = por %p109, %p110
    %p112 = scmp.ne.s32.totalorder %s103, %s104
    %p113 = scmp.eq.s32.totalorder %s30, 0
    %p114 = por %p112, %p113
    %p115 = scmp.ne.s32.totalorder %s103, %s104
    %p116 = scmp.eq.s32.totalorder %s31, 1
    %p117 = por %p115, %p116
    %p119 = scmp.ne.s32.totalorder %s104, %s118
    %p120 = scmp.eq.s32.totalorder %s31, 0
    %p121 = por %p119, %p120
    %s123 = sadd.s32 %s122, 1
    %p126 = scmp.eq.s32.totalorder %s25, 1
    %p127 = scmp.ne.s32.totalorder %s122, %s124
    %p128 = scmp.eq.s32.totalorder %s25, 0
    %p129 = por %p127, %p128
    %p130 = scmp.ne.s32.totalorder %s122, %s124
    %p131 = scmp.eq.s32.totalorder %s30, 1
    %p132 = por %p130, %p131
    %p133 = scmp.ne.s32.totalorder %s124, %s125
    %p134 = scmp.eq.s32.totalorder %s30, 0
    %p135 = por %p133, %p134
    %p136 = scmp.ne.s32.totalorder %s124, %s125
    %p137 = scmp.eq.s32.totalorder %s31, 1
    %p138 = por %p136, %p137
    %p140 = scmp.ne.s32.totalorder %s125, %s139
    %p141 = scmp.eq.s32.totalorder %s31, 0
    %p142 = por %p140, %p141
    %s144 = sadd.s32 %s143, 1
    %p147 = scmp.eq.s32.totalorder %s25, 1
    %p148 = scmp.ne.s32.totalorder %s143, %s145
    %p149 = scmp.eq.s32.totalorder %s25, 0
    %p150 = por %p148, %p149
    %p151 = scmp.ne.s32.totalorder %s143, %s145
    %p152 = scmp.eq.s32.totalorder %s30, 1
    %p153 = por %p151, %p152
    %p154 = scmp.ne.s32.totalorder %s145, %s146
    %p155 = scmp.eq.s32.totalorder %s30, 0
    %p156 = por %p154, %p155
    %p157 = scmp.ne.s32.totalorder %s145, %s146
    %p158 = scmp.eq.s32.totalorder %s31, 1
    %p159 = por %p157, %p158
    %p161 = scmp.ne.s32.totalorder %s146, %s160
    %p162 = scmp.eq.s32.totalorder %s31, 0
    %p163 = por %p161, %p162
    %s165 = sadd.s32 %s164, 1
    %p168 = scmp.eq.s32.totalorder %s25, 1
    %p169 = scmp.ne.s32.totalorder %s164, %s166
    %p170 = scmp.eq.s32.totalorder %s25, 0
    %p171 = por %p169, %p170
    %p172 = scmp.ne.s32.totalorder %s164, %s166
    %p173 = scmp.eq.s32.totalorder %s30, 1
    %p174 = por %p172, %p173
    %p175 = scmp.ne.s32.totalorder %s166, %s167
    %p176 = scmp.eq.s32.totalorder %s30, 0
    %p177 = por %p175, %p176
    %p178 = scmp.ne.s32.totalorder %s166, %s167
    %p179 = scmp.eq.s32.totalorder %s31, 1
    %p180 = por %p178, %p179
    %p182 = scmp.ne.s32.totalorder %s167, %s181
    %p183 = scmp.eq.s32.totalorder %s31, 0
    %p184 = por %p182, %p183
    %s186 = sadd.s32 %s185, 1
    %p189 = scmp.eq.s32.totalorder %s25, 1
    %p190 = scmp.ne.s32.totalorder %s185, %s187
    %p191 = scmp.eq.s32.totalorder %s25, 0
    %p192 = por %p190, %p191
    %p193 = scmp.ne.s32.totalorder %s185, %s187
    %p194 = scmp.eq.s32.totalorder %s30, 1
    %p195 = por %p193, %p194
    %p196 = scmp.ne.s32.totalorder %s187, %s188
    %p197 = scmp.eq.s32.totalorder %s30, 0
    %p198 = por %p196, %p197
    %p199 = scmp.ne.s32.totalorder %s187, %s188
    %p200 = scmp.eq.s32.totalorder %s31, 1
    %p201 = por %p199, %p200
    %p203 = scmp.ne.s32.totalorder %s188, %s202
    %p204 = scmp.eq.s32.totalorder %s31, 0
    %p205 = por %p203, %p204
    %s207 = sadd.s32 %s206, 1
    %p210 = scmp.eq.s32.totalorder %s25, 1
    %p211 = scmp.ne.s32.totalorder %s206, %s208
    %p212 = scmp.eq.s32.totalorder %s25, 0
    %p213 = por %p211, %p212
    %p214 = scmp.ne.s32.totalorder %s206, %s208
    %p215 = scmp.eq.s32.totalorder %s30, 1
    %p216 = por %p214, %p215
    %p217 = scmp.ne.s32.totalorder %s208, %s209
    %p218 = scmp.eq.s32.totalorder %s30, 0
    %p219 = por %p217, %p218
    %p220 = scmp.ne.s32.totalorder %s208, %s209
    %p221 = scmp.eq.s32.totalorder %s31, 1
    %p222 = por %p220, %p221
    %p224 = scmp.ne.s32.totalorder %s209, %s223
    %p225 = scmp.eq.s32.totalorder %s31, 0
    %p226 = por %p224, %p225
    %s228 = sadd.s32 %s227, 1
    %p231 = scmp.eq.s32.totalorder %s25, 1
    %p232 = scmp.ne.s32.totalorder %s227, %s229
    %p233 = scmp.eq.s32.totalorder %s25, 0
    %p234 = por %p232, %p233
    %p235 = scmp.ne.s32.totalorder %s227, %s229
    %p236 = scmp.eq.s32.totalorder %s30, 1
    %p237 = por %p235, %p236
    %p238 = scmp.ne.s32.totalorder %s229, %s230
    %p239 = scmp.eq.s32.totalorder %s30, 0
    %p240 = por %p238, %p239
    %p241 = scmp.ne.s32.totalorder %s229, %s230
    %p242 = scmp.eq.s32.totalorder %s31, 1
    %p243 = por %p241, %p242
    %p245 = scmp.ne.s32.totalorder %s230, %s244
    %p246 = scmp.eq.s32.totalorder %s31, 0
    %p247 = por %p245, %p246
    %s249 = sadd.s32 %s248, 1
    %p252 = scmp.eq.s32.totalorder %s25, 1
    %p253 = scmp.ne.s32.totalorder %s248, %s250
    %p254 = scmp.eq.s32.totalorder %s25, 0
    %p255 = por %p253, %p254
    %p256 = scmp.ne.s32.totalorder %s248, %s250
    %p257 = scmp.eq.s32.totalorder %s30, 1
    %p258 = por %p256, %p257
    %p259 = scmp.ne.s32.totalorder %s250, %s251
    %p260 = scmp.eq.s32.totalorder %s30, 0
    %p261 = por %p259, %p260
    %p262 = scmp.ne.s32.totalorder %s250, %s251
    %p263 = scmp.eq.s32.totalorder %s31, 1
    %p264 = por %p262, %p263
    %p266 = scmp.ne.s32.totalorder %s251, %s265
    %p267 = scmp.eq.s32.totalorder %s31, 0
    %p268 = por %p266, %p267
    %s270 = sadd.s32 %s269, 1
    %p273 = scmp.eq.s32.totalorder %s25, 1
    %p274 = scmp.ne.s32.totalorder %s269, %s271
    %p275 = scmp.eq.s32.totalorder %s25, 0
    %p276 = por %p274, %p275
    %p277 = scmp.ne.s32.totalorder %s269, %s271
    %p278 = scmp.eq.s32.totalorder %s30, 1
    %p279 = por %p277, %p278
    %p280 = scmp.ne.s32.totalorder %s271, %s272
    %p281 = scmp.eq.s32.totalorder %s30, 0
    %p282 = por %p280, %p281
    %p283 = scmp.ne.s32.totalorder %s271, %s272
    %p284 = scmp.eq.s32.totalorder %s31, 1
    %p285 = por %p283, %p284
    %p287 = scmp.ne.s32.totalorder %s272, %s286
    %p288 = scmp.eq.s32.totalorder %s31, 0
    %p289 = por %p287, %p288
    %s291 = sadd.s32 %s290, 1
    %p294 = scmp.eq.s32.totalorder %s25, 1
    %p295 = scmp.ne.s32.totalorder %s290, %s292
    %p296 = scmp.eq.s32.totalorder %s25, 0
    %p297 = por %p295, %p296
    %p298 = scmp.ne.s32.totalorder %s290, %s292
    %p299 = scmp.eq.s32.totalorder %s30, 1
    %p300 = por %p298, %p299
    %p301 = scmp.ne.s32.totalorder %s292, %s293
    %p302 = scmp.eq.s32.totalorder %s30, 0
    %p303 = por %p301, %p302
    %p304 = scmp.ne.s32.totalorder %s292, %s293
    %p305 = scmp.eq.s32.totalorder %s31, 1
    %p306 = por %p304, %p305
    %p308 = scmp.ne.s32.totalorder %s293, %s307
    %p309 = scmp.eq.s32.totalorder %s31, 0
    %p310 = por %p308, %p309
    %s312 = sadd.s32 %s311, 1
    %p315 = scmp.eq.s32.totalorder %s25, 1
    %p316 = scmp.ne.s32.totalorder %s311, %s313
    %p317 = scmp.eq.s32.totalorder %s25, 0
    %p318 = por %p316, %p317
    %p319 = scmp.ne.s32.totalorder %s311, %s313
    %p320 = scmp.eq.s32.totalorder %s30, 1
    %p321 = por %p319, %p320
    %p322 = scmp.ne.s32.totalorder %s313, %s314
    %p323 = scmp.eq.s32.totalorder %s30, 0
    %p324 = por %p322, %p323
    %p325 = scmp.ne.s32.totalorder %s313, %s314
    %p326 = scmp.eq.s32.totalorder %s31, 1
    %p327 = por %p325, %p326
    %p329 = scmp.ne.s32.totalorder %s314, %s328
    %p330 = scmp.eq.s32.totalorder %s31, 0
    %p331 = por %p329, %p330
    %s333 = sadd.s32 %s332, 1
    %p336 = scmp.eq.s32.totalorder %s25, 1
    %p337 = scmp.ne.s32.totalorder %s332, %s334
    %p338 = scmp.eq.s32.totalorder %s25, 0
    %p339 = por %p337, %p338
    %p340 = scmp.ne.s32.totalorder %s332, %s334
    %p341 = scmp.eq.s32.totalorder %s30, 1
    %p342 = por %p340, %p341
    %p343 = scmp.ne.s32.totalorder %s334, %s335
    %p344 = scmp.eq.s32.totalorder %s30, 0
    %p345 = por %p343, %p344
    %p346 = scmp.ne.s32.totalorder %s334, %s335
    %p347 = scmp.eq.s32.totalorder %s31, 1
    %p348 = por %p346, %p347
    %p350 = scmp.ne.s32.totalorder %s335, %s349
    %p351 = scmp.eq.s32.totalorder %s31, 0
    %p352 = por %p350, %p351
    %s354 = sadd.s32 %s353, 1
    %p357 = scmp.eq.s32.totalorder %s25, 1
    %p358 = scmp.ne.s32.totalorder %s353, %s355
    %p359 = scmp.eq.s32.totalorder %s25, 0
    %p360 = por %p358, %p359
    %p361 = scmp.ne.s32.totalorder %s353, %s355
    %p362 = scmp.eq.s32.totalorder %s30, 1
    %p363 = por %p361, %p362
    %p364 = scmp.ne.s32.totalorder %s355, %s356
    %p365 = scmp.eq.s32.totalorder %s30, 0
    %p366 = por %p364, %p365
    %p367 = scmp.ne.s32.totalorder %s355, %s356
    %p368 = scmp.eq.s32.totalorder %s31, 1
    %p369 = por %p367, %p368
    %p371 = scmp.ne.s32.totalorder %s356, %s370
    %p372 = scmp.eq.s32.totalorder %s31, 0
    %p373 = por %p371, %p372
    %s375 = sadd.s32 %s374, 1
    %p378 = scmp.eq.s32.totalorder %s25, 1
    %p379 = scmp.ne.s32.totalorder %s374, %s376
    %p380 = scmp.eq.s32.totalorder %s25, 0
    %p381 = por %p379, %p380
    %p382 = scmp.ne.s32.totalorder %s374, %s376
    %p383 = scmp.eq.s32.totalorder %s30, 1
    %p384 = por %p382, %p383
    %p385 = scmp.ne.s32.totalorder %s376, %s377
    %p386 = scmp.eq.s32.totalorder %s30, 0
    %p387 = por %p385, %p386
    %p388 = scmp.ne.s32.totalorder %s376, %s377
    %p389 = scmp.eq.s32.totalorder %s31, 1
    %p390 = por %p388, %p389
    %p392 = scmp.ne.s32.totalorder %s377, %s391
    %p393 = scmp.eq.s32.totalorder %s31, 0
    %p394 = por %p392, %p393
    %s396 = sadd.s32 %s395, 1
    %p399 = scmp.eq.s32.totalorder %s25, 1
    %p400 = scmp.ne.s32.totalorder %s395, %s397
    %p401 = scmp.eq.s32.totalorder %s25, 0
    %p402 = por %p400, %p401
    %p403 = scmp.ne.s32.totalorder %s395, %s397
    %p404 = scmp.eq.s32.totalorder %s30, 1
    %p405 = por %p403, %p404
    %p406 = scmp.ne.s32.totalorder %s397, %s398
    %p407 = scmp.eq.s32.totalorder %s30, 0
    %p408 = por %p406, %p407
    %p409 = scmp.ne.s32.totalorder %s397, %s398
    %p410 = scmp.eq.s32.totalorder %s31, 1
    %p411 = por %p409, %p410
    %p413 = scmp.ne.s32.totalorder %s398, %s412
    %p414 = scmp.eq.s32.totalorder %s31, 0
    %p415 = por %p413, %p414
    %s417 = sadd.s32 %s416, 1
    %p420 = scmp.eq.s32.totalorder %s25, 1
    %p421 = scmp.ne.s32.totalorder %s416, %s418
    %p422 = scmp.eq.s32.totalorder %s25, 0
    %p423 = por %p421, %p422
    %p424 = scmp.ne.s32.totalorder %s416, %s418
    %p425 = scmp.eq.s32.totalorder %s30, 1
    %p426 = por %p424, %p425
    %p427 = scmp.ne.s32.totalorder %s418, %s419
    %p428 = scmp.eq.s32.totalorder %s30, 0
    %p429 = por %p427, %p428
    %p430 = scmp.ne.s32.totalorder %s418, %s419
    %p431 = scmp.eq.s32.totalorder %s31, 1
    %p432 = por %p430, %p431
    %p434 = scmp.ne.s32.totalorder %s419, %s433
    %p435 = scmp.eq.s32.totalorder %s31, 0
    %p436 = por %p434, %p435
    %s437 = ssub.s32 %s25, %s32
    %p438 = scmp.eq.s32.totalorder %s437, 0
    %s440 = sadd.s32 %s439, 1
    %s441 = scalar_select %p438, %s439, %s440
    %p444 = pneg %p438
    %p445 = scmp.eq.s32.totalorder %s25, 1
    %p446 = por %p444, %p445
    %p447 = scmp.ne.s32.totalorder %s439, %s442
    %p448 = scmp.eq.s32.totalorder %s25, 0
    %p449 = por %p447, %p448
    %p450 = scmp.ne.s32.totalorder %s439, %s442
    %p451 = scmp.eq.s32.totalorder %s30, 1
    %p452 = por %p450, %p451
    %p453 = scmp.ne.s32.totalorder %s442, %s443
    %p454 = scmp.eq.s32.totalorder %s30, 0
    %p455 = por %p453, %p454
    %p456 = scmp.ne.s32.totalorder %s442, %s443
    %p457 = scmp.eq.s32.totalorder %s31, 1
    %p458 = por %p456, %p457
    %p460 = scmp.ne.s32.totalorder %s443, %s459
    %p461 = scmp.eq.s32.totalorder %s31, 0
    %p462 = por %p460, %p461
    %p463 = scmp.le.s32.totalorder 1, %s25
    %p464 = scmp.lt.s32.totalorder %s25, 3
    %p465 = pnand %p463, %p464
    %p466 = pneg %p465
    // Predicated region
    $region9: #{_lambda_.14} parent=5 // pred_check
      _
    $region10: #{_lambda_.14} parent=5 // pred_check_branch
      %468 = sbr.rel (%p465) target = $region12
    $region11: #{_lambda_.14} parent=5 // pred_region
      %s469 = ssub.s32 %s25, 1
      // Predicated region
      $region13: #{_lambda_.14} parent=11 // pred_check
        %p470 = pneg %p72
      $region14: #{_lambda_.14} parent=11 // pred_check_branch
        %472 = sbr.rel (%p470) target = $region16
      $region15: #{_lambda_.14} parent=11 // pred_region
        _
      $region16: #{_lambda_.14} parent=11 // pred_fallthru
        _
      // Predicated region
      $region17: #{_lambda_.14} parent=11 // pred_check
        %p473 = pneg %p93
      $region18: #{_lambda_.14} parent=11 // pred_check_branch
        %475 = sbr.rel (%p473) target = $region20
      $region19: #{_lambda_.14} parent=11 // pred_region
        _
      $region20: #{_lambda_.14} parent=11 // pred_fallthru
        _
      // Predicated region
      $region21: #{_lambda_.14} parent=11 // pred_check
        %p476 = pneg %p114
      $region22: #{_lambda_.14} parent=11 // pred_check_branch
        %478 = sbr.rel (%p476) target = $region24
      $region23: #{_lambda_.14} parent=11 // pred_region
        _
      $region24: #{_lambda_.14} parent=11 // pred_fallthru
        _
      // Predicated region
      $region25: #{_lambda_.14} parent=11 // pred_check
        %p479 = pneg %p135
      $region26: #{_lambda_.14} parent=11 // pred_check_branch
        %481 = sbr.rel (%p479) target = $region28
      $region27: #{_lambda_.14} parent=11 // pred_region
        _
      $region28: #{_lambda_.14} parent=11 // pred_fallthru
        _
      // Predicated region
      $region29: #{_lambda_.14} parent=11 // pred_check
        %p482 = pneg %p156
      $region30: #{_lambda_.14} parent=11 // pred_check_branch
        %484 = sbr.rel (%p482) target = $region32
      $region31: #{_lambda_.14} parent=11 // pred_region
        _
      $region32: #{_lambda_.14} parent=11 // pred_fallthru
        _
      // Predicated region
      $region33: #{_lambda_.14} parent=11 // pred_check
        %p485 = pneg %p177
      $region34: #{_lambda_.14} parent=11 // pred_check_branch
        %487 = sbr.rel (%p485) target = $region36
      $region35: #{_lambda_.14} parent=11 // pred_region
        _
      $region36: #{_lambda_.14} parent=11 // pred_fallthru
        _
      // Predicated region
      $region37: #{_lambda_.14} parent=11 // pred_check
        %p488 = pneg %p198
      $region38: #{_lambda_.14} parent=11 // pred_check_branch
        %490 = sbr.rel (%p488) target = $region40
      $region39: #{_lambda_.14} parent=11 // pred_region
        _
      $region40: #{_lambda_.14} parent=11 // pred_fallthru
        _
      // Predicated region
      $region41: #{_lambda_.14} parent=11 // pred_check
        %p491 = pneg %p219
      $region42: #{_lambda_.14} parent=11 // pred_check_branch
        %493 = sbr.rel (%p491) target = $region44
      $region43: #{_lambda_.14} parent=11 // pred_region
        _
      $region44: #{_lambda_.14} parent=11 // pred_fallthru
        _
      // Predicated region
      $region45: #{_lambda_.14} parent=11 // pred_check
        %p494 = pneg %p240
      $region46: #{_lambda_.14} parent=11 // pred_check_branch
        %496 = sbr.rel (%p494) target = $region48
      $region47: #{_lambda_.14} parent=11 // pred_region
        _
      $region48: #{_lambda_.14} parent=11 // pred_fallthru
        _
      // Predicated region
      $region49: #{_lambda_.14} parent=11 // pred_check
        %p497 = pneg %p261
      $region50: #{_lambda_.14} parent=11 // pred_check_branch
        %499 = sbr.rel (%p497) target = $region52
      $region51: #{_lambda_.14} parent=11 // pred_region
        _
      $region52: #{_lambda_.14} parent=11 // pred_fallthru
        _
      // Predicated region
      $region53: #{_lambda_.14} parent=11 // pred_check
        %p500 = pneg %p282
      $region54: #{_lambda_.14} parent=11 // pred_check_branch
        %502 = sbr.rel (%p500) target = $region56
      $region55: #{_lambda_.14} parent=11 // pred_region
        _
      $region56: #{_lambda_.14} parent=11 // pred_fallthru
        _
      // Predicated region
      $region57: #{_lambda_.14} parent=11 // pred_check
        %p503 = pneg %p303
      $region58: #{_lambda_.14} parent=11 // pred_check_branch
        %505 = sbr.rel (%p503) target = $region60
      $region59: #{_lambda_.14} parent=11 // pred_region
        _
      $region60: #{_lambda_.14} parent=11 // pred_fallthru
        _
      // Predicated region
      $region61: #{_lambda_.14} parent=11 // pred_check
        %p506 = pneg %p324
      $region62: #{_lambda_.14} parent=11 // pred_check_branch
        %508 = sbr.rel (%p506) target = $region64
      $region63: #{_lambda_.14} parent=11 // pred_region
        _
      $region64: #{_lambda_.14} parent=11 // pred_fallthru
        _
      // Predicated region
      $region65: #{_lambda_.14} parent=11 // pred_check
        %p509 = pneg %p345
      $region66: #{_lambda_.14} parent=11 // pred_check_branch
        %511 = sbr.rel (%p509) target = $region68
      $region67: #{_lambda_.14} parent=11 // pred_region
        _
      $region68: #{_lambda_.14} parent=11 // pred_fallthru
        _
      // Predicated region
      $region69: #{_lambda_.14} parent=11 // pred_check
        %p512 = pneg %p366
      $region70: #{_lambda_.14} parent=11 // pred_check_branch
        %514 = sbr.rel (%p512) target = $region72
      $region71: #{_lambda_.14} parent=11 // pred_region
        _
      $region72: #{_lambda_.14} parent=11 // pred_fallthru
        _
      // Predicated region
      $region73: #{_lambda_.14} parent=11 // pred_check
        %p515 = pneg %p387
      $region74: #{_lambda_.14} parent=11 // pred_check_branch
        %517 = sbr.rel (%p515) target = $region76
      $region75: #{_lambda_.14} parent=11 // pred_region
        _
      $region76: #{_lambda_.14} parent=11 // pred_fallthru
        _
      // Predicated region
      $region77: #{_lambda_.14} parent=11 // pred_check
        %p518 = pneg %p408
      $region78: #{_lambda_.14} parent=11 // pred_check_branch
        %520 = sbr.rel (%p518) target = $region80
      $region79: #{_lambda_.14} parent=11 // pred_region
        _
      $region80: #{_lambda_.14} parent=11 // pred_fallthru
        _
      // Predicated region
      $region81: #{_lambda_.14} parent=11 // pred_check
        %p521 = pneg %p429
      $region82: #{_lambda_.14} parent=11 // pred_check_branch
        %523 = sbr.rel (%p521) target = $region84
      $region83: #{_lambda_.14} parent=11 // pred_region
        _
      $region84: #{_lambda_.14} parent=11 // pred_fallthru
        _
    $region12: #{_lambda_.14} parent=5 // pred_fallthru
      _
    %p524 = scmp.lt.s32.totalorder %s25, 2
    // Predicated region
    $region85: #{_lambda_.14} parent=5 // pred_check
      %p525 = pneg %p524
    $region86: #{_lambda_.14} parent=5 // pred_check_branch
      %527 = sbr.rel (%p525) target = $region88
    $region87: #{_lambda_.14} parent=5 // pred_region
      // Predicated region
      $region89: #{_lambda_.14} parent=87 // pred_check
        %p528 = pneg %p45
      $region90: #{_lambda_.14} parent=87 // pred_check_branch
        %530 = sbr.rel (%p528) target = $region92
      $region91: #{_lambda_.14} parent=87 // pred_region
        %p531 = scmp.lt.s32.totalorder %s25, 1
        %s532 = scalar_select %p531, %s25, 1
        %s533 = smul.addr %s532, 4
        %s534 = smul.addr %s533, 8
        %s535 = scalar_lea.vmem %s0, %s534
      $region92: #{_lambda_.14} parent=87 // pred_fallthru
        _
    $region88: #{_lambda_.14} parent=5 // pred_fallthru
      _
    %p536 = scmp.le.s32.totalorder 1, %s25
    %p537 = scmp.lt.s32.totalorder %s25, 3
    %p538 = pnand %p536, %p537
    %p539 = pneg %p538
    // Predicated region
    $region93: #{_lambda_.14} parent=5 // pred_check
      _
    $region94: #{_lambda_.14} parent=5 // pred_check_branch
      %541 = sbr.rel (%p538) target = $region96
    $region95: #{_lambda_.14} parent=5 // pred_region
      %s542 = ssub.s32 %s25, 1
      %p543 = scmp.lt.s32.totalorder %s30, 1
      %s544 = scalar_select %p543, %s30, 1
      %s545 = smul.addr %s544, 4
      %s546 = smul.addr %s545, 8
      %s547 = scalar_lea.vmem %s0, %s546
      %p548 = pneg %p51
      %p549 = pneg %p48
      %p550 = pneg %p72
      %p551 = pneg %p69
      %p552 = pneg %p93
      %p553 = pneg %p90
      %p554 = pneg %p114
      %p555 = pneg %p111
      %p556 = pneg %p135
      %p557 = pneg %p132
      %p558 = pneg %p156
      %p559 = pneg %p153
      %p560 = pneg %p177
      %p561 = pneg %p174
      %p562 = pneg %p198
      %p563 = pneg %p195
      %p564 = pneg %p219
      %p565 = pneg %p216
      %p566 = pneg %p240
      %p567 = pneg %p237
      %p568 = pneg %p261
      %p569 = pneg %p258
      %p570 = pneg %p282
      %p571 = pneg %p279
      %p572 = pneg %p303
      %p573 = pneg %p300
      %p574 = pneg %p324
      %p575 = pneg %p321
      %p576 = pneg %p345
      %p577 = pneg %p342
      %p578 = pneg %p366
      %p579 = pneg %p363
      %p580 = pneg %p387
      %p581 = pneg %p384
      %p582 = pneg %p408
      %p583 = pneg %p405
      %p584 = pneg %p429
      %p585 = pneg %p426
      %p586 = pneg %p455
      %p587 = pneg %p452
      %p588 = scmp.lt.s32.totalorder %s30, 1
      %s589 = scalar_select %p588, %s30, 1
      %s590 = smul.addr %s589, 4
      %s591 = smul.addr %s590, 8
      %s592 = scalar_lea.vmem %s19, %s591
      %p593 = scmp.lt.s32.totalorder %s30, 1
      %s594 = scalar_select %p593, %s30, 1
      %s595 = smul.addr %s594, 4
      %s596 = smul.addr %s595, 8
      %s597 = scalar_lea.vmem %s0, %s596
      %p598 = scmp.lt.s32.totalorder %s30, 1
      %s599 = scalar_select %p598, %s30, 1
      %s600 = smul.addr %s599, 4
      %s601 = smul.addr %s600, 8
      %s602 = scalar_lea.vmem %s19, %s601
      %v604 = vld [vmem:[%s597] sm:$0xff]
      %v605 = vld [vmem:[%s597 + $0x8] sm:$0xff]
      %v606 = vld [vmem:[%s597 + $0x10] sm:$0xff]
      %v607 = vld [vmem:[%s597 + $0x18] sm:$0xff]
      %v608 = vld [vmem:[%s1] sm:$0x1]
      %v609 = vld [vmem:[%s2] sm:$0x1]
      %v610 = vld [vmem:[%s3] sm:$0xff]
      %v611 = vld [vmem:[%s3 + $0x8] sm:$0xff]
      %v612 = vld [vmem:[%s3 + $0x10] sm:$0xff]
      %v613 = vld [vmem:[%s3 + $0x18] sm:$0xff]
      %v614 = vld [vmem:[%s4] sm:$0x1]
      %v615 = vld [vmem:[%s5] sm:$0xff]
      %v616 = vld [vmem:[%s5 + $0x8] sm:$0xff]
      %v617 = vld [vmem:[%s5 + $0x10] sm:$0xff]
      %v618 = vld [vmem:[%s5 + $0x18] sm:$0xff]
      %v619 = vld [vmem:[%s6] sm:$0x1]
      %v620 = vld [vmem:[%s7] sm:$0xff]
      %v621 = vld [vmem:[%s7 + $0x8] sm:$0xff]
      %v622 = vld [vmem:[%s7 + $0x10] sm:$0xff]
      %v623 = vld [vmem:[%s7 + $0x18] sm:$0xff]
      %v624 = vld [vmem:[%s8] sm:$0x1]
      %v625 = vld [vmem:[%s9] sm:$0xff]
      %v626 = vld [vmem:[%s9 + $0x8] sm:$0xff]
      %v627 = vld [vmem:[%s9 + $0x10] sm:$0xff]
      %v628 = vld [vmem:[%s9 + $0x18] sm:$0xff]
      %v629 = vld [vmem:[%s9 + $0x20] sm:$0xff]
      %v630 = vld [vmem:[%s9 + $0x28] sm:$0xff]
      %v631 = vld [vmem:[%s9 + $0x30] sm:$0xff]
      %v632 = vld [vmem:[%s9 + $0x38] sm:$0xff]
      %v633 = vld [vmem:[%s9 + $0x40] sm:$0xff]
      %v634 = vld [vmem:[%s9 + $0x48] sm:$0xff]
      %v635 = vld [vmem:[%s9 + $0x50] sm:$0xff]
      %v636 = vld [vmem:[%s9 + $0x58] sm:$0xff]
      %v637 = vld [vmem:[%s9 + $0x60] sm:$0xff]
      %v638 = vld [vmem:[%s9 + $0x68] sm:$0xff]
      %v639 = vld [vmem:[%s9 + $0x70] sm:$0xff]
      %v640 = vld [vmem:[%s9 + $0x78] sm:$0xff]
      %v641 = vld [vmem:[%s10] sm:$0x1]
      %v642 = vld [vmem:[%s11] sm:$0x1]
      %v643 = vld [vmem:[%s12] sm:$0x1]
      %v644 = vld [vmem:[%s13] sm:$0xff]
      %v645 = vld [vmem:[%s13 + $0x8] sm:$0xff]
      %v646 = vld [vmem:[%s13 + $0x10] sm:$0xff]
      %v647 = vld [vmem:[%s13 + $0x18] sm:$0xff]
      %v648 = vld [vmem:[%s14] sm:$0x1]
      %v649 = vld [vmem:[%s15] sm:$0xff]
      %v650 = vld [vmem:[%s15 + $0x8] sm:$0xff]
      %v651 = vld [vmem:[%s15 + $0x10] sm:$0xff]
      %v652 = vld [vmem:[%s15 + $0x18] sm:$0xff]
      %v653 = vld [vmem:[%s15 + $0x20] sm:$0xff]
      %v654 = vld [vmem:[%s15 + $0x28] sm:$0xff]
      %v655 = vld [vmem:[%s15 + $0x30] sm:$0xff]
      %v656 = vld [vmem:[%s15 + $0x38] sm:$0xff]
      %v657 = vld [vmem:[%s16] sm:$0x1]
      %v658 = vld [vmem:[%s17] sm:$0x1]
      %v659 = vld [vmem:[%s18] sm:$0x1]
      %vm660 = vcmask 261120
      %v661 = vsel %vm660, %v604, 0.0
      %662 = vadd.xlane.f32.xlu0 %v661
      %v663 = vpop.xlane.xlu0 %662
      %v664 = vsel %vm660, %v605, 0.0
      %665 = vadd.xlane.f32.xlu0 %v664
      %v666 = vpop.xlane.xlu0 %665
      %v667 = vsel %vm660, %v606, 0.0
      %668 = vadd.xlane.f32.xlu0 %v667
      %v669 = vpop.xlane.xlu0 %668
      %v670 = vsel %vm660, %v607, 0.0
      %671 = vadd.xlane.f32.xlu0 %v670
      %v672 = vpop.xlane.xlu0 %671
      %v673 = vrcp.pop 32.0
      %v674 = vmul.f32 %v663, %v673
      %v675 = vmul.f32 %v666, %v673
      %v676 = vmul.f32 %v669, %v673
      %v677 = vmul.f32 %v672, %v673
      %v678 = vsub.f32 %v604, %v674
      %v679 = vsub.f32 %v605, %v675
      %v680 = vsub.f32 %v606, %v676
      %v681 = vsub.f32 %v607, %v677
      %v682 = vmul.f32 %v678, %v678
      %v683 = vmul.f32 %v679, %v679
      %v684 = vmul.f32 %v680, %v680
      %v685 = vmul.f32 %v681, %v681
      %v686 = vsel %vm660, %v682, 0.0
      %687 = vadd.xlane.f32.xlu0 %v686
      %v688 = vpop.xlane.xlu0 %687
      %v689 = vsel %vm660, %v683, 0.0
      %690 = vadd.xlane.f32.xlu0 %v689
      %v691 = vpop.xlane.xlu0 %690
      %v692 = vsel %vm660, %v684, 0.0
      %693 = vadd.xlane.f32.xlu0 %v692
      %v694 = vpop.xlane.xlu0 %693
      %v695 = vsel %vm660, %v685, 0.0
      %696 = vadd.xlane.f32.xlu0 %v695
      %v697 = vpop.xlane.xlu0 %696
      %v698 = vmul.f32 %v688, %v673
      %v699 = vmul.f32 %v691, %v673
      %v700 = vmul.f32 %v694, %v673
      %v701 = vmul.f32 %v697, %v673
      %v702 = vadd.f32 %v698, 1e-05
      %v703 = vadd.f32 %v699, 1e-05
      %v704 = vadd.f32 %v700, 1e-05
      %v705 = vadd.f32 %v701, 1e-05
      %v706 = vrsqrt.pop %v702
      %v707 = vrsqrt.pop %v703
      %v708 = vrsqrt.pop %v704
      %v709 = vrsqrt.pop %v705
      %v710 = vmul.f32 %v678, %v706
      %v711 = vmul.f32 %v679, %v707
      %v712 = vmul.f32 %v680, %v708
      %v713 = vmul.f32 %v681, %v709
      %v715 = vlaneseq
      %v716 = vshrl.u32 %v715, 7
      %v717 = vsub.s32 0, %v716
      %v718 = vrot.slane %v608, %v717
      %v720 = vmul.f32 %v710, %v718
      %v721 = vmul.f32 %v711, %v718
      %v722 = vmul.f32 %v712, %v718
      %v723 = vmul.f32 %v713, %v718
      %v725 = vlaneseq
      %v726 = vshrl.u32 %v725, 7
      %v727 = vsub.s32 0, %v726
      %v728 = vrot.slane %v609, %v727
      %v730 = vadd.f32 %v720, %v728
      %v731 = vadd.f32 %v721, %v728
      %v732 = vadd.f32 %v722, %v728
      %v733 = vadd.f32 %v723, %v728
      %v734 = vpack.c.bf16 %v731, %v730
      %v735 = vpack.c.bf16 %v733, %v732
      %v736 = vpack.c.bf16 %v611, %v610
      %v737 = vpack.c.bf16 %v613, %v612
      %v739 = vlaneseq
      %v740 = vshrl.u32 %v739, 7
      %v741 = vsub.s32 0, %v740
      %v742 = vrot.slane %v614, %v741
      %v745 = vsel %vm660, %v734, 0
      %v748 = vsel %vm660, %v735, 0
      %750 = vmatprep.subr.bf16.mxu0 0
      %751 = vmatpush1.bf16.msra.mxu0 %v736
      %752 = vmatprep.subr.bf16.mxu0 0
      %753 = vmatpush1.bf16.msra.mxu0 %v737
      %754 = vmatprep.subr.bf16.mxu0 0
      %755 = vmatpush1.bf16.msra.mxu0 0
      %756 = vmatprep.subr.bf16.mxu0 0
      %757 = vmatpush1.bf16.msra.mxu0 0
      %758 = vmatprep.subr.bf16.mxu0 0
      %759 = vmatpush1.bf16.msra.mxu0 0
      %760 = vmatprep.subr.bf16.mxu0 0
      %761 = vmatpush1.bf16.msra.mxu0 0
      %762 = vmatprep.subr.bf16.mxu0 0
      %763 = vmatpush1.bf16.msra.mxu0 0
      %764 = vmatprep.subr.bf16.mxu0 0
      %765 = vmatpush1.bf16.msra.mxu0 0
      %766 = vmatprep.subr.bf16.mxu0 0
      %767 = vmatpush1.bf16.msra.mxu0 0
      %768 = vmatprep.subr.bf16.mxu0 0
      %769 = vmatpush1.bf16.msra.mxu0 0
      %770 = vmatprep.subr.bf16.mxu0 0
      %771 = vmatpush1.bf16.msra.mxu0 0
      %772 = vmatprep.subr.bf16.mxu0 0
      %773 = vmatpush1.bf16.msra.mxu0 0
      %774 = vmatprep.subr.bf16.mxu0 0
      %775 = vmatpush1.bf16.msra.mxu0 0
      %776 = vmatprep.subr.bf16.mxu0 0
      %777 = vmatpush1.bf16.msra.mxu0 0
      %778 = vmatprep.subr.bf16.mxu0 0
      %779 = vmatpush1.bf16.msra.mxu0 0
      %780 = vmatprep.subr.bf16.mxu0 0
      %781 = vmatpush1.bf16.msra.mxu0 0
      %782 = vmatprep.mubr.bf16.mxu0 0
      %783 = vmatmul.mubr.bf16.gmra.mrb[0].mxu0 %v745
      %v784 = vpop.f32.mrb[0].mxu0
      %v785 = vadd.f32 %v742, %v784
      %v786 = vpop.f32.mrb[0].mxu0
      %v787 = vpop.f32.mrb[0].mxu0
      %v788 = vadd.f32 %v742, %v787
      %v789 = vpop.f32.mrb[0].mxu0
      %790 = vmatprep.mubr.bf16.mxu0 0
      %791 = vmatmul.mubr.bf16.gmra.mrb[0].mxu0 %v748
      %v792 = vpop.f32.mrb[0].mxu0
      %v793 = vadd.f32 %v742, %v792
      %v794 = vpop.f32.mrb[0].mxu0
      %v795 = vpop.f32.mrb[0].mxu0
      %v796 = vadd.f32 %v742, %v795
      %v797 = vpop.f32.mrb[0].mxu0
      %798 = vdwg.mxu0
      %v799 = vpack.c.bf16 %v616, %v615
      %v800 = vpack.c.bf16 %v618, %v617
      %v802 = vlaneseq
      %v803 = vshrl.u32 %v802, 7
      %v804 = vsub.s32 0, %v803
      %v805 = vrot.slane %v619, %v804
      %807 = vmatprep.subr.bf16.mxu0 0
      %808 = vmatpush1.bf16.msra.mxu0 %v799
      %809 = vmatprep.subr.bf16.mxu0 0
      %810 = vmatpush1.bf16.msra.mxu0 %v800
      %811 = vmatprep.subr.bf16.mxu0 0
      %812 = vmatpush1.bf16.msra.mxu0 0
      %813 = vmatprep.subr.bf16.mxu0 0
      %814 = vmatpush1.bf16.msra.mxu0 0
      %815 = vmatprep.subr.bf16.mxu0 0
      %816 = vmatpush1.bf16.msra.mxu0 0
      %817 = vmatprep.subr.bf16.mxu0 0
      %818 = vmatpush1.bf16.msra.mxu0 0
      %819 = vmatprep.subr.bf16.mxu0 0
      %820 = vmatpush1.bf16.msra.mxu0 0
      %821 = vmatprep.subr.bf16.mxu0 0
      %822 = vmatpush1.bf16.msra.mxu0 0
      %823 = vmatprep.subr.bf16.mxu0 0
      %824 = vmatpush1.bf16.msra.mxu0 0
      %825 = vmatprep.subr.bf16.mxu0 0
      %826 = vmatpush1.bf16.msra.mxu0 0
      %827 = vmatprep.subr.bf16.mxu0 0
      %828 = vmatpush1.bf16.msra.mxu0 0
      %829 = vmatprep.subr.bf16.mxu0 0
      %830 = vmatpush1.bf16.msra.mxu0 0
      %831 = vmatprep.subr.bf16.mxu0 0
      %832 = vmatpush1.bf16.msra.mxu0 0
      %833 = vmatprep.subr.bf16.mxu0 0
      %834 = vmatpush1.bf16.msra.mxu0 0
      %835 = vmatprep.subr.bf16.mxu0 0
      %836 = vmatpush1.bf16.msra.mxu0 0
      %837 = vmatprep.subr.bf16.mxu0 0
      %838 = vmatpush1.bf16.msra.mxu0 0
      %839 = vmatprep.mubr.bf16.mxu0 0
      %840 = vmatmul.mubr.bf16.gmra.mrb[0].mxu0 %v745
      %v841 = vpop.f32.mrb[0].mxu0
      %v842 = vadd.f32 %v805, %v841
      %v843 = vpop.f32.mrb[0].mxu0
      %v844 = vpop.f32.mrb[0].mxu0
      %v845 = vadd.f32 %v805, %v844
      %v846 = vpop.f32.mrb[0].mxu0
      %847 = vmatprep.mubr.bf16.mxu0 0
      %848 = vmatmul.mubr.bf16.gmra.mrb[0].mxu0 %v748
      %v849 = vpop.f32.mrb[0].mxu0
      %v850 = vadd.f32 %v805, %v849
      %v851 = vpop.f32.mrb[0].mxu0
      %v852 = vpop.f32.mrb[0].mxu0
      %v853 = vadd.f32 %v805, %v852
      %v854 = vpop.f32.mrb[0].mxu0
      %855 = vdwg.mxu0
      %v856 = vpack.c.bf16 %v621, %v620
      %v857 = vpack.c.bf16 %v623, %v622
      %v859 = vlaneseq
      %v860 = vshrl.u32 %v859, 7
      %v861 = vsub.s32 0, %v860
      %v862 = vrot.slane %v624, %v861
      %864 = vmatprep.subr.bf16.mxu0 0
      %865 = vmatpush1.bf16.msra.mxu0 %v856
      %866 = vmatprep.subr.bf16.mxu0 0
      %867 = vmatpush1.bf16.msra.mxu0 %v857
      %868 = vmatprep.subr.bf16.mxu0 0
      %869 = vmatpush1.bf16.msra.mxu0 0
      %870 = vmatprep.subr.bf16.mxu0 0
      %871 = vmatpush1.bf16.msra.mxu0 0
      %872 = vmatprep.subr.bf16.mxu0 0
      %873 = vmatpush1.bf16.msra.mxu0 0
      %874 = vmatprep.subr.bf16.mxu0 0
      %875 = vmatpush1.bf16.msra.mxu0 0
      %876 = vmatprep.subr.bf16.mxu0 0
      %877 = vmatpush1.bf16.msra.mxu0 0
      %878 = vmatprep.subr.bf16.mxu0 0
      %879 = vmatpush1.bf16.msra.mxu0 0
      %880 = vmatprep.subr.bf16.mxu0 0
      %881 = vmatpush1.bf16.msra.mxu0 0
      %882 = vmatprep.subr.bf16.mxu0 0
      %883 = vmatpush1.bf16.msra.mxu0 0
      %884 = vmatprep.subr.bf16.mxu0 0
      %885 = vmatpush1.bf16.msra.mxu0 0
      %886 = vmatprep.subr.bf16.mxu0 0
      %887 = vmatpush1.bf16.msra.mxu0 0
      %888 = vmatprep.subr.bf16.mxu0 0
      %889 = vmatpush1.bf16.msra.mxu0 0
      %890 = vmatprep.subr.bf16.mxu0 0
      %891 = vmatpush1.bf16.msra.mxu0 0
      %892 = vmatprep.subr.bf16.mxu0 0
      %893 = vmatpush1.bf16.msra.mxu0 0
      %894 = vmatprep.subr.bf16.mxu0 0
      %895 = vmatpush1.bf16.msra.mxu0 0
      %896 = vmatprep.mubr.bf16.mxu0 0
      %897 = vmatmul.mubr.bf16.gmra.mrb[0].mxu0 %v745
      %v898 = vpop.f32.mrb[0].mxu0
      %v899 = vadd.f32 %v862, %v898
      %v900 = vpop.f32.mrb[0].mxu0
      %v901 = vpop.f32.mrb[0].mxu0
      %v902 = vadd.f32 %v862, %v901
      %v903 = vpop.f32.mrb[0].mxu0
      %904 = vmatprep.mubr.bf16.mxu0 0
      %905 = vmatmul.mubr.bf16.gmra.mrb[0].mxu0 %v748
      %v906 = vpop.f32.mrb[0].mxu0
      %v907 = vadd.f32 %v862, %v906
      %v908 = vpop.f32.mrb[0].mxu0
      %v909 = vpop.f32.mrb[0].mxu0
      %v910 = vadd.f32 %v862, %v909
      %v911 = vpop.f32.mrb[0].mxu0
      %912 = vdwg.mxu0
      %v913 = vpack.c.bf16 %v788, %v785
      %v914 = vpack.c.bf16 %v796, %v793
      %v915 = vpack.c.bf16 %v845, %v842
      %v916 = vpack.c.bf16 %v853, %v850
      %v917 = vpack.c.bf16 %v902, %v899
      %v918 = vpack.c.bf16 %v910, %v907
      %vm919 = vcmask 523264
      %v921 = vsel %vm919, %v913, 0
      %v924 = vsel %vm919, %v914, 0
      %v927 = vsel %vm919, %v915, 0
      %v930 = vsel %vm919, %v916, 0
      %932 = vmatprep.subr.bf16.mxu0 0
      %933 = vmatpush1.bf16.xpose.msra.mxu0 %v927
      %934 = vmatprep.subr.bf16.mxu0 0
      %935 = vmatpush1.bf16.xpose.msra.mxu0 %v930
      %936 = vmatprep.subr.bf16.mxu0 0
      %937 = vmatpush1.bf16.xpose.msra.mxu0 0
      %938 = vmatprep.subr.bf16.mxu0 0
      %939 = vmatpush1.bf16.xpose.msra.mxu0 0
      %940 = vmatprep.subr.bf16.mxu0 0
      %941 = vmatpush1.bf16.xpose.msra.mxu0 0
      %942 = vmatprep.subr.bf16.mxu0 0
      %943 = vmatpush1.bf16.xpose.msra.mxu0 0
      %944 = vmatprep.subr.bf16.mxu0 0
      %945 = vmatpush1.bf16.xpose.msra.mxu0 0
      %946 = vmatprep.subr.bf16.mxu0 0
      %947 = vmatpush1.bf16.xpose.msra.mxu0 0
      %948 = vmatprep.subr.bf16.mxu0 0
      %949 = vmatpush1.bf16.xpose.msra.mxu0 0
      %950 = vmatprep.subr.bf16.mxu0 0
      %951 = vmatpush1.bf16.xpose.msra.mxu0 0
      %952 = vmatprep.subr.bf16.mxu0 0
      %953 = vmatpush1.bf16.xpose.msra.mxu0 0
      %954 = vmatprep.subr.bf16.mxu0 0
      %955 = vmatpush1.bf16.xpose.msra.mxu0 0
      %956 = vmatprep.subr.bf16.mxu0 0
      %957 = vmatpush1.bf16.xpose.msra.mxu0 0
      %958 = vmatprep.subr.bf16.mxu0 0
      %959 = vmatpush1.bf16.xpose.msra.mxu0 0
      %960 = vmatprep.subr.bf16.mxu0 0
      %961 = vmatpush1.bf16.xpose.msra.mxu0 0
      %962 = vmatprep.subr.bf16.mxu0 0
      %963 = vmatpush1.bf16.xpose.msra.mxu0 0
      %964 = vmatprep.mubr.bf16.mxu0 0
      %965 = vmatmul.mubr.bf16.gmra.mrb[0].mxu0 %v921
      %v966 = vpop.f32.mrb[0].mxu0
      %v967 = vadd.f32 0.0, %v966
      %v968 = vpop.f32.mrb[0].mxu0
      %v969 = vpop.f32.mrb[0].mxu0
      %v970 = vadd.f32 0.0, %v969
      %v971 = vpop.f32.mrb[0].mxu0
      %972 = vmatprep.mubr.bf16.mxu0 0
      %973 = vmatmul.mubr.bf16.gmra.mrb[0].mxu0 %v924
      %v974 = vpop.f32.mrb[0].mxu0
      %v975 = vadd.f32 0.0, %v974
      %v976 = vpop.f32.mrb[0].mxu0
      %v977 = vpop.f32.mrb[0].mxu0
      %v978 = vadd.f32 0.0, %v977
      %v979 = vpop.f32.mrb[0].mxu0
      %980 = vdwg.mxu0
      %v981 = vmul.f32 %v967, 0.125
      %v982 = vmul.f32 %v970, 0.125
      %v983 = vmul.f32 %v975, 0.125
      %v984 = vmul.f32 %v978, 0.125
      %v985 = vsel %vm660, %v981, -inf
      %986 = vmax.xlane.f32.xlu0 %v985
      %v987 = vpop.xlane.xlu0 %986
      %v988 = vsel %vm660, %v982, -inf
      %989 = vmax.xlane.f32.xlu0 %v988
      %v990 = vpop.xlane.xlu0 %989
      %v991 = vsel %vm660, %v983, -inf
      %992 = vmax.xlane.f32.xlu0 %v991
      %v993 = vpop.xlane.xlu0 %992
      %v994 = vsel %vm660, %v984, -inf
      %995 = vmax.xlane.f32.xlu0 %v994
      %v996 = vpop.xlane.xlu0 %995
      %v997 = vsub.f32 %v981, %v987
      %v998 = vsub.f32 %v982, %v990
      %v999 = vsub.f32 %v983, %v993
      %v1000 = vsub.f32 %v984, %v996
      %v1001 = vmul.f32 %v997, 1.442695
      %v1002 = vpow.pop %v1001
      %v1003 = vmul.f32 %v998, 1.442695
      %v1004 = vpow.pop %v1003
      %v1005 = vmul.f32 %v999, 1.442695
      %v1006 = vpow.pop %v1005
      %v1007 = vmul.f32 %v1000, 1.442695
      %v1008 = vpow.pop %v1007
      %v1009 = vsel %vm660, %v1002, 0.0
      %1010 = vadd.xlane.f32.xlu0 %v1009
      %v1011 = vpop.xlane.xlu0 %1010
      %v1012 = vsel %vm660, %v1004, 0.0
      %1013 = vadd.xlane.f32.xlu0 %v1012
      %v1014 = vpop.xlane.xlu0 %1013
      %v1015 = vsel %vm660, %v1006, 0.0
      %1016 = vadd.xlane.f32.xlu0 %v1015
      %v1017 = vpop.xlane.xlu0 %1016
      %v1018 = vsel %vm660, %v1008, 0.0
      %1019 = vadd.xlane.f32.xlu0 %v1018
      %v1020 = vpop.xlane.xlu0 %1019
      %v1021 = vrcp.pop %v1011
      %v1022 = vrcp.pop %v1014
      %v1023 = vrcp.pop %v1017
      %v1024 = vrcp.pop %v1020
      %v1025 = vmul.f32 %v1002, %v1021
      %v1026 = vmul.f32 %v1004, %v1022
      %v1027 = vmul.f32 %v1006, %v1023
      %v1028 = vmul.f32 %v1008, %v1024
      %v1029 = vpack.c.bf16 %v1026, %v1025
      %v1030 = vpack.c.bf16 %v1028, %v1027
      %v1032 = vsel %vm660, %v1029, 0
      %v1035 = vsel %vm660, %v1030, 0
      %1037 = vmatprep.subr.bf16.mxu0 0
      %1038 = vmatpush1.bf16.msra.mxu0 %v917
      %1039 = vmatprep.subr.bf16.mxu0 0
      %1040 = vmatpush1.bf16.msra.mxu0 %v918
      %1041 = vmatprep.subr.bf16.mxu0 0
      %1042 = vmatpush1.bf16.msra.mxu0 0
      %1043 = vmatprep.subr.bf16.mxu0 0
      %1044 = vmatpush1.bf16.msra.mxu0 0
      %1045 = vmatprep.subr.bf16.mxu0 0
      %1046 = vmatpush1.bf16.msra.mxu0 0
      %1047 = vmatprep.subr.bf16.mxu0 0
      %1048 = vmatpush1.bf16.msra.mxu0 0
      %1049 = vmatprep.subr.bf16.mxu0 0
      %1050 = vmatpush1.bf16.msra.mxu0 0
      %1051 = vmatprep.subr.bf16.mxu0 0
      %1052 = vmatpush1.bf16.msra.mxu0 0
      %1053 = vmatprep.subr.bf16.mxu0 0
      %1054 = vmatpush1.bf16.msra.mxu0 0
      %1055 = vmatprep.subr.bf16.mxu0 0
      %1056 = vmatpush1.bf16.msra.mxu0 0
      %1057 = vmatprep.subr.bf16.mxu0 0
      %1058 = vmatpush1.bf16.msra.mxu0 0
      %1059 = vmatprep.subr.bf16.mxu0 0
      %1060 = vmatpush1.bf16.msra.mxu0 0
      %1061 = vmatprep.subr.bf16.mxu0 0
      %1062 = vmatpush1.bf16.msra.mxu0 0
      %1063 = vmatprep.subr.bf16.mxu0 0
      %1064 = vmatpush1.bf16.msra.mxu0 0
      %1065 = vmatprep.subr.bf16.mxu0 0
      %1066 = vmatpush1.bf16.msra.mxu0 0
      %1067 = vmatprep.subr.bf16.mxu0 0
      %1068 = vmatpush1.bf16.msra.mxu0 0
      %1069 = vmatprep.mubr.bf16.mxu0 0
      %1070 = vmatmul.mubr.bf16.gmra.mrb[0].mxu0 %v1032
      %v1071 = vpop.f32.mrb[0].mxu0
      %v1072 = vadd.f32 0.0, %v1071
      %v1073 = vpop.f32.mrb[0].mxu0
      %v1074 = vpop.f32.mrb[0].mxu0
      %v1075 = vadd.f32 0.0, %v1074
      %v1076 = vpop.f32.mrb[0].mxu0
      %1077 = vmatprep.mubr.bf16.mxu0 0
      %1078 = vmatmul.mubr.bf16.gmra.mrb[0].mxu0 %v1035
      %v1079 = vpop.f32.mrb[0].mxu0
      %v1080 = vadd.f32 0.0, %v1079
      %v1081 = vpop.f32.mrb[0].mxu0
      %v1082 = vpop.f32.mrb[0].mxu0
      %v1083 = vadd.f32 0.0, %v1082
      %v1084 = vpop.f32.mrb[0].mxu0
      %1085 = vdwg.mxu0
      %1088 = vrot.lane.b32.xlu0 %v913, 64
      %v1089 = vpop.permute.xlu0 %1088
      %1090 = vrot.lane.b32.xlu0 %v914, 64
      %v1091 = vpop.permute.xlu0 %1090
      %1094 = vrot.lane.b32.xlu0 %v915, 64
      %v1095 = vpop.permute.xlu0 %1094
      %1096 = vrot.lane.b32.xlu0 %v916, 64
      %v1097 = vpop.permute.xlu0 %1096
      %v1099 = vsel %vm919, %v1089, 0
      %v1102 = vsel %vm919, %v1091, 0
      %v1105 = vsel %vm919, %v1095, 0
      %v1108 = vsel %vm919, %v1097, 0
      %1110 = vmatprep.subr.bf16.mxu0 0
      %1111 = vmatpush1.bf16.xpose.msra.mxu0 %v1105
      %1112 = vmatprep.subr.bf16.mxu0 0
      %1113 = vmatpush1.bf16.xpose.msra.mxu0 %v1108
      %1114 = vmatprep.subr.bf16.mxu0 0
      %1115 = vmatpush1.bf16.xpose.msra.mxu0 0
      %1116 = vmatprep.subr.bf16.mxu0 0
      %1117 = vmatpush1.bf16.xpose.msra.mxu0 0
      %1118 = vmatprep.subr.bf16.mxu0 0
      %1119 = vmatpush1.bf16.xpose.msra.mxu0 0
      %1120 = vmatprep.subr.bf16.mxu0 0
      %1121 = vmatpush1.bf16.xpose.msra.mxu0 0
      %1122 = vmatprep.subr.bf16.mxu0 0
      %1123 = vmatpush1.bf16.xpose.msra.mxu0 0
      %1124 = vmatprep.subr.bf16.mxu0 0
      %1125 = vmatpush1.bf16.xpose.msra.mxu0 0
      %1126 = vmatprep.subr.bf16.mxu0 0
      %1127 = vmatpush1.bf16.xpose.msra.mxu0 0
      %1128 = vmatprep.subr.bf16.mxu0 0
      %1129 = vmatpush1.bf16.xpose.msra.mxu0 0
      %1130 = vmatprep.subr.bf16.mxu0 0
      %1131 = vmatpush1.bf16.xpose.msra.mxu0 0
      %1132 = vmatprep.subr.bf16.mxu0 0
      %1133 = vmatpush1.bf16.xpose.msra.mxu0 0
      %1134 = vmatprep.subr.bf16.mxu0 0
      %1135 = vmatpush1.bf16.xpose.msra.mxu0 0
      %1136 = vmatprep.subr.bf16.mxu0 0
      %1137 = vmatpush1.bf16.xpose.msra.mxu0 0
      %1138 = vmatprep.subr.bf16.mxu0 0
      %1139 = vmatpush1.bf16.xpose.msra.mxu0 0
      %1140 = vmatprep.subr.bf16.mxu0 0
      %1141 = vmatpush1.bf16.xpose.msra.mxu0 0
      %1142 = vmatprep.mubr.bf16.mxu0 0
      %1143 = vmatmul.mubr.bf16.gmra.mrb[0].mxu0 %v1099
      %v1144 = vpop.f32.mrb[0].mxu0
      %v1145 = vadd.f32 0.0, %v1144
      %v1146 = vpop.f32.mrb[0].mxu0
      %v1147 = vpop.f32.mrb[0].mxu0
      %v1148 = vadd.f32 0.0, %v1147
      %v1149 = vpop.f32.mrb[0].mxu0
      %1150 = vmatprep.mubr.bf16.mxu0 0
      %1151 = vmatmul.mubr.bf16.gmra.mrb[0].mxu0 %v1102
      %v1152 = vpop.f32.mrb[0].mxu0
      %v1153 = vadd.f32 0.0, %v1152
      %v1154 = vpop.f32.mrb[0].mxu0
      %v1155 = vpop.f32.mrb[0].mxu0
      %v1156 = vadd.f32 0.0, %v1155
      %v1157 = vpop.f32.mrb[0].mxu0
      %1158 = vdwg.mxu0
      %v1159 = vmul.f32 %v1145, 0.125
      %v1160 = vmul.f32 %v1148, 0.125
      %v1161 = vmul.f32 %v1153, 0.125
      %v1162 = vmul.f32 %v1156, 0.125
      %v1163 = vsel %vm660, %v1159, -inf
      %1164 = vmax.xlane.f32.xlu0 %v1163
      %v1165 = vpop.xlane.xlu0 %1164
      %v1166 = vsel %vm660, %v1160, -inf
      %1167 = vmax.xlane.f32.xlu0 %v1166
      %v1168 = vpop.xlane.xlu0 %1167
      %v1169 = vsel %vm660, %v1161, -inf
      %1170 = vmax.xlane.f32.xlu0 %v1169
      %v1171 = vpop.xlane.xlu0 %1170
      %v1172 = vsel %vm660, %v1162, -inf
      %1173 = vmax.xlane.f32.xlu0 %v1172
      %v1174 = vpop.xlane.xlu0 %1173
      %v1175 = vsub.f32 %v1159, %v1165
      %v1176 = vsub.f32 %v1160, %v1168
      %v1177 = vsub.f32 %v1161, %v1171
      %v1178 = vsub.f32 %v1162, %v1174
      %v1179 = vmul.f32 %v1175, 1.442695
      %v1180 = vpow.pop %v1179
      %v1181 = vmul.f32 %v1176, 1.442695
      %v1182 = vpow.pop %v1181
      %v1183 = vmul.f32 %v1177, 1.442695
      %v1184 = vpow.pop %v1183
      %v1185 = vmul.f32 %v1178, 1.442695
      %v1186 = vpow.pop %v1185
      %v1187 = vsel %vm660, %v1180, 0.0
      %1188 = vadd.xlane.f32.xlu0 %v1187
      %v1189 = vpop.xlane.xlu0 %1188
      %v1190 = vsel %vm660, %v1182, 0.0
      %1191 = vadd.xlane.f32.xlu0 %v1190
      %v1192 = vpop.xlane.xlu0 %1191
      %v1193 = vsel %vm660, %v1184, 0.0
      %1194 = vadd.xlane.f32.xlu0 %v1193
      %v1195 = vpop.xlane.xlu0 %1194
      %v1196 = vsel %vm660, %v1186, 0.0
      %1197 = vadd.xlane.f32.xlu0 %v1196
      %v1198 = vpop.xlane.xlu0 %1197
      %v1199 = vrcp.pop %v1189
      %v1200 = vrcp.pop %v1192
      %v1201 = vrcp.pop %v1195
      %v1202 = vrcp.pop %v1198
      %v1203 = vmul.f32 %v1180, %v1199
      %v1204 = vmul.f32 %v1182, %v1200
      %v1205 = vmul.f32 %v1184, %v1201
      %v1206 = vmul.f32 %v1186, %v1202
      %v1207 = vpack.c.bf16 %v1204, %v1203
      %v1208 = vpack.c.bf16 %v1206, %v1205
      %1211 = vrot.lane.b32.xlu0 %v917, 64
      %v1212 = vpop.permute.xlu0 %1211
      %1213 = vrot.lane.b32.xlu0 %v918, 64
      %v1214 = vpop.permute.xlu0 %1213
      %v1218 = vsel %vm660, %v1207, 0
      %v1221 = vsel %vm660, %v1208, 0
      %1223 = vmatprep.subr.bf16.mxu0 0
      %1224 = vmatpush1.bf16.msra.mxu0 %v1212
      %1225 = vmatprep.subr.bf16.mxu0 0
      %1226 = vmatpush1.bf16.msra.mxu0 %v1214
      %1227 = vmatprep.subr.bf16.mxu0 0
      %1228 = vmatpush1.bf16.msra.mxu0 0
      %1229 = vmatprep.subr.bf16.mxu0 0
      %1230 = vmatpush1.bf16.msra.mxu0 0
      %1231 = vmatprep.subr.bf16.mxu0 0
      %1232 = vmatpush1.bf16.msra.mxu0 0
      %1233 = vmatprep.subr.bf16.mxu0 0
      %1234 = vmatpush1.bf16.msra.mxu0 0
      %1235 = vmatprep.subr.bf16.mxu0 0
      %1236 = vmatpush1.bf16.msra.mxu0 0
      %1237 = vmatprep.subr.bf16.mxu0 0
      %1238 = vmatpush1.bf16.msra.mxu0 0
      %1239 = vmatprep.subr.bf16.mxu0 0
      %1240 = vmatpush1.bf16.msra.mxu0 0
      %1241 = vmatprep.subr.bf16.mxu0 0
      %1242 = vmatpush1.bf16.msra.mxu0 0
      %1243 = vmatprep.subr.bf16.mxu0 0
      %1244 = vmatpush1.bf16.msra.mxu0 0
      %1245 = vmatprep.subr.bf16.mxu0 0
      %1246 = vmatpush1.bf16.msra.mxu0 0
      %1247 = vmatprep.subr.bf16.mxu0 0
      %1248 = vmatpush1.bf16.msra.mxu0 0
      %1249 = vmatprep.subr.bf16.mxu0 0
      %1250 = vmatpush1.bf16.msra.mxu0 0
      %1251 = vmatprep.subr.bf16.mxu0 0
      %1252 = vmatpush1.bf16.msra.mxu0 0
      %1253 = vmatprep.subr.bf16.mxu0 0
      %1254 = vmatpush1.bf16.msra.mxu0 0
      %1255 = vmatprep.mubr.bf16.mxu0 0
      %1256 = vmatmul.mubr.bf16.gmra.mrb[0].mxu0 %v1218
      %v1257 = vpop.f32.mrb[0].mxu0
      %v1258 = vadd.f32 0.0, %v1257
      %v1259 = vpop.f32.mrb[0].mxu0
      %v1260 = vpop.f32.mrb[0].mxu0
      %v1261 = vadd.f32 0.0, %v1260
      %v1262 = vpop.f32.mrb[0].mxu0
      %1263 = vmatprep.mubr.bf16.mxu0 0
      %1264 = vmatmul.mubr.bf16.gmra.mrb[0].mxu0 %v1221
      %v1265 = vpop.f32.mrb[0].mxu0
      %v1266 = vadd.f32 0.0, %v1265
      %v1267 = vpop.f32.mrb[0].mxu0
      %v1268 = vpop.f32.mrb[0].mxu0
      %v1269 = vadd.f32 0.0, %v1268
      %v1270 = vpop.f32.mrb[0].mxu0
      %1271 = vdwg.mxu0
      %1276 = vrot.lane.b32.xlu0 %v1258, 64
      %v1277 = vpop.permute.xlu0 %1276
      %1278 = vrot.lane.b32.xlu0 %v1261, 64
      %v1279 = vpop.permute.xlu0 %1278
      %1280 = vrot.lane.b32.xlu0 %v1266, 64
      %v1281 = vpop.permute.xlu0 %1280
      %1282 = vrot.lane.b32.xlu0 %v1269, 64
      %v1283 = vpop.permute.xlu0 %1282
      %v1288 = vsel %vm919, %v1072, %v1277
      %v1289 = vsel %vm919, %v1075, %v1279
      %v1290 = vsel %vm919, %v1080, %v1281
      %v1291 = vsel %vm919, %v1083, %v1283
      %v1292 = vpack.c.bf16 %v1289, %v1288
      %v1293 = vpack.c.bf16 %v1291, %v1290
      %v1294 = vpack.c.bf16 %v626, %v625
      %v1295 = vpack.c.bf16 %v628, %v627
      %v1296 = vpack.c.bf16 %v630, %v629
      %v1297 = vpack.c.bf16 %v632, %v631
      %v1298 = vpack.c.bf16 %v634, %v633
      %v1299 = vpack.c.bf16 %v636, %v635
      %v1300 = vpack.c.bf16 %v638, %v637
      %v1301 = vpack.c.bf16 %v640, %v639
      %v1303 = vlaneseq
      %v1304 = vshrl.u32 %v1303, 7
      %v1305 = vsub.s32 0, %v1304
      %v1306 = vrot.slane %v641, %v1305
      %1308 = vmatprep.subr.bf16.mxu0 0
      %1309 = vmatpush1.bf16.msra.mxu0 %v1294
      %1310 = vmatprep.subr.bf16.mxu0 0
      %1311 = vmatpush1.bf16.msra.mxu0 %v1295
      %1312 = vmatprep.subr.bf16.mxu0 0
      %1313 = vmatpush1.bf16.msra.mxu0 %v1296
      %1314 = vmatprep.subr.bf16.mxu0 0
      %1315 = vmatpush1.bf16.msra.mxu0 %v1297
      %1316 = vmatprep.subr.bf16.mxu0 0
      %1317 = vmatpush1.bf16.msra.mxu0 %v1298
      %1318 = vmatprep.subr.bf16.mxu0 0
      %1319 = vmatpush1.bf16.msra.mxu0 %v1299
      %1320 = vmatprep.subr.bf16.mxu0 0
      %1321 = vmatpush1.bf16.msra.mxu0 %v1300
      %1322 = vmatprep.subr.bf16.mxu0 0
      %1323 = vmatpush1.bf16.msra.mxu0 %v1301
      %1324 = vmatprep.subr.bf16.mxu0 0
      %1325 = vmatpush1.bf16.msra.mxu0 0
      %1326 = vmatprep.subr.bf16.mxu0 0
      %1327 = vmatpush1.bf16.msra.mxu0 0
      %1328 = vmatprep.subr.bf16.mxu0 0
      %1329 = vmatpush1.bf16.msra.mxu0 0
      %1330 = vmatprep.subr.bf16.mxu0 0
      %1331 = vmatpush1.bf16.msra.mxu0 0
      %1332 = vmatprep.subr.bf16.mxu0 0
      %1333 = vmatpush1.bf16.msra.mxu0 0
      %1334 = vmatprep.subr.bf16.mxu0 0
      %1335 = vmatpush1.bf16.msra.mxu0 0
      %1336 = vmatprep.subr.bf16.mxu0 0
      %1337 = vmatpush1.bf16.msra.mxu0 0
      %1338 = vmatprep.subr.bf16.mxu0 0
      %1339 = vmatpush1.bf16.msra.mxu0 0
      %1340 = vmatprep.mubr.bf16.mxu0 0
      %1341 = vmatmul.mubr.bf16.gmra.mrb[0].mxu0 %v1292
      %v1342 = vpop.f32.mrb[0].mxu0
      %v1343 = vadd.f32 %v1306, %v1342
      %v1344 = vpop.f32.mrb[0].mxu0
      %v1345 = vpop.f32.mrb[0].mxu0
      %v1346 = vadd.f32 %v1306, %v1345
      %v1347 = vpop.f32.mrb[0].mxu0
      %1348 = vmatprep.mubr.bf16.mxu0 0
      %1349 = vmatmul.mubr.bf16.gmra.mrb[0].mxu0 %v1293
      %v1350 = vpop.f32.mrb[0].mxu0
      %v1351 = vadd.f32 %v1306, %v1350
      %v1352 = vpop.f32.mrb[0].mxu0
      %v1353 = vpop.f32.mrb[0].mxu0
      %v1354 = vadd.f32 %v1306, %v1353
      %v1355 = vpop.f32.mrb[0].mxu0
      %1356 = vdwg.mxu0
      %v1357 = vadd.f32 %v604, %v1343
      %v1358 = vadd.f32 %v605, %v1346
      %v1359 = vadd.f32 %v606, %v1351
      %v1360 = vadd.f32 %v607, %v1354
      %v1361 = vsel %vm660, %v1357, 0.0
      %1362 = vadd.xlane.f32.xlu0 %v1361
      %v1363 = vpop.xlane.xlu0 %1362
      %v1364 = vsel %vm660, %v1358, 0.0
      %1365 = vadd.xlane.f32.xlu0 %v1364
      %v1366 = vpop.xlane.xlu0 %1365
      %v1367 = vsel %vm660, %v1359, 0.0
      %1368 = vadd.xlane.f32.xlu0 %v1367
      %v1369 = vpop.xlane.xlu0 %1368
      %v1370 = vsel %vm660, %v1360, 0.0
      %1371 = vadd.xlane.f32.xlu0 %v1370
      %v1372 = vpop.xlane.xlu0 %1371
      %v1373 = vmul.f32 %v1363, %v673
      %v1374 = vmul.f32 %v1366, %v673
      %v1375 = vmul.f32 %v1369, %v673
      %v1376 = vmul.f32 %v1372, %v673
      %v1377 = vsub.f32 %v1357, %v1373
      %v1378 = vsub.f32 %v1358, %v1374
      %v1379 = vsub.f32 %v1359, %v1375
      %v1380 = vsub.f32 %v1360, %v1376
      %v1381 = vmul.f32 %v1377, %v1377
      %v1382 = vmul.f32 %v1378, %v1378
      %v1383 = vmul.f32 %v1379, %v1379
      %v1384 = vmul.f32 %v1380, %v1380
      %v1385 = vsel %vm660, %v1381, 0.0
      %1386 = vadd.xlane.f32.xlu0 %v1385
      %v1387 = vpop.xlane.xlu0 %1386
      %v1388 = vsel %vm660, %v1382, 0.0
      %1389 = vadd.xlane.f32.xlu0 %v1388
      %v1390 = vpop.xlane.xlu0 %1389
      %v1391 = vsel %vm660, %v1383, 0.0
      %1392 = vadd.xlane.f32.xlu0 %v1391
      %v1393 = vpop.xlane.xlu0 %1392
      %v1394 = vsel %vm660, %v1384, 0.0
      %1395 = vadd.xlane.f32.xlu0 %v1394
      %v1396 = vpop.xlane.xlu0 %1395
      %v1397 = vmul.f32 %v1387, %v673
      %v1398 = vmul.f32 %v1390, %v673
      %v1399 = vmul.f32 %v1393, %v673
      %v1400 = vmul.f32 %v1396, %v673
      %v1401 = vadd.f32 %v1397, 1e-05
      %v1402 = vadd.f32 %v1398, 1e-05
      %v1403 = vadd.f32 %v1399, 1e-05
      %v1404 = vadd.f32 %v1400, 1e-05
      %v1405 = vrsqrt.pop %v1401
      %v1406 = vrsqrt.pop %v1402
      %v1407 = vrsqrt.pop %v1403
      %v1408 = vrsqrt.pop %v1404
      %v1409 = vmul.f32 %v1377, %v1405
      %v1410 = vmul.f32 %v1378, %v1406
      %v1411 = vmul.f32 %v1379, %v1407
      %v1412 = vmul.f32 %v1380, %v1408
      %v1414 = vlaneseq
      %v1415 = vshrl.u32 %v1414, 7
      %v1416 = vsub.s32 0, %v1415
      %v1417 = vrot.slane %v642, %v1416
      %v1419 = vmul.f32 %v1409, %v1417
      %v1420 = vmul.f32 %v1410, %v1417
      %v1421 = vmul.f32 %v1411, %v1417
      %v1422 = vmul.f32 %v1412, %v1417
      %v1424 = vlaneseq
      %v1425 = vshrl.u32 %v1424, 7
      %v1426 = vsub.s32 0, %v1425
      %v1427 = vrot.slane %v643, %v1426
      %v1429 = vadd.f32 %v1419, %v1427
      %v1430 = vadd.f32 %v1420, %v1427
      %v1431 = vadd.f32 %v1421, %v1427
      %v1432 = vadd.f32 %v1422, %v1427
      %v1433 = vpack.c.bf16 %v1430, %v1429
      %v1434 = vpack.c.bf16 %v1432, %v1431
      %v1435 = vpack.c.bf16 %v645, %v644
      %v1436 = vpack.c.bf16 %v647, %v646
      %v1438 = vlaneseq
      %v1439 = vshrl.u32 %v1438, 7
      %v1440 = vsub.s32 0, %v1439
      %v1441 = vrot.slane %v648, %v1440
      %v1444 = vsel %vm660, %v1433, 0
      %v1447 = vsel %vm660, %v1434, 0
      %1449 = vmatprep.subr.bf16.mxu0 0
      %1450 = vmatpush1.bf16.msra.mxu0 %v1435
      %1451 = vmatprep.subr.bf16.mxu0 0
      %1452 = vmatpush1.bf16.msra.mxu0 %v1436
      %1453 = vmatprep.subr.bf16.mxu0 0
      %1454 = vmatpush1.bf16.msra.mxu0 0
      %1455 = vmatprep.subr.bf16.mxu0 0
      %1456 = vmatpush1.bf16.msra.mxu0 0
      %1457 = vmatprep.subr.bf16.mxu0 0
      %1458 = vmatpush1.bf16.msra.mxu0 0
      %1459 = vmatprep.subr.bf16.mxu0 0
      %1460 = vmatpush1.bf16.msra.mxu0 0
      %1461 = vmatprep.subr.bf16.mxu0 0
      %1462 = vmatpush1.bf16.msra.mxu0 0
      %1463 = vmatprep.subr.bf16.mxu0 0
      %1464 = vmatpush1.bf16.msra.mxu0 0
      %1465 = vmatprep.subr.bf16.mxu0 0
      %1466 = vmatpush1.bf16.msra.mxu0 0
      %1467 = vmatprep.subr.bf16.mxu0 0
      %1468 = vmatpush1.bf16.msra.mxu0 0
      %1469 = vmatprep.subr.bf16.mxu0 0
      %1470 = vmatpush1.bf16.msra.mxu0 0
      %1471 = vmatprep.subr.bf16.mxu0 0
      %1472 = vmatpush1.bf16.msra.mxu0 0
      %1473 = vmatprep.subr.bf16.mxu0 0
      %1474 = vmatpush1.bf16.msra.mxu0 0
      %1475 = vmatprep.subr.bf16.mxu0 0
      %1476 = vmatpush1.bf16.msra.mxu0 0
      %1477 = vmatprep.subr.bf16.mxu0 0
      %1478 = vmatpush1.bf16.msra.mxu0 0
      %1479 = vmatprep.subr.bf16.mxu0 0
      %1480 = vmatpush1.bf16.msra.mxu0 0
      %1481 = vmatprep.mubr.bf16.mxu0 0
      %1482 = vmatmul.mubr.bf16.gmra.mrb[0].mxu0 %v1444
      %v1483 = vpop.f32.mrb[0].mxu0
      %v1484 = vadd.f32 %v1441, %v1483
      %v1485 = vpop.f32.mrb[0].mxu0
      %v1486 = vpop.f32.mrb[0].mxu0
      %v1487 = vadd.f32 %v1441, %v1486
      %v1488 = vpop.f32.mrb[0].mxu0
      %1489 = vmatprep.mubr.bf16.mxu0 0
      %1490 = vmatmul.mubr.bf16.gmra.mrb[0].mxu0 %v1447
      %v1491 = vpop.f32.mrb[0].mxu0
      %v1492 = vadd.f32 %v1441, %v1491
      %v1493 = vpop.f32.mrb[0].mxu0
      %v1494 = vpop.f32.mrb[0].mxu0
      %v1495 = vadd.f32 %v1441, %v1494
      %v1496 = vpop.f32.mrb[0].mxu0
      %1497 = vdwg.mxu0
      %v1498 = vmul.f32 %v1484, %v1484
      %v1499 = vmul.f32 %v1487, %v1487
      %v1500 = vmul.f32 %v1492, %v1492
      %v1501 = vmul.f32 %v1495, %v1495
      %v1502 = vmul.f32 %v1484, %v1498
      %v1503 = vmul.f32 %v1487, %v1499
      %v1504 = vmul.f32 %v1492, %v1500
      %v1505 = vmul.f32 %v1495, %v1501
      %v1506 = vmul.f32 %v1502, 0.044715
      %v1507 = vmul.f32 %v1503, 0.044715
      %v1508 = vmul.f32 %v1504, 0.044715
      %v1509 = vmul.f32 %v1505, 0.044715
      %v1510 = vadd.f32 %v1484, %v1506
      %v1511 = vadd.f32 %v1487, %v1507
      %v1512 = vadd.f32 %v1492, %v1508
      %v1513 = vadd.f32 %v1495, %v1509
      %v1514 = vmul.f32 %v1510, 0.7978846
      %v1515 = vmul.f32 %v1511, 0.7978846
      %v1516 = vmul.f32 %v1512, 0.7978846
      %v1517 = vmul.f32 %v1513, 0.7978846
      %v1518 = vtanh.pop %v1514
      %v1519 = vtanh.pop %v1515
      %v1520 = vtanh.pop %v1516
      %v1521 = vtanh.pop %v1517
      %v1522 = vadd.f32 %v1518, 1.0
      %v1523 = vadd.f32 %v1519, 1.0
      %v1524 = vadd.f32 %v1520, 1.0
      %v1525 = vadd.f32 %v1521, 1.0
      %v1526 = vmul.f32 %v1522, 0.5
      %v1527 = vmul.f32 %v1523, 0.5
      %v1528 = vmul.f32 %v1524, 0.5
      %v1529 = vmul.f32 %v1525, 0.5
      %v1530 = vmul.f32 %v1484, %v1526
      %v1531 = vmul.f32 %v1487, %v1527
      %v1532 = vmul.f32 %v1492, %v1528
      %v1533 = vmul.f32 %v1495, %v1529
      %v1534 = vpack.c.bf16 %v1531, %v1530
      %v1535 = vpack.c.bf16 %v1533, %v1532
      %v1536 = vpack.c.bf16 %v650, %v649
      %v1537 = vpack.c.bf16 %v652, %v651
      %v1538 = vpack.c.bf16 %v654, %v653
      %v1539 = vpack.c.bf16 %v656, %v655
      %v1541 = vlaneseq
      %v1542 = vshrl.u32 %v1541, 7
      %v1543 = vsub.s32 0, %v1542
      %v1544 = vrot.slane %v657, %v1543
      %v1547 = vsel %vm919, %v1534, 0
      %v1550 = vsel %vm919, %v1535, 0
      %1552 = vmatprep.subr.bf16.mxu0 0
      %1553 = vmatpush1.bf16.msra.mxu0 %v1536
      %1554 = vmatprep.subr.bf16.mxu0 0
      %1555 = vmatpush1.bf16.msra.mxu0 %v1537
      %1556 = vmatprep.subr.bf16.mxu0 0
      %1557 = vmatpush1.bf16.msra.mxu0 %v1538
      %1558 = vmatprep.subr.bf16.mxu0 0
      %1559 = vmatpush1.bf16.msra.mxu0 %v1539
      %1560 = vmatprep.subr.bf16.mxu0 0
      %1561 = vmatpush1.bf16.msra.mxu0 0
      %1562 = vmatprep.subr.bf16.mxu0 0
      %1563 = vmatpush1.bf16.msra.mxu0 0
      %1564 = vmatprep.subr.bf16.mxu0 0
      %1565 = vmatpush1.bf16.msra.mxu0 0
      %1566 = vmatprep.subr.bf16.mxu0 0
      %1567 = vmatpush1.bf16.msra.mxu0 0
      %1568 = vmatprep.subr.bf16.mxu0 0
      %1569 = vmatpush1.bf16.msra.mxu0 0
      %1570 = vmatprep.subr.bf16.mxu0 0
      %1571 = vmatpush1.bf16.msra.mxu0 0
      %1572 = vmatprep.subr.bf16.mxu0 0
      %1573 = vmatpush1.bf16.msra.mxu0 0
      %1574 = vmatprep.subr.bf16.mxu0 0
      %1575 = vmatpush1.bf16.msra.mxu0 0
      %1576 = vmatprep.subr.bf16.mxu0 0
      %1577 = vmatpush1.bf16.msra.mxu0 0
      %1578 = vmatprep.subr.bf16.mxu0 0
      %1579 = vmatpush1.bf16.msra.mxu0 0
      %1580 = vmatprep.subr.bf16.mxu0 0
      %1581 = vmatpush1.bf16.msra.mxu0 0
      %1582 = vmatprep.subr.bf16.mxu0 0
      %1583 = vmatpush1.bf16.msra.mxu0 0
      %1584 = vmatprep.mubr.bf16.mxu0 0
      %1585 = vmatmul.mubr.bf16.gmra.mrb[0].mxu0 %v1547
      %v1586 = vpop.f32.mrb[0].mxu0
      %v1587 = vadd.f32 %v1544, %v1586
      %v1588 = vpop.f32.mrb[0].mxu0
      %v1589 = vpop.f32.mrb[0].mxu0
      %v1590 = vadd.f32 %v1544, %v1589
      %v1591 = vpop.f32.mrb[0].mxu0
      %1592 = vmatprep.mubr.bf16.mxu0 0
      %1593 = vmatmul.mubr.bf16.gmra.mrb[0].mxu0 %v1550
      %v1594 = vpop.f32.mrb[0].mxu0
      %v1595 = vadd.f32 %v1544, %v1594
      %v1596 = vpop.f32.mrb[0].mxu0
      %v1597 = vpop.f32.mrb[0].mxu0
      %v1598 = vadd.f32 %v1544, %v1597
      %v1599 = vpop.f32.mrb[0].mxu0
      %1600 = vdwg.mxu0
      %v1601 = vadd.f32 %v1357, %v1587
      %v1602 = vadd.f32 %v1358, %v1590
      %v1603 = vadd.f32 %v1359, %v1595
      %v1604 = vadd.f32 %v1360, %v1598
      %v1605 = vsel %vm660, %v1601, 0.0
      %1606 = vadd.xlane.f32.xlu0 %v1605
      %v1607 = vpop.xlane.xlu0 %1606
      %v1608 = vsel %vm660, %v1602, 0.0
      %1609 = vadd.xlane.f32.xlu0 %v1608
      %v1610 = vpop.xlane.xlu0 %1609
      %v1611 = vsel %vm660, %v1603, 0.0
      %1612 = vadd.xlane.f32.xlu0 %v1611
      %v1613 = vpop.xlane.xlu0 %1612
      %v1614 = vsel %vm660, %v1604, 0.0
      %1615 = vadd.xlane.f32.xlu0 %v1614
      %v1616 = vpop.xlane.xlu0 %1615
      %v1617 = vmul.f32 %v1607, %v673
      %v1618 = vmul.f32 %v1610, %v673
      %v1619 = vmul.f32 %v1613, %v673
      %v1620 = vmul.f32 %v1616, %v673
      %v1621 = vsub.f32 %v1601, %v1617
      %v1622 = vsub.f32 %v1602, %v1618
      %v1623 = vsub.f32 %v1603, %v1619
      %v1624 = vsub.f32 %v1604, %v1620
      %v1625 = vmul.f32 %v1621, %v1621
      %v1626 = vmul.f32 %v1622, %v1622
      %v1627 = vmul.f32 %v1623, %v1623
      %v1628 = vmul.f32 %v1624, %v1624
      %v1629 = vsel %vm660, %v1625, 0.0
      %1630 = vadd.xlane.f32.xlu0 %v1629
      %v1631 = vpop.xlane.xlu0 %1630
      %v1632 = vsel %vm660, %v1626, 0.0
      %1633 = vadd.xlane.f32.xlu0 %v1632
      %v1634 = vpop.xlane.xlu0 %1633
      %v1635 = vsel %vm660, %v1627, 0.0
      %1636 = vadd.xlane.f32.xlu0 %v1635
      %v1637 = vpop.xlane.xlu0 %1636
      %v1638 = vsel %vm660, %v1628, 0.0
      %1639 = vadd.xlane.f32.xlu0 %v1638
      %v1640 = vpop.xlane.xlu0 %1639
      %v1641 = vmul.f32 %v1631, %v673
      %v1642 = vmul.f32 %v1634, %v673
      %v1643 = vmul.f32 %v1637, %v673
      %v1644 = vmul.f32 %v1640, %v673
      %v1645 = vadd.f32 %v1641, 1e-05
      %v1646 = vadd.f32 %v1642, 1e-05
      %v1647 = vadd.f32 %v1643, 1e-05
      %v1648 = vadd.f32 %v1644, 1e-05
      %v1649 = vrsqrt.pop %v1645
      %v1650 = vrsqrt.pop %v1646
      %v1651 = vrsqrt.pop %v1647
      %v1652 = vrsqrt.pop %v1648
      %v1653 = vmul.f32 %v1621, %v1649
      %v1654 = vmul.f32 %v1622, %v1650
      %v1655 = vmul.f32 %v1623, %v1651
      %v1656 = vmul.f32 %v1624, %v1652
      %v1658 = vlaneseq
      %v1659 = vshrl.u32 %v1658, 7
      %v1660 = vsub.s32 0, %v1659
      %v1661 = vrot.slane %v658, %v1660
      %v1663 = vmul.f32 %v1653, %v1661
      %v1664 = vmul.f32 %v1654, %v1661
      %v1665 = vmul.f32 %v1655, %v1661
      %v1666 = vmul.f32 %v1656, %v1661
      %v1668 = vlaneseq
      %v1669 = vshrl.u32 %v1668, 7
      %v1670 = vsub.s32 0, %v1669
      %v1671 = vrot.slane %v659, %v1670
      %v1673 = vadd.f32 %v1663, %v1671
      %v1674 = vadd.f32 %v1664, %v1671
      %v1675 = vadd.f32 %v1665, %v1671
      %v1676 = vadd.f32 %v1666, %v1671
      %1677 = vst.msk [vmem:[%s602] sm:$0xff] %vm660, %v1673
      %1678 = vst.msk [vmem:[%s602 + $0x8] sm:$0xff] %vm660, %v1674
      %1679 = vst.msk [vmem:[%s602 + $0x10] sm:$0xff] %vm660, %v1675
      %1680 = vst.msk [vmem:[%s602 + $0x18] sm:$0xff] %vm660, %v1676
      %p1681 = scmp.lt.s32.totalorder %s30, 1
      %s1682 = scalar_select %p1681, %s30, 1
      %s1683 = smul.addr %s1682, 4
      %s1684 = smul.addr %s1683, 8
      %s1685 = scalar_lea.vmem %s19, %s1684
      // Predicated region
      $region97: #{_lambda_.14} parent=95 // pred_check
        %p1686 = pneg %p452
      $region98: #{_lambda_.14} parent=95 // pred_check_branch
        %1688 = sbr.rel (%p1686) target = $region100
      $region99: #{_lambda_.14} parent=95 // pred_region
        _
      $region100: #{_lambda_.14} parent=95 // pred_fallthru
        _
    $region96: #{_lambda_.14} parent=5 // pred_fallthru
      _
    %p1689 = scmp.le.s32.totalorder 2, %s25
    // Predicated region
    $region101: #{_lambda_.14} parent=5 // pred_check
      %p1690 = pneg %p1689
    $region102: #{_lambda_.14} parent=5 // pred_check_branch
      %1692 = sbr.rel (%p1690) target = $region104
    $region103: #{_lambda_.14} parent=5 // pred_region
      %s1693 = ssub.s32 %s25, 2
      // Predicated region
      $region105: #{_lambda_.14} parent=103 // pred_check
        %p1694 = pneg %p458
      $region106: #{_lambda_.14} parent=103 // pred_check_branch
        %1696 = sbr.rel (%p1694) target = $region108
      $region107: #{_lambda_.14} parent=103 // pred_region
        %p1697 = scmp.lt.s32.totalorder %s31, 1
        %s1698 = scalar_select %p1697, %s31, 1
        %s1699 = smul.addr %s1698, 4
        %s1700 = smul.addr %s1699, 8
        %s1701 = scalar_lea.vmem %s19, %s1700
      $region108: #{_lambda_.14} parent=103 // pred_fallthru
        _
    $region104: #{_lambda_.14} parent=5 // pred_fallthru
      _
  $region6: #{_lambda_.14} parent=0 // loop_footer
    %s29 = sadd.s32 1, %s25
  $region7: #{_lambda_.14} parent=0 // loop_footer_branch
    %24 = sbr.rel target = $region3
  $region8: #{_lambda_.14} parent=0 // loop_exit
    _

// kernel: _lambda_.15
$region0: #{_lambda_.15}
  #allocation0 [shape = 'u32[]', space=smem, size = 0x4, offset = 0x4, fixed_abs, tag = 'smem constant byte address 0x4 - core index']
  #allocation1 [shape = 'u32[144,128]{1,0:T(1,128)}', space=vmem, size = 0x12000, scoped, tag = 'internal scratch']
  #allocation2 [shape = 'f32[2,16]{1,0:T(2,128)}', space=vmem, size = 0x400, scoped, tag = 'scratch operand']
  %s0 = inlined_call_operand.vmem [shape: f32[2,1024], index: 0, kind: input, shape index: {}]
  %s1 = inlined_call_operand.vmem [shape: f32[1024,16], index: 1, kind: input, shape index: {}]
  %s2 = inlined_call_operand.vmem [shape: f32[1,16], index: 2, kind: input, shape index: {}]
  %s3 = inlined_call_operand.vmem [shape: f32[2,16], index: 3, kind: output, shape index: {}]
  %s4 = sld [smem:[#allocation0]]
  $region53: #{_lambda_.15} parent=0
    _
  %s6 = ssub.s32 1, %s4
  %s7 = scalar_select 0, %s6, %s4
  loop: start=0, step=1, limit=4
  $region2: #{_lambda_.15} parent=0 // loop_pre_header
    _
  $region3: #{_lambda_.15} parent=0 // loop_header
    %s9 = sphi 0, %s13
    %p10 = scmp.ge.s32.totalorder %s9, 4
    %s16 = sphi 0, %s35
    %s17 = sphi 0, %s31
    %s18 = sphi 0, %s27
    %s19 = sphi 0, %s16
    %s20 = sphi 0, %s17
    %s21 = sphi 0, %s18
    %s22 = sphi 0, %s19
    %s23 = sphi 0, %s20
    %s24 = sphi 0, %s21
    %s40 = sphi 0, %s42
    %s43 = sphi 0, %s40
    %s44 = sphi 0, %s43
    %s60 = sphi 0, %s44
    %s68 = sphi 0, %s70
    %s71 = sphi 0, %s68
    %s72 = sphi 0, %s71
    %s88 = sphi 0, %s72
    %s94 = sphi 0, %s96
    %s97 = sphi 0, %s94
    %s98 = sphi 0, %s97
    %s114 = sphi 0, %s98
    %s122 = sphi 0, %s124
    %s125 = sphi 0, %s122
    %s126 = sphi 0, %s125
    %s142 = sphi 0, %s126
  $region4: #{_lambda_.15} parent=0 // loop_header_branch
    %12 = sbr.rel (%p10) target = $region8
  $region5: #{_lambda_.15} parent=0 // loop_body
    %s14 = ssub.s32 %s9, 1
    %s15 = ssub.s32 %s9, 2
    %s25 = sadd.s32 1, %s18
    %p26 = scmp.ge.s32.totalorder %s25, 2
    %s27 = scalar_select %p26, 0, %s25
    %s28 = sadd.s32 1, %s17
    %s29 = scalar_select %p26, %s28, %s17
    %p30 = scmp.ge.s32.totalorder %s29, 1
    %s31 = scalar_select %p30, 0, %s29
    %s32 = sadd.s32 1, %s16
    %s33 = scalar_select %p30, %s32, %s16
    %p34 = scmp.ge.s32.totalorder %s33, 1
    %s35 = scalar_select %p34, 0, %s33
    %s36 = ssub.s32 %s16, %s35
    %s37 = ssub.s32 %s18, %s27
    %s38 = sor.u32 %s36, %s37
    %p39 = scmp.eq.s32.totalorder %s38, 0
    %s41 = sadd.s32 %s40, 1
    %s42 = scalar_select %p39, %s40, %s41
    %p45 = pneg %p39
    %p46 = scmp.eq.s32.totalorder %s9, 1
    %p47 = por %p45, %p46
    %p48 = scmp.ne.s32.totalorder %s40, %s43
    %p49 = scmp.eq.s32.totalorder %s9, 0
    %p50 = por %p48, %p49
    %p51 = scmp.ne.s32.totalorder %s40, %s43
    %p52 = scmp.eq.s32.totalorder %s14, 1
    %p53 = por %p51, %p52
    %p54 = scmp.ne.s32.totalorder %s43, %s44
    %p55 = scmp.eq.s32.totalorder %s14, 0
    %p56 = por %p54, %p55
    %p57 = scmp.ne.s32.totalorder %s43, %s44
    %p58 = scmp.eq.s32.totalorder %s15, 1
    %p59 = por %p57, %p58
    %p61 = scmp.ne.s32.totalorder %s44, %s60
    %p62 = scmp.eq.s32.totalorder %s15, 0
    %p63 = por %p61, %p62
    %s64 = ssub.s32 %s18, %s27
    %s65 = ssub.s32 %s17, %s31
    %s66 = sor.u32 %s64, %s65
    %p67 = scmp.eq.s32.totalorder %s66, 0
    %s69 = sadd.s32 %s68, 1
    %s70 = scalar_select %p67, %s68, %s69
    %p73 = pneg %p67
    %p74 = scmp.eq.s32.totalorder %s9, 1
    %p75 = por %p73, %p74
    %p76 = scmp.ne.s32.totalorder %s68, %s71
    %p77 = scmp.eq.s32.totalorder %s9, 0
    %p78 = por %p76, %p77
    %p79 = scmp.ne.s32.totalorder %s68, %s71
    %p80 = scmp.eq.s32.totalorder %s14, 1
    %p81 = por %p79, %p80
    %p82 = scmp.ne.s32.totalorder %s71, %s72
    %p83 = scmp.eq.s32.totalorder %s14, 0
    %p84 = por %p82, %p83
    %p85 = scmp.ne.s32.totalorder %s71, %s72
    %p86 = scmp.eq.s32.totalorder %s15, 1
    %p87 = por %p85, %p86
    %p89 = scmp.ne.s32.totalorder %s72, %s88
    %p90 = scmp.eq.s32.totalorder %s15, 0
    %p91 = por %p89, %p90
    %s92 = ssub.s32 %s17, %s31
    %p93 = scmp.eq.s32.totalorder %s92, 0
    %s95 = sadd.s32 %s94, 1
    %s96 = scalar_select %p93, %s94, %s95
    %p99 = pneg %p93
    %p100 = scmp.eq.s32.totalorder %s9, 1
    %p101 = por %p99, %p100
    %p102 = scmp.ne.s32.totalorder %s94, %s97
    %p103 = scmp.eq.s32.totalorder %s9, 0
    %p104 = por %p102, %p103
    %p105 = scmp.ne.s32.totalorder %s94, %s97
    %p106 = scmp.eq.s32.totalorder %s14, 1
    %p107 = por %p105, %p106
    %p108 = scmp.ne.s32.totalorder %s97, %s98
    %p109 = scmp.eq.s32.totalorder %s14, 0
    %p110 = por %p108, %p109
    %p111 = scmp.ne.s32.totalorder %s97, %s98
    %p112 = scmp.eq.s32.totalorder %s15, 1
    %p113 = por %p111, %p112
    %p115 = scmp.ne.s32.totalorder %s98, %s114
    %p116 = scmp.eq.s32.totalorder %s15, 0
    %p117 = por %p115, %p116
    %s118 = ssub.s32 %s16, %s35
    %s119 = ssub.s32 %s17, %s31
    %s120 = sor.u32 %s118, %s119
    %p121 = scmp.eq.s32.totalorder %s120, 0
    %s123 = sadd.s32 %s122, 1
    %s124 = scalar_select %p121, %s122, %s123
    %p127 = pneg %p121
    %p128 = scmp.eq.s32.totalorder %s9, 1
    %p129 = por %p127, %p128
    %p130 = scmp.ne.s32.totalorder %s122, %s125
    %p131 = scmp.eq.s32.totalorder %s9, 0
    %p132 = por %p130, %p131
    %p133 = scmp.ne.s32.totalorder %s122, %s125
    %p134 = scmp.eq.s32.totalorder %s14, 1
    %p135 = por %p133, %p134
    %p136 = scmp.ne.s32.totalorder %s125, %s126
    %p137 = scmp.eq.s32.totalorder %s14, 0
    %p138 = por %p136, %p137
    %p139 = scmp.ne.s32.totalorder %s125, %s126
    %p140 = scmp.eq.s32.totalorder %s15, 1
    %p141 = por %p139, %p140
    %p143 = scmp.ne.s32.totalorder %s126, %s142
    %p144 = scmp.eq.s32.totalorder %s15, 0
    %p145 = por %p143, %p144
    %p146 = scmp.le.s32.totalorder 1, %s9
    %p147 = scmp.lt.s32.totalorder %s9, 3
    %p148 = pnand %p146, %p147
    %p149 = pneg %p148
    // Predicated region
    $region9: #{_lambda_.15} parent=5 // pred_check
      _
    $region10: #{_lambda_.15} parent=5 // pred_check_branch
      %151 = sbr.rel (%p148) target = $region12
    $region11: #{_lambda_.15} parent=5 // pred_region
      %s152 = ssub.s32 %s9, 1
      // Predicated region
      $region13: #{_lambda_.15} parent=11 // pred_check
        %p153 = pneg %p110
      $region14: #{_lambda_.15} parent=11 // pred_check_branch
        %155 = sbr.rel (%p153) target = $region16
      $region15: #{_lambda_.15} parent=11 // pred_region
        %p156 = scmp.lt.s32.totalorder %s20, 0
        %s157 = scalar_select %p156, %s20, 0
        %s158 = scalar_lea.vmem %s2, %s157
      $region16: #{_lambda_.15} parent=11 // pred_fallthru
        _
    $region12: #{_lambda_.15} parent=5 // pred_fallthru
      _
    %p159 = scmp.lt.s32.totalorder %s9, 2
    // Predicated region
    $region17: #{_lambda_.15} parent=5 // pred_check
      %p160 = pneg %p159
    $region18: #{_lambda_.15} parent=5 // pred_check_branch
      %162 = sbr.rel (%p160) target = $region20
    $region19: #{_lambda_.15} parent=5 // pred_region
      // Predicated region
      $region21: #{_lambda_.15} parent=19 // pred_check
        %p163 = pneg %p50
      $region22: #{_lambda_.15} parent=19 // pred_check_branch
        %165 = sbr.rel (%p163) target = $region24
      $region23: #{_lambda_.15} parent=19 // pred_region
        %s166 = smul.u32 4, %s18
        %p167 = scmp.lt.s32.totalorder %s16, 0
        %s168 = scalar_select %p167, %s16, 0
        %p169 = scmp.lt.s32.totalorder %s166, 7
        %s170 = scalar_select %p169, %s166, 7
        %s171 = smul.addr %s168, 8
        %s172 = sadd.s32 %s170, %s171
        %s173 = smul.addr %s172, 2
        %s174 = scalar_lea.vmem %s0, %s173
        %s175 = smul.u32 4, %s18
      $region24: #{_lambda_.15} parent=19 // pred_fallthru
        _
      // Predicated region
      $region25: #{_lambda_.15} parent=19 // pred_check
        %p176 = pneg %p78
      $region26: #{_lambda_.15} parent=19 // pred_check_branch
        %178 = sbr.rel (%p176) target = $region28
      $region27: #{_lambda_.15} parent=19 // pred_region
        %s179 = smul.u32 64, %s18
        %p180 = scmp.lt.s32.totalorder %s179, 127
        %s181 = scalar_select %p180, %s179, 127
        %p182 = scmp.lt.s32.totalorder %s17, 0
        %s183 = scalar_select %p182, %s17, 0
        %s184 = sadd.s32 %s183, %s181
        %s185 = smul.addr %s184, 8
        %s186 = scalar_lea.vmem %s1, %s185
        %s187 = smul.u32 64, %s18
      $region28: #{_lambda_.15} parent=19 // pred_fallthru
        _
    $region20: #{_lambda_.15} parent=5 // pred_fallthru
      _
    %p188 = scmp.le.s32.totalorder 1, %s9
    %p189 = scmp.lt.s32.totalorder %s9, 3
    %p190 = pnand %p188, %p189
    %p191 = pneg %p190
    // Predicated region
    $region29: #{_lambda_.15} parent=5 // pred_check
      _
    $region30: #{_lambda_.15} parent=5 // pred_check_branch
      %193 = sbr.rel (%p190) target = $region32
    $region31: #{_lambda_.15} parent=5 // pred_region
      %s194 = ssub.s32 %s9, 1
      %s195 = smul.u32 4, %s21
      %p196 = scmp.lt.s32.totalorder %s19, 0
      %s197 = scalar_select %p196, %s19, 0
      %p198 = scmp.lt.s32.totalorder %s195, 7
      %s199 = scalar_select %p198, %s195, 7
      %s200 = smul.addr %s197, 8
      %s201 = sadd.s32 %s199, %s200
      %s202 = smul.addr %s201, 2
      %s203 = scalar_lea.vmem %s0, %s202
      %p204 = pneg %p56
      %p205 = pneg %p53
      %s206 = smul.u32 64, %s21
      %p207 = scmp.lt.s32.totalorder %s206, 127
      %s208 = scalar_select %p207, %s206, 127
      %p209 = scmp.lt.s32.totalorder %s20, 0
      %s210 = scalar_select %p209, %s20, 0
      %s211 = sadd.s32 %s210, %s208
      %s212 = smul.addr %s211, 8
      %s213 = scalar_lea.vmem %s1, %s212
      %p214 = pneg %p84
      %p215 = pneg %p81
      %p216 = scmp.lt.s32.totalorder %s20, 0
      %s217 = scalar_select %p216, %s20, 0
      %s218 = scalar_lea.vmem %s2, %s217
      %p219 = pneg %p110
      %p220 = pneg %p107
      %p221 = pneg %p138
      %p222 = pneg %p135
      %p223 = scmp.lt.s32.totalorder %s19, 0
      %s224 = scalar_select %p223, %s19, 0
      %p225 = scmp.lt.s32.totalorder %s20, 0
      %s226 = scalar_select %p225, %s20, 0
      %s227 = sadd.s32 %s226, %s224
      %s228 = smul.addr %s227, 2
      %s229 = scalar_lea.vmem %s3, %s228
      %s230 = smul.u32 4, %s21
      %p231 = scmp.lt.s32.totalorder %s19, 0
      %s232 = scalar_select %p231, %s19, 0
      %p233 = scmp.lt.s32.totalorder %s230, 7
      %s234 = scalar_select %p233, %s230, 7
      %s235 = smul.addr %s232, 8
      %s236 = sadd.s32 %s234, %s235
      %s237 = smul.addr %s236, 2
      %s238 = scalar_lea.vmem %s0, %s237
      %s239 = smul.u32 4, %s21
      %s240 = smul.u32 64, %s21
      %p241 = scmp.lt.s32.totalorder %s240, 127
      %s242 = scalar_select %p241, %s240, 127
      %p243 = scmp.lt.s32.totalorder %s20, 0
      %s244 = scalar_select %p243, %s20, 0
      %s245 = sadd.s32 %s244, %s242
      %s246 = smul.addr %s245, 8
      %s247 = scalar_lea.vmem %s1, %s246
      %s248 = smul.u32 64, %s21
      %p249 = scmp.lt.s32.totalorder %s20, 0
      %s250 = scalar_select %p249, %s20, 0
      %s251 = scalar_lea.vmem %s2, %s250
      %p252 = scmp.lt.s32.totalorder %s19, 0
      %s253 = scalar_select %p252, %s19, 0
      %p254 = scmp.lt.s32.totalorder %s20, 0
      %s255 = scalar_select %p254, %s20, 0
      %s256 = sadd.s32 %s255, %s253
      %s257 = smul.addr %s256, 2
      %s258 = scalar_lea.vmem %s3, %s257
      %p260 = scmp.eq.s32.totalorder %s21, 0
      // Predicated region
      $region33: #{_lambda_.15} parent=31 // pred_check
        %p261 = pneg %p260
      $region34: #{_lambda_.15} parent=31 // pred_check_branch
        %263 = sbr.rel (%p261) target = $region36
      $region35: #{_lambda_.15} parent=31 // pred_region
        %vm264 = vcmask 123904
        %265 = vst.msk [vmem:[#allocation2] sm:$0x3] %vm264, 0.0
      $region36: #{_lambda_.15} parent=31 // pred_fallthru
        _
      %v266 = vld [vmem:[#allocation2] sm:$0x3]
      %v267 = vld [vmem:[%s238] sm:$0xff]
      %v269 = vcombine.high %v267, %v267
      %v271 = vunpack.c.l.s4 1983009808
      %v272 = vunpack.c.0.s8 %v271
      %v273 = vlaneseq
      %v274 = vshrl.u32 %v273, 7
      %v275 = vsub.s32 %v272, %v274
      %v276 = vrot.slane %v267, %v275
      %v278 = vunpack.c.l.s4 1983009808
      %v279 = vunpack.c.0.s8 %v278
      %v280 = vlaneseq
      %v281 = vshrl.u32 %v280, 7
      %v282 = vsub.s32 %v279, %v281
      %v283 = vrot.slane %v269, %v282
      %v284 = vcombine.high %v276, %v276
      %v285 = vcombine.high %v283, %v283
      %v290 = vpack.c.bf16 %v276, %v276
      %v291 = vpack.c.bf16 %v284, %v284
      %v292 = vpack.c.bf16 %v283, %v283
      %v293 = vpack.c.bf16 %v285, %v285
      %v294 = vld [vmem:[%s247] sm:$0xff]
      %v295 = vld [vmem:[%s247 + $0x8] sm:$0xff]
      %v296 = vld [vmem:[%s247 + $0x10] sm:$0xff]
      %v297 = vld [vmem:[%s247 + $0x18] sm:$0xff]
      %v298 = vld [vmem:[%s247 + $0x20] sm:$0xff]
      %v299 = vld [vmem:[%s247 + $0x28] sm:$0xff]
      %v300 = vld [vmem:[%s247 + $0x30] sm:$0xff]
      %v301 = vld [vmem:[%s247 + $0x38] sm:$0xff]
      %v302 = vld [vmem:[%s247 + $0x40] sm:$0xff]
      %v303 = vld [vmem:[%s247 + $0x48] sm:$0xff]
      %v304 = vld [vmem:[%s247 + $0x50] sm:$0xff]
      %v305 = vld [vmem:[%s247 + $0x58] sm:$0xff]
      %v306 = vld [vmem:[%s247 + $0x60] sm:$0xff]
      %v307 = vld [vmem:[%s247 + $0x68] sm:$0xff]
      %v308 = vld [vmem:[%s247 + $0x70] sm:$0xff]
      %v309 = vld [vmem:[%s247 + $0x78] sm:$0xff]
      %v310 = vld [vmem:[%s247 + $0x80] sm:$0xff]
      %v311 = vld [vmem:[%s247 + $0x88] sm:$0xff]
      %v312 = vld [vmem:[%s247 + $0x90] sm:$0xff]
      %v313 = vld [vmem:[%s247 + $0x98] sm:$0xff]
      %v314 = vld [vmem:[%s247 + $0xa0] sm:$0xff]
      %v315 = vld [vmem:[%s247 + $0xa8] sm:$0xff]
      %v316 = vld [vmem:[%s247 + $0xb0] sm:$0xff]
      %v317 = vld [vmem:[%s247 + $0xb8] sm:$0xff]
      %v318 = vld [vmem:[%s247 + $0xc0] sm:$0xff]
      %v319 = vld [vmem:[%s247 + $0xc8] sm:$0xff]
      %v320 = vld [vmem:[%s247 + $0xd0] sm:$0xff]
      %v321 = vld [vmem:[%s247 + $0xd8] sm:$0xff]
      %v322 = vld [vmem:[%s247 + $0xe0] sm:$0xff]
      %v323 = vld [vmem:[%s247 + $0xe8] sm:$0xff]
      %v324 = vld [vmem:[%s247 + $0xf0] sm:$0xff]
      %v325 = vld [vmem:[%s247 + $0xf8] sm:$0xff]
      %v326 = vld [vmem:[%s247 + $0x100] sm:$0xff]
      %v327 = vld [vmem:[%s247 + $0x108] sm:$0xff]
      %v328 = vld [vmem:[%s247 + $0x110] sm:$0xff]
      %v329 = vld [vmem:[%s247 + $0x118] sm:$0xff]
      %v330 = vld [vmem:[%s247 + $0x120] sm:$0xff]
      %v331 = vld [vmem:[%s247 + $0x128] sm:$0xff]
      %v332 = vld [vmem:[%s247 + $0x130] sm:$0xff]
      %v333 = vld [vmem:[%s247 + $0x138] sm:$0xff]
      %v334 = vld [vmem:[%s247 + $0x140] sm:$0xff]
      %v335 = vld [vmem:[%s247 + $0x148] sm:$0xff]
      %v336 = vld [vmem:[%s247 + $0x150] sm:$0xff]
      %v337 = vld [vmem:[%s247 + $0x158] sm:$0xff]
      %v338 = vld [vmem:[%s247 + $0x160] sm:$0xff]
      %v339 = vld [vmem:[%s247 + $0x168] sm:$0xff]
      %v340 = vld [vmem:[%s247 + $0x170] sm:$0xff]
      %v341 = vld [vmem:[%s247 + $0x178] sm:$0xff]
      %v342 = vld [vmem:[%s247 + $0x180] sm:$0xff]
      %v343 = vld [vmem:[%s247 + $0x188] sm:$0xff]
      %v344 = vld [vmem:[%s247 + $0x190] sm:$0xff]
      %v345 = vld [vmem:[%s247 + $0x198] sm:$0xff]
      %v346 = vld [vmem:[%s247 + $0x1a0] sm:$0xff]
      %v347 = vld [vmem:[%s247 + $0x1a8] sm:$0xff]
      %v348 = vld [vmem:[%s247 + $0x1b0] sm:$0xff]
      %v349 = vld [vmem:[%s247 + $0x1b8] sm:$0xff]
      %v350 = vld [vmem:[%s247 + $0x1c0] sm:$0xff]
      %v351 = vld [vmem:[%s247 + $0x1c8] sm:$0xff]
      %v352 = vld [vmem:[%s247 + $0x1d0] sm:$0xff]
      %v353 = vld [vmem:[%s247 + $0x1d8] sm:$0xff]
      %v354 = vld [vmem:[%s247 + $0x1e0] sm:$0xff]
      %v355 = vld [vmem:[%s247 + $0x1e8] sm:$0xff]
      %v356 = vld [vmem:[%s247 + $0x1f0] sm:$0xff]
      %v357 = vld [vmem:[%s247 + $0x1f8] sm:$0xff]
      %v358 = vpack.c.bf16 %v295, %v294
      %v359 = vpack.c.bf16 %v297, %v296
      %v360 = vpack.c.bf16 %v299, %v298
      %v361 = vpack.c.bf16 %v301, %v300
      %v362 = vpack.c.bf16 %v303, %v302
      %v363 = vpack.c.bf16 %v305, %v304
      %v364 = vpack.c.bf16 %v307, %v306
      %v365 = vpack.c.bf16 %v309, %v308
      %v366 = vpack.c.bf16 %v311, %v310
      %v367 = vpack.c.bf16 %v313, %v312
      %v368 = vpack.c.bf16 %v315, %v314
      %v369 = vpack.c.bf16 %v317, %v316
      %v370 = vpack.c.bf16 %v319, %v318
      %v371 = vpack.c.bf16 %v321, %v320
      %v372 = vpack.c.bf16 %v323, %v322
      %v373 = vpack.c.bf16 %v325, %v324
      %v374 = vpack.c.bf16 %v327, %v326
      %v375 = vpack.c.bf16 %v329, %v328
      %v376 = vpack.c.bf16 %v331, %v330
      %v377 = vpack.c.bf16 %v333, %v332
      %v378 = vpack.c.bf16 %v335, %v334
      %v379 = vpack.c.bf16 %v337, %v336
      %v380 = vpack.c.bf16 %v339, %v338
      %v381 = vpack.c.bf16 %v341, %v340
      %v382 = vpack.c.bf16 %v343, %v342
      %v383 = vpack.c.bf16 %v345, %v344
      %v384 = vpack.c.bf16 %v347, %v346
      %v385 = vpack.c.bf16 %v349, %v348
      %v386 = vpack.c.bf16 %v351, %v350
      %v387 = vpack.c.bf16 %v353, %v352
      %v388 = vpack.c.bf16 %v355, %v354
      %v389 = vpack.c.bf16 %v357, %v356
      %390 = vmatprep.subr.bf16.mxu0 0
      %391 = vmatpush1.bf16.msra.mxu0 %v358
      %392 = vmatprep.subr.bf16.mxu0 0
      %393 = vmatpush1.bf16.msra.mxu0 %v359
      %394 = vmatprep.subr.bf16.mxu0 0
      %395 = vmatpush1.bf16.msra.mxu0 %v360
      %396 = vmatprep.subr.bf16.mxu0 0
      %397 = vmatpush1.bf16.msra.mxu0 %v361
      %398 = vmatprep.subr.bf16.mxu0 0
      %399 = vmatpush1.bf16.msra.mxu0 %v362
      %400 = vmatprep.subr.bf16.mxu0 0
      %401 = vmatpush1.bf16.msra.mxu0 %v363
      %402 = vmatprep.subr.bf16.mxu0 0
      %403 = vmatpush1.bf16.msra.mxu0 %v364
      %404 = vmatprep.subr.bf16.mxu0 0
      %405 = vmatpush1.bf16.msra.mxu0 %v365
      %406 = vmatprep.subr.bf16.mxu0 0
      %407 = vmatpush1.bf16.msra.mxu0 %v366
      %408 = vmatprep.subr.bf16.mxu0 0
      %409 = vmatpush1.bf16.msra.mxu0 %v367
      %410 = vmatprep.subr.bf16.mxu0 0
      %411 = vmatpush1.bf16.msra.mxu0 %v368
      %412 = vmatprep.subr.bf16.mxu0 0
      %413 = vmatpush1.bf16.msra.mxu0 %v369
      %414 = vmatprep.subr.bf16.mxu0 0
      %415 = vmatpush1.bf16.msra.mxu0 %v370
      %416 = vmatprep.subr.bf16.mxu0 0
      %417 = vmatpush1.bf16.msra.mxu0 %v371
      %418 = vmatprep.subr.bf16.mxu0 0
      %419 = vmatpush1.bf16.msra.mxu0 %v372
      %420 = vmatprep.subr.bf16.mxu0 0
      %421 = vmatpush1.bf16.msra.mxu0 %v373
      %422 = vmatprep.mubr.bf16.mxu0 %v291
      %423 = vmatmul.mubr.bf16.gmra.mrb[0].mxu0 %v290
      %v424 = vpop.f32.mrb[0].mxu0
      %v425 = vadd.f32 0.0, %v424
      %v426 = vpop.f32.mrb[0].mxu0
      %v427 = vpop.f32.mrb[0].mxu0
      %v428 = vpop.f32.mrb[0].mxu0
      %429 = vdwg.mxu0
      %430 = vmatprep.subr.bf16.mxu0 0
      %431 = vmatpush1.bf16.msra.mxu0 %v374
      %432 = vmatprep.subr.bf16.mxu0 0
      %433 = vmatpush1.bf16.msra.mxu0 %v375
      %434 = vmatprep.subr.bf16.mxu0 0
      %435 = vmatpush1.bf16.msra.mxu0 %v376
      %436 = vmatprep.subr.bf16.mxu0 0
      %437 = vmatpush1.bf16.msra.mxu0 %v377
      %438 = vmatprep.subr.bf16.mxu0 0
      %439 = vmatpush1.bf16.msra.mxu0 %v378
      %440 = vmatprep.subr.bf16.mxu0 0
      %441 = vmatpush1.bf16.msra.mxu0 %v379
      %442 = vmatprep.subr.bf16.mxu0 0
      %443 = vmatpush1.bf16.msra.mxu0 %v380
      %444 = vmatprep.subr.bf16.mxu0 0
      %445 = vmatpush1.bf16.msra.mxu0 %v381
      %446 = vmatprep.subr.bf16.mxu0 0
      %447 = vmatpush1.bf16.msra.mxu0 %v382
      %448 = vmatprep.subr.bf16.mxu0 0
      %449 = vmatpush1.bf16.msra.mxu0 %v383
      %450 = vmatprep.subr.bf16.mxu0 0
      %451 = vmatpush1.bf16.msra.mxu0 %v384
      %452 = vmatprep.subr.bf16.mxu0 0
      %453 = vmatpush1.bf16.msra.mxu0 %v385
      %454 = vmatprep.subr.bf16.mxu0 0
      %455 = vmatpush1.bf16.msra.mxu0 %v386
      %456 = vmatprep.subr.bf16.mxu0 0
      %457 = vmatpush1.bf16.msra.mxu0 %v387
      %458 = vmatprep.subr.bf16.mxu0 0
      %459 = vmatpush1.bf16.msra.mxu0 %v388
      %460 = vmatprep.subr.bf16.mxu0 0
      %461 = vmatpush1.bf16.msra.mxu0 %v389
      %462 = vmatprep.mubr.bf16.mxu0 %v293
      %463 = vmatmul.mubr.bf16.gmra.mrb[0].mxu0 %v292
      %v464 = vpop.f32.mrb[0].mxu0
      %v465 = vadd.f32 %v425, %v464
      %v466 = vpop.f32.mrb[0].mxu0
      %v467 = vpop.f32.mrb[0].mxu0
      %v468 = vpop.f32.mrb[0].mxu0
      %469 = vdwg.mxu0
      %v470 = vadd.f32 %v266, %v465
      %vm471 = vcmask 123904
      %472 = vst.msk [vmem:[#allocation2] sm:$0x3] %vm471, %v470
      %p473 = scmp.eq.s32.totalorder %s21, 1
      // Predicated region
      $region37: #{_lambda_.15} parent=31 // pred_check
        %p474 = pneg %p473
      $region38: #{_lambda_.15} parent=31 // pred_check_branch
        %476 = sbr.rel (%p474) target = $region40
      $region39: #{_lambda_.15} parent=31 // pred_region
        %v477 = vld [vmem:[#allocation2] sm:$0x3]
        %v478 = vld [vmem:[%s251] sm:$0x1]
        %v480 = vlaneseq
        %v481 = vshrl.u32 %v480, 7
        %v482 = vsub.s32 0, %v481
        %v483 = vrot.slane %v478, %v482
        %v485 = vadd.f32 %v477, %v483
        %486 = vst.msk [vmem:[%s258] sm:$0x3] %vm471, %v485
      $region40: #{_lambda_.15} parent=31 // pred_fallthru
        _
      %p487 = scmp.lt.s32.totalorder %s19, 0
      %s488 = scalar_select %p487, %s19, 0
      %p489 = scmp.lt.s32.totalorder %s20, 0
      %s490 = scalar_select %p489, %s20, 0
      %s491 = sadd.s32 %s490, %s488
      %s492 = smul.addr %s491, 2
      %s493 = scalar_lea.vmem %s3, %s492
      // Predicated region
      $region41: #{_lambda_.15} parent=31 // pred_check
        %p494 = pneg %p135
      $region42: #{_lambda_.15} parent=31 // pred_check_branch
        %496 = sbr.rel (%p494) target = $region44
      $region43: #{_lambda_.15} parent=31 // pred_region
        _
      $region44: #{_lambda_.15} parent=31 // pred_fallthru
        _
      // Predicated region
      $region45: #{_lambda_.15} parent=31 // pred_check
        %p497 = pneg %p135
      $region46: #{_lambda_.15} parent=31 // pred_check_branch
        %499 = sbr.rel (%p497) target = $region48
      $region47: #{_lambda_.15} parent=31 // pred_region
        %p500 = scmp.lt.s32.totalorder %s19, 0
        %s501 = scalar_select %p500, %s19, 0
        %p502 = scmp.lt.s32.totalorder %s20, 0
        %s503 = scalar_select %p502, %s20, 0
        %s504 = sadd.s32 %s503, %s501
        %s505 = smul.addr %s504, 2
        %s506 = scalar_lea.vmem %s3, %s505
      $region48: #{_lambda_.15} parent=31 // pred_fallthru
        _
    $region32: #{_lambda_.15} parent=5 // pred_fallthru
      _
    %p507 = scmp.le.s32.totalorder 2, %s9
    // Predicated region
    $region49: #{_lambda_.15} parent=5 // pred_check
      %p508 = pneg %p507
    $region50: #{_lambda_.15} parent=5 // pred_check_branch
      %510 = sbr.rel (%p508) target = $region52
    $region51: #{_lambda_.15} parent=5 // pred_region
      %s511 = ssub.s32 %s9, 2
    $region52: #{_lambda_.15} parent=5 // pred_fallthru
      _
  $region6: #{_lambda_.15} parent=0 // loop_footer
    %s13 = sadd.s32 1, %s9
  $region7: #{_lambda_.15} parent=0 // loop_footer_branch
    %8 = sbr.rel target = $region3
  $region8: #{_lambda_.15} parent=0 // loop_exit
    _

// kernel: _lambda_.16
$region0: #{_lambda_.16}
  #allocation0 [shape = 'u32[]', space=smem, size = 0x4, offset = 0x4, fixed_abs, tag = 'smem constant byte address 0x4 - core index']
  #allocation1 [shape = 'u32[144,128]{1,0:T(1,128)}', space=vmem, size = 0x12000, scoped, tag = 'internal scratch']
  %s0 = inlined_call_operand.vmem [shape: f32[2,16], index: 0, kind: input, shape index: {}]
  %s1 = inlined_call_operand.vmem [shape: f32[8,16], index: 1, kind: input, shape index: {}]
  %s2 = inlined_call_operand.vmem [shape: f32[2,16], index: 2, kind: output, shape index: {0}]
  %s3 = inlined_call_operand.hbm [shape: s32[2,128], index: 3, kind: output, shape index: {1}]
  %4 = xla_tuple %s2, %s3
  %s5 = sld [smem:[#allocation0]]
  $region26: #{_lambda_.16} parent=0
    _
  %s7 = ssub.s32 1, %s5
  %s8 = scalar_select 0, %s7, %s5
  $region1: #{_lambda_.16} parent=0
    #allocation2 [shape = 'u8[1024]{0}', space=vmem, size = 0x400, scoped, tag = 'output window, operand 1, single buffered']
    #allocation3 [shape = 's32[1]{0}', space=sflag, size = 0x4, scoped, tag = 'scoped memory for _lambda_.16']
    %9 = vsyncpa [#allocation3], 0
    // Predicated region
    $region2: #{_lambda_.16} parent=1 // pred_check
      _
    $region3: #{_lambda_.16} parent=1 // pred_check_branch
      %11 = sbr.rel (0) target = $region5
    $region4: #{_lambda_.16} parent=1 // pred_region
      _
    $region5: #{_lambda_.16} parent=1 // pred_fallthru
      _
    // Predicated region
    $region6: #{_lambda_.16} parent=1 // pred_check
      _
    $region7: #{_lambda_.16} parent=1 // pred_check_branch
      %13 = sbr.rel (0) target = $region9
    $region8: #{_lambda_.16} parent=1 // pred_region
      _
    $region9: #{_lambda_.16} parent=1 // pred_fallthru
      _
    %v14 = vld [vmem:[%s0] sm:$0x3]
    %v15 = vld [vmem:[%s1] sm:$0xff]
    %vm16 = vcmask 130048
    %v18 = vsel %vm16, %v14, 0
    %v21 = vsel %vm16, %v15, 0
    %23 = vmatprep.subr.mxu0 0.0
    %24 = vmatpush1.xpose.msra.mxu0 %v21
    %25 = vmatprep.subr.mxu0 0.0
    %26 = vmatpush1.xpose.msra.mxu0 0.0
    %27 = vmatprep.subr.mxu0 0.0
    %28 = vmatpush1.xpose.msra.mxu0 0.0
    %29 = vmatprep.subr.mxu0 0.0
    %30 = vmatpush1.xpose.msra.mxu0 0.0
    %31 = vmatprep.subr.mxu0 0.0
    %32 = vmatpush1.xpose.msra.mxu0 0.0
    %33 = vmatprep.subr.mxu0 0.0
    %34 = vmatpush1.xpose.msra.mxu0 0.0
    %35 = vmatprep.subr.mxu0 0.0
    %36 = vmatpush1.xpose.msra.mxu0 0.0
    %37 = vmatprep.subr.mxu0 0.0
    %38 = vmatpush1.xpose.msra.mxu0 0.0
    %39 = vmatprep.subr.mxu0 0.0
    %40 = vmatpush1.xpose.msra.mxu0 0.0
    %41 = vmatprep.subr.mxu0 0.0
    %42 = vmatpush1.xpose.msra.mxu0 0.0
    %43 = vmatprep.subr.mxu0 0.0
    %44 = vmatpush1.xpose.msra.mxu0 0.0
    %45 = vmatprep.subr.mxu0 0.0
    %46 = vmatpush1.xpose.msra.mxu0 0.0
    %47 = vmatprep.subr.mxu0 0.0
    %48 = vmatpush1.xpose.msra.mxu0 0.0
    %49 = vmatprep.subr.mxu0 0.0
    %50 = vmatpush1.xpose.msra.mxu0 0.0
    %51 = vmatprep.subr.mxu0 0.0
    %52 = vmatpush1.xpose.msra.mxu0 0.0
    %53 = vmatprep.subr.mxu0 0.0
    %54 = vmatpush1.xpose.msra.mxu0 0.0
    %55 = vmatprep.subr.mxu0 0.0
    %56 = vmatpush1.xpose.msra.mxu0 0.0
    %57 = vmatprep.subr.mxu0 0.0
    %58 = vmatpush1.xpose.msra.mxu0 0.0
    %59 = vmatprep.subr.mxu0 0.0
    %60 = vmatpush1.xpose.msra.mxu0 0.0
    %61 = vmatprep.subr.mxu0 0.0
    %62 = vmatpush1.xpose.msra.mxu0 0.0
    %63 = vmatprep.subr.mxu0 0.0
    %64 = vmatpush1.xpose.msra.mxu0 0.0
    %65 = vmatprep.subr.mxu0 0.0
    %66 = vmatpush1.xpose.msra.mxu0 0.0
    %67 = vmatprep.subr.mxu0 0.0
    %68 = vmatpush1.xpose.msra.mxu0 0.0
    %69 = vmatprep.subr.mxu0 0.0
    %70 = vmatpush1.xpose.msra.mxu0 0.0
    %71 = vmatprep.subr.mxu0 0.0
    %72 = vmatpush1.xpose.msra.mxu0 0.0
    %73 = vmatprep.subr.mxu0 0.0
    %74 = vmatpush1.xpose.msra.mxu0 0.0
    %75 = vmatprep.subr.mxu0 0.0
    %76 = vmatpush1.xpose.msra.mxu0 0.0
    %77 = vmatprep.subr.mxu0 0.0
    %78 = vmatpush1.xpose.msra.mxu0 0.0
    %79 = vmatprep.subr.mxu0 0.0
    %80 = vmatpush1.xpose.msra.mxu0 0.0
    %81 = vmatprep.subr.mxu0 0.0
    %82 = vmatpush1.xpose.msra.mxu0 0.0
    %83 = vmatprep.subr.mxu0 0.0
    %84 = vmatpush1.xpose.msra.mxu0 0.0
    %85 = vmatprep.subr.mxu0 0.0
    %86 = vmatpush1.xpose.msra.mxu0 0.0
    %87 = vmatprep.mubr.f32.mxu0 0.0
    %88 = vmatmul.mubr.f32.gmra.mrb[0].mxu0 %v18
    %v89 = vpop.f32.mrb[0].mxu0
    %v90 = vadd.f32 0.0, %v89
    %v91 = vpop.f32.mrb[0].mxu0
    %92 = vdwg.mxu0
    %v93 = vmul.f32 %v14, %v14
    %vm94 = vcmask 123904
    %v95 = vsel %vm94, %v93, 0.0
    %96 = vadd.xlane.f32.xlu0 %v95
    %v97 = vpop.xlane.xlu0 %96
    %v98 = vmul.f32 %v90, 2.0
    %v99 = vsub.f32 %v97, %v98
    %v100 = vmul.f32 %v15, %v15
    %v101 = vsel %vm16, %v100, 0.0
    %102 = vadd.xlane.f32.xlu0 %v101
    %v103 = vpop.xlane.xlu0 %102
    %v105 = vlaneseq
    %v106 = vand.u32 %v105, 127
    %v107 = vlaneseq
    %v108 = vshrl.u32 %v107, 7
    %v109 = vsub.s32 %v106, %v108
    %v110 = vrot.slane %v103, %v109
    %v112 = vadd.f32 %v99, %v110
    %vm113 = vcmask 58368
    %v114 = vsel %vm113, %v112, inf
    %115 = vmin.xlane.f32.xlu0 %v114
    %v116 = vpop.xlane.xlu0 %115
    %vm117 = vcmp.le.f32.partialorder %v112, %v116
    %v118 = vsel %vm117, %v106, 8
    %v119 = vsel %vm113, %v118, 2147483647
    %v120 = vand.u32 %v119, 65535
    %v121 = vshra.s32 %v119, 16
    %v122 = vcvt.s32.f32 %v120
    %v123 = vcvt.s32.f32 %v121
    %124 = vmin.xlane.f32.xlu0 %v123
    %v125 = vpop.xlane.xlu0 %124
    %vm126 = vcmp.eq.f32.partialorder %v123, %v125
    %v127 = vsel %vm126, %v122, inf
    %128 = vmin.xlane.f32.xlu0 %v127
    %v129 = vpop.xlane.xlu0 %128
    %v130 = vcvt.f32.s32 %v129
    %v131 = vcvt.f32.s32 %v125
    %v132 = vshll.u32 %v131, 16
    %v133 = vadd.s32 %v132, %v130
    %v134 = vlaneseq
    %v135 = vshrl.u32 %v134, 7
    %s136 = vtos %v133
    %v137 = vstv %s136
    %vm138 = vcmp.eq.s32.totalorder %v135, %v137
    %v139 = vsel %vm138, 1, 0
    %v140 = vcvt.s32.f32 %v139
    %v141 = vmul.f32 %v140, %v15
    %v142 = vsel %vm16, %v141, 0.0
    %v143 = vrot.slane %v142, 4
    %v144 = vadd.f32 %v142, %v143
    %v145 = vrot.slane %v144, 2
    %v146 = vadd.f32 %v144, %v145
    %v147 = vrot.slane %v146, 1
    %v148 = vadd.f32 %v146, %v147
    %v149 = vrot.slane %v133, 1
    %s150 = vtos %v149
    %v151 = vstv %s150
    %vm152 = vcmp.eq.s32.totalorder %v135, %v151
    %v153 = vsel %vm152, 1, 0
    %v154 = vcvt.s32.f32 %v153
    %v155 = vmul.f32 %v154, %v15
    %v156 = vsel %vm16, %v155, 0.0
    %v157 = vrot.slane %v156, 4
    %v158 = vadd.f32 %v156, %v157
    %v159 = vrot.slane %v158, 2
    %v160 = vadd.f32 %v158, %v159
    %v161 = vrot.slane %v160, 1
    %v162 = vadd.f32 %v160, %v161
    %vm163 = vcmask 1040384
    %v164 = vsel %vm163, %v148, %v162
    %165 = vst.msk [vmem:[%s2] sm:$0x3] %vm94, %v164
    %166 = vst [vmem:[#allocation2] sm:$0x3] %v133
    // Predicated region
    $region10: #{_lambda_.16} parent=1 // pred_check
      _
    $region11: #{_lambda_.16} parent=1 // pred_check_branch
      %168 = sbr.rel (0) target = $region13
    $region12: #{_lambda_.16} parent=1 // pred_region
      _
    $region13: #{_lambda_.16} parent=1 // pred_fallthru
      _
    // Predicated region
    $region14: #{_lambda_.16} parent=1 // pred_check
      _
    $region15: #{_lambda_.16} parent=1 // pred_check_branch
      %170 = sbr.rel (0) target = $region17
    $region16: #{_lambda_.16} parent=1 // pred_region
      %s172 = ssub.s32 32, 32
      %173 = vsyncadd [#allocation3], %s172
      %s175 = sshll.u32 [#allocation2], 4
      %s176 = int_to_ptr.vmem [resolvable:$true] %s175
      %178 = dma.vmem_to_hbm [thread:$0]  %s176, 32, %s3, [#allocation3]
    $region17: #{_lambda_.16} parent=1 // pred_fallthru
      _
    // Predicated region
    $region18: #{_lambda_.16} parent=1 // pred_check
      _
    $region19: #{_lambda_.16} parent=1 // pred_check_branch
      %180 = sbr.rel (0) target = $region21
    $region20: #{_lambda_.16} parent=1 // pred_region
      _
    $region21: #{_lambda_.16} parent=1 // pred_fallthru
      _
    // Predicated region
    $region22: #{_lambda_.16} parent=1 // pred_check
      _
    $region23: #{_lambda_.16} parent=1 // pred_check_branch
      %182 = sbr.rel (0) target = $region25
    $region24: #{_lambda_.16} parent=1 // pred_region
      %183 = dma.done [#allocation3], 32
    $region25: #{_lambda_.16} parent=1 // pred_fallthru
      _
    %184 = vsyncpa [#allocation3], 1

// kernel: _lambda_.17
$region0: #{_lambda_.17}
  #allocation0 [shape = 'u32[]', space=smem, size = 0x4, offset = 0x4, fixed_abs, tag = 'smem constant byte address 0x4 - core index']
  #allocation1 [shape = 'u32[144,128]{1,0:T(1,128)}', space=vmem, size = 0x12000, scoped, tag = 'internal scratch']
  #allocation2 [shape = 'f32[2,512]{1,0:T(2,128)}', space=vmem, size = 0x1000, scoped, tag = 'scratch operand']
  %s0 = inlined_call_operand.vmem [shape: f32[2,16], index: 0, kind: input, shape index: {}]
  %s1 = inlined_call_operand.vmem [shape: f32[16,512], index: 1, kind: input, shape index: {}]
  %s2 = inlined_call_operand.vmem [shape: f32[1,512], index: 2, kind: input, shape index: {}]
  %s3 = inlined_call_operand.vmem [shape: f32[2,512], index: 3, kind: output, shape index: {}]
  %s4 = sld [smem:[#allocation0]]
  $region30: #{_lambda_.17} parent=0
    _
  %s6 = ssub.s32 1, %s4
  %s7 = scalar_select 0, %s6, %s4
  // Predicated region
  $region2: #{_lambda_.17} parent=0 // pred_check
    _
  $region3: #{_lambda_.17} parent=0 // pred_check_branch
    %9 = sbr.rel (0) target = $region5
  $region4: #{_lambda_.17} parent=0 // pred_region
    _
  $region5: #{_lambda_.17} parent=0 // pred_fallthru
    _
  // Predicated region
  $region6: #{_lambda_.17} parent=0 // pred_check
    _
  $region7: #{_lambda_.17} parent=0 // pred_check_branch
    %11 = sbr.rel (0) target = $region9
  $region8: #{_lambda_.17} parent=0 // pred_region
    _
  $region9: #{_lambda_.17} parent=0 // pred_fallthru
    _
  // Predicated region
  $region10: #{_lambda_.17} parent=0 // pred_check
    _
  $region11: #{_lambda_.17} parent=0 // pred_check_branch
    %13 = sbr.rel (0) target = $region13
  $region12: #{_lambda_.17} parent=0 // pred_region
    _
  $region13: #{_lambda_.17} parent=0 // pred_fallthru
    _
  %p15 = scmp.eq.s32.totalorder 0, 0
  // Predicated region
  $region14: #{_lambda_.17} parent=0 // pred_check
    %p16 = pneg %p15
  $region15: #{_lambda_.17} parent=0 // pred_check_branch
    %18 = sbr.rel (%p16) target = $region17
  $region16: #{_lambda_.17} parent=0 // pred_region
    %19 = vst [vmem:[#allocation2] sm:$0xff] 0.0
  $region17: #{_lambda_.17} parent=0 // pred_fallthru
    _
  %v20 = vld [vmem:[#allocation2] sm:$0xff]
  %v21 = vld [vmem:[%s0] sm:$0x3]
  %v22 = vpack.c.bf16 %v21, %v21
  %v23 = vld [vmem:[%s1] sm:$0xff]
  %v24 = vld [vmem:[%s1 + $0x8] sm:$0xff]
  %v25 = vld [vmem:[%s1 + $0x10] sm:$0xff]
  %v26 = vld [vmem:[%s1 + $0x18] sm:$0xff]
  %v27 = vld [vmem:[%s1 + $0x20] sm:$0xff]
  %v28 = vld [vmem:[%s1 + $0x28] sm:$0xff]
  %v29 = vld [vmem:[%s1 + $0x30] sm:$0xff]
  %v30 = vld [vmem:[%s1 + $0x38] sm:$0xff]
  %v31 = vpack.c.bf16 %v27, %v23
  %v32 = vpack.c.bf16 %v28, %v24
  %v33 = vpack.c.bf16 %v29, %v25
  %v34 = vpack.c.bf16 %v30, %v26
  %vm35 = vcmask 130048
  %v37 = vsel %vm35, %v22, 0
  %39 = vmatprep.subr.bf16.mxu0 %v32
  %40 = vmatpush1.bf16.msra.mxu0 %v31
  %41 = vmatprep.subr.bf16.mxu0 0
  %42 = vmatpush1.bf16.msra.mxu0 0
  %43 = vmatprep.subr.bf16.mxu0 0
  %44 = vmatpush1.bf16.msra.mxu0 0
  %45 = vmatprep.subr.bf16.mxu0 0
  %46 = vmatpush1.bf16.msra.mxu0 0
  %47 = vmatprep.subr.bf16.mxu0 0
  %48 = vmatpush1.bf16.msra.mxu0 0
  %49 = vmatprep.subr.bf16.mxu0 0
  %50 = vmatpush1.bf16.msra.mxu0 0
  %51 = vmatprep.subr.bf16.mxu0 0
  %52 = vmatpush1.bf16.msra.mxu0 0
  %53 = vmatprep.subr.bf16.mxu0 0
  %54 = vmatpush1.bf16.msra.mxu0 0
  %55 = vmatprep.subr.bf16.mxu0 0
  %56 = vmatpush1.bf16.msra.mxu0 0
  %57 = vmatprep.subr.bf16.mxu0 0
  %58 = vmatpush1.bf16.msra.mxu0 0
  %59 = vmatprep.subr.bf16.mxu0 0
  %60 = vmatpush1.bf16.msra.mxu0 0
  %61 = vmatprep.subr.bf16.mxu0 0
  %62 = vmatpush1.bf16.msra.mxu0 0
  %63 = vmatprep.subr.bf16.mxu0 0
  %64 = vmatpush1.bf16.msra.mxu0 0
  %65 = vmatprep.subr.bf16.mxu0 0
  %66 = vmatpush1.bf16.msra.mxu0 0
  %67 = vmatprep.subr.bf16.mxu0 0
  %68 = vmatpush1.bf16.msra.mxu0 0
  %69 = vmatprep.subr.bf16.mxu0 0
  %70 = vmatpush1.bf16.msra.mxu0 0
  %71 = vmatprep.mubr.bf16.mxu0 0
  %72 = vmatmul.mubr.bf16.gmra.mrb[0].mxu0 %v37
  %v73 = vpop.f32.mrb[0].mxu0
  %v74 = vadd.f32 0.0, %v73
  %v75 = vpop.f32.mrb[0].mxu0
  %v76 = vadd.f32 0.0, %v75
  %v77 = vpop.f32.mrb[0].mxu0
  %v78 = vpop.f32.mrb[0].mxu0
  %79 = vdwg.mxu0
  %80 = vmatprep.subr.bf16.mxu0 %v34
  %81 = vmatpush1.bf16.msra.mxu0 %v33
  %82 = vmatprep.subr.bf16.mxu0 0
  %83 = vmatpush1.bf16.msra.mxu0 0
  %84 = vmatprep.subr.bf16.mxu0 0
  %85 = vmatpush1.bf16.msra.mxu0 0
  %86 = vmatprep.subr.bf16.mxu0 0
  %87 = vmatpush1.bf16.msra.mxu0 0
  %88 = vmatprep.subr.bf16.mxu0 0
  %89 = vmatpush1.bf16.msra.mxu0 0
  %90 = vmatprep.subr.bf16.mxu0 0
  %91 = vmatpush1.bf16.msra.mxu0 0
  %92 = vmatprep.subr.bf16.mxu0 0
  %93 = vmatpush1.bf16.msra.mxu0 0
  %94 = vmatprep.subr.bf16.mxu0 0
  %95 = vmatpush1.bf16.msra.mxu0 0
  %96 = vmatprep.subr.bf16.mxu0 0
  %97 = vmatpush1.bf16.msra.mxu0 0
  %98 = vmatprep.subr.bf16.mxu0 0
  %99 = vmatpush1.bf16.msra.mxu0 0
  %100 = vmatprep.subr.bf16.mxu0 0
  %101 = vmatpush1.bf16.msra.mxu0 0
  %102 = vmatprep.subr.bf16.mxu0 0
  %103 = vmatpush1.bf16.msra.mxu0 0
  %104 = vmatprep.subr.bf16.mxu0 0
  %105 = vmatpush1.bf16.msra.mxu0 0
  %106 = vmatprep.subr.bf16.mxu0 0
  %107 = vmatpush1.bf16.msra.mxu0 0
  %108 = vmatprep.subr.bf16.mxu0 0
  %109 = vmatpush1.bf16.msra.mxu0 0
  %110 = vmatprep.subr.bf16.mxu0 0
  %111 = vmatpush1.bf16.msra.mxu0 0
  %112 = vmatprep.mubr.bf16.mxu0 0
  %113 = vmatmul.mubr.bf16.gmra.mrb[0].mxu0 %v37
  %v114 = vpop.f32.mrb[0].mxu0
  %v115 = vadd.f32 0.0, %v114
  %v116 = vpop.f32.mrb[0].mxu0
  %v117 = vadd.f32 0.0, %v116
  %v118 = vpop.f32.mrb[0].mxu0
  %v119 = vpop.f32.mrb[0].mxu0
  %120 = vdwg.mxu0
  %v125 = vcombine.low %v74, %v76
  %v126 = vcombine.low %v115, %v117
  %v128 = vunpack.c.l.s4 1983009808
  %v129 = vunpack.c.0.s8 %v128
  %v130 = vlaneseq
  %v131 = vshrl.u32 %v130, 7
  %v132 = vsub.s32 %v129, %v131
  %v133 = vrot.slane %v125, %v132
  %v135 = vunpack.c.l.s4 1983009808
  %v136 = vunpack.c.0.s8 %v135
  %v137 = vlaneseq
  %v138 = vshrl.u32 %v137, 7
  %v139 = vsub.s32 %v136, %v138
  %v140 = vrot.slane %v126, %v139
  %v141 = vcombine.low %v133, %v140
  %v143 = vadd.f32 %v20, %v141
  %144 = vst [vmem:[#allocation2] sm:$0xff] %v143
  // Predicated region
  $region18: #{_lambda_.17} parent=0 // pred_check
    %p145 = pneg %p15
  $region19: #{_lambda_.17} parent=0 // pred_check_branch
    %147 = sbr.rel (%p145) target = $region21
  $region20: #{_lambda_.17} parent=0 // pred_region
    %v148 = vld [vmem:[#allocation2] sm:$0xff]
    %v149 = vld [vmem:[%s2] sm:$0xf]
    %v151 = vlaneseq
    %v152 = vshrl.u32 %v151, 7
    %v153 = vsub.s32 0, %v152
    %v154 = vrot.slane %v149, %v153
    %v155 = vlaneseq
    %v156 = vshrl.u32 %v155, 7
    %v157 = vsub.s32 1, %v156
    %v158 = vrot.slane %v149, %v157
    %v159 = vlaneseq
    %v160 = vshrl.u32 %v159, 7
    %v161 = vsub.s32 2, %v160
    %v162 = vrot.slane %v149, %v161
    %v163 = vlaneseq
    %v164 = vshrl.u32 %v163, 7
    %v165 = vsub.s32 3, %v164
    %v166 = vrot.slane %v149, %v165
    %v167 = vcombine.low %v154, %v158
    %v168 = vcombine.low %v162, %v166
    %v170 = vunpack.c.l.s4 1983009808
    %v171 = vunpack.c.0.s8 %v170
    %v172 = vlaneseq
    %v173 = vshrl.u32 %v172, 7
    %v174 = vsub.s32 %v171, %v173
    %v175 = vrot.slane %v167, %v174
    %v177 = vunpack.c.l.s4 1983009808
    %v178 = vunpack.c.0.s8 %v177
    %v179 = vlaneseq
    %v180 = vshrl.u32 %v179, 7
    %v181 = vsub.s32 %v178, %v180
    %v182 = vrot.slane %v168, %v181
    %v183 = vcombine.low %v175, %v182
    %v185 = vadd.f32 %v148, %v183
    %186 = vst [vmem:[%s3] sm:$0xff] %v185
  $region21: #{_lambda_.17} parent=0 // pred_fallthru
    _
  // Predicated region
  $region22: #{_lambda_.17} parent=0 // pred_check
    _
  $region23: #{_lambda_.17} parent=0 // pred_check_branch
    %188 = sbr.rel (0) target = $region25
  $region24: #{_lambda_.17} parent=0 // pred_region
    _
  $region25: #{_lambda_.17} parent=0 // pred_fallthru
    _
  // Predicated region
  $region26: #{_lambda_.17} parent=0 // pred_check
    _
  $region27: #{_lambda_.17} parent=0 // pred_check_branch
    %190 = sbr.rel (0) target = $region29
  $region28: #{_lambda_.17} parent=0 // pred_region
    _
  $region29: #{_lambda_.17} parent=0 // pred_fallthru
    _

// kernel: _lambda_.19
$region0: #{_lambda_.19}
  #allocation0 [shape = 'u32[]', space=smem, size = 0x4, offset = 0x4, fixed_abs, tag = 'smem constant byte address 0x4 - core index']
  #allocation1 [shape = 'u32[144,128]{1,0:T(1,128)}', space=vmem, size = 0x12000, scoped, tag = 'internal scratch']
  %s0 = inlined_call_operand.vmem [shape: f32[32,32], index: 0, kind: input, shape index: {}]
  %s1 = inlined_call_operand.vmem [shape: f32[1,32], index: 1, kind: input, shape index: {}]
  %s2 = inlined_call_operand.vmem [shape: f32[1,32], index: 2, kind: input, shape index: {}]
  %s3 = inlined_call_operand.vmem [shape: f32[32,48], index: 3, kind: input, shape index: {}]
  %s4 = inlined_call_operand.vmem [shape: f32[1,48], index: 4, kind: input, shape index: {}]
  %s5 = inlined_call_operand.vmem [shape: f32[32,48], index: 5, kind: output, shape index: {}]
  %s6 = sld [smem:[#allocation0]]
  $region30: #{_lambda_.19} parent=0
    _
  %s8 = ssub.s32 1, %s6
  %s9 = scalar_select 0, %s8, %s6
  // Predicated region
  $region2: #{_lambda_.19} parent=0 // pred_check
    _
  $region3: #{_lambda_.19} parent=0 // pred_check_branch
    %11 = sbr.rel (0) target = $region5
  $region4: #{_lambda_.19} parent=0 // pred_region
    _
  $region5: #{_lambda_.19} parent=0 // pred_fallthru
    _
  // Predicated region
  $region6: #{_lambda_.19} parent=0 // pred_check
    _
  $region7: #{_lambda_.19} parent=0 // pred_check_branch
    %13 = sbr.rel (0) target = $region9
  $region8: #{_lambda_.19} parent=0 // pred_region
    _
  $region9: #{_lambda_.19} parent=0 // pred_fallthru
    _
  // Predicated region
  $region10: #{_lambda_.19} parent=0 // pred_check
    _
  $region11: #{_lambda_.19} parent=0 // pred_check_branch
    %15 = sbr.rel (0) target = $region13
  $region12: #{_lambda_.19} parent=0 // pred_region
    _
  $region13: #{_lambda_.19} parent=0 // pred_fallthru
    _
  // Predicated region
  $region14: #{_lambda_.19} parent=0 // pred_check
    _
  $region15: #{_lambda_.19} parent=0 // pred_check_branch
    %17 = sbr.rel (0) target = $region17
  $region16: #{_lambda_.19} parent=0 // pred_region
    _
  $region17: #{_lambda_.19} parent=0 // pred_fallthru
    _
  // Predicated region
  $region18: #{_lambda_.19} parent=0 // pred_check
    _
  $region19: #{_lambda_.19} parent=0 // pred_check_branch
    %19 = sbr.rel (0) target = $region21
  $region20: #{_lambda_.19} parent=0 // pred_region
    _
  $region21: #{_lambda_.19} parent=0 // pred_fallthru
    _
  %v21 = vld [vmem:[%s0] sm:$0xff]
  %v22 = vld [vmem:[%s0 + $0x8] sm:$0xff]
  %v23 = vld [vmem:[%s0 + $0x10] sm:$0xff]
  %v24 = vld [vmem:[%s0 + $0x18] sm:$0xff]
  %v25 = vld [vmem:[%s1] sm:$0x1]
  %v26 = vld [vmem:[%s2] sm:$0x1]
  %vm27 = vcmask 261120
  %v28 = vsel %vm27, %v21, 0.0
  %29 = vadd.xlane.f32.xlu0 %v28
  %v30 = vpop.xlane.xlu0 %29
  %v31 = vsel %vm27, %v22, 0.0
  %32 = vadd.xlane.f32.xlu0 %v31
  %v33 = vpop.xlane.xlu0 %32
  %v34 = vsel %vm27, %v23, 0.0
  %35 = vadd.xlane.f32.xlu0 %v34
  %v36 = vpop.xlane.xlu0 %35
  %v37 = vsel %vm27, %v24, 0.0
  %38 = vadd.xlane.f32.xlu0 %v37
  %v39 = vpop.xlane.xlu0 %38
  %v40 = vrcp.pop 32.0
  %v41 = vmul.f32 %v30, %v40
  %v42 = vmul.f32 %v33, %v40
  %v43 = vmul.f32 %v36, %v40
  %v44 = vmul.f32 %v39, %v40
  %v45 = vsub.f32 %v21, %v41
  %v46 = vsub.f32 %v22, %v42
  %v47 = vsub.f32 %v23, %v43
  %v48 = vsub.f32 %v24, %v44
  %v49 = vmul.f32 %v45, %v45
  %v50 = vmul.f32 %v46, %v46
  %v51 = vmul.f32 %v47, %v47
  %v52 = vmul.f32 %v48, %v48
  %v53 = vsel %vm27, %v49, 0.0
  %54 = vadd.xlane.f32.xlu0 %v53
  %v55 = vpop.xlane.xlu0 %54
  %v56 = vsel %vm27, %v50, 0.0
  %57 = vadd.xlane.f32.xlu0 %v56
  %v58 = vpop.xlane.xlu0 %57
  %v59 = vsel %vm27, %v51, 0.0
  %60 = vadd.xlane.f32.xlu0 %v59
  %v61 = vpop.xlane.xlu0 %60
  %v62 = vsel %vm27, %v52, 0.0
  %63 = vadd.xlane.f32.xlu0 %v62
  %v64 = vpop.xlane.xlu0 %63
  %v65 = vmul.f32 %v55, %v40
  %v66 = vmul.f32 %v58, %v40
  %v67 = vmul.f32 %v61, %v40
  %v68 = vmul.f32 %v64, %v40
  %v69 = vadd.f32 %v65, 1e-05
  %v70 = vadd.f32 %v66, 1e-05
  %v71 = vadd.f32 %v67, 1e-05
  %v72 = vadd.f32 %v68, 1e-05
  %v73 = vrsqrt.pop %v69
  %v74 = vrsqrt.pop %v70
  %v75 = vrsqrt.pop %v71
  %v76 = vrsqrt.pop %v72
  %v77 = vmul.f32 %v45, %v73
  %v78 = vmul.f32 %v46, %v74
  %v79 = vmul.f32 %v47, %v75
  %v80 = vmul.f32 %v48, %v76
  %v82 = vlaneseq
  %v83 = vshrl.u32 %v82, 7
  %v84 = vsub.s32 0, %v83
  %v85 = vrot.slane %v25, %v84
  %v87 = vmul.f32 %v77, %v85
  %v88 = vmul.f32 %v78, %v85
  %v89 = vmul.f32 %v79, %v85
  %v90 = vmul.f32 %v80, %v85
  %v92 = vlaneseq
  %v93 = vshrl.u32 %v92, 7
  %v94 = vsub.s32 0, %v93
  %v95 = vrot.slane %v26, %v94
  %v97 = vadd.f32 %v87, %v95
  %v98 = vadd.f32 %v88, %v95
  %v99 = vadd.f32 %v89, %v95
  %v100 = vadd.f32 %v90, %v95
  %v101 = vpack.c.bf16 %v98, %v97
  %v102 = vpack.c.bf16 %v100, %v99
  %v103 = vld [vmem:[%s3] sm:$0xff]
  %v104 = vld [vmem:[%s3 + $0x8] sm:$0xff]
  %v105 = vld [vmem:[%s3 + $0x10] sm:$0xff]
  %v106 = vld [vmem:[%s3 + $0x18] sm:$0xff]
  %v107 = vpack.c.bf16 %v104, %v103
  %v108 = vpack.c.bf16 %v106, %v105
  %v109 = vld [vmem:[%s4] sm:$0x1]
  %v111 = vlaneseq
  %v112 = vshrl.u32 %v111, 7
  %v113 = vsub.s32 0, %v112
  %v114 = vrot.slane %v109, %v113
  %v117 = vsel %vm27, %v101, 0
  %v120 = vsel %vm27, %v102, 0
  %122 = vmatprep.subr.bf16.mxu0 0
  %123 = vmatpush1.bf16.msra.mxu0 %v107
  %124 = vmatprep.subr.bf16.mxu0 0
  %125 = vmatpush1.bf16.msra.mxu0 %v108
  %126 = vmatprep.subr.bf16.mxu0 0
  %127 = vmatpush1.bf16.msra.mxu0 0
  %128 = vmatprep.subr.bf16.mxu0 0
  %129 = vmatpush1.bf16.msra.mxu0 0
  %130 = vmatprep.subr.bf16.mxu0 0
  %131 = vmatpush1.bf16.msra.mxu0 0
  %132 = vmatprep.subr.bf16.mxu0 0
  %133 = vmatpush1.bf16.msra.mxu0 0
  %134 = vmatprep.subr.bf16.mxu0 0
  %135 = vmatpush1.bf16.msra.mxu0 0
  %136 = vmatprep.subr.bf16.mxu0 0
  %137 = vmatpush1.bf16.msra.mxu0 0
  %138 = vmatprep.subr.bf16.mxu0 0
  %139 = vmatpush1.bf16.msra.mxu0 0
  %140 = vmatprep.subr.bf16.mxu0 0
  %141 = vmatpush1.bf16.msra.mxu0 0
  %142 = vmatprep.subr.bf16.mxu0 0
  %143 = vmatpush1.bf16.msra.mxu0 0
  %144 = vmatprep.subr.bf16.mxu0 0
  %145 = vmatpush1.bf16.msra.mxu0 0
  %146 = vmatprep.subr.bf16.mxu0 0
  %147 = vmatpush1.bf16.msra.mxu0 0
  %148 = vmatprep.subr.bf16.mxu0 0
  %149 = vmatpush1.bf16.msra.mxu0 0
  %150 = vmatprep.subr.bf16.mxu0 0
  %151 = vmatpush1.bf16.msra.mxu0 0
  %152 = vmatprep.subr.bf16.mxu0 0
  %153 = vmatpush1.bf16.msra.mxu0 0
  %154 = vmatprep.mubr.bf16.mxu0 0
  %155 = vmatmul.mubr.bf16.gmra.mrb[0].mxu0 %v117
  %v156 = vpop.f32.mrb[0].mxu0
  %v157 = vadd.f32 %v114, %v156
  %v158 = vpop.f32.mrb[0].mxu0
  %v159 = vpop.f32.mrb[0].mxu0
  %v160 = vadd.f32 %v114, %v159
  %v161 = vpop.f32.mrb[0].mxu0
  %162 = vmatprep.mubr.bf16.mxu0 0
  %163 = vmatmul.mubr.bf16.gmra.mrb[0].mxu0 %v120
  %v164 = vpop.f32.mrb[0].mxu0
  %v165 = vadd.f32 %v114, %v164
  %v166 = vpop.f32.mrb[0].mxu0
  %v167 = vpop.f32.mrb[0].mxu0
  %v168 = vadd.f32 %v114, %v167
  %v169 = vpop.f32.mrb[0].mxu0
  %170 = vdwg.mxu0
  %vm171 = vcmask 392192
  %172 = vst.msk [vmem:[%s5] sm:$0xff] %vm171, %v157
  %173 = vst.msk [vmem:[%s5 + $0x8] sm:$0xff] %vm171, %v160
  %174 = vst.msk [vmem:[%s5 + $0x10] sm:$0xff] %vm171, %v165
  %175 = vst.msk [vmem:[%s5 + $0x18] sm:$0xff] %vm171, %v168
  // Predicated region
  $region22: #{_lambda_.19} parent=0 // pred_check
    _
  $region23: #{_lambda_.19} parent=0 // pred_check_branch
    %177 = sbr.rel (0) target = $region25
  $region24: #{_lambda_.19} parent=0 // pred_region
    _
  $region25: #{_lambda_.19} parent=0 // pred_fallthru
    _
  // Predicated region
  $region26: #{_lambda_.19} parent=0 // pred_check
    _
  $region27: #{_lambda_.19} parent=0 // pred_check_branch
    %179 = sbr.rel (0) target = $region29
  $region28: #{_lambda_.19} parent=0 // pred_region
    _
  $region29: #{_lambda_.19} parent=0 // pred_fallthru
    _

// kernel: _lambda_.18
$region0: #{_lambda_.18}
  #allocation0 [shape = 'u32[]', space=smem, size = 0x4, offset = 0x4, fixed_abs, tag = 'smem constant byte address 0x4 - core index']
  #allocation1 [shape = 'u32[144,128]{1,0:T(1,128)}', space=vmem, size = 0x12000, scoped, tag = 'internal scratch']
  %s0 = inlined_call_operand.vmem [shape: f32[2,16,32], index: 0, kind: input, shape index: {}]
  %s1 = inlined_call_operand.vmem [shape: f32[2,16,32], index: 1, kind: input, shape index: {}]
  %s2 = inlined_call_operand.vmem [shape: f32[1,32], index: 2, kind: input, shape index: {}]
  %s3 = inlined_call_operand.vmem [shape: f32[1,32], index: 3, kind: input, shape index: {}]
  %s4 = inlined_call_operand.vmem [shape: f32[32,128], index: 4, kind: input, shape index: {}]
  %s5 = inlined_call_operand.vmem [shape: f32[1,128], index: 5, kind: input, shape index: {}]
  %s6 = inlined_call_operand.vmem [shape: f32[32,128], index: 6, kind: input, shape index: {}]
  %s7 = inlined_call_operand.vmem [shape: f32[1,128], index: 7, kind: input, shape index: {}]
  %s8 = inlined_call_operand.vmem [shape: f32[32,128], index: 8, kind: input, shape index: {}]
  %s9 = inlined_call_operand.vmem [shape: f32[1,128], index: 9, kind: input, shape index: {}]
  %s10 = inlined_call_operand.vmem [shape: f32[128,32], index: 10, kind: input, shape index: {}]
  %s11 = inlined_call_operand.vmem [shape: f32[1,32], index: 11, kind: input, shape index: {}]
  %s12 = inlined_call_operand.vmem [shape: f32[1,32], index: 12, kind: input, shape index: {}]
  %s13 = inlined_call_operand.vmem [shape: f32[1,32], index: 13, kind: input, shape index: {}]
  %s14 = inlined_call_operand.vmem [shape: f32[32,64], index: 14, kind: input, shape index: {}]
  %s15 = inlined_call_operand.vmem [shape: f32[1,64], index: 15, kind: input, shape index: {}]
  %s16 = inlined_call_operand.vmem [shape: f32[64,32], index: 16, kind: input, shape index: {}]
  %s17 = inlined_call_operand.vmem [shape: f32[1,32], index: 17, kind: input, shape index: {}]
  %s18 = inlined_call_operand.vmem [shape: f32[1,32], index: 18, kind: input, shape index: {}]
  %s19 = inlined_call_operand.vmem [shape: f32[1,32], index: 19, kind: input, shape index: {}]
  %s20 = inlined_call_operand.vmem [shape: f32[2,16,32], index: 20, kind: output, shape index: {}]
  %s21 = sld [smem:[#allocation0]]
  $region113: #{_lambda_.18} parent=0
    _
  %s23 = ssub.s32 1, %s21
  %s24 = scalar_select 0, %s23, %s21
  loop: start=0, step=1, limit=4
  $region2: #{_lambda_.18} parent=0 // loop_pre_header
    _
  $region3: #{_lambda_.18} parent=0 // loop_header
    %s26 = sphi 0, %s30
    %p27 = scmp.ge.s32.totalorder %s26, 4
    %s36 = sphi 0, %s38
    %s39 = sphi 0, %s36
    %s40 = sphi 0, %s39
    %s56 = sphi 0, %s40
    %s62 = sphi 0, %s64
    %s65 = sphi 0, %s62
    %s66 = sphi 0, %s65
    %s82 = sphi 0, %s66
    %s86 = sphi 0, %s86
    %s88 = sphi 0, %s86
    %s89 = sphi 0, %s88
    %s103 = sphi 0, %s89
    %s107 = sphi 0, %s107
    %s109 = sphi 0, %s107
    %s110 = sphi 0, %s109
    %s124 = sphi 0, %s110
    %s128 = sphi 0, %s128
    %s130 = sphi 0, %s128
    %s131 = sphi 0, %s130
    %s145 = sphi 0, %s131
    %s149 = sphi 0, %s149
    %s151 = sphi 0, %s149
    %s152 = sphi 0, %s151
    %s166 = sphi 0, %s152
    %s170 = sphi 0, %s170
    %s172 = sphi 0, %s170
    %s173 = sphi 0, %s172
    %s187 = sphi 0, %s173
    %s191 = sphi 0, %s191
    %s193 = sphi 0, %s191
    %s194 = sphi 0, %s193
    %s208 = sphi 0, %s194
    %s212 = sphi 0, %s212
    %s214 = sphi 0, %s212
    %s215 = sphi 0, %s214
    %s229 = sphi 0, %s215
    %s233 = sphi 0, %s233
    %s235 = sphi 0, %s233
    %s236 = sphi 0, %s235
    %s250 = sphi 0, %s236
    %s254 = sphi 0, %s254
    %s256 = sphi 0, %s254
    %s257 = sphi 0, %s256
    %s271 = sphi 0, %s257
    %s275 = sphi 0, %s275
    %s277 = sphi 0, %s275
    %s278 = sphi 0, %s277
    %s292 = sphi 0, %s278
    %s296 = sphi 0, %s296
    %s298 = sphi 0, %s296
    %s299 = sphi 0, %s298
    %s313 = sphi 0, %s299
    %s317 = sphi 0, %s317
    %s319 = sphi 0, %s317
    %s320 = sphi 0, %s319
    %s334 = sphi 0, %s320
    %s338 = sphi 0, %s338
    %s340 = sphi 0, %s338
    %s341 = sphi 0, %s340
    %s355 = sphi 0, %s341
    %s359 = sphi 0, %s359
    %s361 = sphi 0, %s359
    %s362 = sphi 0, %s361
    %s376 = sphi 0, %s362
    %s380 = sphi 0, %s380
    %s382 = sphi 0, %s380
    %s383 = sphi 0, %s382
    %s397 = sphi 0, %s383
    %s401 = sphi 0, %s401
    %s403 = sphi 0, %s401
    %s404 = sphi 0, %s403
    %s418 = sphi 0, %s404
    %s422 = sphi 0, %s422
    %s424 = sphi 0, %s422
    %s425 = sphi 0, %s424
    %s439 = sphi 0, %s425
    %s443 = sphi 0, %s443
    %s445 = sphi 0, %s443
    %s446 = sphi 0, %s445
    %s460 = sphi 0, %s446
    %s466 = sphi 0, %s468
    %s469 = sphi 0, %s466
    %s470 = sphi 0, %s469
    %s486 = sphi 0, %s470
  $region4: #{_lambda_.18} parent=0 // loop_header_branch
    %29 = sbr.rel (%p27) target = $region8
  $region5: #{_lambda_.18} parent=0 // loop_body
    %s31 = ssub.s32 %s26, 1
    %s32 = ssub.s32 %s26, 2
    %s33 = sadd.s32 %s26, 1
    %s34 = ssub.s32 %s26, %s33
    %p35 = scmp.eq.s32.totalorder %s34, 0
    %s37 = sadd.s32 %s36, 1
    %s38 = scalar_select %p35, %s36, %s37
    %p41 = pneg %p35
    %p42 = scmp.eq.s32.totalorder %s26, 1
    %p43 = por %p41, %p42
    %p44 = scmp.ne.s32.totalorder %s36, %s39
    %p45 = scmp.eq.s32.totalorder %s26, 0
    %p46 = por %p44, %p45
    %p47 = scmp.ne.s32.totalorder %s36, %s39
    %p48 = scmp.eq.s32.totalorder %s31, 1
    %p49 = por %p47, %p48
    %p50 = scmp.ne.s32.totalorder %s39, %s40
    %p51 = scmp.eq.s32.totalorder %s31, 0
    %p52 = por %p50, %p51
    %p53 = scmp.ne.s32.totalorder %s39, %s40
    %p54 = scmp.eq.s32.totalorder %s32, 1
    %p55 = por %p53, %p54
    %p57 = scmp.ne.s32.totalorder %s40, %s56
    %p58 = scmp.eq.s32.totalorder %s32, 0
    %p59 = por %p57, %p58
    %s60 = ssub.s32 %s26, %s33
    %p61 = scmp.eq.s32.totalorder %s60, 0
    %s63 = sadd.s32 %s62, 1
    %s64 = scalar_select %p61, %s62, %s63
    %p67 = pneg %p61
    %p68 = scmp.eq.s32.totalorder %s26, 1
    %p69 = por %p67, %p68
    %p70 = scmp.ne.s32.totalorder %s62, %s65
    %p71 = scmp.eq.s32.totalorder %s26, 0
    %p72 = por %p70, %p71
    %p73 = scmp.ne.s32.totalorder %s62, %s65
    %p74 = scmp.eq.s32.totalorder %s31, 1
    %p75 = por %p73, %p74
    %p76 = scmp.ne.s32.totalorder %s65, %s66
    %p77 = scmp.eq.s32.totalorder %s31, 0
    %p78 = por %p76, %p77
    %p79 = scmp.ne.s32.totalorder %s65, %s66
    %p80 = scmp.eq.s32.totalorder %s32, 1
    %p81 = por %p79, %p80
    %p83 = scmp.ne.s32.totalorder %s66, %s82
    %p84 = scmp.eq.s32.totalorder %s32, 0
    %p85 = por %p83, %p84
    %s87 = sadd.s32 %s86, 1
    %p90 = scmp.eq.s32.totalorder %s26, 1
    %p91 = scmp.ne.s32.totalorder %s86, %s88
    %p92 = scmp.eq.s32.totalorder %s26, 0
    %p93 = por %p91, %p92
    %p94 = scmp.ne.s32.totalorder %s86, %s88
    %p95 = scmp.eq.s32.totalorder %s31, 1
    %p96 = por %p94, %p95
    %p97 = scmp.ne.s32.totalorder %s88, %s89
    %p98 = scmp.eq.s32.totalorder %s31, 0
    %p99 = por %p97, %p98
    %p100 = scmp.ne.s32.totalorder %s88, %s89
    %p101 = scmp.eq.s32.totalorder %s32, 1
    %p102 = por %p100, %p101
    %p104 = scmp.ne.s32.totalorder %s89, %s103
    %p105 = scmp.eq.s32.totalorder %s32, 0
    %p106 = por %p104, %p105
    %s108 = sadd.s32 %s107, 1
    %p111 = scmp.eq.s32.totalorder %s26, 1
    %p112 = scmp.ne.s32.totalorder %s107, %s109
    %p113 = scmp.eq.s32.totalorder %s26, 0
    %p114 = por %p112, %p113
    %p115 = scmp.ne.s32.totalorder %s107, %s109
    %p116 = scmp.eq.s32.totalorder %s31, 1
    %p117 = por %p115, %p116
    %p118 = scmp.ne.s32.totalorder %s109, %s110
    %p119 = scmp.eq.s32.totalorder %s31, 0
    %p120 = por %p118, %p119
    %p121 = scmp.ne.s32.totalorder %s109, %s110
    %p122 = scmp.eq.s32.totalorder %s32, 1
    %p123 = por %p121, %p122
    %p125 = scmp.ne.s32.totalorder %s110, %s124
    %p126 = scmp.eq.s32.totalorder %s32, 0
    %p127 = por %p125, %p126
    %s129 = sadd.s32 %s128, 1
    %p132 = scmp.eq.s32.totalorder %s26, 1
    %p133 = scmp.ne.s32.totalorder %s128, %s130
    %p134 = scmp.eq.s32.totalorder %s26, 0
    %p135 = por %p133, %p134
    %p136 = scmp.ne.s32.totalorder %s128, %s130
    %p137 = scmp.eq.s32.totalorder %s31, 1
    %p138 = por %p136, %p137
    %p139 = scmp.ne.s32.totalorder %s130, %s131
    %p140 = scmp.eq.s32.totalorder %s31, 0
    %p141 = por %p139, %p140
    %p142 = scmp.ne.s32.totalorder %s130, %s131
    %p143 = scmp.eq.s32.totalorder %s32, 1
    %p144 = por %p142, %p143
    %p146 = scmp.ne.s32.totalorder %s131, %s145
    %p147 = scmp.eq.s32.totalorder %s32, 0
    %p148 = por %p146, %p147
    %s150 = sadd.s32 %s149, 1
    %p153 = scmp.eq.s32.totalorder %s26, 1
    %p154 = scmp.ne.s32.totalorder %s149, %s151
    %p155 = scmp.eq.s32.totalorder %s26, 0
    %p156 = por %p154, %p155
    %p157 = scmp.ne.s32.totalorder %s149, %s151
    %p158 = scmp.eq.s32.totalorder %s31, 1
    %p159 = por %p157, %p158
    %p160 = scmp.ne.s32.totalorder %s151, %s152
    %p161 = scmp.eq.s32.totalorder %s31, 0
    %p162 = por %p160, %p161
    %p163 = scmp.ne.s32.totalorder %s151, %s152
    %p164 = scmp.eq.s32.totalorder %s32, 1
    %p165 = por %p163, %p164
    %p167 = scmp.ne.s32.totalorder %s152, %s166
    %p168 = scmp.eq.s32.totalorder %s32, 0
    %p169 = por %p167, %p168
    %s171 = sadd.s32 %s170, 1
    %p174 = scmp.eq.s32.totalorder %s26, 1
    %p175 = scmp.ne.s32.totalorder %s170, %s172
    %p176 = scmp.eq.s32.totalorder %s26, 0
    %p177 = por %p175, %p176
    %p178 = scmp.ne.s32.totalorder %s170, %s172
    %p179 = scmp.eq.s32.totalorder %s31, 1
    %p180 = por %p178, %p179
    %p181 = scmp.ne.s32.totalorder %s172, %s173
    %p182 = scmp.eq.s32.totalorder %s31, 0
    %p183 = por %p181, %p182
    %p184 = scmp.ne.s32.totalorder %s172, %s173
    %p185 = scmp.eq.s32.totalorder %s32, 1
    %p186 = por %p184, %p185
    %p188 = scmp.ne.s32.totalorder %s173, %s187
    %p189 = scmp.eq.s32.totalorder %s32, 0
    %p190 = por %p188, %p189
    %s192 = sadd.s32 %s191, 1
    %p195 = scmp.eq.s32.totalorder %s26, 1
    %p196 = scmp.ne.s32.totalorder %s191, %s193
    %p197 = scmp.eq.s32.totalorder %s26, 0
    %p198 = por %p196, %p197
    %p199 = scmp.ne.s32.totalorder %s191, %s193
    %p200 = scmp.eq.s32.totalorder %s31, 1
    %p201 = por %p199, %p200
    %p202 = scmp.ne.s32.totalorder %s193, %s194
    %p203 = scmp.eq.s32.totalorder %s31, 0
    %p204 = por %p202, %p203
    %p205 = scmp.ne.s32.totalorder %s193, %s194
    %p206 = scmp.eq.s32.totalorder %s32, 1
    %p207 = por %p205, %p206
    %p209 = scmp.ne.s32.totalorder %s194, %s208
    %p210 = scmp.eq.s32.totalorder %s32, 0
    %p211 = por %p209, %p210
    %s213 = sadd.s32 %s212, 1
    %p216 = scmp.eq.s32.totalorder %s26, 1
    %p217 = scmp.ne.s32.totalorder %s212, %s214
    %p218 = scmp.eq.s32.totalorder %s26, 0
    %p219 = por %p217, %p218
    %p220 = scmp.ne.s32.totalorder %s212, %s214
    %p221 = scmp.eq.s32.totalorder %s31, 1
    %p222 = por %p220, %p221
    %p223 = scmp.ne.s32.totalorder %s214, %s215
    %p224 = scmp.eq.s32.totalorder %s31, 0
    %p225 = por %p223, %p224
    %p226 = scmp.ne.s32.totalorder %s214, %s215
    %p227 = scmp.eq.s32.totalorder %s32, 1
    %p228 = por %p226, %p227
    %p230 = scmp.ne.s32.totalorder %s215, %s229
    %p231 = scmp.eq.s32.totalorder %s32, 0
    %p232 = por %p230, %p231
    %s234 = sadd.s32 %s233, 1
    %p237 = scmp.eq.s32.totalorder %s26, 1
    %p238 = scmp.ne.s32.totalorder %s233, %s235
    %p239 = scmp.eq.s32.totalorder %s26, 0
    %p240 = por %p238, %p239
    %p241 = scmp.ne.s32.totalorder %s233, %s235
    %p242 = scmp.eq.s32.totalorder %s31, 1
    %p243 = por %p241, %p242
    %p244 = scmp.ne.s32.totalorder %s235, %s236
    %p245 = scmp.eq.s32.totalorder %s31, 0
    %p246 = por %p244, %p245
    %p247 = scmp.ne.s32.totalorder %s235, %s236
    %p248 = scmp.eq.s32.totalorder %s32, 1
    %p249 = por %p247, %p248
    %p251 = scmp.ne.s32.totalorder %s236, %s250
    %p252 = scmp.eq.s32.totalorder %s32, 0
    %p253 = por %p251, %p252
    %s255 = sadd.s32 %s254, 1
    %p258 = scmp.eq.s32.totalorder %s26, 1
    %p259 = scmp.ne.s32.totalorder %s254, %s256
    %p260 = scmp.eq.s32.totalorder %s26, 0
    %p261 = por %p259, %p260
    %p262 = scmp.ne.s32.totalorder %s254, %s256
    %p263 = scmp.eq.s32.totalorder %s31, 1
    %p264 = por %p262, %p263
    %p265 = scmp.ne.s32.totalorder %s256, %s257
    %p266 = scmp.eq.s32.totalorder %s31, 0
    %p267 = por %p265, %p266
    %p268 = scmp.ne.s32.totalorder %s256, %s257
    %p269 = scmp.eq.s32.totalorder %s32, 1
    %p270 = por %p268, %p269
    %p272 = scmp.ne.s32.totalorder %s257, %s271
    %p273 = scmp.eq.s32.totalorder %s32, 0
    %p274 = por %p272, %p273
    %s276 = sadd.s32 %s275, 1
    %p279 = scmp.eq.s32.totalorder %s26, 1
    %p280 = scmp.ne.s32.totalorder %s275, %s277
    %p281 = scmp.eq.s32.totalorder %s26, 0
    %p282 = por %p280, %p281
    %p283 = scmp.ne.s32.totalorder %s275, %s277
    %p284 = scmp.eq.s32.totalorder %s31, 1
    %p285 = por %p283, %p284
    %p286 = scmp.ne.s32.totalorder %s277, %s278
    %p287 = scmp.eq.s32.totalorder %s31, 0
    %p288 = por %p286, %p287
    %p289 = scmp.ne.s32.totalorder %s277, %s278
    %p290 = scmp.eq.s32.totalorder %s32, 1
    %p291 = por %p289, %p290
    %p293 = scmp.ne.s32.totalorder %s278, %s292
    %p294 = scmp.eq.s32.totalorder %s32, 0
    %p295 = por %p293, %p294
    %s297 = sadd.s32 %s296, 1
    %p300 = scmp.eq.s32.totalorder %s26, 1
    %p301 = scmp.ne.s32.totalorder %s296, %s298
    %p302 = scmp.eq.s32.totalorder %s26, 0
    %p303 = por %p301, %p302
    %p304 = scmp.ne.s32.totalorder %s296, %s298
    %p305 = scmp.eq.s32.totalorder %s31, 1
    %p306 = por %p304, %p305
    %p307 = scmp.ne.s32.totalorder %s298, %s299
    %p308 = scmp.eq.s32.totalorder %s31, 0
    %p309 = por %p307, %p308
    %p310 = scmp.ne.s32.totalorder %s298, %s299
    %p311 = scmp.eq.s32.totalorder %s32, 1
    %p312 = por %p310, %p311
    %p314 = scmp.ne.s32.totalorder %s299, %s313
    %p315 = scmp.eq.s32.totalorder %s32, 0
    %p316 = por %p314, %p315
    %s318 = sadd.s32 %s317, 1
    %p321 = scmp.eq.s32.totalorder %s26, 1
    %p322 = scmp.ne.s32.totalorder %s317, %s319
    %p323 = scmp.eq.s32.totalorder %s26, 0
    %p324 = por %p322, %p323
    %p325 = scmp.ne.s32.totalorder %s317, %s319
    %p326 = scmp.eq.s32.totalorder %s31, 1
    %p327 = por %p325, %p326
    %p328 = scmp.ne.s32.totalorder %s319, %s320
    %p329 = scmp.eq.s32.totalorder %s31, 0
    %p330 = por %p328, %p329
    %p331 = scmp.ne.s32.totalorder %s319, %s320
    %p332 = scmp.eq.s32.totalorder %s32, 1
    %p333 = por %p331, %p332
    %p335 = scmp.ne.s32.totalorder %s320, %s334
    %p336 = scmp.eq.s32.totalorder %s32, 0
    %p337 = por %p335, %p336
    %s339 = sadd.s32 %s338, 1
    %p342 = scmp.eq.s32.totalorder %s26, 1
    %p343 = scmp.ne.s32.totalorder %s338, %s340
    %p344 = scmp.eq.s32.totalorder %s26, 0
    %p345 = por %p343, %p344
    %p346 = scmp.ne.s32.totalorder %s338, %s340
    %p347 = scmp.eq.s32.totalorder %s31, 1
    %p348 = por %p346, %p347
    %p349 = scmp.ne.s32.totalorder %s340, %s341
    %p350 = scmp.eq.s32.totalorder %s31, 0
    %p351 = por %p349, %p350
    %p352 = scmp.ne.s32.totalorder %s340, %s341
    %p353 = scmp.eq.s32.totalorder %s32, 1
    %p354 = por %p352, %p353
    %p356 = scmp.ne.s32.totalorder %s341, %s355
    %p357 = scmp.eq.s32.totalorder %s32, 0
    %p358 = por %p356, %p357
    %s360 = sadd.s32 %s359, 1
    %p363 = scmp.eq.s32.totalorder %s26, 1
    %p364 = scmp.ne.s32.totalorder %s359, %s361
    %p365 = scmp.eq.s32.totalorder %s26, 0
    %p366 = por %p364, %p365
    %p367 = scmp.ne.s32.totalorder %s359, %s361
    %p368 = scmp.eq.s32.totalorder %s31, 1
    %p369 = por %p367, %p368
    %p370 = scmp.ne.s32.totalorder %s361, %s362
    %p371 = scmp.eq.s32.totalorder %s31, 0
    %p372 = por %p370, %p371
    %p373 = scmp.ne.s32.totalorder %s361, %s362
    %p374 = scmp.eq.s32.totalorder %s32, 1
    %p375 = por %p373, %p374
    %p377 = scmp.ne.s32.totalorder %s362, %s376
    %p378 = scmp.eq.s32.totalorder %s32, 0
    %p379 = por %p377, %p378
    %s381 = sadd.s32 %s380, 1
    %p384 = scmp.eq.s32.totalorder %s26, 1
    %p385 = scmp.ne.s32.totalorder %s380, %s382
    %p386 = scmp.eq.s32.totalorder %s26, 0
    %p387 = por %p385, %p386
    %p388 = scmp.ne.s32.totalorder %s380, %s382
    %p389 = scmp.eq.s32.totalorder %s31, 1
    %p390 = por %p388, %p389
    %p391 = scmp.ne.s32.totalorder %s382, %s383
    %p392 = scmp.eq.s32.totalorder %s31, 0
    %p393 = por %p391, %p392
    %p394 = scmp.ne.s32.totalorder %s382, %s383
    %p395 = scmp.eq.s32.totalorder %s32, 1
    %p396 = por %p394, %p395
    %p398 = scmp.ne.s32.totalorder %s383, %s397
    %p399 = scmp.eq.s32.totalorder %s32, 0
    %p400 = por %p398, %p399
    %s402 = sadd.s32 %s401, 1
    %p405 = scmp.eq.s32.totalorder %s26, 1
    %p406 = scmp.ne.s32.totalorder %s401, %s403
    %p407 = scmp.eq.s32.totalorder %s26, 0
    %p408 = por %p406, %p407
    %p409 = scmp.ne.s32.totalorder %s401, %s403
    %p410 = scmp.eq.s32.totalorder %s31, 1
    %p411 = por %p409, %p410
    %p412 = scmp.ne.s32.totalorder %s403, %s404
    %p413 = scmp.eq.s32.totalorder %s31, 0
    %p414 = por %p412, %p413
    %p415 = scmp.ne.s32.totalorder %s403, %s404
    %p416 = scmp.eq.s32.totalorder %s32, 1
    %p417 = por %p415, %p416
    %p419 = scmp.ne.s32.totalorder %s404, %s418
    %p420 = scmp.eq.s32.totalorder %s32, 0
    %p421 = por %p419, %p420
    %s423 = sadd.s32 %s422, 1
    %p426 = scmp.eq.s32.totalorder %s26, 1
    %p427 = scmp.ne.s32.totalorder %s422, %s424
    %p428 = scmp.eq.s32.totalorder %s26, 0
    %p429 = por %p427, %p428
    %p430 = scmp.ne.s32.totalorder %s422, %s424
    %p431 = scmp.eq.s32.totalorder %s31, 1
    %p432 = por %p430, %p431
    %p433 = scmp.ne.s32.totalorder %s424, %s425
    %p434 = scmp.eq.s32.totalorder %s31, 0
    %p435 = por %p433, %p434
    %p436 = scmp.ne.s32.totalorder %s424, %s425
    %p437 = scmp.eq.s32.totalorder %s32, 1
    %p438 = por %p436, %p437
    %p440 = scmp.ne.s32.totalorder %s425, %s439
    %p441 = scmp.eq.s32.totalorder %s32, 0
    %p442 = por %p440, %p441
    %s444 = sadd.s32 %s443, 1
    %p447 = scmp.eq.s32.totalorder %s26, 1
    %p448 = scmp.ne.s32.totalorder %s443, %s445
    %p449 = scmp.eq.s32.totalorder %s26, 0
    %p450 = por %p448, %p449
    %p451 = scmp.ne.s32.totalorder %s443, %s445
    %p452 = scmp.eq.s32.totalorder %s31, 1
    %p453 = por %p451, %p452
    %p454 = scmp.ne.s32.totalorder %s445, %s446
    %p455 = scmp.eq.s32.totalorder %s31, 0
    %p456 = por %p454, %p455
    %p457 = scmp.ne.s32.totalorder %s445, %s446
    %p458 = scmp.eq.s32.totalorder %s32, 1
    %p459 = por %p457, %p458
    %p461 = scmp.ne.s32.totalorder %s446, %s460
    %p462 = scmp.eq.s32.totalorder %s32, 0
    %p463 = por %p461, %p462
    %s464 = ssub.s32 %s26, %s33
    %p465 = scmp.eq.s32.totalorder %s464, 0
    %s467 = sadd.s32 %s466, 1
    %s468 = scalar_select %p465, %s466, %s467
    %p471 = pneg %p465
    %p472 = scmp.eq.s32.totalorder %s26, 1
    %p473 = por %p471, %p472
    %p474 = scmp.ne.s32.totalorder %s466, %s469
    %p475 = scmp.eq.s32.totalorder %s26, 0
    %p476 = por %p474, %p475
    %p477 = scmp.ne.s32.totalorder %s466, %s469
    %p478 = scmp.eq.s32.totalorder %s31, 1
    %p479 = por %p477, %p478
    %p480 = scmp.ne.s32.totalorder %s469, %s470
    %p481 = scmp.eq.s32.totalorder %s31, 0
    %p482 = por %p480, %p481
    %p483 = scmp.ne.s32.totalorder %s469, %s470
    %p484 = scmp.eq.s32.totalorder %s32, 1
    %p485 = por %p483, %p484
    %p487 = scmp.ne.s32.totalorder %s470, %s486
    %p488 = scmp.eq.s32.totalorder %s32, 0
    %p489 = por %p487, %p488
    %p490 = scmp.le.s32.totalorder 1, %s26
    %p491 = scmp.lt.s32.totalorder %s26, 3
    %p492 = pnand %p490, %p491
    %p493 = pneg %p492
    // Predicated region
    $region9: #{_lambda_.18} parent=5 // pred_check
      _
    $region10: #{_lambda_.18} parent=5 // pred_check_branch
      %495 = sbr.rel (%p492) target = $region12
    $region11: #{_lambda_.18} parent=5 // pred_region
      %s496 = ssub.s32 %s26, 1
      // Predicated region
      $region13: #{_lambda_.18} parent=11 // pred_check
        %p497 = pneg %p99
      $region14: #{_lambda_.18} parent=11 // pred_check_branch
        %499 = sbr.rel (%p497) target = $region16
      $region15: #{_lambda_.18} parent=11 // pred_region
        _
      $region16: #{_lambda_.18} parent=11 // pred_fallthru
        _
      // Predicated region
      $region17: #{_lambda_.18} parent=11 // pred_check
        %p500 = pneg %p120
      $region18: #{_lambda_.18} parent=11 // pred_check_branch
        %502 = sbr.rel (%p500) target = $region20
      $region19: #{_lambda_.18} parent=11 // pred_region
        _
      $region20: #{_lambda_.18} parent=11 // pred_fallthru
        _
      // Predicated region
      $region21: #{_lambda_.18} parent=11 // pred_check
        %p503 = pneg %p141
      $region22: #{_lambda_.18} parent=11 // pred_check_branch
        %505 = sbr.rel (%p503) target = $region24
      $region23: #{_lambda_.18} parent=11 // pred_region
        _
      $region24: #{_lambda_.18} parent=11 // pred_fallthru
        _
      // Predicated region
      $region25: #{_lambda_.18} parent=11 // pred_check
        %p506 = pneg %p162
      $region26: #{_lambda_.18} parent=11 // pred_check_branch
        %508 = sbr.rel (%p506) target = $region28
      $region27: #{_lambda_.18} parent=11 // pred_region
        _
      $region28: #{_lambda_.18} parent=11 // pred_fallthru
        _
      // Predicated region
      $region29: #{_lambda_.18} parent=11 // pred_check
        %p509 = pneg %p183
      $region30: #{_lambda_.18} parent=11 // pred_check_branch
        %511 = sbr.rel (%p509) target = $region32
      $region31: #{_lambda_.18} parent=11 // pred_region
        _
      $region32: #{_lambda_.18} parent=11 // pred_fallthru
        _
      // Predicated region
      $region33: #{_lambda_.18} parent=11 // pred_check
        %p512 = pneg %p204
      $region34: #{_lambda_.18} parent=11 // pred_check_branch
        %514 = sbr.rel (%p512) target = $region36
      $region35: #{_lambda_.18} parent=11 // pred_region
        _
      $region36: #{_lambda_.18} parent=11 // pred_fallthru
        _
      // Predicated region
      $region37: #{_lambda_.18} parent=11 // pred_check
        %p515 = pneg %p225
      $region38: #{_lambda_.18} parent=11 // pred_check_branch
        %517 = sbr.rel (%p515) target = $region40
      $region39: #{_lambda_.18} parent=11 // pred_region
        _
      $region40: #{_lambda_.18} parent=11 // pred_fallthru
        _
      // Predicated region
      $region41: #{_lambda_.18} parent=11 // pred_check
        %p518 = pneg %p246
      $region42: #{_lambda_.18} parent=11 // pred_check_branch
        %520 = sbr.rel (%p518) target = $region44
      $region43: #{_lambda_.18} parent=11 // pred_region
        _
      $region44: #{_lambda_.18} parent=11 // pred_fallthru
        _
      // Predicated region
      $region45: #{_lambda_.18} parent=11 // pred_check
        %p521 = pneg %p267
      $region46: #{_lambda_.18} parent=11 // pred_check_branch
        %523 = sbr.rel (%p521) target = $region48
      $region47: #{_lambda_.18} parent=11 // pred_region
        _
      $region48: #{_lambda_.18} parent=11 // pred_fallthru
        _
      // Predicated region
      $region49: #{_lambda_.18} parent=11 // pred_check
        %p524 = pneg %p288
      $region50: #{_lambda_.18} parent=11 // pred_check_branch
        %526 = sbr.rel (%p524) target = $region52
      $region51: #{_lambda_.18} parent=11 // pred_region
        _
      $region52: #{_lambda_.18} parent=11 // pred_fallthru
        _
      // Predicated region
      $region53: #{_lambda_.18} parent=11 // pred_check
        %p527 = pneg %p309
      $region54: #{_lambda_.18} parent=11 // pred_check_branch
        %529 = sbr.rel (%p527) target = $region56
      $region55: #{_lambda_.18} parent=11 // pred_region
        _
      $region56: #{_lambda_.18} parent=11 // pred_fallthru
        _
      // Predicated region
      $region57: #{_lambda_.18} parent=11 // pred_check
        %p530 = pneg %p330
      $region58: #{_lambda_.18} parent=11 // pred_check_branch
        %532 = sbr.rel (%p530) target = $region60
      $region59: #{_lambda_.18} parent=11 // pred_region
        _
      $region60: #{_lambda_.18} parent=11 // pred_fallthru
        _
      // Predicated region
      $region61: #{_lambda_.18} parent=11 // pred_check
        %p533 = pneg %p351
      $region62: #{_lambda_.18} parent=11 // pred_check_branch
        %535 = sbr.rel (%p533) target = $region64
      $region63: #{_lambda_.18} parent=11 // pred_region
        _
      $region64: #{_lambda_.18} parent=11 // pred_fallthru
        _
      // Predicated region
      $region65: #{_lambda_.18} parent=11 // pred_check
        %p536 = pneg %p372
      $region66: #{_lambda_.18} parent=11 // pred_check_branch
        %538 = sbr.rel (%p536) target = $region68
      $region67: #{_lambda_.18} parent=11 // pred_region
        _
      $region68: #{_lambda_.18} parent=11 // pred_fallthru
        _
      // Predicated region
      $region69: #{_lambda_.18} parent=11 // pred_check
        %p539 = pneg %p393
      $region70: #{_lambda_.18} parent=11 // pred_check_branch
        %541 = sbr.rel (%p539) target = $region72
      $region71: #{_lambda_.18} parent=11 // pred_region
        _
      $region72: #{_lambda_.18} parent=11 // pred_fallthru
        _
      // Predicated region
      $region73: #{_lambda_.18} parent=11 // pred_check
        %p542 = pneg %p414
      $region74: #{_lambda_.18} parent=11 // pred_check_branch
        %544 = sbr.rel (%p542) target = $region76
      $region75: #{_lambda_.18} parent=11 // pred_region
        _
      $region76: #{_lambda_.18} parent=11 // pred_fallthru
        _
      // Predicated region
      $region77: #{_lambda_.18} parent=11 // pred_check
        %p545 = pneg %p435
      $region78: #{_lambda_.18} parent=11 // pred_check_branch
        %547 = sbr.rel (%p545) target = $region80
      $region79: #{_lambda_.18} parent=11 // pred_region
        _
      $region80: #{_lambda_.18} parent=11 // pred_fallthru
        _
      // Predicated region
      $region81: #{_lambda_.18} parent=11 // pred_check
        %p548 = pneg %p456
      $region82: #{_lambda_.18} parent=11 // pred_check_branch
        %550 = sbr.rel (%p548) target = $region84
      $region83: #{_lambda_.18} parent=11 // pred_region
        _
      $region84: #{_lambda_.18} parent=11 // pred_fallthru
        _
    $region12: #{_lambda_.18} parent=5 // pred_fallthru
      _
    %p551 = scmp.lt.s32.totalorder %s26, 2
    // Predicated region
    $region85: #{_lambda_.18} parent=5 // pred_check
      %p552 = pneg %p551
    $region86: #{_lambda_.18} parent=5 // pred_check_branch
      %554 = sbr.rel (%p552) target = $region88
    $region87: #{_lambda_.18} parent=5 // pred_region
      // Predicated region
      $region89: #{_lambda_.18} parent=87 // pred_check
        %p555 = pneg %p46
      $region90: #{_lambda_.18} parent=87 // pred_check_branch
        %557 = sbr.rel (%p555) target = $region92
      $region91: #{_lambda_.18} parent=87 // pred_region
        %p558 = scmp.lt.s32.totalorder %s26, 1
        %s559 = scalar_select %p558, %s26, 1
        %s560 = smul.addr %s559, 2
        %s561 = smul.addr %s560, 8
        %s562 = scalar_lea.vmem %s0, %s561
      $region92: #{_lambda_.18} parent=87 // pred_fallthru
        _
      // Predicated region
      $region93: #{_lambda_.18} parent=87 // pred_check
        %p563 = pneg %p72
      $region94: #{_lambda_.18} parent=87 // pred_check_branch
        %565 = sbr.rel (%p563) target = $region96
      $region95: #{_lambda_.18} parent=87 // pred_region
        %p566 = scmp.lt.s32.totalorder %s26, 1
        %s567 = scalar_select %p566, %s26, 1
        %s568 = smul.addr %s567, 2
        %s569 = smul.addr %s568, 8
        %s570 = scalar_lea.vmem %s1, %s569
      $region96: #{_lambda_.18} parent=87 // pred_fallthru
        _
    $region88: #{_lambda_.18} parent=5 // pred_fallthru
      _
    %p571 = scmp.le.s32.totalorder 1, %s26
    %p572 = scmp.lt.s32.totalorder %s26, 3
    %p573 = pnand %p571, %p572
    %p574 = pneg %p573
    // Predicated region
    $region97: #{_lambda_.18} parent=5 // pred_check
      _
    $region98: #{_lambda_.18} parent=5 // pred_check_branch
      %576 = sbr.rel (%p573) target = $region100
    $region99: #{_lambda_.18} parent=5 // pred_region
      %s577 = ssub.s32 %s26, 1
      %p578 = scmp.lt.s32.totalorder %s31, 1
      %s579 = scalar_select %p578, %s31, 1
      %s580 = smul.addr %s579, 2
      %s581 = smul.addr %s580, 8
      %s582 = scalar_lea.vmem %s0, %s581
      %p583 = pneg %p52
      %p584 = pneg %p49
      %p585 = scmp.lt.s32.totalorder %s31, 1
      %s586 = scalar_select %p585, %s31, 1
      %s587 = smul.addr %s586, 2
      %s588 = smul.addr %s587, 8
      %s589 = scalar_lea.vmem %s1, %s588
      %p590 = pneg %p78
      %p591 = pneg %p75
      %p592 = pneg %p99
      %p593 = pneg %p96
      %p594 = pneg %p120
      %p595 = pneg %p117
      %p596 = pneg %p141
      %p597 = pneg %p138
      %p598 = pneg %p162
      %p599 = pneg %p159
      %p600 = pneg %p183
      %p601 = pneg %p180
      %p602 = pneg %p204
      %p603 = pneg %p201
      %p604 = pneg %p225
      %p605 = pneg %p222
      %p606 = pneg %p246
      %p607 = pneg %p243
      %p608 = pneg %p267
      %p609 = pneg %p264
      %p610 = pneg %p288
      %p611 = pneg %p285
      %p612 = pneg %p309
      %p613 = pneg %p306
      %p614 = pneg %p330
      %p615 = pneg %p327
      %p616 = pneg %p351
      %p617 = pneg %p348
      %p618 = pneg %p372
      %p619 = pneg %p369
      %p620 = pneg %p393
      %p621 = pneg %p390
      %p622 = pneg %p414
      %p623 = pneg %p411
      %p624 = pneg %p435
      %p625 = pneg %p432
      %p626 = pneg %p456
      %p627 = pneg %p453
      %p628 = pneg %p482
      %p629 = pneg %p479
      %p630 = scmp.lt.s32.totalorder %s31, 1
      %s631 = scalar_select %p630, %s31, 1
      %s632 = smul.addr %s631, 2
      %s633 = smul.addr %s632, 8
      %s634 = scalar_lea.vmem %s20, %s633
      %p635 = scmp.lt.s32.totalorder %s31, 1
      %s636 = scalar_select %p635, %s31, 1
      %s637 = smul.addr %s636, 2
      %s638 = smul.addr %s637, 8
      %s639 = scalar_lea.vmem %s0, %s638
      %p640 = scmp.lt.s32.totalorder %s31, 1
      %s641 = scalar_select %p640, %s31, 1
      %s642 = smul.addr %s641, 2
      %s643 = smul.addr %s642, 8
      %s644 = scalar_lea.vmem %s1, %s643
      %p645 = scmp.lt.s32.totalorder %s31, 1
      %s646 = scalar_select %p645, %s31, 1
      %s647 = smul.addr %s646, 2
      %s648 = smul.addr %s647, 8
      %s649 = scalar_lea.vmem %s20, %s648
      %v651 = vld [vmem:[%s639] sm:$0xff]
      %v652 = vld [vmem:[%s639 + $0x8] sm:$0xff]
      %v653 = vld [vmem:[%s644] sm:$0xff]
      %v654 = vld [vmem:[%s644 + $0x8] sm:$0xff]
      %v655 = vld [vmem:[%s2] sm:$0x1]
      %v656 = vld [vmem:[%s3] sm:$0x1]
      %v657 = vld [vmem:[%s4] sm:$0xff]
      %v658 = vld [vmem:[%s4 + $0x8] sm:$0xff]
      %v659 = vld [vmem:[%s4 + $0x10] sm:$0xff]
      %v660 = vld [vmem:[%s4 + $0x18] sm:$0xff]
      %v661 = vld [vmem:[%s5] sm:$0x1]
      %v662 = vld [vmem:[%s6] sm:$0xff]
      %v663 = vld [vmem:[%s6 + $0x8] sm:$0xff]
      %v664 = vld [vmem:[%s6 + $0x10] sm:$0xff]
      %v665 = vld [vmem:[%s6 + $0x18] sm:$0xff]
      %v666 = vld [vmem:[%s7] sm:$0x1]
      %v667 = vld [vmem:[%s8] sm:$0xff]
      %v668 = vld [vmem:[%s8 + $0x8] sm:$0xff]
      %v669 = vld [vmem:[%s8 + $0x10] sm:$0xff]
      %v670 = vld [vmem:[%s8 + $0x18] sm:$0xff]
      %v671 = vld [vmem:[%s9] sm:$0x1]
      %v672 = vld [vmem:[%s10] sm:$0xff]
      %v673 = vld [vmem:[%s10 + $0x8] sm:$0xff]
      %v674 = vld [vmem:[%s10 + $0x10] sm:$0xff]
      %v675 = vld [vmem:[%s10 + $0x18] sm:$0xff]
      %v676 = vld [vmem:[%s10 + $0x20] sm:$0xff]
      %v677 = vld [vmem:[%s10 + $0x28] sm:$0xff]
      %v678 = vld [vmem:[%s10 + $0x30] sm:$0xff]
      %v679 = vld [vmem:[%s10 + $0x38] sm:$0xff]
      %v680 = vld [vmem:[%s10 + $0x40] sm:$0xff]
      %v681 = vld [vmem:[%s10 + $0x48] sm:$0xff]
      %v682 = vld [vmem:[%s10 + $0x50] sm:$0xff]
      %v683 = vld [vmem:[%s10 + $0x58] sm:$0xff]
      %v684 = vld [vmem:[%s10 + $0x60] sm:$0xff]
      %v685 = vld [vmem:[%s10 + $0x68] sm:$0xff]
      %v686 = vld [vmem:[%s10 + $0x70] sm:$0xff]
      %v687 = vld [vmem:[%s10 + $0x78] sm:$0xff]
      %v688 = vld [vmem:[%s11] sm:$0x1]
      %v689 = vld [vmem:[%s12] sm:$0x1]
      %v690 = vld [vmem:[%s13] sm:$0x1]
      %v691 = vld [vmem:[%s14] sm:$0xff]
      %v692 = vld [vmem:[%s14 + $0x8] sm:$0xff]
      %v693 = vld [vmem:[%s14 + $0x10] sm:$0xff]
      %v694 = vld [vmem:[%s14 + $0x18] sm:$0xff]
      %v695 = vld [vmem:[%s15] sm:$0x1]
      %v696 = vld [vmem:[%s16] sm:$0xff]
      %v697 = vld [vmem:[%s16 + $0x8] sm:$0xff]
      %v698 = vld [vmem:[%s16 + $0x10] sm:$0xff]
      %v699 = vld [vmem:[%s16 + $0x18] sm:$0xff]
      %v700 = vld [vmem:[%s16 + $0x20] sm:$0xff]
      %v701 = vld [vmem:[%s16 + $0x28] sm:$0xff]
      %v702 = vld [vmem:[%s16 + $0x30] sm:$0xff]
      %v703 = vld [vmem:[%s16 + $0x38] sm:$0xff]
      %v704 = vld [vmem:[%s17] sm:$0x1]
      %v705 = vld [vmem:[%s18] sm:$0x1]
      %v706 = vld [vmem:[%s19] sm:$0x1]
      %vm707 = vcmask 261120
      %v708 = vsel %vm707, %v651, 0.0
      %709 = vadd.xlane.f32.xlu0 %v708
      %v710 = vpop.xlane.xlu0 %709
      %v711 = vsel %vm707, %v652, 0.0
      %712 = vadd.xlane.f32.xlu0 %v711
      %v713 = vpop.xlane.xlu0 %712
      %v714 = vrcp.pop 32.0
      %v715 = vmul.f32 %v710, %v714
      %v716 = vmul.f32 %v713, %v714
      %v717 = vsub.f32 %v651, %v715
      %v718 = vsub.f32 %v652, %v716
      %v719 = vmul.f32 %v717, %v717
      %v720 = vmul.f32 %v718, %v718
      %v721 = vsel %vm707, %v719, 0.0
      %722 = vadd.xlane.f32.xlu0 %v721
      %v723 = vpop.xlane.xlu0 %722
      %v724 = vsel %vm707, %v720, 0.0
      %725 = vadd.xlane.f32.xlu0 %v724
      %v726 = vpop.xlane.xlu0 %725
      %v727 = vmul.f32 %v723, %v714
      %v728 = vmul.f32 %v726, %v714
      %v729 = vadd.f32 %v727, 1e-05
      %v730 = vadd.f32 %v728, 1e-05
      %v731 = vrsqrt.pop %v729
      %v732 = vrsqrt.pop %v730
      %v733 = vmul.f32 %v717, %v731
      %v734 = vmul.f32 %v718, %v732
      %v736 = vlaneseq
      %v737 = vshrl.u32 %v736, 7
      %v738 = vsub.s32 0, %v737
      %v739 = vrot.slane %v655, %v738
      %v741 = vmul.f32 %v733, %v739
      %v742 = vmul.f32 %v734, %v739
      %v744 = vlaneseq
      %v745 = vshrl.u32 %v744, 7
      %v746 = vsub.s32 0, %v745
      %v747 = vrot.slane %v656, %v746
      %v749 = vadd.f32 %v741, %v747
      %v750 = vadd.f32 %v742, %v747
      %v751 = vpack.c.bf16 %v750, %v749
      %v752 = vpack.c.bf16 %v658, %v657
      %v753 = vpack.c.bf16 %v660, %v659
      %v755 = vlaneseq
      %v756 = vshrl.u32 %v755, 7
      %v757 = vsub.s32 0, %v756
      %v758 = vrot.slane %v661, %v757
      %v761 = vsel %vm707, %v751, 0
      %763 = vmatprep.subr.bf16.mxu0 0
      %764 = vmatpush1.bf16.msra.mxu0 %v752
      %765 = vmatprep.subr.bf16.mxu0 0
      %766 = vmatpush1.bf16.msra.mxu0 %v753
      %767 = vmatprep.subr.bf16.mxu0 0
      %768 = vmatpush1.bf16.msra.mxu0 0
      %769 = vmatprep.subr.bf16.mxu0 0
      %770 = vmatpush1.bf16.msra.mxu0 0
      %771 = vmatprep.subr.bf16.mxu0 0
      %772 = vmatpush1.bf16.msra.mxu0 0
      %773 = vmatprep.subr.bf16.mxu0 0
      %774 = vmatpush1.bf16.msra.mxu0 0
      %775 = vmatprep.subr.bf16.mxu0 0
      %776 = vmatpush1.bf16.msra.mxu0 0
      %777 = vmatprep.subr.bf16.mxu0 0
      %778 = vmatpush1.bf16.msra.mxu0 0
      %779 = vmatprep.subr.bf16.mxu0 0
      %780 = vmatpush1.bf16.msra.mxu0 0
      %781 = vmatprep.subr.bf16.mxu0 0
      %782 = vmatpush1.bf16.msra.mxu0 0
      %783 = vmatprep.subr.bf16.mxu0 0
      %784 = vmatpush1.bf16.msra.mxu0 0
      %785 = vmatprep.subr.bf16.mxu0 0
      %786 = vmatpush1.bf16.msra.mxu0 0
      %787 = vmatprep.subr.bf16.mxu0 0
      %788 = vmatpush1.bf16.msra.mxu0 0
      %789 = vmatprep.subr.bf16.mxu0 0
      %790 = vmatpush1.bf16.msra.mxu0 0
      %791 = vmatprep.subr.bf16.mxu0 0
      %792 = vmatpush1.bf16.msra.mxu0 0
      %793 = vmatprep.subr.bf16.mxu0 0
      %794 = vmatpush1.bf16.msra.mxu0 0
      %795 = vmatprep.mubr.bf16.mxu0 0
      %796 = vmatmul.mubr.bf16.gmra.mrb[0].mxu0 %v761
      %v797 = vpop.f32.mrb[0].mxu0
      %v798 = vadd.f32 %v758, %v797
      %v799 = vpop.f32.mrb[0].mxu0
      %v800 = vpop.f32.mrb[0].mxu0
      %v801 = vadd.f32 %v758, %v800
      %v802 = vpop.f32.mrb[0].mxu0
      %803 = vdwg.mxu0
      %v804 = vpack.c.bf16 %v654, %v653
      %v805 = vpack.c.bf16 %v663, %v662
      %v806 = vpack.c.bf16 %v665, %v664
      %v808 = vlaneseq
      %v809 = vshrl.u32 %v808, 7
      %v810 = vsub.s32 0, %v809
      %v811 = vrot.slane %v666, %v810
      %v814 = vsel %vm707, %v804, 0
      %816 = vmatprep.subr.bf16.mxu0 0
      %817 = vmatpush1.bf16.msra.mxu0 %v805
      %818 = vmatprep.subr.bf16.mxu0 0
      %819 = vmatpush1.bf16.msra.mxu0 %v806
      %820 = vmatprep.subr.bf16.mxu0 0
      %821 = vmatpush1.bf16.msra.mxu0 0
      %822 = vmatprep.subr.bf16.mxu0 0
      %823 = vmatpush1.bf16.msra.mxu0 0
      %824 = vmatprep.subr.bf16.mxu0 0
      %825 = vmatpush1.bf16.msra.mxu0 0
      %826 = vmatprep.subr.bf16.mxu0 0
      %827 = vmatpush1.bf16.msra.mxu0 0
      %828 = vmatprep.subr.bf16.mxu0 0
      %829 = vmatpush1.bf16.msra.mxu0 0
      %830 = vmatprep.subr.bf16.mxu0 0
      %831 = vmatpush1.bf16.msra.mxu0 0
      %832 = vmatprep.subr.bf16.mxu0 0
      %833 = vmatpush1.bf16.msra.mxu0 0
      %834 = vmatprep.subr.bf16.mxu0 0
      %835 = vmatpush1.bf16.msra.mxu0 0
      %836 = vmatprep.subr.bf16.mxu0 0
      %837 = vmatpush1.bf16.msra.mxu0 0
      %838 = vmatprep.subr.bf16.mxu0 0
      %839 = vmatpush1.bf16.msra.mxu0 0
      %840 = vmatprep.subr.bf16.mxu0 0
      %841 = vmatpush1.bf16.msra.mxu0 0
      %842 = vmatprep.subr.bf16.mxu0 0
      %843 = vmatpush1.bf16.msra.mxu0 0
      %844 = vmatprep.subr.bf16.mxu0 0
      %845 = vmatpush1.bf16.msra.mxu0 0
      %846 = vmatprep.subr.bf16.mxu0 0
      %847 = vmatpush1.bf16.msra.mxu0 0
      %848 = vmatprep.mubr.bf16.mxu0 0
      %849 = vmatmul.mubr.bf16.gmra.mrb[0].mxu0 %v814
      %v850 = vpop.f32.mrb[0].mxu0
      %v851 = vadd.f32 %v811, %v850
      %v852 = vpop.f32.mrb[0].mxu0
      %v853 = vpop.f32.mrb[0].mxu0
      %v854 = vadd.f32 %v811, %v853
      %v855 = vpop.f32.mrb[0].mxu0
      %856 = vdwg.mxu0
      %v857 = vpack.c.bf16 %v668, %v667
      %v858 = vpack.c.bf16 %v670, %v669
      %v860 = vlaneseq
      %v861 = vshrl.u32 %v860, 7
      %v862 = vsub.s32 0, %v861
      %v863 = vrot.slane %v671, %v862
      %865 = vmatprep.subr.bf16.mxu0 0
      %866 = vmatpush1.bf16.msra.mxu0 %v857
      %867 = vmatprep.subr.bf16.mxu0 0
      %868 = vmatpush1.bf16.msra.mxu0 %v858
      %869 = vmatprep.subr.bf16.mxu0 0
      %870 = vmatpush1.bf16.msra.mxu0 0
      %871 = vmatprep.subr.bf16.mxu0 0
      %872 = vmatpush1.bf16.msra.mxu0 0
      %873 = vmatprep.subr.bf16.mxu0 0
      %874 = vmatpush1.bf16.msra.mxu0 0
      %875 = vmatprep.subr.bf16.mxu0 0
      %876 = vmatpush1.bf16.msra.mxu0 0
      %877 = vmatprep.subr.bf16.mxu0 0
      %878 = vmatpush1.bf16.msra.mxu0 0
      %879 = vmatprep.subr.bf16.mxu0 0
      %880 = vmatpush1.bf16.msra.mxu0 0
      %881 = vmatprep.subr.bf16.mxu0 0
      %882 = vmatpush1.bf16.msra.mxu0 0
      %883 = vmatprep.subr.bf16.mxu0 0
      %884 = vmatpush1.bf16.msra.mxu0 0
      %885 = vmatprep.subr.bf16.mxu0 0
      %886 = vmatpush1.bf16.msra.mxu0 0
      %887 = vmatprep.subr.bf16.mxu0 0
      %888 = vmatpush1.bf16.msra.mxu0 0
      %889 = vmatprep.subr.bf16.mxu0 0
      %890 = vmatpush1.bf16.msra.mxu0 0
      %891 = vmatprep.subr.bf16.mxu0 0
      %892 = vmatpush1.bf16.msra.mxu0 0
      %893 = vmatprep.subr.bf16.mxu0 0
      %894 = vmatpush1.bf16.msra.mxu0 0
      %895 = vmatprep.subr.bf16.mxu0 0
      %896 = vmatpush1.bf16.msra.mxu0 0
      %897 = vmatprep.mubr.bf16.mxu0 0
      %898 = vmatmul.mubr.bf16.gmra.mrb[0].mxu0 %v814
      %v899 = vpop.f32.mrb[0].mxu0
      %v900 = vadd.f32 %v863, %v899
      %v901 = vpop.f32.mrb[0].mxu0
      %v902 = vpop.f32.mrb[0].mxu0
      %v903 = vadd.f32 %v863, %v902
      %v904 = vpop.f32.mrb[0].mxu0
      %905 = vdwg.mxu0
      %v906 = vpack.c.bf16 %v801, %v798
      %v907 = vpack.c.bf16 %v854, %v851
      %v908 = vpack.c.bf16 %v903, %v900
      %vm909 = vcmask 523264
      %v911 = vsel %vm909, %v906, 0
      %v914 = vsel %vm909, %v907, 0
      %916 = vmatprep.subr.bf16.mxu0 0
      %917 = vmatpush1.bf16.xpose.msra.mxu0 %v914
      %918 = vmatprep.subr.bf16.mxu0 0
      %919 = vmatpush1.bf16.xpose.msra.mxu0 0
      %920 = vmatprep.subr.bf16.mxu0 0
      %921 = vmatpush1.bf16.xpose.msra.mxu0 0
      %922 = vmatprep.subr.bf16.mxu0 0
      %923 = vmatpush1.bf16.xpose.msra.mxu0 0
      %924 = vmatprep.subr.bf16.mxu0 0
      %925 = vmatpush1.bf16.xpose.msra.mxu0 0
      %926 = vmatprep.subr.bf16.mxu0 0
      %927 = vmatpush1.bf16.xpose.msra.mxu0 0
      %928 = vmatprep.subr.bf16.mxu0 0
      %929 = vmatpush1.bf16.xpose.msra.mxu0 0
      %930 = vmatprep.subr.bf16.mxu0 0
      %931 = vmatpush1.bf16.xpose.msra.mxu0 0
      %932 = vmatprep.subr.bf16.mxu0 0
      %933 = vmatpush1.bf16.xpose.msra.mxu0 0
      %934 = vmatprep.subr.bf16.mxu0 0
      %935 = vmatpush1.bf16.xpose.msra.mxu0 0
      %936 = vmatprep.subr.bf16.mxu0 0
      %937 = vmatpush1.bf16.xpose.msra.mxu0 0
      %938 = vmatprep.subr.bf16.mxu0 0
      %939 = vmatpush1.bf16.xpose.msra.mxu0 0
      %940 = vmatprep.subr.bf16.mxu0 0
      %941 = vmatpush1.bf16.xpose.msra.mxu0 0
      %942 = vmatprep.subr.bf16.mxu0 0
      %943 = vmatpush1.bf16.xpose.msra.mxu0 0
      %944 = vmatprep.subr.bf16.mxu0 0
      %945 = vmatpush1.bf16.xpose.msra.mxu0 0
      %946 = vmatprep.subr.bf16.mxu0 0
      %947 = vmatpush1.bf16.xpose.msra.mxu0 0
      %948 = vmatprep.mubr.bf16.mxu0 0
      %949 = vmatmul.mubr.bf16.gmra.mrb[0].mxu0 %v911
      %v950 = vpop.f32.mrb[0].mxu0
      %v951 = vadd.f32 0.0, %v950
      %v952 = vpop.f32.mrb[0].mxu0
      %v953 = vpop.f32.mrb[0].mxu0
      %v954 = vadd.f32 0.0, %v953
      %v955 = vpop.f32.mrb[0].mxu0
      %956 = vdwg.mxu0
      %v957 = vmul.f32 %v951, 0.125
      %v958 = vmul.f32 %v954, 0.125
      %vm959 = vcmask 130048
      %v960 = vsel %vm959, %v957, -inf
      %961 = vmax.xlane.f32.xlu0 %v960
      %v962 = vpop.xlane.xlu0 %961
      %v963 = vsel %vm959, %v958, -inf
      %964 = vmax.xlane.f32.xlu0 %v963
      %v965 = vpop.xlane.xlu0 %964
      %v966 = vsub.f32 %v957, %v962
      %v967 = vsub.f32 %v958, %v965
      %v968 = vmul.f32 %v966, 1.442695
      %v969 = vpow.pop %v968
      %v970 = vmul.f32 %v967, 1.442695
      %v971 = vpow.pop %v970
      %v972 = vsel %vm959, %v969, 0.0
      %973 = vadd.xlane.f32.xlu0 %v972
      %v974 = vpop.xlane.xlu0 %973
      %v975 = vsel %vm959, %v971, 0.0
      %976 = vadd.xlane.f32.xlu0 %v975
      %v977 = vpop.xlane.xlu0 %976
      %v978 = vrcp.pop %v974
      %v979 = vrcp.pop %v977
      %v980 = vmul.f32 %v969, %v978
      %v981 = vmul.f32 %v971, %v979
      %v982 = vpack.c.bf16 %v981, %v980
      %v984 = vsel %vm959, %v982, 0
      %986 = vmatprep.subr.bf16.mxu0 0
      %987 = vmatpush1.bf16.msra.mxu0 %v908
      %988 = vmatprep.subr.bf16.mxu0 0
      %989 = vmatpush1.bf16.msra.mxu0 0
      %990 = vmatprep.subr.bf16.mxu0 0
      %991 = vmatpush1.bf16.msra.mxu0 0
      %992 = vmatprep.subr.bf16.mxu0 0
      %993 = vmatpush1.bf16.msra.mxu0 0
      %994 = vmatprep.subr.bf16.mxu0 0
      %995 = vmatpush1.bf16.msra.mxu0 0
      %996 = vmatprep.subr.bf16.mxu0 0
      %997 = vmatpush1.bf16.msra.mxu0 0
      %998 = vmatprep.subr.bf16.mxu0 0
      %999 = vmatpush1.bf16.msra.mxu0 0
      %1000 = vmatprep.subr.bf16.mxu0 0
      %1001 = vmatpush1.bf16.msra.mxu0 0
      %1002 = vmatprep.subr.bf16.mxu0 0
      %1003 = vmatpush1.bf16.msra.mxu0 0
      %1004 = vmatprep.subr.bf16.mxu0 0
      %1005 = vmatpush1.bf16.msra.mxu0 0
      %1006 = vmatprep.subr.bf16.mxu0 0
      %1007 = vmatpush1.bf16.msra.mxu0 0
      %1008 = vmatprep.subr.bf16.mxu0 0
      %1009 = vmatpush1.bf16.msra.mxu0 0
      %1010 = vmatprep.subr.bf16.mxu0 0
      %1011 = vmatpush1.bf16.msra.mxu0 0
      %1012 = vmatprep.subr.bf16.mxu0 0
      %1013 = vmatpush1.bf16.msra.mxu0 0
      %1014 = vmatprep.subr.bf16.mxu0 0
      %1015 = vmatpush1.bf16.msra.mxu0 0
      %1016 = vmatprep.subr.bf16.mxu0 0
      %1017 = vmatpush1.bf16.msra.mxu0 0
      %1018 = vmatprep.mubr.bf16.mxu0 0
      %1019 = vmatmul.mubr.bf16.gmra.mrb[0].mxu0 %v984
      %v1020 = vpop.f32.mrb[0].mxu0
      %v1021 = vadd.f32 0.0, %v1020
      %v1022 = vpop.f32.mrb[0].mxu0
      %v1023 = vpop.f32.mrb[0].mxu0
      %v1024 = vadd.f32 0.0, %v1023
      %v1025 = vpop.f32.mrb[0].mxu0
      %1026 = vdwg.mxu0
      %1028 = vrot.lane.b32.xlu0 %v906, 64
      %v1029 = vpop.permute.xlu0 %1028
      %1031 = vrot.lane.b32.xlu0 %v907, 64
      %v1032 = vpop.permute.xlu0 %1031
      %v1034 = vsel %vm909, %v1029, 0
      %v1037 = vsel %vm909, %v1032, 0
      %1039 = vmatprep.subr.bf16.mxu0 0
      %1040 = vmatpush1.bf16.xpose.msra.mxu0 %v1037
      %1041 = vmatprep.subr.bf16.mxu0 0
      %1042 = vmatpush1.bf16.xpose.msra.mxu0 0
      %1043 = vmatprep.subr.bf16.mxu0 0
      %1044 = vmatpush1.bf16.xpose.msra.mxu0 0
      %1045 = vmatprep.subr.bf16.mxu0 0
      %1046 = vmatpush1.bf16.xpose.msra.mxu0 0
      %1047 = vmatprep.subr.bf16.mxu0 0
      %1048 = vmatpush1.bf16.xpose.msra.mxu0 0
      %1049 = vmatprep.subr.bf16.mxu0 0
      %1050 = vmatpush1.bf16.xpose.msra.mxu0 0
      %1051 = vmatprep.subr.bf16.mxu0 0
      %1052 = vmatpush1.bf16.xpose.msra.mxu0 0
      %1053 = vmatprep.subr.bf16.mxu0 0
      %1054 = vmatpush1.bf16.xpose.msra.mxu0 0
      %1055 = vmatprep.subr.bf16.mxu0 0
      %1056 = vmatpush1.bf16.xpose.msra.mxu0 0
      %1057 = vmatprep.subr.bf16.mxu0 0
      %1058 = vmatpush1.bf16.xpose.msra.mxu0 0
      %1059 = vmatprep.subr.bf16.mxu0 0
      %1060 = vmatpush1.bf16.xpose.msra.mxu0 0
      %1061 = vmatprep.subr.bf16.mxu0 0
      %1062 = vmatpush1.bf16.xpose.msra.mxu0 0
      %1063 = vmatprep.subr.bf16.mxu0 0
      %1064 = vmatpush1.bf16.xpose.msra.mxu0 0
      %1065 = vmatprep.subr.bf16.mxu0 0
      %1066 = vmatpush1.bf16.xpose.msra.mxu0 0
      %1067 = vmatprep.subr.bf16.mxu0 0
      %1068 = vmatpush1.bf16.xpose.msra.mxu0 0
      %1069 = vmatprep.subr.bf16.mxu0 0
      %1070 = vmatpush1.bf16.xpose.msra.mxu0 0
      %1071 = vmatprep.mubr.bf16.mxu0 0
      %1072 = vmatmul.mubr.bf16.gmra.mrb[0].mxu0 %v1034
      %v1073 = vpop.f32.mrb[0].mxu0
      %v1074 = vadd.f32 0.0, %v1073
      %v1075 = vpop.f32.mrb[0].mxu0
      %v1076 = vpop.f32.mrb[0].mxu0
      %v1077 = vadd.f32 0.0, %v1076
      %v1078 = vpop.f32.mrb[0].mxu0
      %1079 = vdwg.mxu0
      %v1080 = vmul.f32 %v1074, 0.125
      %v1081 = vmul.f32 %v1077, 0.125
      %v1082 = vsel %vm959, %v1080, -inf
      %1083 = vmax.xlane.f32.xlu0 %v1082
      %v1084 = vpop.xlane.xlu0 %1083
      %v1085 = vsel %vm959, %v1081, -inf
      %1086 = vmax.xlane.f32.xlu0 %v1085
      %v1087 = vpop.xlane.xlu0 %1086
      %v1088 = vsub.f32 %v1080, %v1084
      %v1089 = vsub.f32 %v1081, %v1087
      %v1090 = vmul.f32 %v1088, 1.442695
      %v1091 = vpow.pop %v1090
      %v1092 = vmul.f32 %v1089, 1.442695
      %v1093 = vpow.pop %v1092
      %v1094 = vsel %vm959, %v1091, 0.0
      %1095 = vadd.xlane.f32.xlu0 %v1094
      %v1096 = vpop.xlane.xlu0 %1095
      %v1097 = vsel %vm959, %v1093, 0.0
      %1098 = vadd.xlane.f32.xlu0 %v1097
      %v1099 = vpop.xlane.xlu0 %1098
      %v1100 = vrcp.pop %v1096
      %v1101 = vrcp.pop %v1099
      %v1102 = vmul.f32 %v1091, %v1100
      %v1103 = vmul.f32 %v1093, %v1101
      %v1104 = vpack.c.bf16 %v1103, %v1102
      %1106 = vrot.lane.b32.xlu0 %v908, 64
      %v1107 = vpop.permute.xlu0 %1106
      %v1110 = vsel %vm959, %v1104, 0
      %1112 = vmatprep.subr.bf16.mxu0 0
      %1113 = vmatpush1.bf16.msra.mxu0 %v1107
      %1114 = vmatprep.subr.bf16.mxu0 0
      %1115 = vmatpush1.bf16.msra.mxu0 0
      %1116 = vmatprep.subr.bf16.mxu0 0
      %1117 = vmatpush1.bf16.msra.mxu0 0
      %1118 = vmatprep.subr.bf16.mxu0 0
      %1119 = vmatpush1.bf16.msra.mxu0 0
      %1120 = vmatprep.subr.bf16.mxu0 0
      %1121 = vmatpush1.bf16.msra.mxu0 0
      %1122 = vmatprep.subr.bf16.mxu0 0
      %1123 = vmatpush1.bf16.msra.mxu0 0
      %1124 = vmatprep.subr.bf16.mxu0 0
      %1125 = vmatpush1.bf16.msra.mxu0 0
      %1126 = vmatprep.subr.bf16.mxu0 0
      %1127 = vmatpush1.bf16.msra.mxu0 0
      %1128 = vmatprep.subr.bf16.mxu0 0
      %1129 = vmatpush1.bf16.msra.mxu0 0
      %1130 = vmatprep.subr.bf16.mxu0 0
      %1131 = vmatpush1.bf16.msra.mxu0 0
      %1132 = vmatprep.subr.bf16.mxu0 0
      %1133 = vmatpush1.bf16.msra.mxu0 0
      %1134 = vmatprep.subr.bf16.mxu0 0
      %1135 = vmatpush1.bf16.msra.mxu0 0
      %1136 = vmatprep.subr.bf16.mxu0 0
      %1137 = vmatpush1.bf16.msra.mxu0 0
      %1138 = vmatprep.subr.bf16.mxu0 0
      %1139 = vmatpush1.bf16.msra.mxu0 0
      %1140 = vmatprep.subr.bf16.mxu0 0
      %1141 = vmatpush1.bf16.msra.mxu0 0
      %1142 = vmatprep.subr.bf16.mxu0 0
      %1143 = vmatpush1.bf16.msra.mxu0 0
      %1144 = vmatprep.mubr.bf16.mxu0 0
      %1145 = vmatmul.mubr.bf16.gmra.mrb[0].mxu0 %v1110
      %v1146 = vpop.f32.mrb[0].mxu0
      %v1147 = vadd.f32 0.0, %v1146
      %v1148 = vpop.f32.mrb[0].mxu0
      %v1149 = vpop.f32.mrb[0].mxu0
      %v1150 = vadd.f32 0.0, %v1149
      %v1151 = vpop.f32.mrb[0].mxu0
      %1152 = vdwg.mxu0
      %1155 = vrot.lane.b32.xlu0 %v1147, 64
      %v1156 = vpop.permute.xlu0 %1155
      %1157 = vrot.lane.b32.xlu0 %v1150, 64
      %v1158 = vpop.permute.xlu0 %1157
      %v1161 = vsel %vm909, %v1021, %v1156
      %v1162 = vsel %vm909, %v1024, %v1158
      %v1163 = vpack.c.bf16 %v1162, %v1161
      %v1164 = vpack.c.bf16 %v673, %v672
      %v1165 = vpack.c.bf16 %v675, %v674
      %v1166 = vpack.c.bf16 %v677, %v676
      %v1167 = vpack.c.bf16 %v679, %v678
      %v1168 = vpack.c.bf16 %v681, %v680
      %v1169 = vpack.c.bf16 %v683, %v682
      %v1170 = vpack.c.bf16 %v685, %v684
      %v1171 = vpack.c.bf16 %v687, %v686
      %v1173 = vlaneseq
      %v1174 = vshrl.u32 %v1173, 7
      %v1175 = vsub.s32 0, %v1174
      %v1176 = vrot.slane %v688, %v1175
      %1178 = vmatprep.subr.bf16.mxu0 0
      %1179 = vmatpush1.bf16.msra.mxu0 %v1164
      %1180 = vmatprep.subr.bf16.mxu0 0
      %1181 = vmatpush1.bf16.msra.mxu0 %v1165
      %1182 = vmatprep.subr.bf16.mxu0 0
      %1183 = vmatpush1.bf16.msra.mxu0 %v1166
      %1184 = vmatprep.subr.bf16.mxu0 0
      %1185 = vmatpush1.bf16.msra.mxu0 %v1167
      %1186 = vmatprep.subr.bf16.mxu0 0
      %1187 = vmatpush1.bf16.msra.mxu0 %v1168
      %1188 = vmatprep.subr.bf16.mxu0 0
      %1189 = vmatpush1.bf16.msra.mxu0 %v1169
      %1190 = vmatprep.subr.bf16.mxu0 0
      %1191 = vmatpush1.bf16.msra.mxu0 %v1170
      %1192 = vmatprep.subr.bf16.mxu0 0
      %1193 = vmatpush1.bf16.msra.mxu0 %v1171
      %1194 = vmatprep.subr.bf16.mxu0 0
      %1195 = vmatpush1.bf16.msra.mxu0 0
      %1196 = vmatprep.subr.bf16.mxu0 0
      %1197 = vmatpush1.bf16.msra.mxu0 0
      %1198 = vmatprep.subr.bf16.mxu0 0
      %1199 = vmatpush1.bf16.msra.mxu0 0
      %1200 = vmatprep.subr.bf16.mxu0 0
      %1201 = vmatpush1.bf16.msra.mxu0 0
      %1202 = vmatprep.subr.bf16.mxu0 0
      %1203 = vmatpush1.bf16.msra.mxu0 0
      %1204 = vmatprep.subr.bf16.mxu0 0
      %1205 = vmatpush1.bf16.msra.mxu0 0
      %1206 = vmatprep.subr.bf16.mxu0 0
      %1207 = vmatpush1.bf16.msra.mxu0 0
      %1208 = vmatprep.subr.bf16.mxu0 0
      %1209 = vmatpush1.bf16.msra.mxu0 0
      %1210 = vmatprep.mubr.bf16.mxu0 0
      %1211 = vmatmul.mubr.bf16.gmra.mrb[0].mxu0 %v1163
      %v1212 = vpop.f32.mrb[0].mxu0
      %v1213 = vadd.f32 %v1176, %v1212
      %v1214 = vpop.f32.mrb[0].mxu0
      %v1215 = vpop.f32.mrb[0].mxu0
      %v1216 = vadd.f32 %v1176, %v1215
      %v1217 = vpop.f32.mrb[0].mxu0
      %1218 = vdwg.mxu0
      %v1219 = vadd.f32 %v651, %v1213
      %v1220 = vadd.f32 %v652, %v1216
      %v1221 = vsel %vm707, %v1219, 0.0
      %1222 = vadd.xlane.f32.xlu0 %v1221
      %v1223 = vpop.xlane.xlu0 %1222
      %v1224 = vsel %vm707, %v1220, 0.0
      %1225 = vadd.xlane.f32.xlu0 %v1224
      %v1226 = vpop.xlane.xlu0 %1225
      %v1227 = vmul.f32 %v1223, %v714
      %v1228 = vmul.f32 %v1226, %v714
      %v1229 = vsub.f32 %v1219, %v1227
      %v1230 = vsub.f32 %v1220, %v1228
      %v1231 = vmul.f32 %v1229, %v1229
      %v1232 = vmul.f32 %v1230, %v1230
      %v1233 = vsel %vm707, %v1231, 0.0
      %1234 = vadd.xlane.f32.xlu0 %v1233
      %v1235 = vpop.xlane.xlu0 %1234
      %v1236 = vsel %vm707, %v1232, 0.0
      %1237 = vadd.xlane.f32.xlu0 %v1236
      %v1238 = vpop.xlane.xlu0 %1237
      %v1239 = vmul.f32 %v1235, %v714
      %v1240 = vmul.f32 %v1238, %v714
      %v1241 = vadd.f32 %v1239, 1e-05
      %v1242 = vadd.f32 %v1240, 1e-05
      %v1243 = vrsqrt.pop %v1241
      %v1244 = vrsqrt.pop %v1242
      %v1245 = vmul.f32 %v1229, %v1243
      %v1246 = vmul.f32 %v1230, %v1244
      %v1248 = vlaneseq
      %v1249 = vshrl.u32 %v1248, 7
      %v1250 = vsub.s32 0, %v1249
      %v1251 = vrot.slane %v689, %v1250
      %v1253 = vmul.f32 %v1245, %v1251
      %v1254 = vmul.f32 %v1246, %v1251
      %v1256 = vlaneseq
      %v1257 = vshrl.u32 %v1256, 7
      %v1258 = vsub.s32 0, %v1257
      %v1259 = vrot.slane %v690, %v1258
      %v1261 = vadd.f32 %v1253, %v1259
      %v1262 = vadd.f32 %v1254, %v1259
      %v1263 = vpack.c.bf16 %v1262, %v1261
      %v1264 = vpack.c.bf16 %v692, %v691
      %v1265 = vpack.c.bf16 %v694, %v693
      %v1267 = vlaneseq
      %v1268 = vshrl.u32 %v1267, 7
      %v1269 = vsub.s32 0, %v1268
      %v1270 = vrot.slane %v695, %v1269
      %v1273 = vsel %vm707, %v1263, 0
      %1275 = vmatprep.subr.bf16.mxu0 0
      %1276 = vmatpush1.bf16.msra.mxu0 %v1264
      %1277 = vmatprep.subr.bf16.mxu0 0
      %1278 = vmatpush1.bf16.msra.mxu0 %v1265
      %1279 = vmatprep.subr.bf16.mxu0 0
      %1280 = vmatpush1.bf16.msra.mxu0 0
      %1281 = vmatprep.subr.bf16.mxu0 0
      %1282 = vmatpush1.bf16.msra.mxu0 0
      %1283 = vmatprep.subr.bf16.mxu0 0
      %1284 = vmatpush1.bf16.msra.mxu0 0
      %1285 = vmatprep.subr.bf16.mxu0 0
      %1286 = vmatpush1.bf16.msra.mxu0 0
      %1287 = vmatprep.subr.bf16.mxu0 0
      %1288 = vmatpush1.bf16.msra.mxu0 0
      %1289 = vmatprep.subr.bf16.mxu0 0
      %1290 = vmatpush1.bf16.msra.mxu0 0
      %1291 = vmatprep.subr.bf16.mxu0 0
      %1292 = vmatpush1.bf16.msra.mxu0 0
      %1293 = vmatprep.subr.bf16.mxu0 0
      %1294 = vmatpush1.bf16.msra.mxu0 0
      %1295 = vmatprep.subr.bf16.mxu0 0
      %1296 = vmatpush1.bf16.msra.mxu0 0
      %1297 = vmatprep.subr.bf16.mxu0 0
      %1298 = vmatpush1.bf16.msra.mxu0 0
      %1299 = vmatprep.subr.bf16.mxu0 0
      %1300 = vmatpush1.bf16.msra.mxu0 0
      %1301 = vmatprep.subr.bf16.mxu0 0
      %1302 = vmatpush1.bf16.msra.mxu0 0
      %1303 = vmatprep.subr.bf16.mxu0 0
      %1304 = vmatpush1.bf16.msra.mxu0 0
      %1305 = vmatprep.subr.bf16.mxu0 0
      %1306 = vmatpush1.bf16.msra.mxu0 0
      %1307 = vmatprep.mubr.bf16.mxu0 0
      %1308 = vmatmul.mubr.bf16.gmra.mrb[0].mxu0 %v1273
      %v1309 = vpop.f32.mrb[0].mxu0
      %v1310 = vadd.f32 %v1270, %v1309
      %v1311 = vpop.f32.mrb[0].mxu0
      %v1312 = vpop.f32.mrb[0].mxu0
      %v1313 = vadd.f32 %v1270, %v1312
      %v1314 = vpop.f32.mrb[0].mxu0
      %1315 = vdwg.mxu0
      %v1316 = vmul.f32 %v1310, %v1310
      %v1317 = vmul.f32 %v1313, %v1313
      %v1318 = vmul.f32 %v1310, %v1316
      %v1319 = vmul.f32 %v1313, %v1317
      %v1320 = vmul.f32 %v1318, 0.044715
      %v1321 = vmul.f32 %v1319, 0.044715
      %v1322 = vadd.f32 %v1310, %v1320
      %v1323 = vadd.f32 %v1313, %v1321
      %v1324 = vmul.f32 %v1322, 0.7978846
      %v1325 = vmul.f32 %v1323, 0.7978846
      %v1326 = vtanh.pop %v1324
      %v1327 = vtanh.pop %v1325
      %v1328 = vadd.f32 %v1326, 1.0
      %v1329 = vadd.f32 %v1327, 1.0
      %v1330 = vmul.f32 %v1328, 0.5
      %v1331 = vmul.f32 %v1329, 0.5
      %v1332 = vmul.f32 %v1310, %v1330
      %v1333 = vmul.f32 %v1313, %v1331
      %v1334 = vpack.c.bf16 %v1333, %v1332
      %v1335 = vpack.c.bf16 %v697, %v696
      %v1336 = vpack.c.bf16 %v699, %v698
      %v1337 = vpack.c.bf16 %v701, %v700
      %v1338 = vpack.c.bf16 %v703, %v702
      %v1340 = vlaneseq
      %v1341 = vshrl.u32 %v1340, 7
      %v1342 = vsub.s32 0, %v1341
      %v1343 = vrot.slane %v704, %v1342
      %v1346 = vsel %vm909, %v1334, 0
      %1348 = vmatprep.subr.bf16.mxu0 0
      %1349 = vmatpush1.bf16.msra.mxu0 %v1335
      %1350 = vmatprep.subr.bf16.mxu0 0
      %1351 = vmatpush1.bf16.msra.mxu0 %v1336
      %1352 = vmatprep.subr.bf16.mxu0 0
      %1353 = vmatpush1.bf16.msra.mxu0 %v1337
      %1354 = vmatprep.subr.bf16.mxu0 0
      %1355 = vmatpush1.bf16.msra.mxu0 %v1338
      %1356 = vmatprep.subr.bf16.mxu0 0
      %1357 = vmatpush1.bf16.msra.mxu0 0
      %1358 = vmatprep.subr.bf16.mxu0 0
      %1359 = vmatpush1.bf16.msra.mxu0 0
      %1360 = vmatprep.subr.bf16.mxu0 0
      %1361 = vmatpush1.bf16.msra.mxu0 0
      %1362 = vmatprep.subr.bf16.mxu0 0
      %1363 = vmatpush1.bf16.msra.mxu0 0
      %1364 = vmatprep.subr.bf16.mxu0 0
      %1365 = vmatpush1.bf16.msra.mxu0 0
      %1366 = vmatprep.subr.bf16.mxu0 0
      %1367 = vmatpush1.bf16.msra.mxu0 0
      %1368 = vmatprep.subr.bf16.mxu0 0
      %1369 = vmatpush1.bf16.msra.mxu0 0
      %1370 = vmatprep.subr.bf16.mxu0 0
      %1371 = vmatpush1.bf16.msra.mxu0 0
      %1372 = vmatprep.subr.bf16.mxu0 0
      %1373 = vmatpush1.bf16.msra.mxu0 0
      %1374 = vmatprep.subr.bf16.mxu0 0
      %1375 = vmatpush1.bf16.msra.mxu0 0
      %1376 = vmatprep.subr.bf16.mxu0 0
      %1377 = vmatpush1.bf16.msra.mxu0 0
      %1378 = vmatprep.subr.bf16.mxu0 0
      %1379 = vmatpush1.bf16.msra.mxu0 0
      %1380 = vmatprep.mubr.bf16.mxu0 0
      %1381 = vmatmul.mubr.bf16.gmra.mrb[0].mxu0 %v1346
      %v1382 = vpop.f32.mrb[0].mxu0
      %v1383 = vadd.f32 %v1343, %v1382
      %v1384 = vpop.f32.mrb[0].mxu0
      %v1385 = vpop.f32.mrb[0].mxu0
      %v1386 = vadd.f32 %v1343, %v1385
      %v1387 = vpop.f32.mrb[0].mxu0
      %1388 = vdwg.mxu0
      %v1389 = vadd.f32 %v1219, %v1383
      %v1390 = vadd.f32 %v1220, %v1386
      %v1391 = vsel %vm707, %v1389, 0.0
      %1392 = vadd.xlane.f32.xlu0 %v1391
      %v1393 = vpop.xlane.xlu0 %1392
      %v1394 = vsel %vm707, %v1390, 0.0
      %1395 = vadd.xlane.f32.xlu0 %v1394
      %v1396 = vpop.xlane.xlu0 %1395
      %v1397 = vmul.f32 %v1393, %v714
      %v1398 = vmul.f32 %v1396, %v714
      %v1399 = vsub.f32 %v1389, %v1397
      %v1400 = vsub.f32 %v1390, %v1398
      %v1401 = vmul.f32 %v1399, %v1399
      %v1402 = vmul.f32 %v1400, %v1400
      %v1403 = vsel %vm707, %v1401, 0.0
      %1404 = vadd.xlane.f32.xlu0 %v1403
      %v1405 = vpop.xlane.xlu0 %1404
      %v1406 = vsel %vm707, %v1402, 0.0
      %1407 = vadd.xlane.f32.xlu0 %v1406
      %v1408 = vpop.xlane.xlu0 %1407
      %v1409 = vmul.f32 %v1405, %v714
      %v1410 = vmul.f32 %v1408, %v714
      %v1411 = vadd.f32 %v1409, 1e-05
      %v1412 = vadd.f32 %v1410, 1e-05
      %v1413 = vrsqrt.pop %v1411
      %v1414 = vrsqrt.pop %v1412
      %v1415 = vmul.f32 %v1399, %v1413
      %v1416 = vmul.f32 %v1400, %v1414
      %v1418 = vlaneseq
      %v1419 = vshrl.u32 %v1418, 7
      %v1420 = vsub.s32 0, %v1419
      %v1421 = vrot.slane %v705, %v1420
      %v1423 = vmul.f32 %v1415, %v1421
      %v1424 = vmul.f32 %v1416, %v1421
      %v1426 = vlaneseq
      %v1427 = vshrl.u32 %v1426, 7
      %v1428 = vsub.s32 0, %v1427
      %v1429 = vrot.slane %v706, %v1428
      %v1431 = vadd.f32 %v1423, %v1429
      %v1432 = vadd.f32 %v1424, %v1429
      %1433 = vst.msk [vmem:[%s649] sm:$0xff] %vm707, %v1431
      %1434 = vst.msk [vmem:[%s649 + $0x8] sm:$0xff] %vm707, %v1432
      %p1435 = scmp.lt.s32.totalorder %s31, 1
      %s1436 = scalar_select %p1435, %s31, 1
      %s1437 = smul.addr %s1436, 2
      %s1438 = smul.addr %s1437, 8
      %s1439 = scalar_lea.vmem %s20, %s1438
      // Predicated region
      $region101: #{_lambda_.18} parent=99 // pred_check
        %p1440 = pneg %p479
      $region102: #{_lambda_.18} parent=99 // pred_check_branch
        %1442 = sbr.rel (%p1440) target = $region104
      $region103: #{_lambda_.18} parent=99 // pred_region
        _
      $region104: #{_lambda_.18} parent=99 // pred_fallthru
        _
    $region100: #{_lambda_.18} parent=5 // pred_fallthru
      _
    %p1443 = scmp.le.s32.totalorder 2, %s26
    // Predicated region
    $region105: #{_lambda_.18} parent=5 // pred_check
      %p1444 = pneg %p1443
    $region106: #{_lambda_.18} parent=5 // pred_check_branch
      %1446 = sbr.rel (%p1444) target = $region108
    $region107: #{_lambda_.18} parent=5 // pred_region
      %s1447 = ssub.s32 %s26, 2
      // Predicated region
      $region109: #{_lambda_.18} parent=107 // pred_check
        %p1448 = pneg %p485
      $region110: #{_lambda_.18} parent=107 // pred_check_branch
        %1450 = sbr.rel (%p1448) target = $region112
      $region111: #{_lambda_.18} parent=107 // pred_region
        %p1451 = scmp.lt.s32.totalorder %s32, 1
        %s1452 = scalar_select %p1451, %s32, 1
        %s1453 = smul.addr %s1452, 2
        %s1454 = smul.addr %s1453, 8
        %s1455 = scalar_lea.vmem %s20, %s1454
      $region112: #{_lambda_.18} parent=107 // pred_fallthru
        _
    $region108: #{_lambda_.18} parent=5 // pred_fallthru
      _
  $region6: #{_lambda_.18} parent=0 // loop_footer
    %s30 = sadd.s32 1, %s26
  $region7: #{_lambda_.18} parent=0 // loop_footer_branch
    %25 = sbr.rel target = $region3
  $region8: #{_lambda_.18} parent=0 // loop_exit
    _

</llo_original>
